<compile_context>
chip_gen: v7x
topology: tpu7x:2x2x1
jax: 0.10.0
libtpu: 0.0.40
codegen_flags: <defaults>
</compile_context>

<pallas_src>
import functools

import jax
import jax.numpy as jnp
from jax.experimental import pallas as pl
from jax.experimental.pallas import tpu as pltpu

# Module hyper-params (gate=True, size_arg='small', head_size='small', n_heads=2)
EMBED_DIM = 1024
N_HEADS = 2
SIZE1 = 512                 # size_dict['small'][1]
STEP = SIZE1 // N_HEADS     # 256
DIM = STEP // 2             # 128  (head_size == 'small')

TILE_N = 512                # instance-tile; fits comfortably in v5e/v6e/v7x scoped VMEM
NEG_INF = float('-inf')


def _mad_mil_kernel(h_ref, w1_ref, b1_ref, wa_ref, ba_ref, wb_ref, bb_ref,
                    wc_ref, bc_ref, wr_ref, br_ref,
                    scores_ref, m_ref, logr_ref, risk_ref,
                    acc_scr, m_scr, l_scr, *, n_valid):
    i = pl.program_id(0)
    tile_n = h_ref.shape[0]

    @pl.when(i == 0)
    def _init():
        m_scr[...] = jnp.full(m_scr.shape, NEG_INF, jnp.float32)
        l_scr[...] = jnp.zeros(l_scr.shape, jnp.float32)
        acc_scr[...] = jnp.zeros(acc_scr.shape, jnp.float32)

    # net_general: Linear(E, 512) + ReLU  (Dropout is identity at inference)
    # bf16 operands on the MXU, f32 accumulation.
    x = jnp.dot(h_ref[...], w1_ref[...], preferred_element_type=jnp.float32)
    x = jnp.maximum(x + b1_ref[...], 0.0)                          # (tile_n, SIZE1) f32

    # valid-row mask for this tile (global instance index < n_valid)
    row = jax.lax.broadcasted_iota(jnp.int32, (tile_n, 1), 0) + i * tile_n
    valid = row < n_valid

    score_cols = []
    for hd in range(N_HEADS):                                      # unrolled, static
        x_h = x[:, hd * STEP:(hd + 1) * STEP]                      # (tile_n, STEP) f32
        x_hb = x_h.astype(jnp.bfloat16)

        # Attn_Net_Gated (bf16 MXU matmuls, f32 accum / activations)
        a = jnp.tanh(jnp.dot(x_hb, wa_ref[hd],
                             preferred_element_type=jnp.float32) + ba_ref[hd])
        b = jax.nn.sigmoid(jnp.dot(x_hb, wb_ref[hd],
                                   preferred_element_type=jnp.float32) + bb_ref[hd])

        # width-1 Linear as VPU multiply + lane reduce (keeps the MXU free for W1/Wa/Wb)
        s = jnp.sum((a * b) * wc_ref[hd], axis=-1, keepdims=True) + bc_ref[hd]  # (tile_n,1)
        s = jnp.where(valid, s, NEG_INF)
        score_cols.append(s)

        # ---- online softmax over the instance axis ----
        m_old = m_scr[hd]                                          # (1,1)
        m_new = jnp.maximum(m_old, jnp.max(s, axis=0, keepdims=True))
        corr = jnp.exp(m_old - m_new)                              # (1,1)
        p = jnp.exp(s - m_new)                                     # (tile_n,1); padded rows -> 0
        l_scr[hd] = corr * l_scr[hd] + jnp.sum(p, axis=0, keepdims=True)
        # pooled feature as broadcast-mul + sublane reduce (no 1-row MXU matmul)
        acc_scr[hd] = corr * acc_scr[hd] + jnp.sum(p * x_h, axis=0, keepdims=True)
        m_scr[hd] = m_new

    # raw (pre-softmax) scores, streamed out per tile; normalized in the JAX epilogue
    scores_ref[...] = jnp.concatenate(score_cols, axis=1)          # (tile_n, N_HEADS)

    @pl.when(i == pl.num_programs(0) - 1)
    def _finalize():
        m_parts = []
        for hd in range(N_HEADS):
            m_hd = acc_scr[hd] / l_scr[hd]                         # (1, STEP)
            m_parts.append(m_hd)
            m_ref[:, hd * STEP:(hd + 1) * STEP] = m_hd
        m_full = jnp.concatenate(m_parts, axis=1)                  # (1, SIZE1)
        # fused regressor: (1,512)·(1,512) broadcast-mul + lane reduce, then exp
        lr = jnp.sum(m_full * wr_ref[...], axis=-1, keepdims=True) + br_ref[...]
        logr_ref[...] = lr
        risk_ref[...] = jnp.exp(lr)


def mad_mil_reg(h, params, return_features=False, tile_n=TILE_N):
    N = h.shape[0]
    num_tiles = (N + tile_n - 1) // tile_n
    n_pad = num_tiles * tile_n

    # Pad the bag to a tile multiple (padded rows are masked inside the kernel) and
    # cast the big matmul operands to bf16 (halves h HBM traffic, bf16-native MXU).
    h_p = jnp.pad(h, ((0, n_pad - N), (0, 0))).astype(jnp.bfloat16)
    w1 = params['w1'].astype(jnp.bfloat16)
    wa = params['wa'].astype(jnp.bfloat16)
    wb = params['wb'].astype(jnp.bfloat16)
    b1 = params['b1'].reshape(1, SIZE1).astype(jnp.float32)
    ba = params['ba'].reshape(N_HEADS, 1, DIM).astype(jnp.float32)
    bb = params['bb'].reshape(N_HEADS, 1, DIM).astype(jnp.float32)
    wc = jnp.transpose(params['wc'], (0, 2, 1)).astype(jnp.float32)   # (H, 1, DIM)
    bc = params['bc'].reshape(N_HEADS, 1, 1).astype(jnp.float32)
    wr = params['wr'].reshape(1, SIZE1).astype(jnp.float32)
    br = params['br'].reshape(1, 1).astype(jnp.float32)

    kernel = functools.partial(_mad_mil_kernel, n_valid=N)

    grid_spec = pltpu.PrefetchScalarGridSpec(
        num_scalar_prefetch=0,
        grid=(num_tiles,),
        in_specs=[
            pl.BlockSpec((tile_n, EMBED_DIM), lambda i: (i, 0)),       # h (streamed)
            pl.BlockSpec((EMBED_DIM, SIZE1), lambda i: (0, 0)),        # W1 (resident)
            pl.BlockSpec((1, SIZE1), lambda i: (0, 0)),                # b1
            pl.BlockSpec((N_HEADS, STEP, DIM), lambda i: (0, 0, 0)),   # Wa
            pl.BlockSpec((N_HEADS, 1, DIM), lambda i: (0, 0, 0)),      # ba
            pl.BlockSpec((N_HEADS, STEP, DIM), lambda i: (0, 0, 0)),   # Wb
            pl.BlockSpec((N_HEADS, 1, DIM), lambda i: (0, 0, 0)),      # bb
            pl.BlockSpec((N_HEADS, 1, DIM), lambda i: (0, 0, 0)),      # Wc (row form)
            pl.BlockSpec((N_HEADS, 1, 1), lambda i: (0, 0, 0)),        # bc
            pl.BlockSpec((1, SIZE1), lambda i: (0, 0)),                # Wr (row form)
            pl.BlockSpec((1, 1), lambda i: (0, 0)),                    # br
        ],
        out_specs=[
            pl.BlockSpec((tile_n, N_HEADS), lambda i: (i, 0)),         # raw attention scores
            pl.BlockSpec((1, SIZE1), lambda i: (0, 0)),                # pooled features M
            pl.BlockSpec((1, 1), lambda i: (0, 0)),                    # log_risks
            pl.BlockSpec((1, 1), lambda i: (0, 0)),                    # risks
        ],
        scratch_shapes=[
            pltpu.VMEM((N_HEADS, 1, STEP), jnp.float32),               # rescaled M accumulator
            pltpu.VMEM((N_HEADS, 1, 1), jnp.float32),                  # running max
            pltpu.VMEM((N_HEADS, 1, 1), jnp.float32),                  # running sum
        ],
    )

    flops = (2 * n_pad * EMBED_DIM * SIZE1
             + N_HEADS * 2 * (2 * n_pad * STEP * DIM)
             + 8 * n_pad * SIZE1
             + 2 * SIZE1)
    bytes_accessed = (n_pad * EMBED_DIM * 2
                      + (EMBED_DIM * SIZE1 + 2 * N_HEADS * STEP * DIM) * 2
                      + n_pad * N_HEADS * 4 + (2 * SIZE1 + 4) * 4)
    transcendentals = n_pad * N_HEADS * (2 * DIM + 2) + 1

    scores, M, log_risks, risks = pl.pallas_call(
        kernel,
        out_shape=(jax.ShapeDtypeStruct((n_pad, N_HEADS), jnp.float32),
                   jax.ShapeDtypeStruct((1, SIZE1), jnp.float32),
                   jax.ShapeDtypeStruct((1, 1), jnp.float32),
                   jax.ShapeDtypeStruct((1, 1), jnp.float32)),
        grid_spec=grid_spec,
        compiler_params=pltpu.CompilerParams(
            dimension_semantics=("arbitrary",),          # online-softmax carries state across tiles
            vmem_limit_bytes=32 * 1024 * 1024),
        cost_estimate=pl.CostEstimate(flops=flops,
                                      transcendentals=transcendentals,
                                      bytes_accessed=bytes_accessed),
    )(h_p, w1, b1, wa, ba, wb, bb, wc, bc, wr, br)

    # Tiny JAX epilogue: normalize A over the valid instances (earlier tiles' raw scores
    # are already in HBM before the global max/sum are known, so this can't be fused).
    A = jax.nn.softmax(scores[:N].T, axis=-1)[None]                    # (1, H, N)
    results_dict = {}
    if return_features:
        results_dict['features'] = M
    return log_risks, risks, results_dict, A


def init_params(key):
    ks = jax.random.split(key, 10)

    def lin(k, fan_in, shape):
        bound = 1.0 / jnp.sqrt(jnp.float32(fan_in))
        return jax.random.uniform(k, shape, jnp.float32, -bound, bound)

    return dict(
        w1=lin(ks[0], EMBED_DIM, (EMBED_DIM, SIZE1)),
        b1=lin(ks[1], EMBED_DIM, (1, SIZE1)),
        wa=lin(ks[2], STEP, (N_HEADS, STEP, DIM)),
        ba=lin(ks[3], STEP, (N_HEADS, DIM)),
        wb=lin(ks[4], STEP, (N_HEADS, STEP, DIM)),
        bb=lin(ks[5], STEP, (N_HEADS, DIM)),
        wc=lin(ks[6], DIM, (N_HEADS, DIM, 1)),
        bc=lin(ks[7], DIM, (N_HEADS, 1)),
        wr=lin(ks[8], SIZE1, (SIZE1, 1)),
        br=lin(ks[9], SIZE1, (1, 1)),
    )


def reference(h, p):
    """Pure-JAX reference mirroring the PyTorch forward (eval mode), with the same
    bf16 matmul inputs / f32 accumulation as the kernel."""
    x = jnp.maximum(
        jnp.dot(h.astype(jnp.bfloat16), p['w1'].astype(jnp.bfloat16),
                preferred_element_type=jnp.float32) + p['b1'], 0.0)
    raw = []
    for hd in range(N_HEADS):
        xh = x[:, hd * STEP:(hd + 1) * STEP]
        xhb = xh.astype(jnp.bfloat16)
        a = jnp.tanh(jnp.dot(xhb, p['wa'][hd].astype(jnp.bfloat16),
                             preferred_element_type=jnp.float32) + p['ba'][hd])
        b = jax.nn.sigmoid(jnp.dot(xhb, p['wb'][hd].astype(jnp.bfloat16),
                                   preferred_element_type=jnp.float32) + p['bb'][hd])
        raw.append(((a * b) @ p['wc'][hd] + p['bc'][hd])[:, 0])
    A = jax.nn.softmax(jnp.stack(raw, axis=0)[None], axis=-1)          # (1, H, N)
    m_parts = [A[0, hd][None, :] @ x[:, hd * STEP:(hd + 1) * STEP]
               for hd in range(N_HEADS)]
    M = jnp.concatenate(m_parts, axis=1)
    logit = M @ p['wr'] + p['br']
    return logit, jnp.exp(logit), A, M


if __name__ == "__main__":
    key = jax.random.PRNGKey(0)
    kh, kp = jax.random.split(key)
    params = init_params(kp)

    # TODO(synk): nn.Dropout(0.25) is identity at inference; training-mode dropout not implemented.
    for N in (16, 700):   # single-tile case and a multi-tile (online-softmax across tiles) case
        h = jax.random.normal(jax.random.fold_in(kh, N), (N, EMBED_DIM), dtype=jnp.float32)

        log_risks, risks, results_dict, A = jax.block_until_ready(
            mad_mil_reg(h, params, return_features=True))

        ref_logit, ref_risk, ref_A, ref_M = reference(h, params)
        assert log_risks.shape == (1, 1) and risks.shape == (1, 1)
        assert A.shape == (1, N_HEADS, N)
        assert jnp.allclose(log_risks, ref_logit, atol=1e-2, rtol=1e-2), (log_risks, ref_logit)
        assert jnp.allclose(risks, ref_risk, atol=1e-2, rtol=2e-2), (risks, ref_risk)
        assert jnp.allclose(A, ref_A, atol=2e-3, rtol=1e-2)
        assert jnp.allclose(results_dict['features'], ref_M, atol=1e-2, rtol=1e-2)

    print("KERNEL_OK")
</pallas_src>

<mosaic_0001>
module attributes {stable_mosaic.version = 11 : i64} {
  func.func @_mad_mil_kernel(%arg0: i32, %arg1: memref<512x1024xbf16, #tpu.memory_space<vmem>>, %arg2: memref<1024x512xbf16, #tpu.memory_space<vmem>>, %arg3: memref<1x512xf32, #tpu.memory_space<vmem>>, %arg4: memref<2x256x128xbf16, #tpu.memory_space<vmem>>, %arg5: memref<2x1x128xf32, #tpu.memory_space<vmem>>, %arg6: memref<2x256x128xbf16, #tpu.memory_space<vmem>>, %arg7: memref<2x1x128xf32, #tpu.memory_space<vmem>>, %arg8: memref<2x1x128xf32, #tpu.memory_space<vmem>>, %arg9: memref<2x1x1xf32, #tpu.memory_space<vmem>>, %arg10: memref<1x512xf32, #tpu.memory_space<vmem>>, %arg11: memref<1x1xf32, #tpu.memory_space<vmem>>, %arg12: memref<512x2xf32, #tpu.memory_space<vmem>>, %arg13: memref<1x512xf32, #tpu.memory_space<vmem>>, %arg14: memref<1x1xf32, #tpu.memory_space<vmem>>, %arg15: memref<1x1xf32, #tpu.memory_space<vmem>>, %arg16: memref<2x1x256xf32, #tpu.memory_space<vmem>>, %arg17: memref<2x1x1xf32, #tpu.memory_space<vmem>>, %arg18: memref<2x1x1xf32, #tpu.memory_space<vmem>>) attributes {dimension_semantics = [#tpu.dimension_semantics<arbitrary>], iteration_bounds = array<i64: 1>, scalar_prefetch = 0 : i64, scratch_operands = 3 : i64, tpu.core_type = #tpu.core_type<tc>, window_params = [{transform_indices = @transform_0, window_bounds = array<i64: 512, 1024>}, {pipeline_mode = #tpu.pipeline_mode<synchronous>, transform_indices = @transform_1, window_bounds = array<i64: 1024, 512>}, {pipeline_mode = #tpu.pipeline_mode<synchronous>, transform_indices = @transform_2, window_bounds = array<i64: 1, 512>}, {pipeline_mode = #tpu.pipeline_mode<synchronous>, transform_indices = @transform_3, window_bounds = array<i64: 2, 256, 128>}, {pipeline_mode = #tpu.pipeline_mode<synchronous>, transform_indices = @transform_4, window_bounds = array<i64: 2, 1, 128>}, {pipeline_mode = #tpu.pipeline_mode<synchronous>, transform_indices = @transform_5, window_bounds = array<i64: 2, 256, 128>}, {pipeline_mode = #tpu.pipeline_mode<synchronous>, transform_indices = @transform_6, window_bounds = array<i64: 2, 1, 128>}, {pipeline_mode = #tpu.pipeline_mode<synchronous>, transform_indices = @transform_7, window_bounds = array<i64: 2, 1, 128>}, {pipeline_mode = #tpu.pipeline_mode<synchronous>, transform_indices = @transform_8, window_bounds = array<i64: 2, 1, 1>}, {pipeline_mode = #tpu.pipeline_mode<synchronous>, transform_indices = @transform_9, window_bounds = array<i64: 1, 512>}, {pipeline_mode = #tpu.pipeline_mode<synchronous>, transform_indices = @transform_10, window_bounds = array<i64: 1, 1>}, {transform_indices = @transform_11, window_bounds = array<i64: 512, 2>}, {pipeline_mode = #tpu.pipeline_mode<synchronous>, transform_indices = @transform_12, window_bounds = array<i64: 1, 512>}, {pipeline_mode = #tpu.pipeline_mode<synchronous>, transform_indices = @transform_13, window_bounds = array<i64: 1, 1>}, {pipeline_mode = #tpu.pipeline_mode<synchronous>, transform_indices = @transform_14, window_bounds = array<i64: 1, 1>}]} {
    %c0_i32 = arith.constant 0 : i32
    %0 = arith.cmpi eq, %arg0, %c0_i32 : i32
    %1 = arith.extui %0 : i1 to i32
    %c0_i32_0 = arith.constant 0 : i32
    %2 = arith.cmpi ne, %1, %c0_i32_0 : i32
    scf.if %2 {
      %cst_98 = arith.constant 0xFF800000 : f32
      %160 = vector.broadcast %cst_98 : f32 to vector<2x1x1xf32>
      %c0_99 = arith.constant 0 : index
      %c0_100 = arith.constant 0 : index
      %c0_101 = arith.constant 0 : index
      %161 = vector.load %arg17[%c0_99, %c0_100, %c0_101] : memref<2x1x1xf32, #tpu.memory_space<vmem>>, vector<2x1x1xf32>
      tpu.vector_store %arg17[%c0_99, %c0_100, %c0_101], %160 {strides = array<i32>} : memref<2x1x1xf32, #tpu.memory_space<vmem>>, vector<2x1x1xf32>,
      %cst_102 = arith.constant 0.000000e+00 : f32
      %162 = vector.broadcast %cst_102 : f32 to vector<2x1x1xf32>
      %c0_103 = arith.constant 0 : index
      %c0_104 = arith.constant 0 : index
      %c0_105 = arith.constant 0 : index
      %163 = vector.load %arg18[%c0_103, %c0_104, %c0_105] : memref<2x1x1xf32, #tpu.memory_space<vmem>>, vector<2x1x1xf32>
      tpu.vector_store %arg18[%c0_103, %c0_104, %c0_105], %162 {strides = array<i32>} : memref<2x1x1xf32, #tpu.memory_space<vmem>>, vector<2x1x1xf32>,
      %cst_106 = arith.constant 0.000000e+00 : f32
      %164 = vector.broadcast %cst_106 : f32 to vector<2x1x256xf32>
      %c0_107 = arith.constant 0 : index
      %c0_108 = arith.constant 0 : index
      %c0_109 = arith.constant 0 : index
      %165 = vector.load %arg16[%c0_107, %c0_108, %c0_109] : memref<2x1x256xf32, #tpu.memory_space<vmem>>, vector<2x1x256xf32>
      tpu.vector_store %arg16[%c0_107, %c0_108, %c0_109], %164 {strides = array<i32>} : memref<2x1x256xf32, #tpu.memory_space<vmem>>, vector<2x1x256xf32>,
    } else {
    }
    %c0 = arith.constant 0 : index
    %c0_1 = arith.constant 0 : index
    %3 = vector.load %arg1[%c0, %c0_1] : memref<512x1024xbf16, #tpu.memory_space<vmem>>, vector<512x1024xbf16>
    %c0_2 = arith.constant 0 : index
    %c0_3 = arith.constant 0 : index
    %4 = vector.load %arg2[%c0_2, %c0_3] : memref<1024x512xbf16, #tpu.memory_space<vmem>>, vector<1024x512xbf16>
    %cst = arith.constant dense<0.000000e+00> : vector<512x512xf32>
    %5 = tpu.matmul %3, %4, %cst {dimension_numbers = #tpu.dot_dimension_numbers<[1], [0], [0], [1], [0, 0, 1, 1], [], []>} : vector<512x1024xbf16>, vector<1024x512xbf16>, vector<512x512xf32> -> vector<512x512xf32>
    %c0_4 = arith.constant 0 : index
    %c0_5 = arith.constant 0 : index
    %6 = vector.load %arg3[%c0_4, %c0_5] : memref<1x512xf32, #tpu.memory_space<vmem>>, vector<1x512xf32>
    %7 = vector.broadcast %6 : vector<1x512xf32> to vector<512x512xf32>
    %8 = arith.addf %5, %7 : vector<512x512xf32>
    %cst_6 = arith.constant 0.000000e+00 : f32
    %9 = vector.broadcast %cst_6 : f32 to vector<512x512xf32>
    %10 = arith.maximumf %8, %9 : vector<512x512xf32>
    %11 = tpu.iota {dimensions = array<i32: 0>} : vector<512x1xi32>
    %c512_i32 = arith.constant 512 : i32
    %12 = arith.muli %arg0, %c512_i32 : i32
    %13 = vector.broadcast %12 : i32 to vector<512x1xi32>
    %14 = arith.addi %11, %13 : vector<512x1xi32>
    %c16_i32 = arith.constant 16 : i32
    %15 = vector.broadcast %c16_i32 : i32 to vector<512x1xi32>
    %16 = arith.cmpi slt, %14, %15 : vector<512x1xi32>
    %17 = vector.extract_strided_slice %10 {offsets = [0, 0], sizes = [512, 256], strides = [1, 1]} : vector<512x512xf32> to vector<512x256xf32>
    %18 = arith.truncf %17 : vector<512x256xf32> to vector<512x256xbf16>
    %c0_7 = arith.constant 0 : index
    %c0_8 = arith.constant 0 : index
    %c0_9 = arith.constant 0 : index
    %19 = vector.load %arg4[%c0_7, %c0_8, %c0_9] : memref<2x256x128xbf16, #tpu.memory_space<vmem>>, vector<1x256x128xbf16>
    %20 = vector.shape_cast %19 : vector<1x256x128xbf16> to vector<256x128xbf16>
    %cst_10 = arith.constant dense<0.000000e+00> : vector<512x128xf32>
    %21 = tpu.matmul %18, %20, %cst_10 {dimension_numbers = #tpu.dot_dimension_numbers<[1], [0], [0], [1], [0, 0, 1, 1], [], []>} : vector<512x256xbf16>, vector<256x128xbf16>, vector<512x128xf32> -> vector<512x128xf32>
    %c0_11 = arith.constant 0 : index
    %c0_12 = arith.constant 0 : index
    %c0_13 = arith.constant 0 : index
    %22 = vector.load %arg5[%c0_11, %c0_12, %c0_13] : memref<2x1x128xf32, #tpu.memory_space<vmem>>, vector<1x1x128xf32>
    %23 = vector.shape_cast %22 : vector<1x1x128xf32> to vector<1x128xf32>
    %24 = vector.broadcast %23 : vector<1x128xf32> to vector<512x128xf32>
    %25 = arith.addf %21, %24 : vector<512x128xf32>
    %26 = math.tanh %25 : vector<512x128xf32>
    %c0_14 = arith.constant 0 : index
    %c0_15 = arith.constant 0 : index
    %c0_16 = arith.constant 0 : index
    %27 = vector.load %arg6[%c0_14, %c0_15, %c0_16] : memref<2x256x128xbf16, #tpu.memory_space<vmem>>, vector<1x256x128xbf16>
    %28 = vector.shape_cast %27 : vector<1x256x128xbf16> to vector<256x128xbf16>
    %cst_17 = arith.constant dense<0.000000e+00> : vector<512x128xf32>
    %29 = tpu.matmul %18, %28, %cst_17 {dimension_numbers = #tpu.dot_dimension_numbers<[1], [0], [0], [1], [0, 0, 1, 1], [], []>} : vector<512x256xbf16>, vector<256x128xbf16>, vector<512x128xf32> -> vector<512x128xf32>
    %c0_18 = arith.constant 0 : index
    %c0_19 = arith.constant 0 : index
    %c0_20 = arith.constant 0 : index
    %30 = vector.load %arg7[%c0_18, %c0_19, %c0_20] : memref<2x1x128xf32, #tpu.memory_space<vmem>>, vector<1x1x128xf32>
    %31 = vector.shape_cast %30 : vector<1x1x128xf32> to vector<1x128xf32>
    %32 = vector.broadcast %31 : vector<1x128xf32> to vector<512x128xf32>
    %33 = arith.addf %29, %32 : vector<512x128xf32>
    %34 = arith.negf %33 : vector<512x128xf32>
    %35 = math.exp %34 : vector<512x128xf32>
    %cst_21 = arith.constant 1.000000e+00 : f32
    %36 = vector.broadcast %cst_21 : f32 to vector<512x128xf32>
    %37 = arith.addf %36, %35 : vector<512x128xf32>
    %38 = arith.divf %36, %37 : vector<512x128xf32>
    %39 = arith.mulf %26, %38 : vector<512x128xf32>
    %c0_22 = arith.constant 0 : index
    %c0_23 = arith.constant 0 : index
    %c0_24 = arith.constant 0 : index
    %40 = vector.load %arg8[%c0_22, %c0_23, %c0_24] : memref<2x1x128xf32, #tpu.memory_space<vmem>>, vector<1x1x128xf32>
    %41 = vector.shape_cast %40 : vector<1x1x128xf32> to vector<1x128xf32>
    %42 = vector.broadcast %41 : vector<1x128xf32> to vector<512x128xf32>
    %43 = arith.mulf %39, %42 : vector<512x128xf32>
    %cst_25 = arith.constant dense<0.000000e+00> : vector<512xf32>
    %44 = vector.multi_reduction <add>, %43, %cst_25 [1] : vector<512x128xf32> to vector<512xf32>
    %45 = vector.shape_cast %44 : vector<512xf32> to vector<512x1xf32>
    %c0_26 = arith.constant 0 : index
    %c0_27 = arith.constant 0 : index
    %c0_28 = arith.constant 0 : index
    %46 = vector.load %arg9[%c0_26, %c0_27, %c0_28] : memref<2x1x1xf32, #tpu.memory_space<vmem>>, vector<1x1x1xf32>
    %47 = vector.shape_cast %46 : vector<1x1x1xf32> to vector<1x1xf32>
    %48 = vector.broadcast %47 : vector<1x1xf32> to vector<512x1xf32>
    %49 = arith.addf %45, %48 : vector<512x1xf32>
    %cst_29 = arith.constant 0xFF800000 : f32
    %50 = vector.broadcast %cst_29 : f32 to vector<512x1xf32>
    %51 = arith.select %16, %49, %50 : vector<512x1xi1>, vector<512x1xf32>
    %c0_30 = arith.constant 0 : index
    %c0_31 = arith.constant 0 : index
    %c0_32 = arith.constant 0 : index
    %52 = vector.load %arg17[%c0_30, %c0_31, %c0_32] : memref<2x1x1xf32, #tpu.memory_space<vmem>>, vector<1x1x1xf32>
    %53 = vector.shape_cast %52 : vector<1x1x1xf32> to vector<1x1xf32>
    %cst_33 = arith.constant dense<0xFF800000> : vector<1xf32>
    %54 = vector.multi_reduction <maximumf>, %51, %cst_33 [0] : vector<512x1xf32> to vector<1xf32>
    %55 = vector.shape_cast %54 : vector<1xf32> to vector<1x1xf32>
    %56 = arith.maximumf %53, %55 : vector<1x1xf32>
    %57 = arith.subf %53, %56 : vector<1x1xf32>
    %58 = math.exp %57 : vector<1x1xf32>
    %59 = vector.broadcast %56 : vector<1x1xf32> to vector<512x1xf32>
    %60 = arith.subf %51, %59 : vector<512x1xf32>
    %61 = math.exp %60 : vector<512x1xf32>
    %c0_34 = arith.constant 0 : index
    %c0_35 = arith.constant 0 : index
    %c0_36 = arith.constant 0 : index
    %62 = vector.load %arg18[%c0_34, %c0_35, %c0_36] : memref<2x1x1xf32, #tpu.memory_space<vmem>>, vector<1x1x1xf32>
    %63 = vector.shape_cast %62 : vector<1x1x1xf32> to vector<1x1xf32>
    %64 = arith.mulf %58, %63 : vector<1x1xf32>
    %cst_37 = arith.constant dense<0.000000e+00> : vector<1xf32>
    %65 = vector.multi_reduction <add>, %61, %cst_37 [0] : vector<512x1xf32> to vector<1xf32>
    %66 = vector.shape_cast %65 : vector<1xf32> to vector<1x1xf32>
    %67 = arith.addf %64, %66 : vector<1x1xf32>
    %c0_38 = arith.constant 0 : index
    %c0_39 = arith.constant 0 : index
    %c0_40 = arith.constant 0 : index
    %68 = vector.load %arg18[%c0_38, %c0_39, %c0_40] : memref<2x1x1xf32, #tpu.memory_space<vmem>>, vector<1x1x1xf32>
    %69 = vector.shape_cast %68 : vector<1x1x1xf32> to vector<1x1xf32>
    %70 = vector.shape_cast %67 : vector<1x1xf32> to vector<1x1x1xf32>
    tpu.vector_store %arg18[%c0_38, %c0_39, %c0_40], %70 {strides = array<i32>} : memref<2x1x1xf32, #tpu.memory_space<vmem>>, vector<1x1x1xf32>,
    %c0_41 = arith.constant 0 : index
    %c0_42 = arith.constant 0 : index
    %c0_43 = arith.constant 0 : index
    %71 = vector.load %arg16[%c0_41, %c0_42, %c0_43] : memref<2x1x256xf32, #tpu.memory_space<vmem>>, vector<1x1x256xf32>
    %72 = vector.shape_cast %71 : vector<1x1x256xf32> to vector<1x256xf32>
    %73 = vector.broadcast %58 : vector<1x1xf32> to vector<1x256xf32>
    %74 = arith.mulf %73, %72 : vector<1x256xf32>
    %75 = vector.broadcast %61 : vector<512x1xf32> to vector<512x256xf32>
    %76 = arith.mulf %75, %17 : vector<512x256xf32>
    %cst_44 = arith.constant dense<0.000000e+00> : vector<256xf32>
    %77 = vector.multi_reduction <add>, %76, %cst_44 [0] : vector<512x256xf32> to vector<256xf32>
    %78 = vector.shape_cast %77 : vector<256xf32> to vector<1x256xf32>
    %79 = arith.addf %74, %78 : vector<1x256xf32>
    %c0_45 = arith.constant 0 : index
    %c0_46 = arith.constant 0 : index
    %c0_47 = arith.constant 0 : index
    %80 = vector.load %arg16[%c0_45, %c0_46, %c0_47] : memref<2x1x256xf32, #tpu.memory_space<vmem>>, vector<1x1x256xf32>
    %81 = vector.shape_cast %80 : vector<1x1x256xf32> to vector<1x256xf32>
    %82 = vector.shape_cast %79 : vector<1x256xf32> to vector<1x1x256xf32>
    tpu.vector_store %arg16[%c0_45, %c0_46, %c0_47], %82 {strides = array<i32>} : memref<2x1x256xf32, #tpu.memory_space<vmem>>, vector<1x1x256xf32>,
    %c0_48 = arith.constant 0 : index
    %c0_49 = arith.constant 0 : index
    %c0_50 = arith.constant 0 : index
    %83 = vector.load %arg17[%c0_48, %c0_49, %c0_50] : memref<2x1x1xf32, #tpu.memory_space<vmem>>, vector<1x1x1xf32>
    %84 = vector.shape_cast %83 : vector<1x1x1xf32> to vector<1x1xf32>
    %85 = vector.shape_cast %56 : vector<1x1xf32> to vector<1x1x1xf32>
    tpu.vector_store %arg17[%c0_48, %c0_49, %c0_50], %85 {strides = array<i32>} : memref<2x1x1xf32, #tpu.memory_space<vmem>>, vector<1x1x1xf32>,
    %86 = vector.extract_strided_slice %10 {offsets = [0, 256], sizes = [512, 256], strides = [1, 1]} : vector<512x512xf32> to vector<512x256xf32>
    %87 = arith.truncf %86 : vector<512x256xf32> to vector<512x256xbf16>
    %c1 = arith.constant 1 : index
    %c0_51 = arith.constant 0 : index
    %c0_52 = arith.constant 0 : index
    %88 = vector.load %arg4[%c1, %c0_51, %c0_52] : memref<2x256x128xbf16, #tpu.memory_space<vmem>>, vector<1x256x128xbf16>
    %89 = vector.shape_cast %88 : vector<1x256x128xbf16> to vector<256x128xbf16>
    %cst_53 = arith.constant dense<0.000000e+00> : vector<512x128xf32>
    %90 = tpu.matmul %87, %89, %cst_53 {dimension_numbers = #tpu.dot_dimension_numbers<[1], [0], [0], [1], [0, 0, 1, 1], [], []>} : vector<512x256xbf16>, vector<256x128xbf16>, vector<512x128xf32> -> vector<512x128xf32>
    %c1_54 = arith.constant 1 : index
    %c0_55 = arith.constant 0 : index
    %c0_56 = arith.constant 0 : index
    %91 = vector.load %arg5[%c1_54, %c0_55, %c0_56] : memref<2x1x128xf32, #tpu.memory_space<vmem>>, vector<1x1x128xf32>
    %92 = vector.shape_cast %91 : vector<1x1x128xf32> to vector<1x128xf32>
    %93 = vector.broadcast %92 : vector<1x128xf32> to vector<512x128xf32>
    %94 = arith.addf %90, %93 : vector<512x128xf32>
    %95 = math.tanh %94 : vector<512x128xf32>
    %c1_57 = arith.constant 1 : index
    %c0_58 = arith.constant 0 : index
    %c0_59 = arith.constant 0 : index
    %96 = vector.load %arg6[%c1_57, %c0_58, %c0_59] : memref<2x256x128xbf16, #tpu.memory_space<vmem>>, vector<1x256x128xbf16>
    %97 = vector.shape_cast %96 : vector<1x256x128xbf16> to vector<256x128xbf16>
    %cst_60 = arith.constant dense<0.000000e+00> : vector<512x128xf32>
    %98 = tpu.matmul %87, %97, %cst_60 {dimension_numbers = #tpu.dot_dimension_numbers<[1], [0], [0], [1], [0, 0, 1, 1], [], []>} : vector<512x256xbf16>, vector<256x128xbf16>, vector<512x128xf32> -> vector<512x128xf32>
    %c1_61 = arith.constant 1 : index
    %c0_62 = arith.constant 0 : index
    %c0_63 = arith.constant 0 : index
    %99 = vector.load %arg7[%c1_61, %c0_62, %c0_63] : memref<2x1x128xf32, #tpu.memory_space<vmem>>, vector<1x1x128xf32>
    %100 = vector.shape_cast %99 : vector<1x1x128xf32> to vector<1x128xf32>
    %101 = vector.broadcast %100 : vector<1x128xf32> to vector<512x128xf32>
    %102 = arith.addf %98, %101 : vector<512x128xf32>
    %103 = arith.negf %102 : vector<512x128xf32>
    %104 = math.exp %103 : vector<512x128xf32>
    %cst_64 = arith.constant 1.000000e+00 : f32
    %105 = vector.broadcast %cst_64 : f32 to vector<512x128xf32>
    %106 = arith.addf %105, %104 : vector<512x128xf32>
    %107 = arith.divf %105, %106 : vector<512x128xf32>
    %108 = arith.mulf %95, %107 : vector<512x128xf32>
    %c1_65 = arith.constant 1 : index
    %c0_66 = arith.constant 0 : index
    %c0_67 = arith.constant 0 : index
    %109 = vector.load %arg8[%c1_65, %c0_66, %c0_67] : memref<2x1x128xf32, #tpu.memory_space<vmem>>, vector<1x1x128xf32>
    %110 = vector.shape_cast %109 : vector<1x1x128xf32> to vector<1x128xf32>
    %111 = vector.broadcast %110 : vector<1x128xf32> to vector<512x128xf32>
    %112 = arith.mulf %108, %111 : vector<512x128xf32>
    %cst_68 = arith.constant dense<0.000000e+00> : vector<512xf32>
    %113 = vector.multi_reduction <add>, %112, %cst_68 [1] : vector<512x128xf32> to vector<512xf32>
    %114 = vector.shape_cast %113 : vector<512xf32> to vector<512x1xf32>
    %c1_69 = arith.constant 1 : index
    %c0_70 = arith.constant 0 : index
    %c0_71 = arith.constant 0 : index
    %115 = vector.load %arg9[%c1_69, %c0_70, %c0_71] : memref<2x1x1xf32, #tpu.memory_space<vmem>>, vector<1x1x1xf32>
    %116 = vector.shape_cast %115 : vector<1x1x1xf32> to vector<1x1xf32>
    %117 = vector.broadcast %116 : vector<1x1xf32> to vector<512x1xf32>
    %118 = arith.addf %114, %117 : vector<512x1xf32>
    %cst_72 = arith.constant 0xFF800000 : f32
    %119 = vector.broadcast %cst_72 : f32 to vector<512x1xf32>
    %120 = arith.select %16, %118, %119 : vector<512x1xi1>, vector<512x1xf32>
    %c1_73 = arith.constant 1 : index
    %c0_74 = arith.constant 0 : index
    %c0_75 = arith.constant 0 : index
    %121 = vector.load %arg17[%c1_73, %c0_74, %c0_75] : memref<2x1x1xf32, #tpu.memory_space<vmem>>, vector<1x1x1xf32>
    %122 = vector.shape_cast %121 : vector<1x1x1xf32> to vector<1x1xf32>
    %cst_76 = arith.constant dense<0xFF800000> : vector<1xf32>
    %123 = vector.multi_reduction <maximumf>, %120, %cst_76 [0] : vector<512x1xf32> to vector<1xf32>
    %124 = vector.shape_cast %123 : vector<1xf32> to vector<1x1xf32>
    %125 = arith.maximumf %122, %124 : vector<1x1xf32>
    %126 = arith.subf %122, %125 : vector<1x1xf32>
    %127 = math.exp %126 : vector<1x1xf32>
    %128 = vector.broadcast %125 : vector<1x1xf32> to vector<512x1xf32>
    %129 = arith.subf %120, %128 : vector<512x1xf32>
    %130 = math.exp %129 : vector<512x1xf32>
    %c1_77 = arith.constant 1 : index
    %c0_78 = arith.constant 0 : index
    %c0_79 = arith.constant 0 : index
    %131 = vector.load %arg18[%c1_77, %c0_78, %c0_79] : memref<2x1x1xf32, #tpu.memory_space<vmem>>, vector<1x1x1xf32>
    %132 = vector.shape_cast %131 : vector<1x1x1xf32> to vector<1x1xf32>
    %133 = arith.mulf %127, %132 : vector<1x1xf32>
    %cst_80 = arith.constant dense<0.000000e+00> : vector<1xf32>
    %134 = vector.multi_reduction <add>, %130, %cst_80 [0] : vector<512x1xf32> to vector<1xf32>
    %135 = vector.shape_cast %134 : vector<1xf32> to vector<1x1xf32>
    %136 = arith.addf %133, %135 : vector<1x1xf32>
    %c1_81 = arith.constant 1 : index
    %c0_82 = arith.constant 0 : index
    %c0_83 = arith.constant 0 : index
    %137 = vector.load %arg18[%c1_81, %c0_82, %c0_83] : memref<2x1x1xf32, #tpu.memory_space<vmem>>, vector<1x1x1xf32>
    %138 = vector.shape_cast %137 : vector<1x1x1xf32> to vector<1x1xf32>
    %139 = vector.shape_cast %136 : vector<1x1xf32> to vector<1x1x1xf32>
    tpu.vector_store %arg18[%c1_81, %c0_82, %c0_83], %139 {strides = array<i32>} : memref<2x1x1xf32, #tpu.memory_space<vmem>>, vector<1x1x1xf32>,
    %c1_84 = arith.constant 1 : index
    %c0_85 = arith.constant 0 : index
    %c0_86 = arith.constant 0 : index
    %140 = vector.load %arg16[%c1_84, %c0_85, %c0_86] : memref<2x1x256xf32, #tpu.memory_space<vmem>>, vector<1x1x256xf32>
    %141 = vector.shape_cast %140 : vector<1x1x256xf32> to vector<1x256xf32>
    %142 = vector.broadcast %127 : vector<1x1xf32> to vector<1x256xf32>
    %143 = arith.mulf %142, %141 : vector<1x256xf32>
    %144 = vector.broadcast %130 : vector<512x1xf32> to vector<512x256xf32>
    %145 = arith.mulf %144, %86 : vector<512x256xf32>
    %cst_87 = arith.constant dense<0.000000e+00> : vector<256xf32>
    %146 = vector.multi_reduction <add>, %145, %cst_87 [0] : vector<512x256xf32> to vector<256xf32>
    %147 = vector.shape_cast %146 : vector<256xf32> to vector<1x256xf32>
    %148 = arith.addf %143, %147 : vector<1x256xf32>
    %c1_88 = arith.constant 1 : index
    %c0_89 = arith.constant 0 : index
    %c0_90 = arith.constant 0 : index
    %149 = vector.load %arg16[%c1_88, %c0_89, %c0_90] : memref<2x1x256xf32, #tpu.memory_space<vmem>>, vector<1x1x256xf32>
    %150 = vector.shape_cast %149 : vector<1x1x256xf32> to vector<1x256xf32>
    %151 = vector.shape_cast %148 : vector<1x256xf32> to vector<1x1x256xf32>
    tpu.vector_store %arg16[%c1_88, %c0_89, %c0_90], %151 {strides = array<i32>} : memref<2x1x256xf32, #tpu.memory_space<vmem>>, vector<1x1x256xf32>,
    %c1_91 = arith.constant 1 : index
    %c0_92 = arith.constant 0 : index
    %c0_93 = arith.constant 0 : index
    %152 = vector.load %arg17[%c1_91, %c0_92, %c0_93] : memref<2x1x1xf32, #tpu.memory_space<vmem>>, vector<1x1x1xf32>
    %153 = vector.shape_cast %152 : vector<1x1x1xf32> to vector<1x1xf32>
    %154 = vector.shape_cast %125 : vector<1x1xf32> to vector<1x1x1xf32>
    tpu.vector_store %arg17[%c1_91, %c0_92, %c0_93], %154 {strides = array<i32>} : memref<2x1x1xf32, #tpu.memory_space<vmem>>, vector<1x1x1xf32>,
    %155 = tpu.concatenate %51, %120 in 1 : vector<512x1xf32>, vector<512x1xf32> -> vector<512x2xf32>
    %c0_94 = arith.constant 0 : index
    %c0_95 = arith.constant 0 : index
    %156 = vector.load %arg12[%c0_94, %c0_95] : memref<512x2xf32, #tpu.memory_space<vmem>>, vector<512x2xf32>
    tpu.vector_store %arg12[%c0_94, %c0_95], %155 {strides = array<i32>} : memref<512x2xf32, #tpu.memory_space<vmem>>, vector<512x2xf32>,
    %c0_i32_96 = arith.constant 0 : i32
    %157 = arith.cmpi eq, %arg0, %c0_i32_96 : i32
    %158 = arith.extui %157 : i1 to i32
    %c0_i32_97 = arith.constant 0 : i32
    %159 = arith.cmpi ne, %158, %c0_i32_97 : i32
    scf.if %159 {
      %c0_98 = arith.constant 0 : index
      %c0_99 = arith.constant 0 : index
      %c0_100 = arith.constant 0 : index
      %160 = vector.load %arg16[%c0_98, %c0_99, %c0_100] : memref<2x1x256xf32, #tpu.memory_space<vmem>>, vector<1x1x256xf32>
      %161 = vector.shape_cast %160 : vector<1x1x256xf32> to vector<1x256xf32>
      %c0_101 = arith.constant 0 : index
      %c0_102 = arith.constant 0 : index
      %c0_103 = arith.constant 0 : index
      %162 = vector.load %arg18[%c0_101, %c0_102, %c0_103] : memref<2x1x1xf32, #tpu.memory_space<vmem>>, vector<1x1x1xf32>
      %163 = vector.shape_cast %162 : vector<1x1x1xf32> to vector<1x1xf32>
      %164 = vector.broadcast %163 : vector<1x1xf32> to vector<1x256xf32>
      %165 = arith.divf %161, %164 : vector<1x256xf32>
      %c0_104 = arith.constant 0 : index
      %c0_105 = arith.constant 0 : index
      %166 = vector.load %arg13[%c0_104, %c0_105] : memref<1x512xf32, #tpu.memory_space<vmem>>, vector<1x256xf32>
      tpu.vector_store %arg13[%c0_104, %c0_105], %165 {strides = array<i32>} : memref<1x512xf32, #tpu.memory_space<vmem>>, vector<1x256xf32>,
      %c1_106 = arith.constant 1 : index
      %c0_107 = arith.constant 0 : index
      %c0_108 = arith.constant 0 : index
      %167 = vector.load %arg16[%c1_106, %c0_107, %c0_108] : memref<2x1x256xf32, #tpu.memory_space<vmem>>, vector<1x1x256xf32>
      %168 = vector.shape_cast %167 : vector<1x1x256xf32> to vector<1x256xf32>
      %c1_109 = arith.constant 1 : index
      %c0_110 = arith.constant 0 : index
      %c0_111 = arith.constant 0 : index
      %169 = vector.load %arg18[%c1_109, %c0_110, %c0_111] : memref<2x1x1xf32, #tpu.memory_space<vmem>>, vector<1x1x1xf32>
      %170 = vector.shape_cast %169 : vector<1x1x1xf32> to vector<1x1xf32>
      %171 = vector.broadcast %170 : vector<1x1xf32> to vector<1x256xf32>
      %172 = arith.divf %168, %171 : vector<1x256xf32>
      %c0_112 = arith.constant 0 : index
      %c256 = arith.constant 256 : index
      %173 = vector.load %arg13[%c0_112, %c256] : memref<1x512xf32, #tpu.memory_space<vmem>>, vector<1x256xf32>
      tpu.vector_store %arg13[%c0_112, %c256], %172 {strides = array<i32>} : memref<1x512xf32, #tpu.memory_space<vmem>>, vector<1x256xf32>,
      %174 = tpu.concatenate %165, %172 in 1 : vector<1x256xf32>, vector<1x256xf32> -> vector<1x512xf32>
      %c0_113 = arith.constant 0 : index
      %c0_114 = arith.constant 0 : index
      %175 = vector.load %arg10[%c0_113, %c0_114] : memref<1x512xf32, #tpu.memory_space<vmem>>, vector<1x512xf32>
      %176 = arith.mulf %174, %175 : vector<1x512xf32>
      %cst_115 = arith.constant dense<0.000000e+00> : vector<1xf32>
      %177 = vector.multi_reduction <add>, %176, %cst_115 [1] : vector<1x512xf32> to vector<1xf32>
      %178 = vector.shape_cast %177 : vector<1xf32> to vector<1x1xf32>
      %c0_116 = arith.constant 0 : index
      %c0_117 = arith.constant 0 : index
      %179 = vector.load %arg11[%c0_116, %c0_117] : memref<1x1xf32, #tpu.memory_space<vmem>>, vector<1x1xf32>
      %180 = arith.addf %178, %179 : vector<1x1xf32>
      %c0_118 = arith.constant 0 : index
      %c0_119 = arith.constant 0 : index
      %181 = vector.load %arg14[%c0_118, %c0_119] : memref<1x1xf32, #tpu.memory_space<vmem>>, vector<1x1xf32>
      tpu.vector_store %arg14[%c0_118, %c0_119], %180 {strides = array<i32>} : memref<1x1xf32, #tpu.memory_space<vmem>>, vector<1x1xf32>,
      %182 = math.exp %180 : vector<1x1xf32>
      %c0_120 = arith.constant 0 : index
      %c0_121 = arith.constant 0 : index
      %183 = vector.load %arg15[%c0_120, %c0_121] : memref<1x1xf32, #tpu.memory_space<vmem>>, vector<1x1xf32>
      tpu.vector_store %arg15[%c0_120, %c0_121], %182 {strides = array<i32>} : memref<1x1xf32, #tpu.memory_space<vmem>>, vector<1x1xf32>,
    } else {
    }
    return
  }
  func.func @transform_0(%arg0: i32) -> (i32, i32) {
    %c0_i32 = arith.constant 0 : i32
    %c0_i32_0 = arith.constant 0 : i32
    return %arg0, %c0_i32 : i32, i32
  }
  func.func @transform_1(%arg0: i32) -> (i32, i32) {
    %c0_i32 = arith.constant 0 : i32
    %c0_i32_0 = arith.constant 0 : i32
    %c0_i32_1 = arith.constant 0 : i32
    return %c0_i32, %c0_i32_0 : i32, i32
  }
  func.func @transform_2(%arg0: i32) -> (i32, i32) {
    %c0_i32 = arith.constant 0 : i32
    %c0_i32_0 = arith.constant 0 : i32
    %c0_i32_1 = arith.constant 0 : i32
    return %c0_i32, %c0_i32_0 : i32, i32
  }
  func.func @transform_3(%arg0: i32) -> (i32, i32, i32) {
    %c0_i32 = arith.constant 0 : i32
    %c0_i32_0 = arith.constant 0 : i32
    %c0_i32_1 = arith.constant 0 : i32
    %c0_i32_2 = arith.constant 0 : i32
    return %c0_i32, %c0_i32_0, %c0_i32_1 : i32, i32, i32
  }
  func.func @transform_4(%arg0: i32) -> (i32, i32, i32) {
    %c0_i32 = arith.constant 0 : i32
    %c0_i32_0 = arith.constant 0 : i32
    %c0_i32_1 = arith.constant 0 : i32
    %c0_i32_2 = arith.constant 0 : i32
    return %c0_i32, %c0_i32_0, %c0_i32_1 : i32, i32, i32
  }
  func.func @transform_5(%arg0: i32) -> (i32, i32, i32) {
    %c0_i32 = arith.constant 0 : i32
    %c0_i32_0 = arith.constant 0 : i32
    %c0_i32_1 = arith.constant 0 : i32
    %c0_i32_2 = arith.constant 0 : i32
    return %c0_i32, %c0_i32_0, %c0_i32_1 : i32, i32, i32
  }
  func.func @transform_6(%arg0: i32) -> (i32, i32, i32) {
    %c0_i32 = arith.constant 0 : i32
    %c0_i32_0 = arith.constant 0 : i32
    %c0_i32_1 = arith.constant 0 : i32
    %c0_i32_2 = arith.constant 0 : i32
    return %c0_i32, %c0_i32_0, %c0_i32_1 : i32, i32, i32
  }
  func.func @transform_7(%arg0: i32) -> (i32, i32, i32) {
    %c0_i32 = arith.constant 0 : i32
    %c0_i32_0 = arith.constant 0 : i32
    %c0_i32_1 = arith.constant 0 : i32
    %c0_i32_2 = arith.constant 0 : i32
    return %c0_i32, %c0_i32_0, %c0_i32_1 : i32, i32, i32
  }
  func.func @transform_8(%arg0: i32) -> (i32, i32, i32) {
    %c0_i32 = arith.constant 0 : i32
    %c0_i32_0 = arith.constant 0 : i32
    %c0_i32_1 = arith.constant 0 : i32
    %c0_i32_2 = arith.constant 0 : i32
    return %c0_i32, %c0_i32_0, %c0_i32_1 : i32, i32, i32
  }
  func.func @transform_9(%arg0: i32) -> (i32, i32) {
    %c0_i32 = arith.constant 0 : i32
    %c0_i32_0 = arith.constant 0 : i32
    %c0_i32_1 = arith.constant 0 : i32
    return %c0_i32, %c0_i32_0 : i32, i32
  }
  func.func @transform_10(%arg0: i32) -> (i32, i32) {
    %c0_i32 = arith.constant 0 : i32
    %c0_i32_0 = arith.constant 0 : i32
    %c0_i32_1 = arith.constant 0 : i32
    return %c0_i32, %c0_i32_0 : i32, i32
  }
  func.func @transform_11(%arg0: i32) -> (i32, i32) {
    %c0_i32 = arith.constant 0 : i32
    %c0_i32_0 = arith.constant 0 : i32
    return %arg0, %c0_i32 : i32, i32
  }
  func.func @transform_12(%arg0: i32) -> (i32, i32) {
    %c0_i32 = arith.constant 0 : i32
    %c0_i32_0 = arith.constant 0 : i32
    %c0_i32_1 = arith.constant 0 : i32
    return %c0_i32, %c0_i32_0 : i32, i32
  }
  func.func @transform_13(%arg0: i32) -> (i32, i32) {
    %c0_i32 = arith.constant 0 : i32
    %c0_i32_0 = arith.constant 0 : i32
    %c0_i32_1 = arith.constant 0 : i32
    return %c0_i32, %c0_i32_0 : i32, i32
  }
  func.func @transform_14(%arg0: i32) -> (i32, i32) {
    %c0_i32 = arith.constant 0 : i32
    %c0_i32_0 = arith.constant 0 : i32
    %c0_i32_1 = arith.constant 0 : i32
    return %c0_i32, %c0_i32_0 : i32, i32
  }
}

</mosaic_0001>

<llo_original>
// kernel: tpu_custom_call.1
$region0: #{tpu_custom_call.1}
  #allocation0 [shape = 'u32[]', space=smem, size = 0x4, offset = 0x4, fixed_abs, tag = 'smem constant byte address 0x4 - core index']
  #allocation1 [shape = 'u32[144,128]{1,0:T(1,128)}', space=vmem, size = 0x12000, scoped, tag = 'internal scratch']
  #allocation2 [shape = 'f32[2,1,256]{2,1,0:T(1,128)}', space=vmem, size = 0x800, scoped, tag = 'scratch operand']
  #allocation3 [shape = 'f32[2,1,1]{2,1,0:T(1,128)}', space=vmem, size = 0x400, scoped, tag = 'scratch operand']
  #allocation4 [shape = 'f32[2,1,1]{2,1,0:T(1,128)}', space=vmem, size = 0x400, scoped, tag = 'scratch operand']
  #allocation5 [shape = 'f32[1,1]{1,0:T(1,128)S(1)}', space=vmem, size = 0x200, scoped, tag = 'scoped memory for tpu_custom_call.1']
  %s0 = inlined_call_operand.hbm [shape: bf16[512,1024], index: 0, kind: input, shape index: {}]
  %s1 = inlined_call_operand.hbm [shape: bf16[1024,512], index: 1, kind: input, shape index: {}]
  %s2 = inlined_call_operand.vmem [shape: f32[1,512], index: 2, kind: input, shape index: {}]
  %s3 = inlined_call_operand.hbm [shape: bf16[2,256,128], index: 3, kind: input, shape index: {}]
  %s4 = inlined_call_operand.vmem [shape: f32[2,1,128], index: 4, kind: input, shape index: {}]
  %s5 = inlined_call_operand.hbm [shape: bf16[2,256,128], index: 5, kind: input, shape index: {}]
  %s6 = inlined_call_operand.vmem [shape: f32[2,1,128], index: 6, kind: input, shape index: {}]
  %s7 = inlined_call_operand.vmem [shape: f32[2,1,128], index: 7, kind: input, shape index: {}]
  %s8 = inlined_call_operand.vmem [shape: f32[2,1,1], index: 8, kind: input, shape index: {}]
  %s9 = inlined_call_operand.vmem [shape: f32[1,512], index: 9, kind: input, shape index: {}]
  %s10 = inlined_call_operand.<no memory space> [shape: f32[1,1], index: 10, kind: input, shape index: {}]
  %s11 = inlined_call_operand.vmem [shape: f32[512,2], index: 11, kind: output, shape index: {0}]
  %s12 = inlined_call_operand.hbm [shape: f32[1,512], index: 12, kind: output, shape index: {1}]
  %s13 = inlined_call_operand.hbm [shape: f32[1,1], index: 13, kind: output, shape index: {2}]
  %s14 = inlined_call_operand.hbm [shape: f32[1,1], index: 14, kind: output, shape index: {3}]
  %15 = xla_tuple %s11, %s12, %s13, %s14
  %s16 = sld [smem:[#allocation0]]
  $region102: #{tpu_custom_call.1} parent=0
    _
  %s18 = ssub.s32 1, %s16
  %s19 = scalar_select 0, %s18, %s16
  %v20 = vstv %s10
  %21 = vst [vmem:[#allocation5] sm:$0x1] %v20
  $region1: #{tpu_custom_call.1} parent=0
    #allocation6 [shape = 'u8[1048576]{0}', space=vmem, size = 0x100000, scoped, tag = 'input window, operand 0, single buffered']
    #allocation7 [shape = 's32[1]{0}', space=sflag, size = 0x4, scoped, tag = 'scoped memory for tpu_custom_call.1']
    #allocation8 [shape = 's32[1]{0}', space=sflag, size = 0x4, scoped, tag = 'scoped memory for tpu_custom_call.1']
    #allocation9 [shape = 'u8[1048576]{0}', space=vmem, size = 0x100000, scoped, tag = 'input window, operand 1, single buffered']
    #allocation10 [shape = 's32[1]{0}', space=sflag, size = 0x4, scoped, tag = 'scoped memory for tpu_custom_call.1']
    #allocation11 [shape = 'u8[131072]{0}', space=vmem, size = 0x20000, scoped, tag = 'input window, operand 3, single buffered']
    #allocation12 [shape = 'u8[131072]{0}', space=vmem, size = 0x20000, scoped, tag = 'input window, operand 5, single buffered']
    #allocation13 [shape = 's32[1]{0}', space=sflag, size = 0x4, scoped, tag = 'scoped memory for tpu_custom_call.1']
    #allocation14 [shape = 'u8[2048]{0}', space=vmem, size = 0x800, scoped, tag = 'output window, operand 1, single buffered']
    #allocation15 [shape = 'u8[512]{0}', space=vmem, size = 0x400, scoped, tag = 'output window, operand 2, single buffered']
    #allocation16 [shape = 's32[1]{0}', space=sflag, size = 0x4, scoped, tag = 'scoped memory for tpu_custom_call.1']
    #allocation17 [shape = 'u8[512]{0}', space=vmem, size = 0x400, scoped, tag = 'output window, operand 3, single buffered']
    %22 = vsyncpa [#allocation7], 0
    %23 = vsyncpa [#allocation10], 0
    %24 = vsyncpa [#allocation13], 0
    %25 = vsyncpa [#allocation8], 0
    %26 = vsyncpa [#allocation16], 0
    // Predicated region
    $region2: #{tpu_custom_call.1} parent=1 // pred_check
      _
    $region3: #{tpu_custom_call.1} parent=1 // pred_check_branch
      %28 = sbr.rel (0) target = $region5
    $region4: #{tpu_custom_call.1} parent=1 // pred_region
      %s30 = ssub.s32 32768, 32768
      %31 = vsyncadd [#allocation7], %s30
      %s32 = sshll.u32 [#allocation6], 4
      %s33 = int_to_ptr.vmem [resolvable:$true] %s32
      %38 = dma.hbm_to_vmem [thread:$0]  %s0, 32768, %s33, [#allocation7], 512, 512, 32
    $region5: #{tpu_custom_call.1} parent=1 // pred_fallthru
      _
    // Predicated region
    $region6: #{tpu_custom_call.1} parent=1 // pred_check
      _
    $region7: #{tpu_custom_call.1} parent=1 // pred_check_branch
      %40 = sbr.rel (0) target = $region9
    $region8: #{tpu_custom_call.1} parent=1 // pred_region
      %s42 = ssub.s32 32768, 32768
      %43 = vsyncadd [#allocation10], %s42
      %s44 = sshll.u32 [#allocation9], 4
      %s45 = int_to_ptr.vmem [resolvable:$true] %s44
      %50 = dma.hbm_to_vmem [thread:$0]  %s1, 32768, %s45, [#allocation10], 256, 256, 16
    $region9: #{tpu_custom_call.1} parent=1 // pred_fallthru
      _
    // Predicated region
    $region10: #{tpu_custom_call.1} parent=1 // pred_check
      _
    $region11: #{tpu_custom_call.1} parent=1 // pred_check_branch
      %52 = sbr.rel (0) target = $region13
    $region12: #{tpu_custom_call.1} parent=1 // pred_region
      _
    $region13: #{tpu_custom_call.1} parent=1 // pred_fallthru
      _
    // Predicated region
    $region14: #{tpu_custom_call.1} parent=1 // pred_check
      _
    $region15: #{tpu_custom_call.1} parent=1 // pred_check_branch
      %54 = sbr.rel (0) target = $region17
    $region16: #{tpu_custom_call.1} parent=1 // pred_region
      %s56 = ssub.s32 4096, 4096
      %57 = vsyncadd [#allocation10], %s56
      %s58 = sshll.u32 [#allocation11], 4
      %s59 = int_to_ptr.vmem [resolvable:$true] %s58
      %64 = dma.hbm_to_vmem [thread:$0]  %s3, 4096, %s59, [#allocation10], 64, 64, 4
    $region17: #{tpu_custom_call.1} parent=1 // pred_fallthru
      _
    // Predicated region
    $region18: #{tpu_custom_call.1} parent=1 // pred_check
      _
    $region19: #{tpu_custom_call.1} parent=1 // pred_check_branch
      %66 = sbr.rel (0) target = $region21
    $region20: #{tpu_custom_call.1} parent=1 // pred_region
      _
    $region21: #{tpu_custom_call.1} parent=1 // pred_fallthru
      _
    // Predicated region
    $region22: #{tpu_custom_call.1} parent=1 // pred_check
      _
    $region23: #{tpu_custom_call.1} parent=1 // pred_check_branch
      %68 = sbr.rel (0) target = $region25
    $region24: #{tpu_custom_call.1} parent=1 // pred_region
      %s70 = ssub.s32 4096, 4096
      %71 = vsyncadd [#allocation13], %s70
      %s72 = sshll.u32 [#allocation12], 4
      %s73 = int_to_ptr.vmem [resolvable:$true] %s72
      %78 = dma.hbm_to_vmem [thread:$0]  %s5, 4096, %s73, [#allocation13], 64, 64, 4
    $region25: #{tpu_custom_call.1} parent=1 // pred_fallthru
      _
    // Predicated region
    $region26: #{tpu_custom_call.1} parent=1 // pred_check
      _
    $region27: #{tpu_custom_call.1} parent=1 // pred_check_branch
      %80 = sbr.rel (0) target = $region29
    $region28: #{tpu_custom_call.1} parent=1 // pred_region
      _
    $region29: #{tpu_custom_call.1} parent=1 // pred_fallthru
      _
    // Predicated region
    $region30: #{tpu_custom_call.1} parent=1 // pred_check
      _
    $region31: #{tpu_custom_call.1} parent=1 // pred_check_branch
      %82 = sbr.rel (0) target = $region33
    $region32: #{tpu_custom_call.1} parent=1 // pred_region
      _
    $region33: #{tpu_custom_call.1} parent=1 // pred_fallthru
      _
    // Predicated region
    $region34: #{tpu_custom_call.1} parent=1 // pred_check
      _
    $region35: #{tpu_custom_call.1} parent=1 // pred_check_branch
      %84 = sbr.rel (0) target = $region37
    $region36: #{tpu_custom_call.1} parent=1 // pred_region
      _
    $region37: #{tpu_custom_call.1} parent=1 // pred_fallthru
      _
    // Predicated region
    $region38: #{tpu_custom_call.1} parent=1 // pred_check
      _
    $region39: #{tpu_custom_call.1} parent=1 // pred_check_branch
      %86 = sbr.rel (0) target = $region41
    $region40: #{tpu_custom_call.1} parent=1 // pred_region
      _
    $region41: #{tpu_custom_call.1} parent=1 // pred_fallthru
      _
    // Predicated region
    $region42: #{tpu_custom_call.1} parent=1 // pred_check
      _
    $region43: #{tpu_custom_call.1} parent=1 // pred_check_branch
      %88 = sbr.rel (0) target = $region45
    $region44: #{tpu_custom_call.1} parent=1 // pred_region
      _
    $region45: #{tpu_custom_call.1} parent=1 // pred_fallthru
      _
    // Predicated region
    $region46: #{tpu_custom_call.1} parent=1 // pred_check
      _
    $region47: #{tpu_custom_call.1} parent=1 // pred_check_branch
      %90 = sbr.rel (0) target = $region49
    $region48: #{tpu_custom_call.1} parent=1 // pred_region
      %91 = dma.done [#allocation7], 32768
    $region49: #{tpu_custom_call.1} parent=1 // pred_fallthru
      _
    // Predicated region
    $region50: #{tpu_custom_call.1} parent=1 // pred_check
      _
    $region51: #{tpu_custom_call.1} parent=1 // pred_check_branch
      %93 = sbr.rel (0) target = $region53
    $region52: #{tpu_custom_call.1} parent=1 // pred_region
      %94 = dma.done [#allocation10], 32768
    $region53: #{tpu_custom_call.1} parent=1 // pred_fallthru
      _
    // Predicated region
    $region54: #{tpu_custom_call.1} parent=1 // pred_check
      _
    $region55: #{tpu_custom_call.1} parent=1 // pred_check_branch
      %96 = sbr.rel (0) target = $region57
    $region56: #{tpu_custom_call.1} parent=1 // pred_region
      %97 = dma.done [#allocation10], 4096
    $region57: #{tpu_custom_call.1} parent=1 // pred_fallthru
      _
    // Predicated region
    $region58: #{tpu_custom_call.1} parent=1 // pred_check
      _
    $region59: #{tpu_custom_call.1} parent=1 // pred_check_branch
      %99 = sbr.rel (0) target = $region61
    $region60: #{tpu_custom_call.1} parent=1 // pred_region
      %100 = dma.done [#allocation13], 4096
    $region61: #{tpu_custom_call.1} parent=1 // pred_fallthru
      _
    %p102 = scmp.eq.s32.totalorder 0, 0
    // Predicated region
    $region62: #{tpu_custom_call.1} parent=1 // pred_check
      %p103 = pneg %p102
    $region63: #{tpu_custom_call.1} parent=1 // pred_check_branch
      %105 = sbr.rel (%p103) target = $region65
    $region64: #{tpu_custom_call.1} parent=1 // pred_region
      %vm106 = vcmask 0
      %107 = vst.msk [vmem:[#allocation3] sm:$0x1] %vm106, -inf
      %108 = vst.msk [vmem:[#allocation3 + $0x1] sm:$0x1] %vm106, -inf
      %109 = vst.msk [vmem:[#allocation4] sm:$0x1] %vm106, 0.0
      %110 = vst.msk [vmem:[#allocation4 + $0x1] sm:$0x1] %vm106, 0.0
      %v111 = vlaneseq
      %vm112 = vcmp.ge.s32.totalorder %v111, 0
      %vm113 = vcmp.lt.s32.totalorder %v111, 256
      %vm114 = vmand %vm112, %vm113
      %115 = vst.msk [vmem:[#allocation2] sm:$0x3] %vm114, 0.0
      %116 = vst.msk [vmem:[#allocation2 + $0x2] sm:$0x3] %vm114, 0.0
    $region65: #{tpu_custom_call.1} parent=1 // pred_fallthru
      _
    %v117 = vld [vmem:[#allocation6] sm:$0xff]
    %v118 = vld [vmem:[#allocation6 + $0x8] sm:$0xff]
    %v119 = vld [vmem:[#allocation6 + $0x10] sm:$0xff]
    %v120 = vld [vmem:[#allocation6 + $0x18] sm:$0xff]
    %v121 = vld [vmem:[#allocation6 + $0x20] sm:$0xff]
    %v122 = vld [vmem:[#allocation6 + $0x28] sm:$0xff]
    %v123 = vld [vmem:[#allocation6 + $0x30] sm:$0xff]
    %v124 = vld [vmem:[#allocation6 + $0x38] sm:$0xff]
    %v125 = vld [vmem:[#allocation6 + $0x40] sm:$0xff]
    %v126 = vld [vmem:[#allocation6 + $0x48] sm:$0xff]
    %v127 = vld [vmem:[#allocation6 + $0x50] sm:$0xff]
    %v128 = vld [vmem:[#allocation6 + $0x58] sm:$0xff]
    %v129 = vld [vmem:[#allocation6 + $0x60] sm:$0xff]
    %v130 = vld [vmem:[#allocation6 + $0x68] sm:$0xff]
    %v131 = vld [vmem:[#allocation6 + $0x70] sm:$0xff]
    %v132 = vld [vmem:[#allocation6 + $0x78] sm:$0xff]
    %v133 = vld [vmem:[#allocation6 + $0x80] sm:$0xff]
    %v134 = vld [vmem:[#allocation6 + $0x88] sm:$0xff]
    %v135 = vld [vmem:[#allocation6 + $0x90] sm:$0xff]
    %v136 = vld [vmem:[#allocation6 + $0x98] sm:$0xff]
    %v137 = vld [vmem:[#allocation6 + $0xa0] sm:$0xff]
    %v138 = vld [vmem:[#allocation6 + $0xa8] sm:$0xff]
    %v139 = vld [vmem:[#allocation6 + $0xb0] sm:$0xff]
    %v140 = vld [vmem:[#allocation6 + $0xb8] sm:$0xff]
    %v141 = vld [vmem:[#allocation6 + $0xc0] sm:$0xff]
    %v142 = vld [vmem:[#allocation6 + $0xc8] sm:$0xff]
    %v143 = vld [vmem:[#allocation6 + $0xd0] sm:$0xff]
    %v144 = vld [vmem:[#allocation6 + $0xd8] sm:$0xff]
    %v145 = vld [vmem:[#allocation6 + $0xe0] sm:$0xff]
    %v146 = vld [vmem:[#allocation6 + $0xe8] sm:$0xff]
    %v147 = vld [vmem:[#allocation6 + $0xf0] sm:$0xff]
    %v148 = vld [vmem:[#allocation6 + $0xf8] sm:$0xff]
    %v149 = vld [vmem:[#allocation6 + $0x100] sm:$0xff]
    %v150 = vld [vmem:[#allocation6 + $0x108] sm:$0xff]
    %v151 = vld [vmem:[#allocation6 + $0x110] sm:$0xff]
    %v152 = vld [vmem:[#allocation6 + $0x118] sm:$0xff]
    %v153 = vld [vmem:[#allocation6 + $0x120] sm:$0xff]
    %v154 = vld [vmem:[#allocation6 + $0x128] sm:$0xff]
    %v155 = vld [vmem:[#allocation6 + $0x130] sm:$0xff]
    %v156 = vld [vmem:[#allocation6 + $0x138] sm:$0xff]
    %v157 = vld [vmem:[#allocation6 + $0x140] sm:$0xff]
    %v158 = vld [vmem:[#allocation6 + $0x148] sm:$0xff]
    %v159 = vld [vmem:[#allocation6 + $0x150] sm:$0xff]
    %v160 = vld [vmem:[#allocation6 + $0x158] sm:$0xff]
    %v161 = vld [vmem:[#allocation6 + $0x160] sm:$0xff]
    %v162 = vld [vmem:[#allocation6 + $0x168] sm:$0xff]
    %v163 = vld [vmem:[#allocation6 + $0x170] sm:$0xff]
    %v164 = vld [vmem:[#allocation6 + $0x178] sm:$0xff]
    %v165 = vld [vmem:[#allocation6 + $0x180] sm:$0xff]
    %v166 = vld [vmem:[#allocation6 + $0x188] sm:$0xff]
    %v167 = vld [vmem:[#allocation6 + $0x190] sm:$0xff]
    %v168 = vld [vmem:[#allocation6 + $0x198] sm:$0xff]
    %v169 = vld [vmem:[#allocation6 + $0x1a0] sm:$0xff]
    %v170 = vld [vmem:[#allocation6 + $0x1a8] sm:$0xff]
    %v171 = vld [vmem:[#allocation6 + $0x1b0] sm:$0xff]
    %v172 = vld [vmem:[#allocation6 + $0x1b8] sm:$0xff]
    %v173 = vld [vmem:[#allocation6 + $0x1c0] sm:$0xff]
    %v174 = vld [vmem:[#allocation6 + $0x1c8] sm:$0xff]
    %v175 = vld [vmem:[#allocation6 + $0x1d0] sm:$0xff]
    %v176 = vld [vmem:[#allocation6 + $0x1d8] sm:$0xff]
    %v177 = vld [vmem:[#allocation6 + $0x1e0] sm:$0xff]
    %v178 = vld [vmem:[#allocation6 + $0x1e8] sm:$0xff]
    %v179 = vld [vmem:[#allocation6 + $0x1f0] sm:$0xff]
    %v180 = vld [vmem:[#allocation6 + $0x1f8] sm:$0xff]
    %v181 = vld [vmem:[#allocation6 + $0x200] sm:$0xff]
    %v182 = vld [vmem:[#allocation6 + $0x208] sm:$0xff]
    %v183 = vld [vmem:[#allocation6 + $0x210] sm:$0xff]
    %v184 = vld [vmem:[#allocation6 + $0x218] sm:$0xff]
    %v185 = vld [vmem:[#allocation6 + $0x220] sm:$0xff]
    %v186 = vld [vmem:[#allocation6 + $0x228] sm:$0xff]
    %v187 = vld [vmem:[#allocation6 + $0x230] sm:$0xff]
    %v188 = vld [vmem:[#allocation6 + $0x238] sm:$0xff]
    %v189 = vld [vmem:[#allocation6 + $0x240] sm:$0xff]
    %v190 = vld [vmem:[#allocation6 + $0x248] sm:$0xff]
    %v191 = vld [vmem:[#allocation6 + $0x250] sm:$0xff]
    %v192 = vld [vmem:[#allocation6 + $0x258] sm:$0xff]
    %v193 = vld [vmem:[#allocation6 + $0x260] sm:$0xff]
    %v194 = vld [vmem:[#allocation6 + $0x268] sm:$0xff]
    %v195 = vld [vmem:[#allocation6 + $0x270] sm:$0xff]
    %v196 = vld [vmem:[#allocation6 + $0x278] sm:$0xff]
    %v197 = vld [vmem:[#allocation6 + $0x280] sm:$0xff]
    %v198 = vld [vmem:[#allocation6 + $0x288] sm:$0xff]
    %v199 = vld [vmem:[#allocation6 + $0x290] sm:$0xff]
    %v200 = vld [vmem:[#allocation6 + $0x298] sm:$0xff]
    %v201 = vld [vmem:[#allocation6 + $0x2a0] sm:$0xff]
    %v202 = vld [vmem:[#allocation6 + $0x2a8] sm:$0xff]
    %v203 = vld [vmem:[#allocation6 + $0x2b0] sm:$0xff]
    %v204 = vld [vmem:[#allocation6 + $0x2b8] sm:$0xff]
    %v205 = vld [vmem:[#allocation6 + $0x2c0] sm:$0xff]
    %v206 = vld [vmem:[#allocation6 + $0x2c8] sm:$0xff]
    %v207 = vld [vmem:[#allocation6 + $0x2d0] sm:$0xff]
    %v208 = vld [vmem:[#allocation6 + $0x2d8] sm:$0xff]
    %v209 = vld [vmem:[#allocation6 + $0x2e0] sm:$0xff]
    %v210 = vld [vmem:[#allocation6 + $0x2e8] sm:$0xff]
    %v211 = vld [vmem:[#allocation6 + $0x2f0] sm:$0xff]
    %v212 = vld [vmem:[#allocation6 + $0x2f8] sm:$0xff]
    %v213 = vld [vmem:[#allocation6 + $0x300] sm:$0xff]
    %v214 = vld [vmem:[#allocation6 + $0x308] sm:$0xff]
    %v215 = vld [vmem:[#allocation6 + $0x310] sm:$0xff]
    %v216 = vld [vmem:[#allocation6 + $0x318] sm:$0xff]
    %v217 = vld [vmem:[#allocation6 + $0x320] sm:$0xff]
    %v218 = vld [vmem:[#allocation6 + $0x328] sm:$0xff]
    %v219 = vld [vmem:[#allocation6 + $0x330] sm:$0xff]
    %v220 = vld [vmem:[#allocation6 + $0x338] sm:$0xff]
    %v221 = vld [vmem:[#allocation6 + $0x340] sm:$0xff]
    %v222 = vld [vmem:[#allocation6 + $0x348] sm:$0xff]
    %v223 = vld [vmem:[#allocation6 + $0x350] sm:$0xff]
    %v224 = vld [vmem:[#allocation6 + $0x358] sm:$0xff]
    %v225 = vld [vmem:[#allocation6 + $0x360] sm:$0xff]
    %v226 = vld [vmem:[#allocation6 + $0x368] sm:$0xff]
    %v227 = vld [vmem:[#allocation6 + $0x370] sm:$0xff]
    %v228 = vld [vmem:[#allocation6 + $0x378] sm:$0xff]
    %v229 = vld [vmem:[#allocation6 + $0x380] sm:$0xff]
    %v230 = vld [vmem:[#allocation6 + $0x388] sm:$0xff]
    %v231 = vld [vmem:[#allocation6 + $0x390] sm:$0xff]
    %v232 = vld [vmem:[#allocation6 + $0x398] sm:$0xff]
    %v233 = vld [vmem:[#allocation6 + $0x3a0] sm:$0xff]
    %v234 = vld [vmem:[#allocation6 + $0x3a8] sm:$0xff]
    %v235 = vld [vmem:[#allocation6 + $0x3b0] sm:$0xff]
    %v236 = vld [vmem:[#allocation6 + $0x3b8] sm:$0xff]
    %v237 = vld [vmem:[#allocation6 + $0x3c0] sm:$0xff]
    %v238 = vld [vmem:[#allocation6 + $0x3c8] sm:$0xff]
    %v239 = vld [vmem:[#allocation6 + $0x3d0] sm:$0xff]
    %v240 = vld [vmem:[#allocation6 + $0x3d8] sm:$0xff]
    %v241 = vld [vmem:[#allocation6 + $0x3e0] sm:$0xff]
    %v242 = vld [vmem:[#allocation6 + $0x3e8] sm:$0xff]
    %v243 = vld [vmem:[#allocation6 + $0x3f0] sm:$0xff]
    %v244 = vld [vmem:[#allocation6 + $0x3f8] sm:$0xff]
    %v245 = vld [vmem:[#allocation6 + $0x400] sm:$0xff]
    %v246 = vld [vmem:[#allocation6 + $0x408] sm:$0xff]
    %v247 = vld [vmem:[#allocation6 + $0x410] sm:$0xff]
    %v248 = vld [vmem:[#allocation6 + $0x418] sm:$0xff]
    %v249 = vld [vmem:[#allocation6 + $0x420] sm:$0xff]
    %v250 = vld [vmem:[#allocation6 + $0x428] sm:$0xff]
    %v251 = vld [vmem:[#allocation6 + $0x430] sm:$0xff]
    %v252 = vld [vmem:[#allocation6 + $0x438] sm:$0xff]
    %v253 = vld [vmem:[#allocation6 + $0x440] sm:$0xff]
    %v254 = vld [vmem:[#allocation6 + $0x448] sm:$0xff]
    %v255 = vld [vmem:[#allocation6 + $0x450] sm:$0xff]
    %v256 = vld [vmem:[#allocation6 + $0x458] sm:$0xff]
    %v257 = vld [vmem:[#allocation6 + $0x460] sm:$0xff]
    %v258 = vld [vmem:[#allocation6 + $0x468] sm:$0xff]
    %v259 = vld [vmem:[#allocation6 + $0x470] sm:$0xff]
    %v260 = vld [vmem:[#allocation6 + $0x478] sm:$0xff]
    %v261 = vld [vmem:[#allocation6 + $0x480] sm:$0xff]
    %v262 = vld [vmem:[#allocation6 + $0x488] sm:$0xff]
    %v263 = vld [vmem:[#allocation6 + $0x490] sm:$0xff]
    %v264 = vld [vmem:[#allocation6 + $0x498] sm:$0xff]
    %v265 = vld [vmem:[#allocation6 + $0x4a0] sm:$0xff]
    %v266 = vld [vmem:[#allocation6 + $0x4a8] sm:$0xff]
    %v267 = vld [vmem:[#allocation6 + $0x4b0] sm:$0xff]
    %v268 = vld [vmem:[#allocation6 + $0x4b8] sm:$0xff]
    %v269 = vld [vmem:[#allocation6 + $0x4c0] sm:$0xff]
    %v270 = vld [vmem:[#allocation6 + $0x4c8] sm:$0xff]
    %v271 = vld [vmem:[#allocation6 + $0x4d0] sm:$0xff]
    %v272 = vld [vmem:[#allocation6 + $0x4d8] sm:$0xff]
    %v273 = vld [vmem:[#allocation6 + $0x4e0] sm:$0xff]
    %v274 = vld [vmem:[#allocation6 + $0x4e8] sm:$0xff]
    %v275 = vld [vmem:[#allocation6 + $0x4f0] sm:$0xff]
    %v276 = vld [vmem:[#allocation6 + $0x4f8] sm:$0xff]
    %v277 = vld [vmem:[#allocation6 + $0x500] sm:$0xff]
    %v278 = vld [vmem:[#allocation6 + $0x508] sm:$0xff]
    %v279 = vld [vmem:[#allocation6 + $0x510] sm:$0xff]
    %v280 = vld [vmem:[#allocation6 + $0x518] sm:$0xff]
    %v281 = vld [vmem:[#allocation6 + $0x520] sm:$0xff]
    %v282 = vld [vmem:[#allocation6 + $0x528] sm:$0xff]
    %v283 = vld [vmem:[#allocation6 + $0x530] sm:$0xff]
    %v284 = vld [vmem:[#allocation6 + $0x538] sm:$0xff]
    %v285 = vld [vmem:[#allocation6 + $0x540] sm:$0xff]
    %v286 = vld [vmem:[#allocation6 + $0x548] sm:$0xff]
    %v287 = vld [vmem:[#allocation6 + $0x550] sm:$0xff]
    %v288 = vld [vmem:[#allocation6 + $0x558] sm:$0xff]
    %v289 = vld [vmem:[#allocation6 + $0x560] sm:$0xff]
    %v290 = vld [vmem:[#allocation6 + $0x568] sm:$0xff]
    %v291 = vld [vmem:[#allocation6 + $0x570] sm:$0xff]
    %v292 = vld [vmem:[#allocation6 + $0x578] sm:$0xff]
    %v293 = vld [vmem:[#allocation6 + $0x580] sm:$0xff]
    %v294 = vld [vmem:[#allocation6 + $0x588] sm:$0xff]
    %v295 = vld [vmem:[#allocation6 + $0x590] sm:$0xff]
    %v296 = vld [vmem:[#allocation6 + $0x598] sm:$0xff]
    %v297 = vld [vmem:[#allocation6 + $0x5a0] sm:$0xff]
    %v298 = vld [vmem:[#allocation6 + $0x5a8] sm:$0xff]
    %v299 = vld [vmem:[#allocation6 + $0x5b0] sm:$0xff]
    %v300 = vld [vmem:[#allocation6 + $0x5b8] sm:$0xff]
    %v301 = vld [vmem:[#allocation6 + $0x5c0] sm:$0xff]
    %v302 = vld [vmem:[#allocation6 + $0x5c8] sm:$0xff]
    %v303 = vld [vmem:[#allocation6 + $0x5d0] sm:$0xff]
    %v304 = vld [vmem:[#allocation6 + $0x5d8] sm:$0xff]
    %v305 = vld [vmem:[#allocation6 + $0x5e0] sm:$0xff]
    %v306 = vld [vmem:[#allocation6 + $0x5e8] sm:$0xff]
    %v307 = vld [vmem:[#allocation6 + $0x5f0] sm:$0xff]
    %v308 = vld [vmem:[#allocation6 + $0x5f8] sm:$0xff]
    %v309 = vld [vmem:[#allocation6 + $0x600] sm:$0xff]
    %v310 = vld [vmem:[#allocation6 + $0x608] sm:$0xff]
    %v311 = vld [vmem:[#allocation6 + $0x610] sm:$0xff]
    %v312 = vld [vmem:[#allocation6 + $0x618] sm:$0xff]
    %v313 = vld [vmem:[#allocation6 + $0x620] sm:$0xff]
    %v314 = vld [vmem:[#allocation6 + $0x628] sm:$0xff]
    %v315 = vld [vmem:[#allocation6 + $0x630] sm:$0xff]
    %v316 = vld [vmem:[#allocation6 + $0x638] sm:$0xff]
    %v317 = vld [vmem:[#allocation6 + $0x640] sm:$0xff]
    %v318 = vld [vmem:[#allocation6 + $0x648] sm:$0xff]
    %v319 = vld [vmem:[#allocation6 + $0x650] sm:$0xff]
    %v320 = vld [vmem:[#allocation6 + $0x658] sm:$0xff]
    %v321 = vld [vmem:[#allocation6 + $0x660] sm:$0xff]
    %v322 = vld [vmem:[#allocation6 + $0x668] sm:$0xff]
    %v323 = vld [vmem:[#allocation6 + $0x670] sm:$0xff]
    %v324 = vld [vmem:[#allocation6 + $0x678] sm:$0xff]
    %v325 = vld [vmem:[#allocation6 + $0x680] sm:$0xff]
    %v326 = vld [vmem:[#allocation6 + $0x688] sm:$0xff]
    %v327 = vld [vmem:[#allocation6 + $0x690] sm:$0xff]
    %v328 = vld [vmem:[#allocation6 + $0x698] sm:$0xff]
    %v329 = vld [vmem:[#allocation6 + $0x6a0] sm:$0xff]
    %v330 = vld [vmem:[#allocation6 + $0x6a8] sm:$0xff]
    %v331 = vld [vmem:[#allocation6 + $0x6b0] sm:$0xff]
    %v332 = vld [vmem:[#allocation6 + $0x6b8] sm:$0xff]
    %v333 = vld [vmem:[#allocation6 + $0x6c0] sm:$0xff]
    %v334 = vld [vmem:[#allocation6 + $0x6c8] sm:$0xff]
    %v335 = vld [vmem:[#allocation6 + $0x6d0] sm:$0xff]
    %v336 = vld [vmem:[#allocation6 + $0x6d8] sm:$0xff]
    %v337 = vld [vmem:[#allocation6 + $0x6e0] sm:$0xff]
    %v338 = vld [vmem:[#allocation6 + $0x6e8] sm:$0xff]
    %v339 = vld [vmem:[#allocation6 + $0x6f0] sm:$0xff]
    %v340 = vld [vmem:[#allocation6 + $0x6f8] sm:$0xff]
    %v341 = vld [vmem:[#allocation6 + $0x700] sm:$0xff]
    %v342 = vld [vmem:[#allocation6 + $0x708] sm:$0xff]
    %v343 = vld [vmem:[#allocation6 + $0x710] sm:$0xff]
    %v344 = vld [vmem:[#allocation6 + $0x718] sm:$0xff]
    %v345 = vld [vmem:[#allocation6 + $0x720] sm:$0xff]
    %v346 = vld [vmem:[#allocation6 + $0x728] sm:$0xff]
    %v347 = vld [vmem:[#allocation6 + $0x730] sm:$0xff]
    %v348 = vld [vmem:[#allocation6 + $0x738] sm:$0xff]
    %v349 = vld [vmem:[#allocation6 + $0x740] sm:$0xff]
    %v350 = vld [vmem:[#allocation6 + $0x748] sm:$0xff]
    %v351 = vld [vmem:[#allocation6 + $0x750] sm:$0xff]
    %v352 = vld [vmem:[#allocation6 + $0x758] sm:$0xff]
    %v353 = vld [vmem:[#allocation6 + $0x760] sm:$0xff]
    %v354 = vld [vmem:[#allocation6 + $0x768] sm:$0xff]
    %v355 = vld [vmem:[#allocation6 + $0x770] sm:$0xff]
    %v356 = vld [vmem:[#allocation6 + $0x778] sm:$0xff]
    %v357 = vld [vmem:[#allocation6 + $0x780] sm:$0xff]
    %v358 = vld [vmem:[#allocation6 + $0x788] sm:$0xff]
    %v359 = vld [vmem:[#allocation6 + $0x790] sm:$0xff]
    %v360 = vld [vmem:[#allocation6 + $0x798] sm:$0xff]
    %v361 = vld [vmem:[#allocation6 + $0x7a0] sm:$0xff]
    %v362 = vld [vmem:[#allocation6 + $0x7a8] sm:$0xff]
    %v363 = vld [vmem:[#allocation6 + $0x7b0] sm:$0xff]
    %v364 = vld [vmem:[#allocation6 + $0x7b8] sm:$0xff]
    %v365 = vld [vmem:[#allocation6 + $0x7c0] sm:$0xff]
    %v366 = vld [vmem:[#allocation6 + $0x7c8] sm:$0xff]
    %v367 = vld [vmem:[#allocation6 + $0x7d0] sm:$0xff]
    %v368 = vld [vmem:[#allocation6 + $0x7d8] sm:$0xff]
    %v369 = vld [vmem:[#allocation6 + $0x7e0] sm:$0xff]
    %v370 = vld [vmem:[#allocation6 + $0x7e8] sm:$0xff]
    %v371 = vld [vmem:[#allocation6 + $0x7f0] sm:$0xff]
    %v372 = vld [vmem:[#allocation6 + $0x7f8] sm:$0xff]
    %v373 = vld [vmem:[#allocation9] sm:$0xff]
    %v374 = vld [vmem:[#allocation9 + $0x8] sm:$0xff]
    %v375 = vld [vmem:[#allocation9 + $0x10] sm:$0xff]
    %v376 = vld [vmem:[#allocation9 + $0x18] sm:$0xff]
    %v377 = vld [vmem:[#allocation9 + $0x20] sm:$0xff]
    %v378 = vld [vmem:[#allocation9 + $0x28] sm:$0xff]
    %v379 = vld [vmem:[#allocation9 + $0x30] sm:$0xff]
    %v380 = vld [vmem:[#allocation9 + $0x38] sm:$0xff]
    %v381 = vld [vmem:[#allocation9 + $0x40] sm:$0xff]
    %v382 = vld [vmem:[#allocation9 + $0x48] sm:$0xff]
    %v383 = vld [vmem:[#allocation9 + $0x50] sm:$0xff]
    %v384 = vld [vmem:[#allocation9 + $0x58] sm:$0xff]
    %v385 = vld [vmem:[#allocation9 + $0x60] sm:$0xff]
    %v386 = vld [vmem:[#allocation9 + $0x68] sm:$0xff]
    %v387 = vld [vmem:[#allocation9 + $0x70] sm:$0xff]
    %v388 = vld [vmem:[#allocation9 + $0x78] sm:$0xff]
    %v389 = vld [vmem:[#allocation9 + $0x80] sm:$0xff]
    %v390 = vld [vmem:[#allocation9 + $0x88] sm:$0xff]
    %v391 = vld [vmem:[#allocation9 + $0x90] sm:$0xff]
    %v392 = vld [vmem:[#allocation9 + $0x98] sm:$0xff]
    %v393 = vld [vmem:[#allocation9 + $0xa0] sm:$0xff]
    %v394 = vld [vmem:[#allocation9 + $0xa8] sm:$0xff]
    %v395 = vld [vmem:[#allocation9 + $0xb0] sm:$0xff]
    %v396 = vld [vmem:[#allocation9 + $0xb8] sm:$0xff]
    %v397 = vld [vmem:[#allocation9 + $0xc0] sm:$0xff]
    %v398 = vld [vmem:[#allocation9 + $0xc8] sm:$0xff]
    %v399 = vld [vmem:[#allocation9 + $0xd0] sm:$0xff]
    %v400 = vld [vmem:[#allocation9 + $0xd8] sm:$0xff]
    %v401 = vld [vmem:[#allocation9 + $0xe0] sm:$0xff]
    %v402 = vld [vmem:[#allocation9 + $0xe8] sm:$0xff]
    %v403 = vld [vmem:[#allocation9 + $0xf0] sm:$0xff]
    %v404 = vld [vmem:[#allocation9 + $0xf8] sm:$0xff]
    %v405 = vld [vmem:[#allocation9 + $0x100] sm:$0xff]
    %v406 = vld [vmem:[#allocation9 + $0x108] sm:$0xff]
    %v407 = vld [vmem:[#allocation9 + $0x110] sm:$0xff]
    %v408 = vld [vmem:[#allocation9 + $0x118] sm:$0xff]
    %v409 = vld [vmem:[#allocation9 + $0x120] sm:$0xff]
    %v410 = vld [vmem:[#allocation9 + $0x128] sm:$0xff]
    %v411 = vld [vmem:[#allocation9 + $0x130] sm:$0xff]
    %v412 = vld [vmem:[#allocation9 + $0x138] sm:$0xff]
    %v413 = vld [vmem:[#allocation9 + $0x140] sm:$0xff]
    %v414 = vld [vmem:[#allocation9 + $0x148] sm:$0xff]
    %v415 = vld [vmem:[#allocation9 + $0x150] sm:$0xff]
    %v416 = vld [vmem:[#allocation9 + $0x158] sm:$0xff]
    %v417 = vld [vmem:[#allocation9 + $0x160] sm:$0xff]
    %v418 = vld [vmem:[#allocation9 + $0x168] sm:$0xff]
    %v419 = vld [vmem:[#allocation9 + $0x170] sm:$0xff]
    %v420 = vld [vmem:[#allocation9 + $0x178] sm:$0xff]
    %v421 = vld [vmem:[#allocation9 + $0x180] sm:$0xff]
    %v422 = vld [vmem:[#allocation9 + $0x188] sm:$0xff]
    %v423 = vld [vmem:[#allocation9 + $0x190] sm:$0xff]
    %v424 = vld [vmem:[#allocation9 + $0x198] sm:$0xff]
    %v425 = vld [vmem:[#allocation9 + $0x1a0] sm:$0xff]
    %v426 = vld [vmem:[#allocation9 + $0x1a8] sm:$0xff]
    %v427 = vld [vmem:[#allocation9 + $0x1b0] sm:$0xff]
    %v428 = vld [vmem:[#allocation9 + $0x1b8] sm:$0xff]
    %v429 = vld [vmem:[#allocation9 + $0x1c0] sm:$0xff]
    %v430 = vld [vmem:[#allocation9 + $0x1c8] sm:$0xff]
    %v431 = vld [vmem:[#allocation9 + $0x1d0] sm:$0xff]
    %v432 = vld [vmem:[#allocation9 + $0x1d8] sm:$0xff]
    %v433 = vld [vmem:[#allocation9 + $0x1e0] sm:$0xff]
    %v434 = vld [vmem:[#allocation9 + $0x1e8] sm:$0xff]
    %v435 = vld [vmem:[#allocation9 + $0x1f0] sm:$0xff]
    %v436 = vld [vmem:[#allocation9 + $0x1f8] sm:$0xff]
    %v437 = vld [vmem:[#allocation9 + $0x200] sm:$0xff]
    %v438 = vld [vmem:[#allocation9 + $0x208] sm:$0xff]
    %v439 = vld [vmem:[#allocation9 + $0x210] sm:$0xff]
    %v440 = vld [vmem:[#allocation9 + $0x218] sm:$0xff]
    %v441 = vld [vmem:[#allocation9 + $0x220] sm:$0xff]
    %v442 = vld [vmem:[#allocation9 + $0x228] sm:$0xff]
    %v443 = vld [vmem:[#allocation9 + $0x230] sm:$0xff]
    %v444 = vld [vmem:[#allocation9 + $0x238] sm:$0xff]
    %v445 = vld [vmem:[#allocation9 + $0x240] sm:$0xff]
    %v446 = vld [vmem:[#allocation9 + $0x248] sm:$0xff]
    %v447 = vld [vmem:[#allocation9 + $0x250] sm:$0xff]
    %v448 = vld [vmem:[#allocation9 + $0x258] sm:$0xff]
    %v449 = vld [vmem:[#allocation9 + $0x260] sm:$0xff]
    %v450 = vld [vmem:[#allocation9 + $0x268] sm:$0xff]
    %v451 = vld [vmem:[#allocation9 + $0x270] sm:$0xff]
    %v452 = vld [vmem:[#allocation9 + $0x278] sm:$0xff]
    %v453 = vld [vmem:[#allocation9 + $0x280] sm:$0xff]
    %v454 = vld [vmem:[#allocation9 + $0x288] sm:$0xff]
    %v455 = vld [vmem:[#allocation9 + $0x290] sm:$0xff]
    %v456 = vld [vmem:[#allocation9 + $0x298] sm:$0xff]
    %v457 = vld [vmem:[#allocation9 + $0x2a0] sm:$0xff]
    %v458 = vld [vmem:[#allocation9 + $0x2a8] sm:$0xff]
    %v459 = vld [vmem:[#allocation9 + $0x2b0] sm:$0xff]
    %v460 = vld [vmem:[#allocation9 + $0x2b8] sm:$0xff]
    %v461 = vld [vmem:[#allocation9 + $0x2c0] sm:$0xff]
    %v462 = vld [vmem:[#allocation9 + $0x2c8] sm:$0xff]
    %v463 = vld [vmem:[#allocation9 + $0x2d0] sm:$0xff]
    %v464 = vld [vmem:[#allocation9 + $0x2d8] sm:$0xff]
    %v465 = vld [vmem:[#allocation9 + $0x2e0] sm:$0xff]
    %v466 = vld [vmem:[#allocation9 + $0x2e8] sm:$0xff]
    %v467 = vld [vmem:[#allocation9 + $0x2f0] sm:$0xff]
    %v468 = vld [vmem:[#allocation9 + $0x2f8] sm:$0xff]
    %v469 = vld [vmem:[#allocation9 + $0x300] sm:$0xff]
    %v470 = vld [vmem:[#allocation9 + $0x308] sm:$0xff]
    %v471 = vld [vmem:[#allocation9 + $0x310] sm:$0xff]
    %v472 = vld [vmem:[#allocation9 + $0x318] sm:$0xff]
    %v473 = vld [vmem:[#allocation9 + $0x320] sm:$0xff]
    %v474 = vld [vmem:[#allocation9 + $0x328] sm:$0xff]
    %v475 = vld [vmem:[#allocation9 + $0x330] sm:$0xff]
    %v476 = vld [vmem:[#allocation9 + $0x338] sm:$0xff]
    %v477 = vld [vmem:[#allocation9 + $0x340] sm:$0xff]
    %v478 = vld [vmem:[#allocation9 + $0x348] sm:$0xff]
    %v479 = vld [vmem:[#allocation9 + $0x350] sm:$0xff]
    %v480 = vld [vmem:[#allocation9 + $0x358] sm:$0xff]
    %v481 = vld [vmem:[#allocation9 + $0x360] sm:$0xff]
    %v482 = vld [vmem:[#allocation9 + $0x368] sm:$0xff]
    %v483 = vld [vmem:[#allocation9 + $0x370] sm:$0xff]
    %v484 = vld [vmem:[#allocation9 + $0x378] sm:$0xff]
    %v485 = vld [vmem:[#allocation9 + $0x380] sm:$0xff]
    %v486 = vld [vmem:[#allocation9 + $0x388] sm:$0xff]
    %v487 = vld [vmem:[#allocation9 + $0x390] sm:$0xff]
    %v488 = vld [vmem:[#allocation9 + $0x398] sm:$0xff]
    %v489 = vld [vmem:[#allocation9 + $0x3a0] sm:$0xff]
    %v490 = vld [vmem:[#allocation9 + $0x3a8] sm:$0xff]
    %v491 = vld [vmem:[#allocation9 + $0x3b0] sm:$0xff]
    %v492 = vld [vmem:[#allocation9 + $0x3b8] sm:$0xff]
    %v493 = vld [vmem:[#allocation9 + $0x3c0] sm:$0xff]
    %v494 = vld [vmem:[#allocation9 + $0x3c8] sm:$0xff]
    %v495 = vld [vmem:[#allocation9 + $0x3d0] sm:$0xff]
    %v496 = vld [vmem:[#allocation9 + $0x3d8] sm:$0xff]
    %v497 = vld [vmem:[#allocation9 + $0x3e0] sm:$0xff]
    %v498 = vld [vmem:[#allocation9 + $0x3e8] sm:$0xff]
    %v499 = vld [vmem:[#allocation9 + $0x3f0] sm:$0xff]
    %v500 = vld [vmem:[#allocation9 + $0x3f8] sm:$0xff]
    %v501 = vld [vmem:[#allocation9 + $0x400] sm:$0xff]
    %v502 = vld [vmem:[#allocation9 + $0x408] sm:$0xff]
    %v503 = vld [vmem:[#allocation9 + $0x410] sm:$0xff]
    %v504 = vld [vmem:[#allocation9 + $0x418] sm:$0xff]
    %v505 = vld [vmem:[#allocation9 + $0x420] sm:$0xff]
    %v506 = vld [vmem:[#allocation9 + $0x428] sm:$0xff]
    %v507 = vld [vmem:[#allocation9 + $0x430] sm:$0xff]
    %v508 = vld [vmem:[#allocation9 + $0x438] sm:$0xff]
    %v509 = vld [vmem:[#allocation9 + $0x440] sm:$0xff]
    %v510 = vld [vmem:[#allocation9 + $0x448] sm:$0xff]
    %v511 = vld [vmem:[#allocation9 + $0x450] sm:$0xff]
    %v512 = vld [vmem:[#allocation9 + $0x458] sm:$0xff]
    %v513 = vld [vmem:[#allocation9 + $0x460] sm:$0xff]
    %v514 = vld [vmem:[#allocation9 + $0x468] sm:$0xff]
    %v515 = vld [vmem:[#allocation9 + $0x470] sm:$0xff]
    %v516 = vld [vmem:[#allocation9 + $0x478] sm:$0xff]
    %v517 = vld [vmem:[#allocation9 + $0x480] sm:$0xff]
    %v518 = vld [vmem:[#allocation9 + $0x488] sm:$0xff]
    %v519 = vld [vmem:[#allocation9 + $0x490] sm:$0xff]
    %v520 = vld [vmem:[#allocation9 + $0x498] sm:$0xff]
    %v521 = vld [vmem:[#allocation9 + $0x4a0] sm:$0xff]
    %v522 = vld [vmem:[#allocation9 + $0x4a8] sm:$0xff]
    %v523 = vld [vmem:[#allocation9 + $0x4b0] sm:$0xff]
    %v524 = vld [vmem:[#allocation9 + $0x4b8] sm:$0xff]
    %v525 = vld [vmem:[#allocation9 + $0x4c0] sm:$0xff]
    %v526 = vld [vmem:[#allocation9 + $0x4c8] sm:$0xff]
    %v527 = vld [vmem:[#allocation9 + $0x4d0] sm:$0xff]
    %v528 = vld [vmem:[#allocation9 + $0x4d8] sm:$0xff]
    %v529 = vld [vmem:[#allocation9 + $0x4e0] sm:$0xff]
    %v530 = vld [vmem:[#allocation9 + $0x4e8] sm:$0xff]
    %v531 = vld [vmem:[#allocation9 + $0x4f0] sm:$0xff]
    %v532 = vld [vmem:[#allocation9 + $0x4f8] sm:$0xff]
    %v533 = vld [vmem:[#allocation9 + $0x500] sm:$0xff]
    %v534 = vld [vmem:[#allocation9 + $0x508] sm:$0xff]
    %v535 = vld [vmem:[#allocation9 + $0x510] sm:$0xff]
    %v536 = vld [vmem:[#allocation9 + $0x518] sm:$0xff]
    %v537 = vld [vmem:[#allocation9 + $0x520] sm:$0xff]
    %v538 = vld [vmem:[#allocation9 + $0x528] sm:$0xff]
    %v539 = vld [vmem:[#allocation9 + $0x530] sm:$0xff]
    %v540 = vld [vmem:[#allocation9 + $0x538] sm:$0xff]
    %v541 = vld [vmem:[#allocation9 + $0x540] sm:$0xff]
    %v542 = vld [vmem:[#allocation9 + $0x548] sm:$0xff]
    %v543 = vld [vmem:[#allocation9 + $0x550] sm:$0xff]
    %v544 = vld [vmem:[#allocation9 + $0x558] sm:$0xff]
    %v545 = vld [vmem:[#allocation9 + $0x560] sm:$0xff]
    %v546 = vld [vmem:[#allocation9 + $0x568] sm:$0xff]
    %v547 = vld [vmem:[#allocation9 + $0x570] sm:$0xff]
    %v548 = vld [vmem:[#allocation9 + $0x578] sm:$0xff]
    %v549 = vld [vmem:[#allocation9 + $0x580] sm:$0xff]
    %v550 = vld [vmem:[#allocation9 + $0x588] sm:$0xff]
    %v551 = vld [vmem:[#allocation9 + $0x590] sm:$0xff]
    %v552 = vld [vmem:[#allocation9 + $0x598] sm:$0xff]
    %v553 = vld [vmem:[#allocation9 + $0x5a0] sm:$0xff]
    %v554 = vld [vmem:[#allocation9 + $0x5a8] sm:$0xff]
    %v555 = vld [vmem:[#allocation9 + $0x5b0] sm:$0xff]
    %v556 = vld [vmem:[#allocation9 + $0x5b8] sm:$0xff]
    %v557 = vld [vmem:[#allocation9 + $0x5c0] sm:$0xff]
    %v558 = vld [vmem:[#allocation9 + $0x5c8] sm:$0xff]
    %v559 = vld [vmem:[#allocation9 + $0x5d0] sm:$0xff]
    %v560 = vld [vmem:[#allocation9 + $0x5d8] sm:$0xff]
    %v561 = vld [vmem:[#allocation9 + $0x5e0] sm:$0xff]
    %v562 = vld [vmem:[#allocation9 + $0x5e8] sm:$0xff]
    %v563 = vld [vmem:[#allocation9 + $0x5f0] sm:$0xff]
    %v564 = vld [vmem:[#allocation9 + $0x5f8] sm:$0xff]
    %v565 = vld [vmem:[#allocation9 + $0x600] sm:$0xff]
    %v566 = vld [vmem:[#allocation9 + $0x608] sm:$0xff]
    %v567 = vld [vmem:[#allocation9 + $0x610] sm:$0xff]
    %v568 = vld [vmem:[#allocation9 + $0x618] sm:$0xff]
    %v569 = vld [vmem:[#allocation9 + $0x620] sm:$0xff]
    %v570 = vld [vmem:[#allocation9 + $0x628] sm:$0xff]
    %v571 = vld [vmem:[#allocation9 + $0x630] sm:$0xff]
    %v572 = vld [vmem:[#allocation9 + $0x638] sm:$0xff]
    %v573 = vld [vmem:[#allocation9 + $0x640] sm:$0xff]
    %v574 = vld [vmem:[#allocation9 + $0x648] sm:$0xff]
    %v575 = vld [vmem:[#allocation9 + $0x650] sm:$0xff]
    %v576 = vld [vmem:[#allocation9 + $0x658] sm:$0xff]
    %v577 = vld [vmem:[#allocation9 + $0x660] sm:$0xff]
    %v578 = vld [vmem:[#allocation9 + $0x668] sm:$0xff]
    %v579 = vld [vmem:[#allocation9 + $0x670] sm:$0xff]
    %v580 = vld [vmem:[#allocation9 + $0x678] sm:$0xff]
    %v581 = vld [vmem:[#allocation9 + $0x680] sm:$0xff]
    %v582 = vld [vmem:[#allocation9 + $0x688] sm:$0xff]
    %v583 = vld [vmem:[#allocation9 + $0x690] sm:$0xff]
    %v584 = vld [vmem:[#allocation9 + $0x698] sm:$0xff]
    %v585 = vld [vmem:[#allocation9 + $0x6a0] sm:$0xff]
    %v586 = vld [vmem:[#allocation9 + $0x6a8] sm:$0xff]
    %v587 = vld [vmem:[#allocation9 + $0x6b0] sm:$0xff]
    %v588 = vld [vmem:[#allocation9 + $0x6b8] sm:$0xff]
    %v589 = vld [vmem:[#allocation9 + $0x6c0] sm:$0xff]
    %v590 = vld [vmem:[#allocation9 + $0x6c8] sm:$0xff]
    %v591 = vld [vmem:[#allocation9 + $0x6d0] sm:$0xff]
    %v592 = vld [vmem:[#allocation9 + $0x6d8] sm:$0xff]
    %v593 = vld [vmem:[#allocation9 + $0x6e0] sm:$0xff]
    %v594 = vld [vmem:[#allocation9 + $0x6e8] sm:$0xff]
    %v595 = vld [vmem:[#allocation9 + $0x6f0] sm:$0xff]
    %v596 = vld [vmem:[#allocation9 + $0x6f8] sm:$0xff]
    %v597 = vld [vmem:[#allocation9 + $0x700] sm:$0xff]
    %v598 = vld [vmem:[#allocation9 + $0x708] sm:$0xff]
    %v599 = vld [vmem:[#allocation9 + $0x710] sm:$0xff]
    %v600 = vld [vmem:[#allocation9 + $0x718] sm:$0xff]
    %v601 = vld [vmem:[#allocation9 + $0x720] sm:$0xff]
    %v602 = vld [vmem:[#allocation9 + $0x728] sm:$0xff]
    %v603 = vld [vmem:[#allocation9 + $0x730] sm:$0xff]
    %v604 = vld [vmem:[#allocation9 + $0x738] sm:$0xff]
    %v605 = vld [vmem:[#allocation9 + $0x740] sm:$0xff]
    %v606 = vld [vmem:[#allocation9 + $0x748] sm:$0xff]
    %v607 = vld [vmem:[#allocation9 + $0x750] sm:$0xff]
    %v608 = vld [vmem:[#allocation9 + $0x758] sm:$0xff]
    %v609 = vld [vmem:[#allocation9 + $0x760] sm:$0xff]
    %v610 = vld [vmem:[#allocation9 + $0x768] sm:$0xff]
    %v611 = vld [vmem:[#allocation9 + $0x770] sm:$0xff]
    %v612 = vld [vmem:[#allocation9 + $0x778] sm:$0xff]
    %v613 = vld [vmem:[#allocation9 + $0x780] sm:$0xff]
    %v614 = vld [vmem:[#allocation9 + $0x788] sm:$0xff]
    %v615 = vld [vmem:[#allocation9 + $0x790] sm:$0xff]
    %v616 = vld [vmem:[#allocation9 + $0x798] sm:$0xff]
    %v617 = vld [vmem:[#allocation9 + $0x7a0] sm:$0xff]
    %v618 = vld [vmem:[#allocation9 + $0x7a8] sm:$0xff]
    %v619 = vld [vmem:[#allocation9 + $0x7b0] sm:$0xff]
    %v620 = vld [vmem:[#allocation9 + $0x7b8] sm:$0xff]
    %v621 = vld [vmem:[#allocation9 + $0x7c0] sm:$0xff]
    %v622 = vld [vmem:[#allocation9 + $0x7c8] sm:$0xff]
    %v623 = vld [vmem:[#allocation9 + $0x7d0] sm:$0xff]
    %v624 = vld [vmem:[#allocation9 + $0x7d8] sm:$0xff]
    %v625 = vld [vmem:[#allocation9 + $0x7e0] sm:$0xff]
    %v626 = vld [vmem:[#allocation9 + $0x7e8] sm:$0xff]
    %v627 = vld [vmem:[#allocation9 + $0x7f0] sm:$0xff]
    %v628 = vld [vmem:[#allocation9 + $0x7f8] sm:$0xff]
    %v629 = vld [vmem:[%s2] sm:$0xf]
    %v631 = vlaneseq
    %v632 = vshrl.u32 %v631, 7
    %v633 = vsub.s32 0, %v632
    %v634 = vrot.slane %v629, %v633
    %v635 = vlaneseq
    %v636 = vshrl.u32 %v635, 7
    %v637 = vsub.s32 1, %v636
    %v638 = vrot.slane %v629, %v637
    %v639 = vlaneseq
    %v640 = vshrl.u32 %v639, 7
    %v641 = vsub.s32 2, %v640
    %v642 = vrot.slane %v629, %v641
    %v643 = vlaneseq
    %v644 = vshrl.u32 %v643, 7
    %v645 = vsub.s32 3, %v644
    %v646 = vrot.slane %v629, %v645
    %v907 = vunpack.c.l.b16 %v117
    %v908 = vunpack.c.h.b16 %v117
    %v909 = vunpack.c.l.b16 %v118
    %v910 = vunpack.c.h.b16 %v118
    %v911 = vunpack.c.l.b16 %v119
    %v912 = vunpack.c.h.b16 %v119
    %v913 = vunpack.c.l.b16 %v120
    %v914 = vunpack.c.h.b16 %v120
    %v915 = vunpack.c.l.b16 %v121
    %v916 = vunpack.c.h.b16 %v121
    %v917 = vunpack.c.l.b16 %v122
    %v918 = vunpack.c.h.b16 %v122
    %v919 = vunpack.c.l.b16 %v123
    %v920 = vunpack.c.h.b16 %v123
    %v921 = vunpack.c.l.b16 %v124
    %v922 = vunpack.c.h.b16 %v124
    %v923 = vunpack.c.l.b16 %v125
    %v924 = vunpack.c.h.b16 %v125
    %v925 = vunpack.c.l.b16 %v126
    %v926 = vunpack.c.h.b16 %v126
    %v927 = vunpack.c.l.b16 %v127
    %v928 = vunpack.c.h.b16 %v127
    %v929 = vunpack.c.l.b16 %v128
    %v930 = vunpack.c.h.b16 %v128
    %v931 = vunpack.c.l.b16 %v129
    %v932 = vunpack.c.h.b16 %v129
    %v933 = vunpack.c.l.b16 %v130
    %v934 = vunpack.c.h.b16 %v130
    %v935 = vunpack.c.l.b16 %v131
    %v936 = vunpack.c.h.b16 %v131
    %v937 = vunpack.c.l.b16 %v132
    %v938 = vunpack.c.h.b16 %v132
    %v939 = vunpack.c.l.b16 %v133
    %v940 = vunpack.c.h.b16 %v133
    %v941 = vunpack.c.l.b16 %v134
    %v942 = vunpack.c.h.b16 %v134
    %v943 = vunpack.c.l.b16 %v135
    %v944 = vunpack.c.h.b16 %v135
    %v945 = vunpack.c.l.b16 %v136
    %v946 = vunpack.c.h.b16 %v136
    %v947 = vunpack.c.l.b16 %v137
    %v948 = vunpack.c.h.b16 %v137
    %v949 = vunpack.c.l.b16 %v138
    %v950 = vunpack.c.h.b16 %v138
    %v951 = vunpack.c.l.b16 %v139
    %v952 = vunpack.c.h.b16 %v139
    %v953 = vunpack.c.l.b16 %v140
    %v954 = vunpack.c.h.b16 %v140
    %v955 = vunpack.c.l.b16 %v141
    %v956 = vunpack.c.h.b16 %v141
    %v957 = vunpack.c.l.b16 %v142
    %v958 = vunpack.c.h.b16 %v142
    %v959 = vunpack.c.l.b16 %v143
    %v960 = vunpack.c.h.b16 %v143
    %v961 = vunpack.c.l.b16 %v144
    %v962 = vunpack.c.h.b16 %v144
    %v963 = vunpack.c.l.b16 %v145
    %v964 = vunpack.c.h.b16 %v145
    %v965 = vunpack.c.l.b16 %v146
    %v966 = vunpack.c.h.b16 %v146
    %v967 = vunpack.c.l.b16 %v147
    %v968 = vunpack.c.h.b16 %v147
    %v969 = vunpack.c.l.b16 %v148
    %v970 = vunpack.c.h.b16 %v148
    %v971 = vunpack.c.l.b16 %v149
    %v972 = vunpack.c.h.b16 %v149
    %v973 = vunpack.c.l.b16 %v150
    %v974 = vunpack.c.h.b16 %v150
    %v975 = vunpack.c.l.b16 %v151
    %v976 = vunpack.c.h.b16 %v151
    %v977 = vunpack.c.l.b16 %v152
    %v978 = vunpack.c.h.b16 %v152
    %v979 = vunpack.c.l.b16 %v153
    %v980 = vunpack.c.h.b16 %v153
    %v981 = vunpack.c.l.b16 %v154
    %v982 = vunpack.c.h.b16 %v154
    %v983 = vunpack.c.l.b16 %v155
    %v984 = vunpack.c.h.b16 %v155
    %v985 = vunpack.c.l.b16 %v156
    %v986 = vunpack.c.h.b16 %v156
    %v987 = vunpack.c.l.b16 %v157
    %v988 = vunpack.c.h.b16 %v157
    %v989 = vunpack.c.l.b16 %v158
    %v990 = vunpack.c.h.b16 %v158
    %v991 = vunpack.c.l.b16 %v159
    %v992 = vunpack.c.h.b16 %v159
    %v993 = vunpack.c.l.b16 %v160
    %v994 = vunpack.c.h.b16 %v160
    %v995 = vunpack.c.l.b16 %v161
    %v996 = vunpack.c.h.b16 %v161
    %v997 = vunpack.c.l.b16 %v162
    %v998 = vunpack.c.h.b16 %v162
    %v999 = vunpack.c.l.b16 %v163
    %v1000 = vunpack.c.h.b16 %v163
    %v1001 = vunpack.c.l.b16 %v164
    %v1002 = vunpack.c.h.b16 %v164
    %v1003 = vunpack.c.l.b16 %v165
    %v1004 = vunpack.c.h.b16 %v165
    %v1005 = vunpack.c.l.b16 %v166
    %v1006 = vunpack.c.h.b16 %v166
    %v1007 = vunpack.c.l.b16 %v167
    %v1008 = vunpack.c.h.b16 %v167
    %v1009 = vunpack.c.l.b16 %v168
    %v1010 = vunpack.c.h.b16 %v168
    %v1011 = vunpack.c.l.b16 %v169
    %v1012 = vunpack.c.h.b16 %v169
    %v1013 = vunpack.c.l.b16 %v170
    %v1014 = vunpack.c.h.b16 %v170
    %v1015 = vunpack.c.l.b16 %v171
    %v1016 = vunpack.c.h.b16 %v171
    %v1017 = vunpack.c.l.b16 %v172
    %v1018 = vunpack.c.h.b16 %v172
    %v1019 = vunpack.c.l.b16 %v173
    %v1020 = vunpack.c.h.b16 %v173
    %v1021 = vunpack.c.l.b16 %v174
    %v1022 = vunpack.c.h.b16 %v174
    %v1023 = vunpack.c.l.b16 %v175
    %v1024 = vunpack.c.h.b16 %v175
    %v1025 = vunpack.c.l.b16 %v176
    %v1026 = vunpack.c.h.b16 %v176
    %v1027 = vunpack.c.l.b16 %v177
    %v1028 = vunpack.c.h.b16 %v177
    %v1029 = vunpack.c.l.b16 %v178
    %v1030 = vunpack.c.h.b16 %v178
    %v1031 = vunpack.c.l.b16 %v179
    %v1032 = vunpack.c.h.b16 %v179
    %v1033 = vunpack.c.l.b16 %v180
    %v1034 = vunpack.c.h.b16 %v180
    %v1035 = vunpack.c.l.b16 %v181
    %v1036 = vunpack.c.h.b16 %v181
    %v1037 = vunpack.c.l.b16 %v182
    %v1038 = vunpack.c.h.b16 %v182
    %v1039 = vunpack.c.l.b16 %v183
    %v1040 = vunpack.c.h.b16 %v183
    %v1041 = vunpack.c.l.b16 %v184
    %v1042 = vunpack.c.h.b16 %v184
    %v1043 = vunpack.c.l.b16 %v185
    %v1044 = vunpack.c.h.b16 %v185
    %v1045 = vunpack.c.l.b16 %v186
    %v1046 = vunpack.c.h.b16 %v186
    %v1047 = vunpack.c.l.b16 %v187
    %v1048 = vunpack.c.h.b16 %v187
    %v1049 = vunpack.c.l.b16 %v188
    %v1050 = vunpack.c.h.b16 %v188
    %v1051 = vunpack.c.l.b16 %v189
    %v1052 = vunpack.c.h.b16 %v189
    %v1053 = vunpack.c.l.b16 %v190
    %v1054 = vunpack.c.h.b16 %v190
    %v1055 = vunpack.c.l.b16 %v191
    %v1056 = vunpack.c.h.b16 %v191
    %v1057 = vunpack.c.l.b16 %v192
    %v1058 = vunpack.c.h.b16 %v192
    %v1059 = vunpack.c.l.b16 %v193
    %v1060 = vunpack.c.h.b16 %v193
    %v1061 = vunpack.c.l.b16 %v194
    %v1062 = vunpack.c.h.b16 %v194
    %v1063 = vunpack.c.l.b16 %v195
    %v1064 = vunpack.c.h.b16 %v195
    %v1065 = vunpack.c.l.b16 %v196
    %v1066 = vunpack.c.h.b16 %v196
    %v1067 = vunpack.c.l.b16 %v197
    %v1068 = vunpack.c.h.b16 %v197
    %v1069 = vunpack.c.l.b16 %v198
    %v1070 = vunpack.c.h.b16 %v198
    %v1071 = vunpack.c.l.b16 %v199
    %v1072 = vunpack.c.h.b16 %v199
    %v1073 = vunpack.c.l.b16 %v200
    %v1074 = vunpack.c.h.b16 %v200
    %v1075 = vunpack.c.l.b16 %v201
    %v1076 = vunpack.c.h.b16 %v201
    %v1077 = vunpack.c.l.b16 %v202
    %v1078 = vunpack.c.h.b16 %v202
    %v1079 = vunpack.c.l.b16 %v203
    %v1080 = vunpack.c.h.b16 %v203
    %v1081 = vunpack.c.l.b16 %v204
    %v1082 = vunpack.c.h.b16 %v204
    %v1083 = vunpack.c.l.b16 %v205
    %v1084 = vunpack.c.h.b16 %v205
    %v1085 = vunpack.c.l.b16 %v206
    %v1086 = vunpack.c.h.b16 %v206
    %v1087 = vunpack.c.l.b16 %v207
    %v1088 = vunpack.c.h.b16 %v207
    %v1089 = vunpack.c.l.b16 %v208
    %v1090 = vunpack.c.h.b16 %v208
    %v1091 = vunpack.c.l.b16 %v209
    %v1092 = vunpack.c.h.b16 %v209
    %v1093 = vunpack.c.l.b16 %v210
    %v1094 = vunpack.c.h.b16 %v210
    %v1095 = vunpack.c.l.b16 %v211
    %v1096 = vunpack.c.h.b16 %v211
    %v1097 = vunpack.c.l.b16 %v212
    %v1098 = vunpack.c.h.b16 %v212
    %v1099 = vunpack.c.l.b16 %v213
    %v1100 = vunpack.c.h.b16 %v213
    %v1101 = vunpack.c.l.b16 %v214
    %v1102 = vunpack.c.h.b16 %v214
    %v1103 = vunpack.c.l.b16 %v215
    %v1104 = vunpack.c.h.b16 %v215
    %v1105 = vunpack.c.l.b16 %v216
    %v1106 = vunpack.c.h.b16 %v216
    %v1107 = vunpack.c.l.b16 %v217
    %v1108 = vunpack.c.h.b16 %v217
    %v1109 = vunpack.c.l.b16 %v218
    %v1110 = vunpack.c.h.b16 %v218
    %v1111 = vunpack.c.l.b16 %v219
    %v1112 = vunpack.c.h.b16 %v219
    %v1113 = vunpack.c.l.b16 %v220
    %v1114 = vunpack.c.h.b16 %v220
    %v1115 = vunpack.c.l.b16 %v221
    %v1116 = vunpack.c.h.b16 %v221
    %v1117 = vunpack.c.l.b16 %v222
    %v1118 = vunpack.c.h.b16 %v222
    %v1119 = vunpack.c.l.b16 %v223
    %v1120 = vunpack.c.h.b16 %v223
    %v1121 = vunpack.c.l.b16 %v224
    %v1122 = vunpack.c.h.b16 %v224
    %v1123 = vunpack.c.l.b16 %v225
    %v1124 = vunpack.c.h.b16 %v225
    %v1125 = vunpack.c.l.b16 %v226
    %v1126 = vunpack.c.h.b16 %v226
    %v1127 = vunpack.c.l.b16 %v227
    %v1128 = vunpack.c.h.b16 %v227
    %v1129 = vunpack.c.l.b16 %v228
    %v1130 = vunpack.c.h.b16 %v228
    %v1131 = vunpack.c.l.b16 %v229
    %v1132 = vunpack.c.h.b16 %v229
    %v1133 = vunpack.c.l.b16 %v230
    %v1134 = vunpack.c.h.b16 %v230
    %v1135 = vunpack.c.l.b16 %v231
    %v1136 = vunpack.c.h.b16 %v231
    %v1137 = vunpack.c.l.b16 %v232
    %v1138 = vunpack.c.h.b16 %v232
    %v1139 = vunpack.c.l.b16 %v233
    %v1140 = vunpack.c.h.b16 %v233
    %v1141 = vunpack.c.l.b16 %v234
    %v1142 = vunpack.c.h.b16 %v234
    %v1143 = vunpack.c.l.b16 %v235
    %v1144 = vunpack.c.h.b16 %v235
    %v1145 = vunpack.c.l.b16 %v236
    %v1146 = vunpack.c.h.b16 %v236
    %v1147 = vunpack.c.l.b16 %v237
    %v1148 = vunpack.c.h.b16 %v237
    %v1149 = vunpack.c.l.b16 %v238
    %v1150 = vunpack.c.h.b16 %v238
    %v1151 = vunpack.c.l.b16 %v239
    %v1152 = vunpack.c.h.b16 %v239
    %v1153 = vunpack.c.l.b16 %v240
    %v1154 = vunpack.c.h.b16 %v240
    %v1155 = vunpack.c.l.b16 %v241
    %v1156 = vunpack.c.h.b16 %v241
    %v1157 = vunpack.c.l.b16 %v242
    %v1158 = vunpack.c.h.b16 %v242
    %v1159 = vunpack.c.l.b16 %v243
    %v1160 = vunpack.c.h.b16 %v243
    %v1161 = vunpack.c.l.b16 %v244
    %v1162 = vunpack.c.h.b16 %v244
    %v1163 = vunpack.c.l.b16 %v245
    %v1164 = vunpack.c.h.b16 %v245
    %v1165 = vunpack.c.l.b16 %v246
    %v1166 = vunpack.c.h.b16 %v246
    %v1167 = vunpack.c.l.b16 %v247
    %v1168 = vunpack.c.h.b16 %v247
    %v1169 = vunpack.c.l.b16 %v248
    %v1170 = vunpack.c.h.b16 %v248
    %v1171 = vunpack.c.l.b16 %v249
    %v1172 = vunpack.c.h.b16 %v249
    %v1173 = vunpack.c.l.b16 %v250
    %v1174 = vunpack.c.h.b16 %v250
    %v1175 = vunpack.c.l.b16 %v251
    %v1176 = vunpack.c.h.b16 %v251
    %v1177 = vunpack.c.l.b16 %v252
    %v1178 = vunpack.c.h.b16 %v252
    %v1179 = vunpack.c.l.b16 %v253
    %v1180 = vunpack.c.h.b16 %v253
    %v1181 = vunpack.c.l.b16 %v254
    %v1182 = vunpack.c.h.b16 %v254
    %v1183 = vunpack.c.l.b16 %v255
    %v1184 = vunpack.c.h.b16 %v255
    %v1185 = vunpack.c.l.b16 %v256
    %v1186 = vunpack.c.h.b16 %v256
    %v1187 = vunpack.c.l.b16 %v257
    %v1188 = vunpack.c.h.b16 %v257
    %v1189 = vunpack.c.l.b16 %v258
    %v1190 = vunpack.c.h.b16 %v258
    %v1191 = vunpack.c.l.b16 %v259
    %v1192 = vunpack.c.h.b16 %v259
    %v1193 = vunpack.c.l.b16 %v260
    %v1194 = vunpack.c.h.b16 %v260
    %v1195 = vunpack.c.l.b16 %v261
    %v1196 = vunpack.c.h.b16 %v261
    %v1197 = vunpack.c.l.b16 %v262
    %v1198 = vunpack.c.h.b16 %v262
    %v1199 = vunpack.c.l.b16 %v263
    %v1200 = vunpack.c.h.b16 %v263
    %v1201 = vunpack.c.l.b16 %v264
    %v1202 = vunpack.c.h.b16 %v264
    %v1203 = vunpack.c.l.b16 %v265
    %v1204 = vunpack.c.h.b16 %v265
    %v1205 = vunpack.c.l.b16 %v266
    %v1206 = vunpack.c.h.b16 %v266
    %v1207 = vunpack.c.l.b16 %v267
    %v1208 = vunpack.c.h.b16 %v267
    %v1209 = vunpack.c.l.b16 %v268
    %v1210 = vunpack.c.h.b16 %v268
    %v1211 = vunpack.c.l.b16 %v269
    %v1212 = vunpack.c.h.b16 %v269
    %v1213 = vunpack.c.l.b16 %v270
    %v1214 = vunpack.c.h.b16 %v270
    %v1215 = vunpack.c.l.b16 %v271
    %v1216 = vunpack.c.h.b16 %v271
    %v1217 = vunpack.c.l.b16 %v272
    %v1218 = vunpack.c.h.b16 %v272
    %v1219 = vunpack.c.l.b16 %v273
    %v1220 = vunpack.c.h.b16 %v273
    %v1221 = vunpack.c.l.b16 %v274
    %v1222 = vunpack.c.h.b16 %v274
    %v1223 = vunpack.c.l.b16 %v275
    %v1224 = vunpack.c.h.b16 %v275
    %v1225 = vunpack.c.l.b16 %v276
    %v1226 = vunpack.c.h.b16 %v276
    %v1227 = vunpack.c.l.b16 %v277
    %v1228 = vunpack.c.h.b16 %v277
    %v1229 = vunpack.c.l.b16 %v278
    %v1230 = vunpack.c.h.b16 %v278
    %v1231 = vunpack.c.l.b16 %v279
    %v1232 = vunpack.c.h.b16 %v279
    %v1233 = vunpack.c.l.b16 %v280
    %v1234 = vunpack.c.h.b16 %v280
    %v1235 = vunpack.c.l.b16 %v281
    %v1236 = vunpack.c.h.b16 %v281
    %v1237 = vunpack.c.l.b16 %v282
    %v1238 = vunpack.c.h.b16 %v282
    %v1239 = vunpack.c.l.b16 %v283
    %v1240 = vunpack.c.h.b16 %v283
    %v1241 = vunpack.c.l.b16 %v284
    %v1242 = vunpack.c.h.b16 %v284
    %v1243 = vunpack.c.l.b16 %v285
    %v1244 = vunpack.c.h.b16 %v285
    %v1245 = vunpack.c.l.b16 %v286
    %v1246 = vunpack.c.h.b16 %v286
    %v1247 = vunpack.c.l.b16 %v287
    %v1248 = vunpack.c.h.b16 %v287
    %v1249 = vunpack.c.l.b16 %v288
    %v1250 = vunpack.c.h.b16 %v288
    %v1251 = vunpack.c.l.b16 %v289
    %v1252 = vunpack.c.h.b16 %v289
    %v1253 = vunpack.c.l.b16 %v290
    %v1254 = vunpack.c.h.b16 %v290
    %v1255 = vunpack.c.l.b16 %v291
    %v1256 = vunpack.c.h.b16 %v291
    %v1257 = vunpack.c.l.b16 %v292
    %v1258 = vunpack.c.h.b16 %v292
    %v1259 = vunpack.c.l.b16 %v293
    %v1260 = vunpack.c.h.b16 %v293
    %v1261 = vunpack.c.l.b16 %v294
    %v1262 = vunpack.c.h.b16 %v294
    %v1263 = vunpack.c.l.b16 %v295
    %v1264 = vunpack.c.h.b16 %v295
    %v1265 = vunpack.c.l.b16 %v296
    %v1266 = vunpack.c.h.b16 %v296
    %v1267 = vunpack.c.l.b16 %v297
    %v1268 = vunpack.c.h.b16 %v297
    %v1269 = vunpack.c.l.b16 %v298
    %v1270 = vunpack.c.h.b16 %v298
    %v1271 = vunpack.c.l.b16 %v299
    %v1272 = vunpack.c.h.b16 %v299
    %v1273 = vunpack.c.l.b16 %v300
    %v1274 = vunpack.c.h.b16 %v300
    %v1275 = vunpack.c.l.b16 %v301
    %v1276 = vunpack.c.h.b16 %v301
    %v1277 = vunpack.c.l.b16 %v302
    %v1278 = vunpack.c.h.b16 %v302
    %v1279 = vunpack.c.l.b16 %v303
    %v1280 = vunpack.c.h.b16 %v303
    %v1281 = vunpack.c.l.b16 %v304
    %v1282 = vunpack.c.h.b16 %v304
    %v1283 = vunpack.c.l.b16 %v305
    %v1284 = vunpack.c.h.b16 %v305
    %v1285 = vunpack.c.l.b16 %v306
    %v1286 = vunpack.c.h.b16 %v306
    %v1287 = vunpack.c.l.b16 %v307
    %v1288 = vunpack.c.h.b16 %v307
    %v1289 = vunpack.c.l.b16 %v308
    %v1290 = vunpack.c.h.b16 %v308
    %v1291 = vunpack.c.l.b16 %v309
    %v1292 = vunpack.c.h.b16 %v309
    %v1293 = vunpack.c.l.b16 %v310
    %v1294 = vunpack.c.h.b16 %v310
    %v1295 = vunpack.c.l.b16 %v311
    %v1296 = vunpack.c.h.b16 %v311
    %v1297 = vunpack.c.l.b16 %v312
    %v1298 = vunpack.c.h.b16 %v312
    %v1299 = vunpack.c.l.b16 %v313
    %v1300 = vunpack.c.h.b16 %v313
    %v1301 = vunpack.c.l.b16 %v314
    %v1302 = vunpack.c.h.b16 %v314
    %v1303 = vunpack.c.l.b16 %v315
    %v1304 = vunpack.c.h.b16 %v315
    %v1305 = vunpack.c.l.b16 %v316
    %v1306 = vunpack.c.h.b16 %v316
    %v1307 = vunpack.c.l.b16 %v317
    %v1308 = vunpack.c.h.b16 %v317
    %v1309 = vunpack.c.l.b16 %v318
    %v1310 = vunpack.c.h.b16 %v318
    %v1311 = vunpack.c.l.b16 %v319
    %v1312 = vunpack.c.h.b16 %v319
    %v1313 = vunpack.c.l.b16 %v320
    %v1314 = vunpack.c.h.b16 %v320
    %v1315 = vunpack.c.l.b16 %v321
    %v1316 = vunpack.c.h.b16 %v321
    %v1317 = vunpack.c.l.b16 %v322
    %v1318 = vunpack.c.h.b16 %v322
    %v1319 = vunpack.c.l.b16 %v323
    %v1320 = vunpack.c.h.b16 %v323
    %v1321 = vunpack.c.l.b16 %v324
    %v1322 = vunpack.c.h.b16 %v324
    %v1323 = vunpack.c.l.b16 %v325
    %v1324 = vunpack.c.h.b16 %v325
    %v1325 = vunpack.c.l.b16 %v326
    %v1326 = vunpack.c.h.b16 %v326
    %v1327 = vunpack.c.l.b16 %v327
    %v1328 = vunpack.c.h.b16 %v327
    %v1329 = vunpack.c.l.b16 %v328
    %v1330 = vunpack.c.h.b16 %v328
    %v1331 = vunpack.c.l.b16 %v329
    %v1332 = vunpack.c.h.b16 %v329
    %v1333 = vunpack.c.l.b16 %v330
    %v1334 = vunpack.c.h.b16 %v330
    %v1335 = vunpack.c.l.b16 %v331
    %v1336 = vunpack.c.h.b16 %v331
    %v1337 = vunpack.c.l.b16 %v332
    %v1338 = vunpack.c.h.b16 %v332
    %v1339 = vunpack.c.l.b16 %v333
    %v1340 = vunpack.c.h.b16 %v333
    %v1341 = vunpack.c.l.b16 %v334
    %v1342 = vunpack.c.h.b16 %v334
    %v1343 = vunpack.c.l.b16 %v335
    %v1344 = vunpack.c.h.b16 %v335
    %v1345 = vunpack.c.l.b16 %v336
    %v1346 = vunpack.c.h.b16 %v336
    %v1347 = vunpack.c.l.b16 %v337
    %v1348 = vunpack.c.h.b16 %v337
    %v1349 = vunpack.c.l.b16 %v338
    %v1350 = vunpack.c.h.b16 %v338
    %v1351 = vunpack.c.l.b16 %v339
    %v1352 = vunpack.c.h.b16 %v339
    %v1353 = vunpack.c.l.b16 %v340
    %v1354 = vunpack.c.h.b16 %v340
    %v1355 = vunpack.c.l.b16 %v341
    %v1356 = vunpack.c.h.b16 %v341
    %v1357 = vunpack.c.l.b16 %v342
    %v1358 = vunpack.c.h.b16 %v342
    %v1359 = vunpack.c.l.b16 %v343
    %v1360 = vunpack.c.h.b16 %v343
    %v1361 = vunpack.c.l.b16 %v344
    %v1362 = vunpack.c.h.b16 %v344
    %v1363 = vunpack.c.l.b16 %v345
    %v1364 = vunpack.c.h.b16 %v345
    %v1365 = vunpack.c.l.b16 %v346
    %v1366 = vunpack.c.h.b16 %v346
    %v1367 = vunpack.c.l.b16 %v347
    %v1368 = vunpack.c.h.b16 %v347
    %v1369 = vunpack.c.l.b16 %v348
    %v1370 = vunpack.c.h.b16 %v348
    %v1371 = vunpack.c.l.b16 %v349
    %v1372 = vunpack.c.h.b16 %v349
    %v1373 = vunpack.c.l.b16 %v350
    %v1374 = vunpack.c.h.b16 %v350
    %v1375 = vunpack.c.l.b16 %v351
    %v1376 = vunpack.c.h.b16 %v351
    %v1377 = vunpack.c.l.b16 %v352
    %v1378 = vunpack.c.h.b16 %v352
    %v1379 = vunpack.c.l.b16 %v353
    %v1380 = vunpack.c.h.b16 %v353
    %v1381 = vunpack.c.l.b16 %v354
    %v1382 = vunpack.c.h.b16 %v354
    %v1383 = vunpack.c.l.b16 %v355
    %v1384 = vunpack.c.h.b16 %v355
    %v1385 = vunpack.c.l.b16 %v356
    %v1386 = vunpack.c.h.b16 %v356
    %v1387 = vunpack.c.l.b16 %v357
    %v1388 = vunpack.c.h.b16 %v357
    %v1389 = vunpack.c.l.b16 %v358
    %v1390 = vunpack.c.h.b16 %v358
    %v1391 = vunpack.c.l.b16 %v359
    %v1392 = vunpack.c.h.b16 %v359
    %v1393 = vunpack.c.l.b16 %v360
    %v1394 = vunpack.c.h.b16 %v360
    %v1395 = vunpack.c.l.b16 %v361
    %v1396 = vunpack.c.h.b16 %v361
    %v1397 = vunpack.c.l.b16 %v362
    %v1398 = vunpack.c.h.b16 %v362
    %v1399 = vunpack.c.l.b16 %v363
    %v1400 = vunpack.c.h.b16 %v363
    %v1401 = vunpack.c.l.b16 %v364
    %v1402 = vunpack.c.h.b16 %v364
    %v1403 = vunpack.c.l.b16 %v365
    %v1404 = vunpack.c.h.b16 %v365
    %v1405 = vunpack.c.l.b16 %v366
    %v1406 = vunpack.c.h.b16 %v366
    %v1407 = vunpack.c.l.b16 %v367
    %v1408 = vunpack.c.h.b16 %v367
    %v1409 = vunpack.c.l.b16 %v368
    %v1410 = vunpack.c.h.b16 %v368
    %v1411 = vunpack.c.l.b16 %v369
    %v1412 = vunpack.c.h.b16 %v369
    %v1413 = vunpack.c.l.b16 %v370
    %v1414 = vunpack.c.h.b16 %v370
    %v1415 = vunpack.c.l.b16 %v371
    %v1416 = vunpack.c.h.b16 %v371
    %v1417 = vunpack.c.l.b16 %v372
    %v1418 = vunpack.c.h.b16 %v372
    %v1419 = vpack.c.b16 %v915, %v907
    %v1420 = vpack.c.b16 %v916, %v908
    %v1421 = vpack.c.b16 %v917, %v909
    %v1422 = vpack.c.b16 %v918, %v910
    %v1423 = vpack.c.b16 %v919, %v911
    %v1424 = vpack.c.b16 %v920, %v912
    %v1425 = vpack.c.b16 %v921, %v913
    %v1426 = vpack.c.b16 %v922, %v914
    %v1427 = vpack.c.b16 %v931, %v923
    %v1428 = vpack.c.b16 %v932, %v924
    %v1429 = vpack.c.b16 %v933, %v925
    %v1430 = vpack.c.b16 %v934, %v926
    %v1431 = vpack.c.b16 %v935, %v927
    %v1432 = vpack.c.b16 %v936, %v928
    %v1433 = vpack.c.b16 %v937, %v929
    %v1434 = vpack.c.b16 %v938, %v930
    %v1435 = vpack.c.b16 %v947, %v939
    %v1436 = vpack.c.b16 %v948, %v940
    %v1437 = vpack.c.b16 %v949, %v941
    %v1438 = vpack.c.b16 %v950, %v942
    %v1439 = vpack.c.b16 %v951, %v943
    %v1440 = vpack.c.b16 %v952, %v944
    %v1441 = vpack.c.b16 %v953, %v945
    %v1442 = vpack.c.b16 %v954, %v946
    %v1443 = vpack.c.b16 %v963, %v955
    %v1444 = vpack.c.b16 %v964, %v956
    %v1445 = vpack.c.b16 %v965, %v957
    %v1446 = vpack.c.b16 %v966, %v958
    %v1447 = vpack.c.b16 %v967, %v959
    %v1448 = vpack.c.b16 %v968, %v960
    %v1449 = vpack.c.b16 %v969, %v961
    %v1450 = vpack.c.b16 %v970, %v962
    %v1451 = vpack.c.b16 %v979, %v971
    %v1452 = vpack.c.b16 %v980, %v972
    %v1453 = vpack.c.b16 %v981, %v973
    %v1454 = vpack.c.b16 %v982, %v974
    %v1455 = vpack.c.b16 %v983, %v975
    %v1456 = vpack.c.b16 %v984, %v976
    %v1457 = vpack.c.b16 %v985, %v977
    %v1458 = vpack.c.b16 %v986, %v978
    %v1459 = vpack.c.b16 %v995, %v987
    %v1460 = vpack.c.b16 %v996, %v988
    %v1461 = vpack.c.b16 %v997, %v989
    %v1462 = vpack.c.b16 %v998, %v990
    %v1463 = vpack.c.b16 %v999, %v991
    %v1464 = vpack.c.b16 %v1000, %v992
    %v1465 = vpack.c.b16 %v1001, %v993
    %v1466 = vpack.c.b16 %v1002, %v994
    %v1467 = vpack.c.b16 %v1011, %v1003
    %v1468 = vpack.c.b16 %v1012, %v1004
    %v1469 = vpack.c.b16 %v1013, %v1005
    %v1470 = vpack.c.b16 %v1014, %v1006
    %v1471 = vpack.c.b16 %v1015, %v1007
    %v1472 = vpack.c.b16 %v1016, %v1008
    %v1473 = vpack.c.b16 %v1017, %v1009
    %v1474 = vpack.c.b16 %v1018, %v1010
    %v1475 = vpack.c.b16 %v1027, %v1019
    %v1476 = vpack.c.b16 %v1028, %v1020
    %v1477 = vpack.c.b16 %v1029, %v1021
    %v1478 = vpack.c.b16 %v1030, %v1022
    %v1479 = vpack.c.b16 %v1031, %v1023
    %v1480 = vpack.c.b16 %v1032, %v1024
    %v1481 = vpack.c.b16 %v1033, %v1025
    %v1482 = vpack.c.b16 %v1034, %v1026
    %v1483 = vpack.c.b16 %v1043, %v1035
    %v1484 = vpack.c.b16 %v1044, %v1036
    %v1485 = vpack.c.b16 %v1045, %v1037
    %v1486 = vpack.c.b16 %v1046, %v1038
    %v1487 = vpack.c.b16 %v1047, %v1039
    %v1488 = vpack.c.b16 %v1048, %v1040
    %v1489 = vpack.c.b16 %v1049, %v1041
    %v1490 = vpack.c.b16 %v1050, %v1042
    %v1491 = vpack.c.b16 %v1059, %v1051
    %v1492 = vpack.c.b16 %v1060, %v1052
    %v1493 = vpack.c.b16 %v1061, %v1053
    %v1494 = vpack.c.b16 %v1062, %v1054
    %v1495 = vpack.c.b16 %v1063, %v1055
    %v1496 = vpack.c.b16 %v1064, %v1056
    %v1497 = vpack.c.b16 %v1065, %v1057
    %v1498 = vpack.c.b16 %v1066, %v1058
    %v1499 = vpack.c.b16 %v1075, %v1067
    %v1500 = vpack.c.b16 %v1076, %v1068
    %v1501 = vpack.c.b16 %v1077, %v1069
    %v1502 = vpack.c.b16 %v1078, %v1070
    %v1503 = vpack.c.b16 %v1079, %v1071
    %v1504 = vpack.c.b16 %v1080, %v1072
    %v1505 = vpack.c.b16 %v1081, %v1073
    %v1506 = vpack.c.b16 %v1082, %v1074
    %v1507 = vpack.c.b16 %v1091, %v1083
    %v1508 = vpack.c.b16 %v1092, %v1084
    %v1509 = vpack.c.b16 %v1093, %v1085
    %v1510 = vpack.c.b16 %v1094, %v1086
    %v1511 = vpack.c.b16 %v1095, %v1087
    %v1512 = vpack.c.b16 %v1096, %v1088
    %v1513 = vpack.c.b16 %v1097, %v1089
    %v1514 = vpack.c.b16 %v1098, %v1090
    %v1515 = vpack.c.b16 %v1107, %v1099
    %v1516 = vpack.c.b16 %v1108, %v1100
    %v1517 = vpack.c.b16 %v1109, %v1101
    %v1518 = vpack.c.b16 %v1110, %v1102
    %v1519 = vpack.c.b16 %v1111, %v1103
    %v1520 = vpack.c.b16 %v1112, %v1104
    %v1521 = vpack.c.b16 %v1113, %v1105
    %v1522 = vpack.c.b16 %v1114, %v1106
    %v1523 = vpack.c.b16 %v1123, %v1115
    %v1524 = vpack.c.b16 %v1124, %v1116
    %v1525 = vpack.c.b16 %v1125, %v1117
    %v1526 = vpack.c.b16 %v1126, %v1118
    %v1527 = vpack.c.b16 %v1127, %v1119
    %v1528 = vpack.c.b16 %v1128, %v1120
    %v1529 = vpack.c.b16 %v1129, %v1121
    %v1530 = vpack.c.b16 %v1130, %v1122
    %v1531 = vpack.c.b16 %v1139, %v1131
    %v1532 = vpack.c.b16 %v1140, %v1132
    %v1533 = vpack.c.b16 %v1141, %v1133
    %v1534 = vpack.c.b16 %v1142, %v1134
    %v1535 = vpack.c.b16 %v1143, %v1135
    %v1536 = vpack.c.b16 %v1144, %v1136
    %v1537 = vpack.c.b16 %v1145, %v1137
    %v1538 = vpack.c.b16 %v1146, %v1138
    %v1539 = vpack.c.b16 %v1155, %v1147
    %v1540 = vpack.c.b16 %v1156, %v1148
    %v1541 = vpack.c.b16 %v1157, %v1149
    %v1542 = vpack.c.b16 %v1158, %v1150
    %v1543 = vpack.c.b16 %v1159, %v1151
    %v1544 = vpack.c.b16 %v1160, %v1152
    %v1545 = vpack.c.b16 %v1161, %v1153
    %v1546 = vpack.c.b16 %v1162, %v1154
    %v1547 = vpack.c.b16 %v1171, %v1163
    %v1548 = vpack.c.b16 %v1172, %v1164
    %v1549 = vpack.c.b16 %v1173, %v1165
    %v1550 = vpack.c.b16 %v1174, %v1166
    %v1551 = vpack.c.b16 %v1175, %v1167
    %v1552 = vpack.c.b16 %v1176, %v1168
    %v1553 = vpack.c.b16 %v1177, %v1169
    %v1554 = vpack.c.b16 %v1178, %v1170
    %v1555 = vpack.c.b16 %v1187, %v1179
    %v1556 = vpack.c.b16 %v1188, %v1180
    %v1557 = vpack.c.b16 %v1189, %v1181
    %v1558 = vpack.c.b16 %v1190, %v1182
    %v1559 = vpack.c.b16 %v1191, %v1183
    %v1560 = vpack.c.b16 %v1192, %v1184
    %v1561 = vpack.c.b16 %v1193, %v1185
    %v1562 = vpack.c.b16 %v1194, %v1186
    %v1563 = vpack.c.b16 %v1203, %v1195
    %v1564 = vpack.c.b16 %v1204, %v1196
    %v1565 = vpack.c.b16 %v1205, %v1197
    %v1566 = vpack.c.b16 %v1206, %v1198
    %v1567 = vpack.c.b16 %v1207, %v1199
    %v1568 = vpack.c.b16 %v1208, %v1200
    %v1569 = vpack.c.b16 %v1209, %v1201
    %v1570 = vpack.c.b16 %v1210, %v1202
    %v1571 = vpack.c.b16 %v1219, %v1211
    %v1572 = vpack.c.b16 %v1220, %v1212
    %v1573 = vpack.c.b16 %v1221, %v1213
    %v1574 = vpack.c.b16 %v1222, %v1214
    %v1575 = vpack.c.b16 %v1223, %v1215
    %v1576 = vpack.c.b16 %v1224, %v1216
    %v1577 = vpack.c.b16 %v1225, %v1217
    %v1578 = vpack.c.b16 %v1226, %v1218
    %v1579 = vpack.c.b16 %v1235, %v1227
    %v1580 = vpack.c.b16 %v1236, %v1228
    %v1581 = vpack.c.b16 %v1237, %v1229
    %v1582 = vpack.c.b16 %v1238, %v1230
    %v1583 = vpack.c.b16 %v1239, %v1231
    %v1584 = vpack.c.b16 %v1240, %v1232
    %v1585 = vpack.c.b16 %v1241, %v1233
    %v1586 = vpack.c.b16 %v1242, %v1234
    %v1587 = vpack.c.b16 %v1251, %v1243
    %v1588 = vpack.c.b16 %v1252, %v1244
    %v1589 = vpack.c.b16 %v1253, %v1245
    %v1590 = vpack.c.b16 %v1254, %v1246
    %v1591 = vpack.c.b16 %v1255, %v1247
    %v1592 = vpack.c.b16 %v1256, %v1248
    %v1593 = vpack.c.b16 %v1257, %v1249
    %v1594 = vpack.c.b16 %v1258, %v1250
    %v1595 = vpack.c.b16 %v1267, %v1259
    %v1596 = vpack.c.b16 %v1268, %v1260
    %v1597 = vpack.c.b16 %v1269, %v1261
    %v1598 = vpack.c.b16 %v1270, %v1262
    %v1599 = vpack.c.b16 %v1271, %v1263
    %v1600 = vpack.c.b16 %v1272, %v1264
    %v1601 = vpack.c.b16 %v1273, %v1265
    %v1602 = vpack.c.b16 %v1274, %v1266
    %v1603 = vpack.c.b16 %v1283, %v1275
    %v1604 = vpack.c.b16 %v1284, %v1276
    %v1605 = vpack.c.b16 %v1285, %v1277
    %v1606 = vpack.c.b16 %v1286, %v1278
    %v1607 = vpack.c.b16 %v1287, %v1279
    %v1608 = vpack.c.b16 %v1288, %v1280
    %v1609 = vpack.c.b16 %v1289, %v1281
    %v1610 = vpack.c.b16 %v1290, %v1282
    %v1611 = vpack.c.b16 %v1299, %v1291
    %v1612 = vpack.c.b16 %v1300, %v1292
    %v1613 = vpack.c.b16 %v1301, %v1293
    %v1614 = vpack.c.b16 %v1302, %v1294
    %v1615 = vpack.c.b16 %v1303, %v1295
    %v1616 = vpack.c.b16 %v1304, %v1296
    %v1617 = vpack.c.b16 %v1305, %v1297
    %v1618 = vpack.c.b16 %v1306, %v1298
    %v1619 = vpack.c.b16 %v1315, %v1307
    %v1620 = vpack.c.b16 %v1316, %v1308
    %v1621 = vpack.c.b16 %v1317, %v1309
    %v1622 = vpack.c.b16 %v1318, %v1310
    %v1623 = vpack.c.b16 %v1319, %v1311
    %v1624 = vpack.c.b16 %v1320, %v1312
    %v1625 = vpack.c.b16 %v1321, %v1313
    %v1626 = vpack.c.b16 %v1322, %v1314
    %v1627 = vpack.c.b16 %v1331, %v1323
    %v1628 = vpack.c.b16 %v1332, %v1324
    %v1629 = vpack.c.b16 %v1333, %v1325
    %v1630 = vpack.c.b16 %v1334, %v1326
    %v1631 = vpack.c.b16 %v1335, %v1327
    %v1632 = vpack.c.b16 %v1336, %v1328
    %v1633 = vpack.c.b16 %v1337, %v1329
    %v1634 = vpack.c.b16 %v1338, %v1330
    %v1635 = vpack.c.b16 %v1347, %v1339
    %v1636 = vpack.c.b16 %v1348, %v1340
    %v1637 = vpack.c.b16 %v1349, %v1341
    %v1638 = vpack.c.b16 %v1350, %v1342
    %v1639 = vpack.c.b16 %v1351, %v1343
    %v1640 = vpack.c.b16 %v1352, %v1344
    %v1641 = vpack.c.b16 %v1353, %v1345
    %v1642 = vpack.c.b16 %v1354, %v1346
    %v1643 = vpack.c.b16 %v1363, %v1355
    %v1644 = vpack.c.b16 %v1364, %v1356
    %v1645 = vpack.c.b16 %v1365, %v1357
    %v1646 = vpack.c.b16 %v1366, %v1358
    %v1647 = vpack.c.b16 %v1367, %v1359
    %v1648 = vpack.c.b16 %v1368, %v1360
    %v1649 = vpack.c.b16 %v1369, %v1361
    %v1650 = vpack.c.b16 %v1370, %v1362
    %v1651 = vpack.c.b16 %v1379, %v1371
    %v1652 = vpack.c.b16 %v1380, %v1372
    %v1653 = vpack.c.b16 %v1381, %v1373
    %v1654 = vpack.c.b16 %v1382, %v1374
    %v1655 = vpack.c.b16 %v1383, %v1375
    %v1656 = vpack.c.b16 %v1384, %v1376
    %v1657 = vpack.c.b16 %v1385, %v1377
    %v1658 = vpack.c.b16 %v1386, %v1378
    %v1659 = vpack.c.b16 %v1395, %v1387
    %v1660 = vpack.c.b16 %v1396, %v1388
    %v1661 = vpack.c.b16 %v1397, %v1389
    %v1662 = vpack.c.b16 %v1398, %v1390
    %v1663 = vpack.c.b16 %v1399, %v1391
    %v1664 = vpack.c.b16 %v1400, %v1392
    %v1665 = vpack.c.b16 %v1401, %v1393
    %v1666 = vpack.c.b16 %v1402, %v1394
    %v1667 = vpack.c.b16 %v1411, %v1403
    %v1668 = vpack.c.b16 %v1412, %v1404
    %v1669 = vpack.c.b16 %v1413, %v1405
    %v1670 = vpack.c.b16 %v1414, %v1406
    %v1671 = vpack.c.b16 %v1415, %v1407
    %v1672 = vpack.c.b16 %v1416, %v1408
    %v1673 = vpack.c.b16 %v1417, %v1409
    %v1674 = vpack.c.b16 %v1418, %v1410
    %v2187 = vunpack.c.l.b16 %v373
    %v2188 = vunpack.c.h.b16 %v373
    %v2189 = vunpack.c.l.b16 %v374
    %v2190 = vunpack.c.h.b16 %v374
    %v2191 = vunpack.c.l.b16 %v375
    %v2192 = vunpack.c.h.b16 %v375
    %v2193 = vunpack.c.l.b16 %v376
    %v2194 = vunpack.c.h.b16 %v376
    %v2195 = vunpack.c.l.b16 %v377
    %v2196 = vunpack.c.h.b16 %v377
    %v2197 = vunpack.c.l.b16 %v378
    %v2198 = vunpack.c.h.b16 %v378
    %v2199 = vunpack.c.l.b16 %v379
    %v2200 = vunpack.c.h.b16 %v379
    %v2201 = vunpack.c.l.b16 %v380
    %v2202 = vunpack.c.h.b16 %v380
    %v2203 = vunpack.c.l.b16 %v381
    %v2204 = vunpack.c.h.b16 %v381
    %v2205 = vunpack.c.l.b16 %v382
    %v2206 = vunpack.c.h.b16 %v382
    %v2207 = vunpack.c.l.b16 %v383
    %v2208 = vunpack.c.h.b16 %v383
    %v2209 = vunpack.c.l.b16 %v384
    %v2210 = vunpack.c.h.b16 %v384
    %v2211 = vunpack.c.l.b16 %v385
    %v2212 = vunpack.c.h.b16 %v385
    %v2213 = vunpack.c.l.b16 %v386
    %v2214 = vunpack.c.h.b16 %v386
    %v2215 = vunpack.c.l.b16 %v387
    %v2216 = vunpack.c.h.b16 %v387
    %v2217 = vunpack.c.l.b16 %v388
    %v2218 = vunpack.c.h.b16 %v388
    %v2219 = vunpack.c.l.b16 %v389
    %v2220 = vunpack.c.h.b16 %v389
    %v2221 = vunpack.c.l.b16 %v390
    %v2222 = vunpack.c.h.b16 %v390
    %v2223 = vunpack.c.l.b16 %v391
    %v2224 = vunpack.c.h.b16 %v391
    %v2225 = vunpack.c.l.b16 %v392
    %v2226 = vunpack.c.h.b16 %v392
    %v2227 = vunpack.c.l.b16 %v393
    %v2228 = vunpack.c.h.b16 %v393
    %v2229 = vunpack.c.l.b16 %v394
    %v2230 = vunpack.c.h.b16 %v394
    %v2231 = vunpack.c.l.b16 %v395
    %v2232 = vunpack.c.h.b16 %v395
    %v2233 = vunpack.c.l.b16 %v396
    %v2234 = vunpack.c.h.b16 %v396
    %v2235 = vunpack.c.l.b16 %v397
    %v2236 = vunpack.c.h.b16 %v397
    %v2237 = vunpack.c.l.b16 %v398
    %v2238 = vunpack.c.h.b16 %v398
    %v2239 = vunpack.c.l.b16 %v399
    %v2240 = vunpack.c.h.b16 %v399
    %v2241 = vunpack.c.l.b16 %v400
    %v2242 = vunpack.c.h.b16 %v400
    %v2243 = vunpack.c.l.b16 %v401
    %v2244 = vunpack.c.h.b16 %v401
    %v2245 = vunpack.c.l.b16 %v402
    %v2246 = vunpack.c.h.b16 %v402
    %v2247 = vunpack.c.l.b16 %v403
    %v2248 = vunpack.c.h.b16 %v403
    %v2249 = vunpack.c.l.b16 %v404
    %v2250 = vunpack.c.h.b16 %v404
    %v2251 = vunpack.c.l.b16 %v405
    %v2252 = vunpack.c.h.b16 %v405
    %v2253 = vunpack.c.l.b16 %v406
    %v2254 = vunpack.c.h.b16 %v406
    %v2255 = vunpack.c.l.b16 %v407
    %v2256 = vunpack.c.h.b16 %v407
    %v2257 = vunpack.c.l.b16 %v408
    %v2258 = vunpack.c.h.b16 %v408
    %v2259 = vunpack.c.l.b16 %v409
    %v2260 = vunpack.c.h.b16 %v409
    %v2261 = vunpack.c.l.b16 %v410
    %v2262 = vunpack.c.h.b16 %v410
    %v2263 = vunpack.c.l.b16 %v411
    %v2264 = vunpack.c.h.b16 %v411
    %v2265 = vunpack.c.l.b16 %v412
    %v2266 = vunpack.c.h.b16 %v412
    %v2267 = vunpack.c.l.b16 %v413
    %v2268 = vunpack.c.h.b16 %v413
    %v2269 = vunpack.c.l.b16 %v414
    %v2270 = vunpack.c.h.b16 %v414
    %v2271 = vunpack.c.l.b16 %v415
    %v2272 = vunpack.c.h.b16 %v415
    %v2273 = vunpack.c.l.b16 %v416
    %v2274 = vunpack.c.h.b16 %v416
    %v2275 = vunpack.c.l.b16 %v417
    %v2276 = vunpack.c.h.b16 %v417
    %v2277 = vunpack.c.l.b16 %v418
    %v2278 = vunpack.c.h.b16 %v418
    %v2279 = vunpack.c.l.b16 %v419
    %v2280 = vunpack.c.h.b16 %v419
    %v2281 = vunpack.c.l.b16 %v420
    %v2282 = vunpack.c.h.b16 %v420
    %v2283 = vunpack.c.l.b16 %v421
    %v2284 = vunpack.c.h.b16 %v421
    %v2285 = vunpack.c.l.b16 %v422
    %v2286 = vunpack.c.h.b16 %v422
    %v2287 = vunpack.c.l.b16 %v423
    %v2288 = vunpack.c.h.b16 %v423
    %v2289 = vunpack.c.l.b16 %v424
    %v2290 = vunpack.c.h.b16 %v424
    %v2291 = vunpack.c.l.b16 %v425
    %v2292 = vunpack.c.h.b16 %v425
    %v2293 = vunpack.c.l.b16 %v426
    %v2294 = vunpack.c.h.b16 %v426
    %v2295 = vunpack.c.l.b16 %v427
    %v2296 = vunpack.c.h.b16 %v427
    %v2297 = vunpack.c.l.b16 %v428
    %v2298 = vunpack.c.h.b16 %v428
    %v2299 = vunpack.c.l.b16 %v429
    %v2300 = vunpack.c.h.b16 %v429
    %v2301 = vunpack.c.l.b16 %v430
    %v2302 = vunpack.c.h.b16 %v430
    %v2303 = vunpack.c.l.b16 %v431
    %v2304 = vunpack.c.h.b16 %v431
    %v2305 = vunpack.c.l.b16 %v432
    %v2306 = vunpack.c.h.b16 %v432
    %v2307 = vunpack.c.l.b16 %v433
    %v2308 = vunpack.c.h.b16 %v433
    %v2309 = vunpack.c.l.b16 %v434
    %v2310 = vunpack.c.h.b16 %v434
    %v2311 = vunpack.c.l.b16 %v435
    %v2312 = vunpack.c.h.b16 %v435
    %v2313 = vunpack.c.l.b16 %v436
    %v2314 = vunpack.c.h.b16 %v436
    %v2315 = vunpack.c.l.b16 %v437
    %v2316 = vunpack.c.h.b16 %v437
    %v2317 = vunpack.c.l.b16 %v438
    %v2318 = vunpack.c.h.b16 %v438
    %v2319 = vunpack.c.l.b16 %v439
    %v2320 = vunpack.c.h.b16 %v439
    %v2321 = vunpack.c.l.b16 %v440
    %v2322 = vunpack.c.h.b16 %v440
    %v2323 = vunpack.c.l.b16 %v441
    %v2324 = vunpack.c.h.b16 %v441
    %v2325 = vunpack.c.l.b16 %v442
    %v2326 = vunpack.c.h.b16 %v442
    %v2327 = vunpack.c.l.b16 %v443
    %v2328 = vunpack.c.h.b16 %v443
    %v2329 = vunpack.c.l.b16 %v444
    %v2330 = vunpack.c.h.b16 %v444
    %v2331 = vunpack.c.l.b16 %v445
    %v2332 = vunpack.c.h.b16 %v445
    %v2333 = vunpack.c.l.b16 %v446
    %v2334 = vunpack.c.h.b16 %v446
    %v2335 = vunpack.c.l.b16 %v447
    %v2336 = vunpack.c.h.b16 %v447
    %v2337 = vunpack.c.l.b16 %v448
    %v2338 = vunpack.c.h.b16 %v448
    %v2339 = vunpack.c.l.b16 %v449
    %v2340 = vunpack.c.h.b16 %v449
    %v2341 = vunpack.c.l.b16 %v450
    %v2342 = vunpack.c.h.b16 %v450
    %v2343 = vunpack.c.l.b16 %v451
    %v2344 = vunpack.c.h.b16 %v451
    %v2345 = vunpack.c.l.b16 %v452
    %v2346 = vunpack.c.h.b16 %v452
    %v2347 = vunpack.c.l.b16 %v453
    %v2348 = vunpack.c.h.b16 %v453
    %v2349 = vunpack.c.l.b16 %v454
    %v2350 = vunpack.c.h.b16 %v454
    %v2351 = vunpack.c.l.b16 %v455
    %v2352 = vunpack.c.h.b16 %v455
    %v2353 = vunpack.c.l.b16 %v456
    %v2354 = vunpack.c.h.b16 %v456
    %v2355 = vunpack.c.l.b16 %v457
    %v2356 = vunpack.c.h.b16 %v457
    %v2357 = vunpack.c.l.b16 %v458
    %v2358 = vunpack.c.h.b16 %v458
    %v2359 = vunpack.c.l.b16 %v459
    %v2360 = vunpack.c.h.b16 %v459
    %v2361 = vunpack.c.l.b16 %v460
    %v2362 = vunpack.c.h.b16 %v460
    %v2363 = vunpack.c.l.b16 %v461
    %v2364 = vunpack.c.h.b16 %v461
    %v2365 = vunpack.c.l.b16 %v462
    %v2366 = vunpack.c.h.b16 %v462
    %v2367 = vunpack.c.l.b16 %v463
    %v2368 = vunpack.c.h.b16 %v463
    %v2369 = vunpack.c.l.b16 %v464
    %v2370 = vunpack.c.h.b16 %v464
    %v2371 = vunpack.c.l.b16 %v465
    %v2372 = vunpack.c.h.b16 %v465
    %v2373 = vunpack.c.l.b16 %v466
    %v2374 = vunpack.c.h.b16 %v466
    %v2375 = vunpack.c.l.b16 %v467
    %v2376 = vunpack.c.h.b16 %v467
    %v2377 = vunpack.c.l.b16 %v468
    %v2378 = vunpack.c.h.b16 %v468
    %v2379 = vunpack.c.l.b16 %v469
    %v2380 = vunpack.c.h.b16 %v469
    %v2381 = vunpack.c.l.b16 %v470
    %v2382 = vunpack.c.h.b16 %v470
    %v2383 = vunpack.c.l.b16 %v471
    %v2384 = vunpack.c.h.b16 %v471
    %v2385 = vunpack.c.l.b16 %v472
    %v2386 = vunpack.c.h.b16 %v472
    %v2387 = vunpack.c.l.b16 %v473
    %v2388 = vunpack.c.h.b16 %v473
    %v2389 = vunpack.c.l.b16 %v474
    %v2390 = vunpack.c.h.b16 %v474
    %v2391 = vunpack.c.l.b16 %v475
    %v2392 = vunpack.c.h.b16 %v475
    %v2393 = vunpack.c.l.b16 %v476
    %v2394 = vunpack.c.h.b16 %v476
    %v2395 = vunpack.c.l.b16 %v477
    %v2396 = vunpack.c.h.b16 %v477
    %v2397 = vunpack.c.l.b16 %v478
    %v2398 = vunpack.c.h.b16 %v478
    %v2399 = vunpack.c.l.b16 %v479
    %v2400 = vunpack.c.h.b16 %v479
    %v2401 = vunpack.c.l.b16 %v480
    %v2402 = vunpack.c.h.b16 %v480
    %v2403 = vunpack.c.l.b16 %v481
    %v2404 = vunpack.c.h.b16 %v481
    %v2405 = vunpack.c.l.b16 %v482
    %v2406 = vunpack.c.h.b16 %v482
    %v2407 = vunpack.c.l.b16 %v483
    %v2408 = vunpack.c.h.b16 %v483
    %v2409 = vunpack.c.l.b16 %v484
    %v2410 = vunpack.c.h.b16 %v484
    %v2411 = vunpack.c.l.b16 %v485
    %v2412 = vunpack.c.h.b16 %v485
    %v2413 = vunpack.c.l.b16 %v486
    %v2414 = vunpack.c.h.b16 %v486
    %v2415 = vunpack.c.l.b16 %v487
    %v2416 = vunpack.c.h.b16 %v487
    %v2417 = vunpack.c.l.b16 %v488
    %v2418 = vunpack.c.h.b16 %v488
    %v2419 = vunpack.c.l.b16 %v489
    %v2420 = vunpack.c.h.b16 %v489
    %v2421 = vunpack.c.l.b16 %v490
    %v2422 = vunpack.c.h.b16 %v490
    %v2423 = vunpack.c.l.b16 %v491
    %v2424 = vunpack.c.h.b16 %v491
    %v2425 = vunpack.c.l.b16 %v492
    %v2426 = vunpack.c.h.b16 %v492
    %v2427 = vunpack.c.l.b16 %v493
    %v2428 = vunpack.c.h.b16 %v493
    %v2429 = vunpack.c.l.b16 %v494
    %v2430 = vunpack.c.h.b16 %v494
    %v2431 = vunpack.c.l.b16 %v495
    %v2432 = vunpack.c.h.b16 %v495
    %v2433 = vunpack.c.l.b16 %v496
    %v2434 = vunpack.c.h.b16 %v496
    %v2435 = vunpack.c.l.b16 %v497
    %v2436 = vunpack.c.h.b16 %v497
    %v2437 = vunpack.c.l.b16 %v498
    %v2438 = vunpack.c.h.b16 %v498
    %v2439 = vunpack.c.l.b16 %v499
    %v2440 = vunpack.c.h.b16 %v499
    %v2441 = vunpack.c.l.b16 %v500
    %v2442 = vunpack.c.h.b16 %v500
    %v2443 = vunpack.c.l.b16 %v501
    %v2444 = vunpack.c.h.b16 %v501
    %v2445 = vunpack.c.l.b16 %v502
    %v2446 = vunpack.c.h.b16 %v502
    %v2447 = vunpack.c.l.b16 %v503
    %v2448 = vunpack.c.h.b16 %v503
    %v2449 = vunpack.c.l.b16 %v504
    %v2450 = vunpack.c.h.b16 %v504
    %v2451 = vunpack.c.l.b16 %v505
    %v2452 = vunpack.c.h.b16 %v505
    %v2453 = vunpack.c.l.b16 %v506
    %v2454 = vunpack.c.h.b16 %v506
    %v2455 = vunpack.c.l.b16 %v507
    %v2456 = vunpack.c.h.b16 %v507
    %v2457 = vunpack.c.l.b16 %v508
    %v2458 = vunpack.c.h.b16 %v508
    %v2459 = vunpack.c.l.b16 %v509
    %v2460 = vunpack.c.h.b16 %v509
    %v2461 = vunpack.c.l.b16 %v510
    %v2462 = vunpack.c.h.b16 %v510
    %v2463 = vunpack.c.l.b16 %v511
    %v2464 = vunpack.c.h.b16 %v511
    %v2465 = vunpack.c.l.b16 %v512
    %v2466 = vunpack.c.h.b16 %v512
    %v2467 = vunpack.c.l.b16 %v513
    %v2468 = vunpack.c.h.b16 %v513
    %v2469 = vunpack.c.l.b16 %v514
    %v2470 = vunpack.c.h.b16 %v514
    %v2471 = vunpack.c.l.b16 %v515
    %v2472 = vunpack.c.h.b16 %v515
    %v2473 = vunpack.c.l.b16 %v516
    %v2474 = vunpack.c.h.b16 %v516
    %v2475 = vunpack.c.l.b16 %v517
    %v2476 = vunpack.c.h.b16 %v517
    %v2477 = vunpack.c.l.b16 %v518
    %v2478 = vunpack.c.h.b16 %v518
    %v2479 = vunpack.c.l.b16 %v519
    %v2480 = vunpack.c.h.b16 %v519
    %v2481 = vunpack.c.l.b16 %v520
    %v2482 = vunpack.c.h.b16 %v520
    %v2483 = vunpack.c.l.b16 %v521
    %v2484 = vunpack.c.h.b16 %v521
    %v2485 = vunpack.c.l.b16 %v522
    %v2486 = vunpack.c.h.b16 %v522
    %v2487 = vunpack.c.l.b16 %v523
    %v2488 = vunpack.c.h.b16 %v523
    %v2489 = vunpack.c.l.b16 %v524
    %v2490 = vunpack.c.h.b16 %v524
    %v2491 = vunpack.c.l.b16 %v525
    %v2492 = vunpack.c.h.b16 %v525
    %v2493 = vunpack.c.l.b16 %v526
    %v2494 = vunpack.c.h.b16 %v526
    %v2495 = vunpack.c.l.b16 %v527
    %v2496 = vunpack.c.h.b16 %v527
    %v2497 = vunpack.c.l.b16 %v528
    %v2498 = vunpack.c.h.b16 %v528
    %v2499 = vunpack.c.l.b16 %v529
    %v2500 = vunpack.c.h.b16 %v529
    %v2501 = vunpack.c.l.b16 %v530
    %v2502 = vunpack.c.h.b16 %v530
    %v2503 = vunpack.c.l.b16 %v531
    %v2504 = vunpack.c.h.b16 %v531
    %v2505 = vunpack.c.l.b16 %v532
    %v2506 = vunpack.c.h.b16 %v532
    %v2507 = vunpack.c.l.b16 %v533
    %v2508 = vunpack.c.h.b16 %v533
    %v2509 = vunpack.c.l.b16 %v534
    %v2510 = vunpack.c.h.b16 %v534
    %v2511 = vunpack.c.l.b16 %v535
    %v2512 = vunpack.c.h.b16 %v535
    %v2513 = vunpack.c.l.b16 %v536
    %v2514 = vunpack.c.h.b16 %v536
    %v2515 = vunpack.c.l.b16 %v537
    %v2516 = vunpack.c.h.b16 %v537
    %v2517 = vunpack.c.l.b16 %v538
    %v2518 = vunpack.c.h.b16 %v538
    %v2519 = vunpack.c.l.b16 %v539
    %v2520 = vunpack.c.h.b16 %v539
    %v2521 = vunpack.c.l.b16 %v540
    %v2522 = vunpack.c.h.b16 %v540
    %v2523 = vunpack.c.l.b16 %v541
    %v2524 = vunpack.c.h.b16 %v541
    %v2525 = vunpack.c.l.b16 %v542
    %v2526 = vunpack.c.h.b16 %v542
    %v2527 = vunpack.c.l.b16 %v543
    %v2528 = vunpack.c.h.b16 %v543
    %v2529 = vunpack.c.l.b16 %v544
    %v2530 = vunpack.c.h.b16 %v544
    %v2531 = vunpack.c.l.b16 %v545
    %v2532 = vunpack.c.h.b16 %v545
    %v2533 = vunpack.c.l.b16 %v546
    %v2534 = vunpack.c.h.b16 %v546
    %v2535 = vunpack.c.l.b16 %v547
    %v2536 = vunpack.c.h.b16 %v547
    %v2537 = vunpack.c.l.b16 %v548
    %v2538 = vunpack.c.h.b16 %v548
    %v2539 = vunpack.c.l.b16 %v549
    %v2540 = vunpack.c.h.b16 %v549
    %v2541 = vunpack.c.l.b16 %v550
    %v2542 = vunpack.c.h.b16 %v550
    %v2543 = vunpack.c.l.b16 %v551
    %v2544 = vunpack.c.h.b16 %v551
    %v2545 = vunpack.c.l.b16 %v552
    %v2546 = vunpack.c.h.b16 %v552
    %v2547 = vunpack.c.l.b16 %v553
    %v2548 = vunpack.c.h.b16 %v553
    %v2549 = vunpack.c.l.b16 %v554
    %v2550 = vunpack.c.h.b16 %v554
    %v2551 = vunpack.c.l.b16 %v555
    %v2552 = vunpack.c.h.b16 %v555
    %v2553 = vunpack.c.l.b16 %v556
    %v2554 = vunpack.c.h.b16 %v556
    %v2555 = vunpack.c.l.b16 %v557
    %v2556 = vunpack.c.h.b16 %v557
    %v2557 = vunpack.c.l.b16 %v558
    %v2558 = vunpack.c.h.b16 %v558
    %v2559 = vunpack.c.l.b16 %v559
    %v2560 = vunpack.c.h.b16 %v559
    %v2561 = vunpack.c.l.b16 %v560
    %v2562 = vunpack.c.h.b16 %v560
    %v2563 = vunpack.c.l.b16 %v561
    %v2564 = vunpack.c.h.b16 %v561
    %v2565 = vunpack.c.l.b16 %v562
    %v2566 = vunpack.c.h.b16 %v562
    %v2567 = vunpack.c.l.b16 %v563
    %v2568 = vunpack.c.h.b16 %v563
    %v2569 = vunpack.c.l.b16 %v564
    %v2570 = vunpack.c.h.b16 %v564
    %v2571 = vunpack.c.l.b16 %v565
    %v2572 = vunpack.c.h.b16 %v565
    %v2573 = vunpack.c.l.b16 %v566
    %v2574 = vunpack.c.h.b16 %v566
    %v2575 = vunpack.c.l.b16 %v567
    %v2576 = vunpack.c.h.b16 %v567
    %v2577 = vunpack.c.l.b16 %v568
    %v2578 = vunpack.c.h.b16 %v568
    %v2579 = vunpack.c.l.b16 %v569
    %v2580 = vunpack.c.h.b16 %v569
    %v2581 = vunpack.c.l.b16 %v570
    %v2582 = vunpack.c.h.b16 %v570
    %v2583 = vunpack.c.l.b16 %v571
    %v2584 = vunpack.c.h.b16 %v571
    %v2585 = vunpack.c.l.b16 %v572
    %v2586 = vunpack.c.h.b16 %v572
    %v2587 = vunpack.c.l.b16 %v573
    %v2588 = vunpack.c.h.b16 %v573
    %v2589 = vunpack.c.l.b16 %v574
    %v2590 = vunpack.c.h.b16 %v574
    %v2591 = vunpack.c.l.b16 %v575
    %v2592 = vunpack.c.h.b16 %v575
    %v2593 = vunpack.c.l.b16 %v576
    %v2594 = vunpack.c.h.b16 %v576
    %v2595 = vunpack.c.l.b16 %v577
    %v2596 = vunpack.c.h.b16 %v577
    %v2597 = vunpack.c.l.b16 %v578
    %v2598 = vunpack.c.h.b16 %v578
    %v2599 = vunpack.c.l.b16 %v579
    %v2600 = vunpack.c.h.b16 %v579
    %v2601 = vunpack.c.l.b16 %v580
    %v2602 = vunpack.c.h.b16 %v580
    %v2603 = vunpack.c.l.b16 %v581
    %v2604 = vunpack.c.h.b16 %v581
    %v2605 = vunpack.c.l.b16 %v582
    %v2606 = vunpack.c.h.b16 %v582
    %v2607 = vunpack.c.l.b16 %v583
    %v2608 = vunpack.c.h.b16 %v583
    %v2609 = vunpack.c.l.b16 %v584
    %v2610 = vunpack.c.h.b16 %v584
    %v2611 = vunpack.c.l.b16 %v585
    %v2612 = vunpack.c.h.b16 %v585
    %v2613 = vunpack.c.l.b16 %v586
    %v2614 = vunpack.c.h.b16 %v586
    %v2615 = vunpack.c.l.b16 %v587
    %v2616 = vunpack.c.h.b16 %v587
    %v2617 = vunpack.c.l.b16 %v588
    %v2618 = vunpack.c.h.b16 %v588
    %v2619 = vunpack.c.l.b16 %v589
    %v2620 = vunpack.c.h.b16 %v589
    %v2621 = vunpack.c.l.b16 %v590
    %v2622 = vunpack.c.h.b16 %v590
    %v2623 = vunpack.c.l.b16 %v591
    %v2624 = vunpack.c.h.b16 %v591
    %v2625 = vunpack.c.l.b16 %v592
    %v2626 = vunpack.c.h.b16 %v592
    %v2627 = vunpack.c.l.b16 %v593
    %v2628 = vunpack.c.h.b16 %v593
    %v2629 = vunpack.c.l.b16 %v594
    %v2630 = vunpack.c.h.b16 %v594
    %v2631 = vunpack.c.l.b16 %v595
    %v2632 = vunpack.c.h.b16 %v595
    %v2633 = vunpack.c.l.b16 %v596
    %v2634 = vunpack.c.h.b16 %v596
    %v2635 = vunpack.c.l.b16 %v597
    %v2636 = vunpack.c.h.b16 %v597
    %v2637 = vunpack.c.l.b16 %v598
    %v2638 = vunpack.c.h.b16 %v598
    %v2639 = vunpack.c.l.b16 %v599
    %v2640 = vunpack.c.h.b16 %v599
    %v2641 = vunpack.c.l.b16 %v600
    %v2642 = vunpack.c.h.b16 %v600
    %v2643 = vunpack.c.l.b16 %v601
    %v2644 = vunpack.c.h.b16 %v601
    %v2645 = vunpack.c.l.b16 %v602
    %v2646 = vunpack.c.h.b16 %v602
    %v2647 = vunpack.c.l.b16 %v603
    %v2648 = vunpack.c.h.b16 %v603
    %v2649 = vunpack.c.l.b16 %v604
    %v2650 = vunpack.c.h.b16 %v604
    %v2651 = vunpack.c.l.b16 %v605
    %v2652 = vunpack.c.h.b16 %v605
    %v2653 = vunpack.c.l.b16 %v606
    %v2654 = vunpack.c.h.b16 %v606
    %v2655 = vunpack.c.l.b16 %v607
    %v2656 = vunpack.c.h.b16 %v607
    %v2657 = vunpack.c.l.b16 %v608
    %v2658 = vunpack.c.h.b16 %v608
    %v2659 = vunpack.c.l.b16 %v609
    %v2660 = vunpack.c.h.b16 %v609
    %v2661 = vunpack.c.l.b16 %v610
    %v2662 = vunpack.c.h.b16 %v610
    %v2663 = vunpack.c.l.b16 %v611
    %v2664 = vunpack.c.h.b16 %v611
    %v2665 = vunpack.c.l.b16 %v612
    %v2666 = vunpack.c.h.b16 %v612
    %v2667 = vunpack.c.l.b16 %v613
    %v2668 = vunpack.c.h.b16 %v613
    %v2669 = vunpack.c.l.b16 %v614
    %v2670 = vunpack.c.h.b16 %v614
    %v2671 = vunpack.c.l.b16 %v615
    %v2672 = vunpack.c.h.b16 %v615
    %v2673 = vunpack.c.l.b16 %v616
    %v2674 = vunpack.c.h.b16 %v616
    %v2675 = vunpack.c.l.b16 %v617
    %v2676 = vunpack.c.h.b16 %v617
    %v2677 = vunpack.c.l.b16 %v618
    %v2678 = vunpack.c.h.b16 %v618
    %v2679 = vunpack.c.l.b16 %v619
    %v2680 = vunpack.c.h.b16 %v619
    %v2681 = vunpack.c.l.b16 %v620
    %v2682 = vunpack.c.h.b16 %v620
    %v2683 = vunpack.c.l.b16 %v621
    %v2684 = vunpack.c.h.b16 %v621
    %v2685 = vunpack.c.l.b16 %v622
    %v2686 = vunpack.c.h.b16 %v622
    %v2687 = vunpack.c.l.b16 %v623
    %v2688 = vunpack.c.h.b16 %v623
    %v2689 = vunpack.c.l.b16 %v624
    %v2690 = vunpack.c.h.b16 %v624
    %v2691 = vunpack.c.l.b16 %v625
    %v2692 = vunpack.c.h.b16 %v625
    %v2693 = vunpack.c.l.b16 %v626
    %v2694 = vunpack.c.h.b16 %v626
    %v2695 = vunpack.c.l.b16 %v627
    %v2696 = vunpack.c.h.b16 %v627
    %v2697 = vunpack.c.l.b16 %v628
    %v2698 = vunpack.c.h.b16 %v628
    %v2699 = vpack.c.b16 %v2191, %v2187
    %v2700 = vpack.c.b16 %v2192, %v2188
    %v2701 = vpack.c.b16 %v2193, %v2189
    %v2702 = vpack.c.b16 %v2194, %v2190
    %v2703 = vpack.c.b16 %v2199, %v2195
    %v2704 = vpack.c.b16 %v2200, %v2196
    %v2705 = vpack.c.b16 %v2201, %v2197
    %v2706 = vpack.c.b16 %v2202, %v2198
    %v2707 = vpack.c.b16 %v2207, %v2203
    %v2708 = vpack.c.b16 %v2208, %v2204
    %v2709 = vpack.c.b16 %v2209, %v2205
    %v2710 = vpack.c.b16 %v2210, %v2206
    %v2711 = vpack.c.b16 %v2215, %v2211
    %v2712 = vpack.c.b16 %v2216, %v2212
    %v2713 = vpack.c.b16 %v2217, %v2213
    %v2714 = vpack.c.b16 %v2218, %v2214
    %v2715 = vpack.c.b16 %v2223, %v2219
    %v2716 = vpack.c.b16 %v2224, %v2220
    %v2717 = vpack.c.b16 %v2225, %v2221
    %v2718 = vpack.c.b16 %v2226, %v2222
    %v2719 = vpack.c.b16 %v2231, %v2227
    %v2720 = vpack.c.b16 %v2232, %v2228
    %v2721 = vpack.c.b16 %v2233, %v2229
    %v2722 = vpack.c.b16 %v2234, %v2230
    %v2723 = vpack.c.b16 %v2239, %v2235
    %v2724 = vpack.c.b16 %v2240, %v2236
    %v2725 = vpack.c.b16 %v2241, %v2237
    %v2726 = vpack.c.b16 %v2242, %v2238
    %v2727 = vpack.c.b16 %v2247, %v2243
    %v2728 = vpack.c.b16 %v2248, %v2244
    %v2729 = vpack.c.b16 %v2249, %v2245
    %v2730 = vpack.c.b16 %v2250, %v2246
    %v2731 = vpack.c.b16 %v2255, %v2251
    %v2732 = vpack.c.b16 %v2256, %v2252
    %v2733 = vpack.c.b16 %v2257, %v2253
    %v2734 = vpack.c.b16 %v2258, %v2254
    %v2735 = vpack.c.b16 %v2263, %v2259
    %v2736 = vpack.c.b16 %v2264, %v2260
    %v2737 = vpack.c.b16 %v2265, %v2261
    %v2738 = vpack.c.b16 %v2266, %v2262
    %v2739 = vpack.c.b16 %v2271, %v2267
    %v2740 = vpack.c.b16 %v2272, %v2268
    %v2741 = vpack.c.b16 %v2273, %v2269
    %v2742 = vpack.c.b16 %v2274, %v2270
    %v2743 = vpack.c.b16 %v2279, %v2275
    %v2744 = vpack.c.b16 %v2280, %v2276
    %v2745 = vpack.c.b16 %v2281, %v2277
    %v2746 = vpack.c.b16 %v2282, %v2278
    %v2747 = vpack.c.b16 %v2287, %v2283
    %v2748 = vpack.c.b16 %v2288, %v2284
    %v2749 = vpack.c.b16 %v2289, %v2285
    %v2750 = vpack.c.b16 %v2290, %v2286
    %v2751 = vpack.c.b16 %v2295, %v2291
    %v2752 = vpack.c.b16 %v2296, %v2292
    %v2753 = vpack.c.b16 %v2297, %v2293
    %v2754 = vpack.c.b16 %v2298, %v2294
    %v2755 = vpack.c.b16 %v2303, %v2299
    %v2756 = vpack.c.b16 %v2304, %v2300
    %v2757 = vpack.c.b16 %v2305, %v2301
    %v2758 = vpack.c.b16 %v2306, %v2302
    %v2759 = vpack.c.b16 %v2311, %v2307
    %v2760 = vpack.c.b16 %v2312, %v2308
    %v2761 = vpack.c.b16 %v2313, %v2309
    %v2762 = vpack.c.b16 %v2314, %v2310
    %v2763 = vpack.c.b16 %v2319, %v2315
    %v2764 = vpack.c.b16 %v2320, %v2316
    %v2765 = vpack.c.b16 %v2321, %v2317
    %v2766 = vpack.c.b16 %v2322, %v2318
    %v2767 = vpack.c.b16 %v2327, %v2323
    %v2768 = vpack.c.b16 %v2328, %v2324
    %v2769 = vpack.c.b16 %v2329, %v2325
    %v2770 = vpack.c.b16 %v2330, %v2326
    %v2771 = vpack.c.b16 %v2335, %v2331
    %v2772 = vpack.c.b16 %v2336, %v2332
    %v2773 = vpack.c.b16 %v2337, %v2333
    %v2774 = vpack.c.b16 %v2338, %v2334
    %v2775 = vpack.c.b16 %v2343, %v2339
    %v2776 = vpack.c.b16 %v2344, %v2340
    %v2777 = vpack.c.b16 %v2345, %v2341
    %v2778 = vpack.c.b16 %v2346, %v2342
    %v2779 = vpack.c.b16 %v2351, %v2347
    %v2780 = vpack.c.b16 %v2352, %v2348
    %v2781 = vpack.c.b16 %v2353, %v2349
    %v2782 = vpack.c.b16 %v2354, %v2350
    %v2783 = vpack.c.b16 %v2359, %v2355
    %v2784 = vpack.c.b16 %v2360, %v2356
    %v2785 = vpack.c.b16 %v2361, %v2357
    %v2786 = vpack.c.b16 %v2362, %v2358
    %v2787 = vpack.c.b16 %v2367, %v2363
    %v2788 = vpack.c.b16 %v2368, %v2364
    %v2789 = vpack.c.b16 %v2369, %v2365
    %v2790 = vpack.c.b16 %v2370, %v2366
    %v2791 = vpack.c.b16 %v2375, %v2371
    %v2792 = vpack.c.b16 %v2376, %v2372
    %v2793 = vpack.c.b16 %v2377, %v2373
    %v2794 = vpack.c.b16 %v2378, %v2374
    %v2795 = vpack.c.b16 %v2383, %v2379
    %v2796 = vpack.c.b16 %v2384, %v2380
    %v2797 = vpack.c.b16 %v2385, %v2381
    %v2798 = vpack.c.b16 %v2386, %v2382
    %v2799 = vpack.c.b16 %v2391, %v2387
    %v2800 = vpack.c.b16 %v2392, %v2388
    %v2801 = vpack.c.b16 %v2393, %v2389
    %v2802 = vpack.c.b16 %v2394, %v2390
    %v2803 = vpack.c.b16 %v2399, %v2395
    %v2804 = vpack.c.b16 %v2400, %v2396
    %v2805 = vpack.c.b16 %v2401, %v2397
    %v2806 = vpack.c.b16 %v2402, %v2398
    %v2807 = vpack.c.b16 %v2407, %v2403
    %v2808 = vpack.c.b16 %v2408, %v2404
    %v2809 = vpack.c.b16 %v2409, %v2405
    %v2810 = vpack.c.b16 %v2410, %v2406
    %v2811 = vpack.c.b16 %v2415, %v2411
    %v2812 = vpack.c.b16 %v2416, %v2412
    %v2813 = vpack.c.b16 %v2417, %v2413
    %v2814 = vpack.c.b16 %v2418, %v2414
    %v2815 = vpack.c.b16 %v2423, %v2419
    %v2816 = vpack.c.b16 %v2424, %v2420
    %v2817 = vpack.c.b16 %v2425, %v2421
    %v2818 = vpack.c.b16 %v2426, %v2422
    %v2819 = vpack.c.b16 %v2431, %v2427
    %v2820 = vpack.c.b16 %v2432, %v2428
    %v2821 = vpack.c.b16 %v2433, %v2429
    %v2822 = vpack.c.b16 %v2434, %v2430
    %v2823 = vpack.c.b16 %v2439, %v2435
    %v2824 = vpack.c.b16 %v2440, %v2436
    %v2825 = vpack.c.b16 %v2441, %v2437
    %v2826 = vpack.c.b16 %v2442, %v2438
    %v2827 = vpack.c.b16 %v2447, %v2443
    %v2828 = vpack.c.b16 %v2448, %v2444
    %v2829 = vpack.c.b16 %v2449, %v2445
    %v2830 = vpack.c.b16 %v2450, %v2446
    %v2831 = vpack.c.b16 %v2455, %v2451
    %v2832 = vpack.c.b16 %v2456, %v2452
    %v2833 = vpack.c.b16 %v2457, %v2453
    %v2834 = vpack.c.b16 %v2458, %v2454
    %v2835 = vpack.c.b16 %v2463, %v2459
    %v2836 = vpack.c.b16 %v2464, %v2460
    %v2837 = vpack.c.b16 %v2465, %v2461
    %v2838 = vpack.c.b16 %v2466, %v2462
    %v2839 = vpack.c.b16 %v2471, %v2467
    %v2840 = vpack.c.b16 %v2472, %v2468
    %v2841 = vpack.c.b16 %v2473, %v2469
    %v2842 = vpack.c.b16 %v2474, %v2470
    %v2843 = vpack.c.b16 %v2479, %v2475
    %v2844 = vpack.c.b16 %v2480, %v2476
    %v2845 = vpack.c.b16 %v2481, %v2477
    %v2846 = vpack.c.b16 %v2482, %v2478
    %v2847 = vpack.c.b16 %v2487, %v2483
    %v2848 = vpack.c.b16 %v2488, %v2484
    %v2849 = vpack.c.b16 %v2489, %v2485
    %v2850 = vpack.c.b16 %v2490, %v2486
    %v2851 = vpack.c.b16 %v2495, %v2491
    %v2852 = vpack.c.b16 %v2496, %v2492
    %v2853 = vpack.c.b16 %v2497, %v2493
    %v2854 = vpack.c.b16 %v2498, %v2494
    %v2855 = vpack.c.b16 %v2503, %v2499
    %v2856 = vpack.c.b16 %v2504, %v2500
    %v2857 = vpack.c.b16 %v2505, %v2501
    %v2858 = vpack.c.b16 %v2506, %v2502
    %v2859 = vpack.c.b16 %v2511, %v2507
    %v2860 = vpack.c.b16 %v2512, %v2508
    %v2861 = vpack.c.b16 %v2513, %v2509
    %v2862 = vpack.c.b16 %v2514, %v2510
    %v2863 = vpack.c.b16 %v2519, %v2515
    %v2864 = vpack.c.b16 %v2520, %v2516
    %v2865 = vpack.c.b16 %v2521, %v2517
    %v2866 = vpack.c.b16 %v2522, %v2518
    %v2867 = vpack.c.b16 %v2527, %v2523
    %v2868 = vpack.c.b16 %v2528, %v2524
    %v2869 = vpack.c.b16 %v2529, %v2525
    %v2870 = vpack.c.b16 %v2530, %v2526
    %v2871 = vpack.c.b16 %v2535, %v2531
    %v2872 = vpack.c.b16 %v2536, %v2532
    %v2873 = vpack.c.b16 %v2537, %v2533
    %v2874 = vpack.c.b16 %v2538, %v2534
    %v2875 = vpack.c.b16 %v2543, %v2539
    %v2876 = vpack.c.b16 %v2544, %v2540
    %v2877 = vpack.c.b16 %v2545, %v2541
    %v2878 = vpack.c.b16 %v2546, %v2542
    %v2879 = vpack.c.b16 %v2551, %v2547
    %v2880 = vpack.c.b16 %v2552, %v2548
    %v2881 = vpack.c.b16 %v2553, %v2549
    %v2882 = vpack.c.b16 %v2554, %v2550
    %v2883 = vpack.c.b16 %v2559, %v2555
    %v2884 = vpack.c.b16 %v2560, %v2556
    %v2885 = vpack.c.b16 %v2561, %v2557
    %v2886 = vpack.c.b16 %v2562, %v2558
    %v2887 = vpack.c.b16 %v2567, %v2563
    %v2888 = vpack.c.b16 %v2568, %v2564
    %v2889 = vpack.c.b16 %v2569, %v2565
    %v2890 = vpack.c.b16 %v2570, %v2566
    %v2891 = vpack.c.b16 %v2575, %v2571
    %v2892 = vpack.c.b16 %v2576, %v2572
    %v2893 = vpack.c.b16 %v2577, %v2573
    %v2894 = vpack.c.b16 %v2578, %v2574
    %v2895 = vpack.c.b16 %v2583, %v2579
    %v2896 = vpack.c.b16 %v2584, %v2580
    %v2897 = vpack.c.b16 %v2585, %v2581
    %v2898 = vpack.c.b16 %v2586, %v2582
    %v2899 = vpack.c.b16 %v2591, %v2587
    %v2900 = vpack.c.b16 %v2592, %v2588
    %v2901 = vpack.c.b16 %v2593, %v2589
    %v2902 = vpack.c.b16 %v2594, %v2590
    %v2903 = vpack.c.b16 %v2599, %v2595
    %v2904 = vpack.c.b16 %v2600, %v2596
    %v2905 = vpack.c.b16 %v2601, %v2597
    %v2906 = vpack.c.b16 %v2602, %v2598
    %v2907 = vpack.c.b16 %v2607, %v2603
    %v2908 = vpack.c.b16 %v2608, %v2604
    %v2909 = vpack.c.b16 %v2609, %v2605
    %v2910 = vpack.c.b16 %v2610, %v2606
    %v2911 = vpack.c.b16 %v2615, %v2611
    %v2912 = vpack.c.b16 %v2616, %v2612
    %v2913 = vpack.c.b16 %v2617, %v2613
    %v2914 = vpack.c.b16 %v2618, %v2614
    %v2915 = vpack.c.b16 %v2623, %v2619
    %v2916 = vpack.c.b16 %v2624, %v2620
    %v2917 = vpack.c.b16 %v2625, %v2621
    %v2918 = vpack.c.b16 %v2626, %v2622
    %v2919 = vpack.c.b16 %v2631, %v2627
    %v2920 = vpack.c.b16 %v2632, %v2628
    %v2921 = vpack.c.b16 %v2633, %v2629
    %v2922 = vpack.c.b16 %v2634, %v2630
    %v2923 = vpack.c.b16 %v2639, %v2635
    %v2924 = vpack.c.b16 %v2640, %v2636
    %v2925 = vpack.c.b16 %v2641, %v2637
    %v2926 = vpack.c.b16 %v2642, %v2638
    %v2927 = vpack.c.b16 %v2647, %v2643
    %v2928 = vpack.c.b16 %v2648, %v2644
    %v2929 = vpack.c.b16 %v2649, %v2645
    %v2930 = vpack.c.b16 %v2650, %v2646
    %v2931 = vpack.c.b16 %v2655, %v2651
    %v2932 = vpack.c.b16 %v2656, %v2652
    %v2933 = vpack.c.b16 %v2657, %v2653
    %v2934 = vpack.c.b16 %v2658, %v2654
    %v2935 = vpack.c.b16 %v2663, %v2659
    %v2936 = vpack.c.b16 %v2664, %v2660
    %v2937 = vpack.c.b16 %v2665, %v2661
    %v2938 = vpack.c.b16 %v2666, %v2662
    %v2939 = vpack.c.b16 %v2671, %v2667
    %v2940 = vpack.c.b16 %v2672, %v2668
    %v2941 = vpack.c.b16 %v2673, %v2669
    %v2942 = vpack.c.b16 %v2674, %v2670
    %v2943 = vpack.c.b16 %v2679, %v2675
    %v2944 = vpack.c.b16 %v2680, %v2676
    %v2945 = vpack.c.b16 %v2681, %v2677
    %v2946 = vpack.c.b16 %v2682, %v2678
    %v2947 = vpack.c.b16 %v2687, %v2683
    %v2948 = vpack.c.b16 %v2688, %v2684
    %v2949 = vpack.c.b16 %v2689, %v2685
    %v2950 = vpack.c.b16 %v2690, %v2686
    %v2951 = vpack.c.b16 %v2695, %v2691
    %v2952 = vpack.c.b16 %v2696, %v2692
    %v2953 = vpack.c.b16 %v2697, %v2693
    %v2954 = vpack.c.b16 %v2698, %v2694
    %3211 = vmatprep.subr.bf16.mxu0 %v2700
    %3212 = vmatpush1.bf16.msra.mxu0 %v2699
    %3213 = vmatprep.subr.bf16.mxu0 %v2704
    %3214 = vmatpush1.bf16.msra.mxu0 %v2703
    %3215 = vmatprep.subr.bf16.mxu0 %v2708
    %3216 = vmatpush1.bf16.msra.mxu0 %v2707
    %3217 = vmatprep.subr.bf16.mxu0 %v2712
    %3218 = vmatpush1.bf16.msra.mxu0 %v2711
    %3219 = vmatprep.subr.bf16.mxu0 %v2716
    %3220 = vmatpush1.bf16.msra.mxu0 %v2715
    %3221 = vmatprep.subr.bf16.mxu0 %v2720
    %3222 = vmatpush1.bf16.msra.mxu0 %v2719
    %3223 = vmatprep.subr.bf16.mxu0 %v2724
    %3224 = vmatpush1.bf16.msra.mxu0 %v2723
    %3225 = vmatprep.subr.bf16.mxu0 %v2728
    %3226 = vmatpush1.bf16.msra.mxu0 %v2727
    %3227 = vmatprep.subr.bf16.mxu0 %v2732
    %3228 = vmatpush1.bf16.msra.mxu0 %v2731
    %3229 = vmatprep.subr.bf16.mxu0 %v2736
    %3230 = vmatpush1.bf16.msra.mxu0 %v2735
    %3231 = vmatprep.subr.bf16.mxu0 %v2740
    %3232 = vmatpush1.bf16.msra.mxu0 %v2739
    %3233 = vmatprep.subr.bf16.mxu0 %v2744
    %3234 = vmatpush1.bf16.msra.mxu0 %v2743
    %3235 = vmatprep.subr.bf16.mxu0 %v2748
    %3236 = vmatpush1.bf16.msra.mxu0 %v2747
    %3237 = vmatprep.subr.bf16.mxu0 %v2752
    %3238 = vmatpush1.bf16.msra.mxu0 %v2751
    %3239 = vmatprep.subr.bf16.mxu0 %v2756
    %3240 = vmatpush1.bf16.msra.mxu0 %v2755
    %3241 = vmatprep.subr.bf16.mxu0 %v2760
    %3242 = vmatpush1.bf16.msra.mxu0 %v2759
    %3243 = vmatprep.mubr.bf16.mxu0 %v1420
    %3244 = vmatmul.mubr.bf16.gmra.mrb[0].mxu0 %v1419
    %v3245 = vpop.f32.mrb[0].mxu0
    %v3246 = vadd.f32 %v634, %v3245
    %v3247 = vpop.f32.mrb[0].mxu0
    %v3248 = vadd.f32 %v638, %v3247
    %v3249 = vpop.f32.mrb[0].mxu0
    %v3250 = vadd.f32 %v634, %v3249
    %v3251 = vpop.f32.mrb[0].mxu0
    %v3252 = vadd.f32 %v638, %v3251
    %3253 = vmatprep.mubr.bf16.mxu0 %v1428
    %3254 = vmatmul.mubr.bf16.gmra.mrb[0].mxu0 %v1427
    %v3255 = vpop.f32.mrb[0].mxu0
    %v3256 = vadd.f32 %v634, %v3255
    %v3257 = vpop.f32.mrb[0].mxu0
    %v3258 = vadd.f32 %v638, %v3257
    %v3259 = vpop.f32.mrb[0].mxu0
    %v3260 = vadd.f32 %v634, %v3259
    %v3261 = vpop.f32.mrb[0].mxu0
    %v3262 = vadd.f32 %v638, %v3261
    %3263 = vmatprep.mubr.bf16.mxu0 %v1436
    %3264 = vmatmul.mubr.bf16.gmra.mrb[0].mxu0 %v1435
    %v3265 = vpop.f32.mrb[0].mxu0
    %v3266 = vadd.f32 %v634, %v3265
    %v3267 = vpop.f32.mrb[0].mxu0
    %v3268 = vadd.f32 %v638, %v3267
    %v3269 = vpop.f32.mrb[0].mxu0
    %v3270 = vadd.f32 %v634, %v3269
    %v3271 = vpop.f32.mrb[0].mxu0
    %v3272 = vadd.f32 %v638, %v3271
    %3273 = vmatprep.mubr.bf16.mxu0 %v1444
    %3274 = vmatmul.mubr.bf16.gmra.mrb[0].mxu0 %v1443
    %v3275 = vpop.f32.mrb[0].mxu0
    %v3276 = vadd.f32 %v634, %v3275
    %v3277 = vpop.f32.mrb[0].mxu0
    %v3278 = vadd.f32 %v638, %v3277
    %v3279 = vpop.f32.mrb[0].mxu0
    %v3280 = vadd.f32 %v634, %v3279
    %v3281 = vpop.f32.mrb[0].mxu0
    %v3282 = vadd.f32 %v638, %v3281
    %3283 = vmatprep.mubr.bf16.mxu0 %v1452
    %3284 = vmatmul.mubr.bf16.gmra.mrb[0].mxu0 %v1451
    %v3285 = vpop.f32.mrb[0].mxu0
    %v3286 = vadd.f32 %v634, %v3285
    %v3287 = vpop.f32.mrb[0].mxu0
    %v3288 = vadd.f32 %v638, %v3287
    %v3289 = vpop.f32.mrb[0].mxu0
    %v3290 = vadd.f32 %v634, %v3289
    %v3291 = vpop.f32.mrb[0].mxu0
    %v3292 = vadd.f32 %v638, %v3291
    %3293 = vmatprep.mubr.bf16.mxu0 %v1460
    %3294 = vmatmul.mubr.bf16.gmra.mrb[0].mxu0 %v1459
    %v3295 = vpop.f32.mrb[0].mxu0
    %v3296 = vadd.f32 %v634, %v3295
    %v3297 = vpop.f32.mrb[0].mxu0
    %v3298 = vadd.f32 %v638, %v3297
    %v3299 = vpop.f32.mrb[0].mxu0
    %v3300 = vadd.f32 %v634, %v3299
    %v3301 = vpop.f32.mrb[0].mxu0
    %v3302 = vadd.f32 %v638, %v3301
    %3303 = vmatprep.mubr.bf16.mxu0 %v1468
    %3304 = vmatmul.mubr.bf16.gmra.mrb[0].mxu0 %v1467
    %v3305 = vpop.f32.mrb[0].mxu0
    %v3306 = vadd.f32 %v634, %v3305
    %v3307 = vpop.f32.mrb[0].mxu0
    %v3308 = vadd.f32 %v638, %v3307
    %v3309 = vpop.f32.mrb[0].mxu0
    %v3310 = vadd.f32 %v634, %v3309
    %v3311 = vpop.f32.mrb[0].mxu0
    %v3312 = vadd.f32 %v638, %v3311
    %3313 = vmatprep.mubr.bf16.mxu0 %v1476
    %3314 = vmatmul.mubr.bf16.gmra.mrb[0].mxu0 %v1475
    %v3315 = vpop.f32.mrb[0].mxu0
    %v3316 = vadd.f32 %v634, %v3315
    %v3317 = vpop.f32.mrb[0].mxu0
    %v3318 = vadd.f32 %v638, %v3317
    %v3319 = vpop.f32.mrb[0].mxu0
    %v3320 = vadd.f32 %v634, %v3319
    %v3321 = vpop.f32.mrb[0].mxu0
    %v3322 = vadd.f32 %v638, %v3321
    %3323 = vmatprep.mubr.bf16.mxu0 %v1484
    %3324 = vmatmul.mubr.bf16.gmra.mrb[0].mxu0 %v1483
    %v3325 = vpop.f32.mrb[0].mxu0
    %v3326 = vadd.f32 %v634, %v3325
    %v3327 = vpop.f32.mrb[0].mxu0
    %v3328 = vadd.f32 %v638, %v3327
    %v3329 = vpop.f32.mrb[0].mxu0
    %v3330 = vadd.f32 %v634, %v3329
    %v3331 = vpop.f32.mrb[0].mxu0
    %v3332 = vadd.f32 %v638, %v3331
    %3333 = vmatprep.mubr.bf16.mxu0 %v1492
    %3334 = vmatmul.mubr.bf16.gmra.mrb[0].mxu0 %v1491
    %v3335 = vpop.f32.mrb[0].mxu0
    %v3336 = vadd.f32 %v634, %v3335
    %v3337 = vpop.f32.mrb[0].mxu0
    %v3338 = vadd.f32 %v638, %v3337
    %v3339 = vpop.f32.mrb[0].mxu0
    %v3340 = vadd.f32 %v634, %v3339
    %v3341 = vpop.f32.mrb[0].mxu0
    %v3342 = vadd.f32 %v638, %v3341
    %3343 = vmatprep.mubr.bf16.mxu0 %v1500
    %3344 = vmatmul.mubr.bf16.gmra.mrb[0].mxu0 %v1499
    %v3345 = vpop.f32.mrb[0].mxu0
    %v3346 = vadd.f32 %v634, %v3345
    %v3347 = vpop.f32.mrb[0].mxu0
    %v3348 = vadd.f32 %v638, %v3347
    %v3349 = vpop.f32.mrb[0].mxu0
    %v3350 = vadd.f32 %v634, %v3349
    %v3351 = vpop.f32.mrb[0].mxu0
    %v3352 = vadd.f32 %v638, %v3351
    %3353 = vmatprep.mubr.bf16.mxu0 %v1508
    %3354 = vmatmul.mubr.bf16.gmra.mrb[0].mxu0 %v1507
    %v3355 = vpop.f32.mrb[0].mxu0
    %v3356 = vadd.f32 %v634, %v3355
    %v3357 = vpop.f32.mrb[0].mxu0
    %v3358 = vadd.f32 %v638, %v3357
    %v3359 = vpop.f32.mrb[0].mxu0
    %v3360 = vadd.f32 %v634, %v3359
    %v3361 = vpop.f32.mrb[0].mxu0
    %v3362 = vadd.f32 %v638, %v3361
    %3363 = vmatprep.mubr.bf16.mxu0 %v1516
    %3364 = vmatmul.mubr.bf16.gmra.mrb[0].mxu0 %v1515
    %v3365 = vpop.f32.mrb[0].mxu0
    %v3366 = vadd.f32 %v634, %v3365
    %v3367 = vpop.f32.mrb[0].mxu0
    %v3368 = vadd.f32 %v638, %v3367
    %v3369 = vpop.f32.mrb[0].mxu0
    %v3370 = vadd.f32 %v634, %v3369
    %v3371 = vpop.f32.mrb[0].mxu0
    %v3372 = vadd.f32 %v638, %v3371
    %3373 = vmatprep.mubr.bf16.mxu0 %v1524
    %3374 = vmatmul.mubr.bf16.gmra.mrb[0].mxu0 %v1523
    %v3375 = vpop.f32.mrb[0].mxu0
    %v3376 = vadd.f32 %v634, %v3375
    %v3377 = vpop.f32.mrb[0].mxu0
    %v3378 = vadd.f32 %v638, %v3377
    %v3379 = vpop.f32.mrb[0].mxu0
    %v3380 = vadd.f32 %v634, %v3379
    %v3381 = vpop.f32.mrb[0].mxu0
    %v3382 = vadd.f32 %v638, %v3381
    %3383 = vmatprep.mubr.bf16.mxu0 %v1532
    %3384 = vmatmul.mubr.bf16.gmra.mrb[0].mxu0 %v1531
    %v3385 = vpop.f32.mrb[0].mxu0
    %v3386 = vadd.f32 %v634, %v3385
    %v3387 = vpop.f32.mrb[0].mxu0
    %v3388 = vadd.f32 %v638, %v3387
    %v3389 = vpop.f32.mrb[0].mxu0
    %v3390 = vadd.f32 %v634, %v3389
    %v3391 = vpop.f32.mrb[0].mxu0
    %v3392 = vadd.f32 %v638, %v3391
    %3393 = vmatprep.mubr.bf16.mxu0 %v1540
    %3394 = vmatmul.mubr.bf16.gmra.mrb[0].mxu0 %v1539
    %v3395 = vpop.f32.mrb[0].mxu0
    %v3396 = vadd.f32 %v634, %v3395
    %v3397 = vpop.f32.mrb[0].mxu0
    %v3398 = vadd.f32 %v638, %v3397
    %v3399 = vpop.f32.mrb[0].mxu0
    %v3400 = vadd.f32 %v634, %v3399
    %v3401 = vpop.f32.mrb[0].mxu0
    %v3402 = vadd.f32 %v638, %v3401
    %3403 = vmatprep.mubr.bf16.mxu0 %v1548
    %3404 = vmatmul.mubr.bf16.gmra.mrb[0].mxu0 %v1547
    %v3405 = vpop.f32.mrb[0].mxu0
    %v3406 = vadd.f32 %v634, %v3405
    %v3407 = vpop.f32.mrb[0].mxu0
    %v3408 = vadd.f32 %v638, %v3407
    %v3409 = vpop.f32.mrb[0].mxu0
    %v3410 = vadd.f32 %v634, %v3409
    %v3411 = vpop.f32.mrb[0].mxu0
    %v3412 = vadd.f32 %v638, %v3411
    %3413 = vmatprep.mubr.bf16.mxu0 %v1556
    %3414 = vmatmul.mubr.bf16.gmra.mrb[0].mxu0 %v1555
    %v3415 = vpop.f32.mrb[0].mxu0
    %v3416 = vadd.f32 %v634, %v3415
    %v3417 = vpop.f32.mrb[0].mxu0
    %v3418 = vadd.f32 %v638, %v3417
    %v3419 = vpop.f32.mrb[0].mxu0
    %v3420 = vadd.f32 %v634, %v3419
    %v3421 = vpop.f32.mrb[0].mxu0
    %v3422 = vadd.f32 %v638, %v3421
    %3423 = vmatprep.mubr.bf16.mxu0 %v1564
    %3424 = vmatmul.mubr.bf16.gmra.mrb[0].mxu0 %v1563
    %v3425 = vpop.f32.mrb[0].mxu0
    %v3426 = vadd.f32 %v634, %v3425
    %v3427 = vpop.f32.mrb[0].mxu0
    %v3428 = vadd.f32 %v638, %v3427
    %v3429 = vpop.f32.mrb[0].mxu0
    %v3430 = vadd.f32 %v634, %v3429
    %v3431 = vpop.f32.mrb[0].mxu0
    %v3432 = vadd.f32 %v638, %v3431
    %3433 = vmatprep.mubr.bf16.mxu0 %v1572
    %3434 = vmatmul.mubr.bf16.gmra.mrb[0].mxu0 %v1571
    %v3435 = vpop.f32.mrb[0].mxu0
    %v3436 = vadd.f32 %v634, %v3435
    %v3437 = vpop.f32.mrb[0].mxu0
    %v3438 = vadd.f32 %v638, %v3437
    %v3439 = vpop.f32.mrb[0].mxu0
    %v3440 = vadd.f32 %v634, %v3439
    %v3441 = vpop.f32.mrb[0].mxu0
    %v3442 = vadd.f32 %v638, %v3441
    %3443 = vmatprep.mubr.bf16.mxu0 %v1580
    %3444 = vmatmul.mubr.bf16.gmra.mrb[0].mxu0 %v1579
    %v3445 = vpop.f32.mrb[0].mxu0
    %v3446 = vadd.f32 %v634, %v3445
    %v3447 = vpop.f32.mrb[0].mxu0
    %v3448 = vadd.f32 %v638, %v3447
    %v3449 = vpop.f32.mrb[0].mxu0
    %v3450 = vadd.f32 %v634, %v3449
    %v3451 = vpop.f32.mrb[0].mxu0
    %v3452 = vadd.f32 %v638, %v3451
    %3453 = vmatprep.mubr.bf16.mxu0 %v1588
    %3454 = vmatmul.mubr.bf16.gmra.mrb[0].mxu0 %v1587
    %v3455 = vpop.f32.mrb[0].mxu0
    %v3456 = vadd.f32 %v634, %v3455
    %v3457 = vpop.f32.mrb[0].mxu0
    %v3458 = vadd.f32 %v638, %v3457
    %v3459 = vpop.f32.mrb[0].mxu0
    %v3460 = vadd.f32 %v634, %v3459
    %v3461 = vpop.f32.mrb[0].mxu0
    %v3462 = vadd.f32 %v638, %v3461
    %3463 = vmatprep.mubr.bf16.mxu0 %v1596
    %3464 = vmatmul.mubr.bf16.gmra.mrb[0].mxu0 %v1595
    %v3465 = vpop.f32.mrb[0].mxu0
    %v3466 = vadd.f32 %v634, %v3465
    %v3467 = vpop.f32.mrb[0].mxu0
    %v3468 = vadd.f32 %v638, %v3467
    %v3469 = vpop.f32.mrb[0].mxu0
    %v3470 = vadd.f32 %v634, %v3469
    %v3471 = vpop.f32.mrb[0].mxu0
    %v3472 = vadd.f32 %v638, %v3471
    %3473 = vmatprep.mubr.bf16.mxu0 %v1604
    %3474 = vmatmul.mubr.bf16.gmra.mrb[0].mxu0 %v1603
    %v3475 = vpop.f32.mrb[0].mxu0
    %v3476 = vadd.f32 %v634, %v3475
    %v3477 = vpop.f32.mrb[0].mxu0
    %v3478 = vadd.f32 %v638, %v3477
    %v3479 = vpop.f32.mrb[0].mxu0
    %v3480 = vadd.f32 %v634, %v3479
    %v3481 = vpop.f32.mrb[0].mxu0
    %v3482 = vadd.f32 %v638, %v3481
    %3483 = vmatprep.mubr.bf16.mxu0 %v1612
    %3484 = vmatmul.mubr.bf16.gmra.mrb[0].mxu0 %v1611
    %v3485 = vpop.f32.mrb[0].mxu0
    %v3486 = vadd.f32 %v634, %v3485
    %v3487 = vpop.f32.mrb[0].mxu0
    %v3488 = vadd.f32 %v638, %v3487
    %v3489 = vpop.f32.mrb[0].mxu0
    %v3490 = vadd.f32 %v634, %v3489
    %v3491 = vpop.f32.mrb[0].mxu0
    %v3492 = vadd.f32 %v638, %v3491
    %3493 = vmatprep.mubr.bf16.mxu0 %v1620
    %3494 = vmatmul.mubr.bf16.gmra.mrb[0].mxu0 %v1619
    %v3495 = vpop.f32.mrb[0].mxu0
    %v3496 = vadd.f32 %v634, %v3495
    %v3497 = vpop.f32.mrb[0].mxu0
    %v3498 = vadd.f32 %v638, %v3497
    %v3499 = vpop.f32.mrb[0].mxu0
    %v3500 = vadd.f32 %v634, %v3499
    %v3501 = vpop.f32.mrb[0].mxu0
    %v3502 = vadd.f32 %v638, %v3501
    %3503 = vmatprep.mubr.bf16.mxu0 %v1628
    %3504 = vmatmul.mubr.bf16.gmra.mrb[0].mxu0 %v1627
    %v3505 = vpop.f32.mrb[0].mxu0
    %v3506 = vadd.f32 %v634, %v3505
    %v3507 = vpop.f32.mrb[0].mxu0
    %v3508 = vadd.f32 %v638, %v3507
    %v3509 = vpop.f32.mrb[0].mxu0
    %v3510 = vadd.f32 %v634, %v3509
    %v3511 = vpop.f32.mrb[0].mxu0
    %v3512 = vadd.f32 %v638, %v3511
    %3513 = vmatprep.mubr.bf16.mxu0 %v1636
    %3514 = vmatmul.mubr.bf16.gmra.mrb[0].mxu0 %v1635
    %v3515 = vpop.f32.mrb[0].mxu0
    %v3516 = vadd.f32 %v634, %v3515
    %v3517 = vpop.f32.mrb[0].mxu0
    %v3518 = vadd.f32 %v638, %v3517
    %v3519 = vpop.f32.mrb[0].mxu0
    %v3520 = vadd.f32 %v634, %v3519
    %v3521 = vpop.f32.mrb[0].mxu0
    %v3522 = vadd.f32 %v638, %v3521
    %3523 = vmatprep.mubr.bf16.mxu0 %v1644
    %3524 = vmatmul.mubr.bf16.gmra.mrb[0].mxu0 %v1643
    %v3525 = vpop.f32.mrb[0].mxu0
    %v3526 = vadd.f32 %v634, %v3525
    %v3527 = vpop.f32.mrb[0].mxu0
    %v3528 = vadd.f32 %v638, %v3527
    %v3529 = vpop.f32.mrb[0].mxu0
    %v3530 = vadd.f32 %v634, %v3529
    %v3531 = vpop.f32.mrb[0].mxu0
    %v3532 = vadd.f32 %v638, %v3531
    %3533 = vmatprep.mubr.bf16.mxu0 %v1652
    %3534 = vmatmul.mubr.bf16.gmra.mrb[0].mxu0 %v1651
    %v3535 = vpop.f32.mrb[0].mxu0
    %v3536 = vadd.f32 %v634, %v3535
    %v3537 = vpop.f32.mrb[0].mxu0
    %v3538 = vadd.f32 %v638, %v3537
    %v3539 = vpop.f32.mrb[0].mxu0
    %v3540 = vadd.f32 %v634, %v3539
    %v3541 = vpop.f32.mrb[0].mxu0
    %v3542 = vadd.f32 %v638, %v3541
    %3543 = vmatprep.mubr.bf16.mxu0 %v1660
    %3544 = vmatmul.mubr.bf16.gmra.mrb[0].mxu0 %v1659
    %v3545 = vpop.f32.mrb[0].mxu0
    %v3546 = vadd.f32 %v634, %v3545
    %v3547 = vpop.f32.mrb[0].mxu0
    %v3548 = vadd.f32 %v638, %v3547
    %v3549 = vpop.f32.mrb[0].mxu0
    %v3550 = vadd.f32 %v634, %v3549
    %v3551 = vpop.f32.mrb[0].mxu0
    %v3552 = vadd.f32 %v638, %v3551
    %3553 = vmatprep.mubr.bf16.mxu0 %v1668
    %3554 = vmatmul.mubr.bf16.gmra.mrb[0].mxu0 %v1667
    %v3555 = vpop.f32.mrb[0].mxu0
    %v3556 = vadd.f32 %v634, %v3555
    %v3557 = vpop.f32.mrb[0].mxu0
    %v3558 = vadd.f32 %v638, %v3557
    %v3559 = vpop.f32.mrb[0].mxu0
    %v3560 = vadd.f32 %v634, %v3559
    %v3561 = vpop.f32.mrb[0].mxu0
    %v3562 = vadd.f32 %v638, %v3561
    %3563 = vdwg.mxu0
    %3564 = vmatprep.subr.bf16.mxu0 %v2764
    %3565 = vmatpush1.bf16.msra.mxu0 %v2763
    %3566 = vmatprep.subr.bf16.mxu0 %v2768
    %3567 = vmatpush1.bf16.msra.mxu0 %v2767
    %3568 = vmatprep.subr.bf16.mxu0 %v2772
    %3569 = vmatpush1.bf16.msra.mxu0 %v2771
    %3570 = vmatprep.subr.bf16.mxu0 %v2776
    %3571 = vmatpush1.bf16.msra.mxu0 %v2775
    %3572 = vmatprep.subr.bf16.mxu0 %v2780
    %3573 = vmatpush1.bf16.msra.mxu0 %v2779
    %3574 = vmatprep.subr.bf16.mxu0 %v2784
    %3575 = vmatpush1.bf16.msra.mxu0 %v2783
    %3576 = vmatprep.subr.bf16.mxu0 %v2788
    %3577 = vmatpush1.bf16.msra.mxu0 %v2787
    %3578 = vmatprep.subr.bf16.mxu0 %v2792
    %3579 = vmatpush1.bf16.msra.mxu0 %v2791
    %3580 = vmatprep.subr.bf16.mxu0 %v2796
    %3581 = vmatpush1.bf16.msra.mxu0 %v2795
    %3582 = vmatprep.subr.bf16.mxu0 %v2800
    %3583 = vmatpush1.bf16.msra.mxu0 %v2799
    %3584 = vmatprep.subr.bf16.mxu0 %v2804
    %3585 = vmatpush1.bf16.msra.mxu0 %v2803
    %3586 = vmatprep.subr.bf16.mxu0 %v2808
    %3587 = vmatpush1.bf16.msra.mxu0 %v2807
    %3588 = vmatprep.subr.bf16.mxu0 %v2812
    %3589 = vmatpush1.bf16.msra.mxu0 %v2811
    %3590 = vmatprep.subr.bf16.mxu0 %v2816
    %3591 = vmatpush1.bf16.msra.mxu0 %v2815
    %3592 = vmatprep.subr.bf16.mxu0 %v2820
    %3593 = vmatpush1.bf16.msra.mxu0 %v2819
    %3594 = vmatprep.subr.bf16.mxu0 %v2824
    %3595 = vmatpush1.bf16.msra.mxu0 %v2823
    %3596 = vmatprep.mubr.bf16.mxu0 %v1422
    %3597 = vmatmul.mubr.bf16.gmra.mrb[0].mxu0 %v1421
    %v3598 = vpop.f32.mrb[0].mxu0
    %v3599 = vadd.f32 %v3246, %v3598
    %v3600 = vpop.f32.mrb[0].mxu0
    %v3601 = vadd.f32 %v3248, %v3600
    %v3602 = vpop.f32.mrb[0].mxu0
    %v3603 = vadd.f32 %v3250, %v3602
    %v3604 = vpop.f32.mrb[0].mxu0
    %v3605 = vadd.f32 %v3252, %v3604
    %3606 = vmatprep.mubr.bf16.mxu0 %v1430
    %3607 = vmatmul.mubr.bf16.gmra.mrb[0].mxu0 %v1429
    %v3608 = vpop.f32.mrb[0].mxu0
    %v3609 = vadd.f32 %v3256, %v3608
    %v3610 = vpop.f32.mrb[0].mxu0
    %v3611 = vadd.f32 %v3258, %v3610
    %v3612 = vpop.f32.mrb[0].mxu0
    %v3613 = vadd.f32 %v3260, %v3612
    %v3614 = vpop.f32.mrb[0].mxu0
    %v3615 = vadd.f32 %v3262, %v3614
    %3616 = vmatprep.mubr.bf16.mxu0 %v1438
    %3617 = vmatmul.mubr.bf16.gmra.mrb[0].mxu0 %v1437
    %v3618 = vpop.f32.mrb[0].mxu0
    %v3619 = vadd.f32 %v3266, %v3618
    %v3620 = vpop.f32.mrb[0].mxu0
    %v3621 = vadd.f32 %v3268, %v3620
    %v3622 = vpop.f32.mrb[0].mxu0
    %v3623 = vadd.f32 %v3270, %v3622
    %v3624 = vpop.f32.mrb[0].mxu0
    %v3625 = vadd.f32 %v3272, %v3624
    %3626 = vmatprep.mubr.bf16.mxu0 %v1446
    %3627 = vmatmul.mubr.bf16.gmra.mrb[0].mxu0 %v1445
    %v3628 = vpop.f32.mrb[0].mxu0
    %v3629 = vadd.f32 %v3276, %v3628
    %v3630 = vpop.f32.mrb[0].mxu0
    %v3631 = vadd.f32 %v3278, %v3630
    %v3632 = vpop.f32.mrb[0].mxu0
    %v3633 = vadd.f32 %v3280, %v3632
    %v3634 = vpop.f32.mrb[0].mxu0
    %v3635 = vadd.f32 %v3282, %v3634
    %3636 = vmatprep.mubr.bf16.mxu0 %v1454
    %3637 = vmatmul.mubr.bf16.gmra.mrb[0].mxu0 %v1453
    %v3638 = vpop.f32.mrb[0].mxu0
    %v3639 = vadd.f32 %v3286, %v3638
    %v3640 = vpop.f32.mrb[0].mxu0
    %v3641 = vadd.f32 %v3288, %v3640
    %v3642 = vpop.f32.mrb[0].mxu0
    %v3643 = vadd.f32 %v3290, %v3642
    %v3644 = vpop.f32.mrb[0].mxu0
    %v3645 = vadd.f32 %v3292, %v3644
    %3646 = vmatprep.mubr.bf16.mxu0 %v1462
    %3647 = vmatmul.mubr.bf16.gmra.mrb[0].mxu0 %v1461
    %v3648 = vpop.f32.mrb[0].mxu0
    %v3649 = vadd.f32 %v3296, %v3648
    %v3650 = vpop.f32.mrb[0].mxu0
    %v3651 = vadd.f32 %v3298, %v3650
    %v3652 = vpop.f32.mrb[0].mxu0
    %v3653 = vadd.f32 %v3300, %v3652
    %v3654 = vpop.f32.mrb[0].mxu0
    %v3655 = vadd.f32 %v3302, %v3654
    %3656 = vmatprep.mubr.bf16.mxu0 %v1470
    %3657 = vmatmul.mubr.bf16.gmra.mrb[0].mxu0 %v1469
    %v3658 = vpop.f32.mrb[0].mxu0
    %v3659 = vadd.f32 %v3306, %v3658
    %v3660 = vpop.f32.mrb[0].mxu0
    %v3661 = vadd.f32 %v3308, %v3660
    %v3662 = vpop.f32.mrb[0].mxu0
    %v3663 = vadd.f32 %v3310, %v3662
    %v3664 = vpop.f32.mrb[0].mxu0
    %v3665 = vadd.f32 %v3312, %v3664
    %3666 = vmatprep.mubr.bf16.mxu0 %v1478
    %3667 = vmatmul.mubr.bf16.gmra.mrb[0].mxu0 %v1477
    %v3668 = vpop.f32.mrb[0].mxu0
    %v3669 = vadd.f32 %v3316, %v3668
    %v3670 = vpop.f32.mrb[0].mxu0
    %v3671 = vadd.f32 %v3318, %v3670
    %v3672 = vpop.f32.mrb[0].mxu0
    %v3673 = vadd.f32 %v3320, %v3672
    %v3674 = vpop.f32.mrb[0].mxu0
    %v3675 = vadd.f32 %v3322, %v3674
    %3676 = vmatprep.mubr.bf16.mxu0 %v1486
    %3677 = vmatmul.mubr.bf16.gmra.mrb[0].mxu0 %v1485
    %v3678 = vpop.f32.mrb[0].mxu0
    %v3679 = vadd.f32 %v3326, %v3678
    %v3680 = vpop.f32.mrb[0].mxu0
    %v3681 = vadd.f32 %v3328, %v3680
    %v3682 = vpop.f32.mrb[0].mxu0
    %v3683 = vadd.f32 %v3330, %v3682
    %v3684 = vpop.f32.mrb[0].mxu0
    %v3685 = vadd.f32 %v3332, %v3684
    %3686 = vmatprep.mubr.bf16.mxu0 %v1494
    %3687 = vmatmul.mubr.bf16.gmra.mrb[0].mxu0 %v1493
    %v3688 = vpop.f32.mrb[0].mxu0
    %v3689 = vadd.f32 %v3336, %v3688
    %v3690 = vpop.f32.mrb[0].mxu0
    %v3691 = vadd.f32 %v3338, %v3690
    %v3692 = vpop.f32.mrb[0].mxu0
    %v3693 = vadd.f32 %v3340, %v3692
    %v3694 = vpop.f32.mrb[0].mxu0
    %v3695 = vadd.f32 %v3342, %v3694
    %3696 = vmatprep.mubr.bf16.mxu0 %v1502
    %3697 = vmatmul.mubr.bf16.gmra.mrb[0].mxu0 %v1501
    %v3698 = vpop.f32.mrb[0].mxu0
    %v3699 = vadd.f32 %v3346, %v3698
    %v3700 = vpop.f32.mrb[0].mxu0
    %v3701 = vadd.f32 %v3348, %v3700
    %v3702 = vpop.f32.mrb[0].mxu0
    %v3703 = vadd.f32 %v3350, %v3702
    %v3704 = vpop.f32.mrb[0].mxu0
    %v3705 = vadd.f32 %v3352, %v3704
    %3706 = vmatprep.mubr.bf16.mxu0 %v1510
    %3707 = vmatmul.mubr.bf16.gmra.mrb[0].mxu0 %v1509
    %v3708 = vpop.f32.mrb[0].mxu0
    %v3709 = vadd.f32 %v3356, %v3708
    %v3710 = vpop.f32.mrb[0].mxu0
    %v3711 = vadd.f32 %v3358, %v3710
    %v3712 = vpop.f32.mrb[0].mxu0
    %v3713 = vadd.f32 %v3360, %v3712
    %v3714 = vpop.f32.mrb[0].mxu0
    %v3715 = vadd.f32 %v3362, %v3714
    %3716 = vmatprep.mubr.bf16.mxu0 %v1518
    %3717 = vmatmul.mubr.bf16.gmra.mrb[0].mxu0 %v1517
    %v3718 = vpop.f32.mrb[0].mxu0
    %v3719 = vadd.f32 %v3366, %v3718
    %v3720 = vpop.f32.mrb[0].mxu0
    %v3721 = vadd.f32 %v3368, %v3720
    %v3722 = vpop.f32.mrb[0].mxu0
    %v3723 = vadd.f32 %v3370, %v3722
    %v3724 = vpop.f32.mrb[0].mxu0
    %v3725 = vadd.f32 %v3372, %v3724
    %3726 = vmatprep.mubr.bf16.mxu0 %v1526
    %3727 = vmatmul.mubr.bf16.gmra.mrb[0].mxu0 %v1525
    %v3728 = vpop.f32.mrb[0].mxu0
    %v3729 = vadd.f32 %v3376, %v3728
    %v3730 = vpop.f32.mrb[0].mxu0
    %v3731 = vadd.f32 %v3378, %v3730
    %v3732 = vpop.f32.mrb[0].mxu0
    %v3733 = vadd.f32 %v3380, %v3732
    %v3734 = vpop.f32.mrb[0].mxu0
    %v3735 = vadd.f32 %v3382, %v3734
    %3736 = vmatprep.mubr.bf16.mxu0 %v1534
    %3737 = vmatmul.mubr.bf16.gmra.mrb[0].mxu0 %v1533
    %v3738 = vpop.f32.mrb[0].mxu0
    %v3739 = vadd.f32 %v3386, %v3738
    %v3740 = vpop.f32.mrb[0].mxu0
    %v3741 = vadd.f32 %v3388, %v3740
    %v3742 = vpop.f32.mrb[0].mxu0
    %v3743 = vadd.f32 %v3390, %v3742
    %v3744 = vpop.f32.mrb[0].mxu0
    %v3745 = vadd.f32 %v3392, %v3744
    %3746 = vmatprep.mubr.bf16.mxu0 %v1542
    %3747 = vmatmul.mubr.bf16.gmra.mrb[0].mxu0 %v1541
    %v3748 = vpop.f32.mrb[0].mxu0
    %v3749 = vadd.f32 %v3396, %v3748
    %v3750 = vpop.f32.mrb[0].mxu0
    %v3751 = vadd.f32 %v3398, %v3750
    %v3752 = vpop.f32.mrb[0].mxu0
    %v3753 = vadd.f32 %v3400, %v3752
    %v3754 = vpop.f32.mrb[0].mxu0
    %v3755 = vadd.f32 %v3402, %v3754
    %3756 = vmatprep.mubr.bf16.mxu0 %v1550
    %3757 = vmatmul.mubr.bf16.gmra.mrb[0].mxu0 %v1549
    %v3758 = vpop.f32.mrb[0].mxu0
    %v3759 = vadd.f32 %v3406, %v3758
    %v3760 = vpop.f32.mrb[0].mxu0
    %v3761 = vadd.f32 %v3408, %v3760
    %v3762 = vpop.f32.mrb[0].mxu0
    %v3763 = vadd.f32 %v3410, %v3762
    %v3764 = vpop.f32.mrb[0].mxu0
    %v3765 = vadd.f32 %v3412, %v3764
    %3766 = vmatprep.mubr.bf16.mxu0 %v1558
    %3767 = vmatmul.mubr.bf16.gmra.mrb[0].mxu0 %v1557
    %v3768 = vpop.f32.mrb[0].mxu0
    %v3769 = vadd.f32 %v3416, %v3768
    %v3770 = vpop.f32.mrb[0].mxu0
    %v3771 = vadd.f32 %v3418, %v3770
    %v3772 = vpop.f32.mrb[0].mxu0
    %v3773 = vadd.f32 %v3420, %v3772
    %v3774 = vpop.f32.mrb[0].mxu0
    %v3775 = vadd.f32 %v3422, %v3774
    %3776 = vmatprep.mubr.bf16.mxu0 %v1566
    %3777 = vmatmul.mubr.bf16.gmra.mrb[0].mxu0 %v1565
    %v3778 = vpop.f32.mrb[0].mxu0
    %v3779 = vadd.f32 %v3426, %v3778
    %v3780 = vpop.f32.mrb[0].mxu0
    %v3781 = vadd.f32 %v3428, %v3780
    %v3782 = vpop.f32.mrb[0].mxu0
    %v3783 = vadd.f32 %v3430, %v3782
    %v3784 = vpop.f32.mrb[0].mxu0
    %v3785 = vadd.f32 %v3432, %v3784
    %3786 = vmatprep.mubr.bf16.mxu0 %v1574
    %3787 = vmatmul.mubr.bf16.gmra.mrb[0].mxu0 %v1573
    %v3788 = vpop.f32.mrb[0].mxu0
    %v3789 = vadd.f32 %v3436, %v3788
    %v3790 = vpop.f32.mrb[0].mxu0
    %v3791 = vadd.f32 %v3438, %v3790
    %v3792 = vpop.f32.mrb[0].mxu0
    %v3793 = vadd.f32 %v3440, %v3792
    %v3794 = vpop.f32.mrb[0].mxu0
    %v3795 = vadd.f32 %v3442, %v3794
    %3796 = vmatprep.mubr.bf16.mxu0 %v1582
    %3797 = vmatmul.mubr.bf16.gmra.mrb[0].mxu0 %v1581
    %v3798 = vpop.f32.mrb[0].mxu0
    %v3799 = vadd.f32 %v3446, %v3798
    %v3800 = vpop.f32.mrb[0].mxu0
    %v3801 = vadd.f32 %v3448, %v3800
    %v3802 = vpop.f32.mrb[0].mxu0
    %v3803 = vadd.f32 %v3450, %v3802
    %v3804 = vpop.f32.mrb[0].mxu0
    %v3805 = vadd.f32 %v3452, %v3804
    %3806 = vmatprep.mubr.bf16.mxu0 %v1590
    %3807 = vmatmul.mubr.bf16.gmra.mrb[0].mxu0 %v1589
    %v3808 = vpop.f32.mrb[0].mxu0
    %v3809 = vadd.f32 %v3456, %v3808
    %v3810 = vpop.f32.mrb[0].mxu0
    %v3811 = vadd.f32 %v3458, %v3810
    %v3812 = vpop.f32.mrb[0].mxu0
    %v3813 = vadd.f32 %v3460, %v3812
    %v3814 = vpop.f32.mrb[0].mxu0
    %v3815 = vadd.f32 %v3462, %v3814
    %3816 = vmatprep.mubr.bf16.mxu0 %v1598
    %3817 = vmatmul.mubr.bf16.gmra.mrb[0].mxu0 %v1597
    %v3818 = vpop.f32.mrb[0].mxu0
    %v3819 = vadd.f32 %v3466, %v3818
    %v3820 = vpop.f32.mrb[0].mxu0
    %v3821 = vadd.f32 %v3468, %v3820
    %v3822 = vpop.f32.mrb[0].mxu0
    %v3823 = vadd.f32 %v3470, %v3822
    %v3824 = vpop.f32.mrb[0].mxu0
    %v3825 = vadd.f32 %v3472, %v3824
    %3826 = vmatprep.mubr.bf16.mxu0 %v1606
    %3827 = vmatmul.mubr.bf16.gmra.mrb[0].mxu0 %v1605
    %v3828 = vpop.f32.mrb[0].mxu0
    %v3829 = vadd.f32 %v3476, %v3828
    %v3830 = vpop.f32.mrb[0].mxu0
    %v3831 = vadd.f32 %v3478, %v3830
    %v3832 = vpop.f32.mrb[0].mxu0
    %v3833 = vadd.f32 %v3480, %v3832
    %v3834 = vpop.f32.mrb[0].mxu0
    %v3835 = vadd.f32 %v3482, %v3834
    %3836 = vmatprep.mubr.bf16.mxu0 %v1614
    %3837 = vmatmul.mubr.bf16.gmra.mrb[0].mxu0 %v1613
    %v3838 = vpop.f32.mrb[0].mxu0
    %v3839 = vadd.f32 %v3486, %v3838
    %v3840 = vpop.f32.mrb[0].mxu0
    %v3841 = vadd.f32 %v3488, %v3840
    %v3842 = vpop.f32.mrb[0].mxu0
    %v3843 = vadd.f32 %v3490, %v3842
    %v3844 = vpop.f32.mrb[0].mxu0
    %v3845 = vadd.f32 %v3492, %v3844
    %3846 = vmatprep.mubr.bf16.mxu0 %v1622
    %3847 = vmatmul.mubr.bf16.gmra.mrb[0].mxu0 %v1621
    %v3848 = vpop.f32.mrb[0].mxu0
    %v3849 = vadd.f32 %v3496, %v3848
    %v3850 = vpop.f32.mrb[0].mxu0
    %v3851 = vadd.f32 %v3498, %v3850
    %v3852 = vpop.f32.mrb[0].mxu0
    %v3853 = vadd.f32 %v3500, %v3852
    %v3854 = vpop.f32.mrb[0].mxu0
    %v3855 = vadd.f32 %v3502, %v3854
    %3856 = vmatprep.mubr.bf16.mxu0 %v1630
    %3857 = vmatmul.mubr.bf16.gmra.mrb[0].mxu0 %v1629
    %v3858 = vpop.f32.mrb[0].mxu0
    %v3859 = vadd.f32 %v3506, %v3858
    %v3860 = vpop.f32.mrb[0].mxu0
    %v3861 = vadd.f32 %v3508, %v3860
    %v3862 = vpop.f32.mrb[0].mxu0
    %v3863 = vadd.f32 %v3510, %v3862
    %v3864 = vpop.f32.mrb[0].mxu0
    %v3865 = vadd.f32 %v3512, %v3864
    %3866 = vmatprep.mubr.bf16.mxu0 %v1638
    %3867 = vmatmul.mubr.bf16.gmra.mrb[0].mxu0 %v1637
    %v3868 = vpop.f32.mrb[0].mxu0
    %v3869 = vadd.f32 %v3516, %v3868
    %v3870 = vpop.f32.mrb[0].mxu0
    %v3871 = vadd.f32 %v3518, %v3870
    %v3872 = vpop.f32.mrb[0].mxu0
    %v3873 = vadd.f32 %v3520, %v3872
    %v3874 = vpop.f32.mrb[0].mxu0
    %v3875 = vadd.f32 %v3522, %v3874
    %3876 = vmatprep.mubr.bf16.mxu0 %v1646
    %3877 = vmatmul.mubr.bf16.gmra.mrb[0].mxu0 %v1645
    %v3878 = vpop.f32.mrb[0].mxu0
    %v3879 = vadd.f32 %v3526, %v3878
    %v3880 = vpop.f32.mrb[0].mxu0
    %v3881 = vadd.f32 %v3528, %v3880
    %v3882 = vpop.f32.mrb[0].mxu0
    %v3883 = vadd.f32 %v3530, %v3882
    %v3884 = vpop.f32.mrb[0].mxu0
    %v3885 = vadd.f32 %v3532, %v3884
    %3886 = vmatprep.mubr.bf16.mxu0 %v1654
    %3887 = vmatmul.mubr.bf16.gmra.mrb[0].mxu0 %v1653
    %v3888 = vpop.f32.mrb[0].mxu0
    %v3889 = vadd.f32 %v3536, %v3888
    %v3890 = vpop.f32.mrb[0].mxu0
    %v3891 = vadd.f32 %v3538, %v3890
    %v3892 = vpop.f32.mrb[0].mxu0
    %v3893 = vadd.f32 %v3540, %v3892
    %v3894 = vpop.f32.mrb[0].mxu0
    %v3895 = vadd.f32 %v3542, %v3894
    %3896 = vmatprep.mubr.bf16.mxu0 %v1662
    %3897 = vmatmul.mubr.bf16.gmra.mrb[0].mxu0 %v1661
    %v3898 = vpop.f32.mrb[0].mxu0
    %v3899 = vadd.f32 %v3546, %v3898
    %v3900 = vpop.f32.mrb[0].mxu0
    %v3901 = vadd.f32 %v3548, %v3900
    %v3902 = vpop.f32.mrb[0].mxu0
    %v3903 = vadd.f32 %v3550, %v3902
    %v3904 = vpop.f32.mrb[0].mxu0
    %v3905 = vadd.f32 %v3552, %v3904
    %3906 = vmatprep.mubr.bf16.mxu0 %v1670
    %3907 = vmatmul.mubr.bf16.gmra.mrb[0].mxu0 %v1669
    %v3908 = vpop.f32.mrb[0].mxu0
    %v3909 = vadd.f32 %v3556, %v3908
    %v3910 = vpop.f32.mrb[0].mxu0
    %v3911 = vadd.f32 %v3558, %v3910
    %v3912 = vpop.f32.mrb[0].mxu0
    %v3913 = vadd.f32 %v3560, %v3912
    %v3914 = vpop.f32.mrb[0].mxu0
    %v3915 = vadd.f32 %v3562, %v3914
    %3916 = vdwg.mxu0
    %3917 = vmatprep.subr.bf16.mxu0 %v2828
    %3918 = vmatpush1.bf16.msra.mxu0 %v2827
    %3919 = vmatprep.subr.bf16.mxu0 %v2832
    %3920 = vmatpush1.bf16.msra.mxu0 %v2831
    %3921 = vmatprep.subr.bf16.mxu0 %v2836
    %3922 = vmatpush1.bf16.msra.mxu0 %v2835
    %3923 = vmatprep.subr.bf16.mxu0 %v2840
    %3924 = vmatpush1.bf16.msra.mxu0 %v2839
    %3925 = vmatprep.subr.bf16.mxu0 %v2844
    %3926 = vmatpush1.bf16.msra.mxu0 %v2843
    %3927 = vmatprep.subr.bf16.mxu0 %v2848
    %3928 = vmatpush1.bf16.msra.mxu0 %v2847
    %3929 = vmatprep.subr.bf16.mxu0 %v2852
    %3930 = vmatpush1.bf16.msra.mxu0 %v2851
    %3931 = vmatprep.subr.bf16.mxu0 %v2856
    %3932 = vmatpush1.bf16.msra.mxu0 %v2855
    %3933 = vmatprep.subr.bf16.mxu0 %v2860
    %3934 = vmatpush1.bf16.msra.mxu0 %v2859
    %3935 = vmatprep.subr.bf16.mxu0 %v2864
    %3936 = vmatpush1.bf16.msra.mxu0 %v2863
    %3937 = vmatprep.subr.bf16.mxu0 %v2868
    %3938 = vmatpush1.bf16.msra.mxu0 %v2867
    %3939 = vmatprep.subr.bf16.mxu0 %v2872
    %3940 = vmatpush1.bf16.msra.mxu0 %v2871
    %3941 = vmatprep.subr.bf16.mxu0 %v2876
    %3942 = vmatpush1.bf16.msra.mxu0 %v2875
    %3943 = vmatprep.subr.bf16.mxu0 %v2880
    %3944 = vmatpush1.bf16.msra.mxu0 %v2879
    %3945 = vmatprep.subr.bf16.mxu0 %v2884
    %3946 = vmatpush1.bf16.msra.mxu0 %v2883
    %3947 = vmatprep.subr.bf16.mxu0 %v2888
    %3948 = vmatpush1.bf16.msra.mxu0 %v2887
    %3949 = vmatprep.mubr.bf16.mxu0 %v1424
    %3950 = vmatmul.mubr.bf16.gmra.mrb[0].mxu0 %v1423
    %v3951 = vpop.f32.mrb[0].mxu0
    %v3952 = vadd.f32 %v3599, %v3951
    %v3953 = vpop.f32.mrb[0].mxu0
    %v3954 = vadd.f32 %v3601, %v3953
    %v3955 = vpop.f32.mrb[0].mxu0
    %v3956 = vadd.f32 %v3603, %v3955
    %v3957 = vpop.f32.mrb[0].mxu0
    %v3958 = vadd.f32 %v3605, %v3957
    %3959 = vmatprep.mubr.bf16.mxu0 %v1432
    %3960 = vmatmul.mubr.bf16.gmra.mrb[0].mxu0 %v1431
    %v3961 = vpop.f32.mrb[0].mxu0
    %v3962 = vadd.f32 %v3609, %v3961
    %v3963 = vpop.f32.mrb[0].mxu0
    %v3964 = vadd.f32 %v3611, %v3963
    %v3965 = vpop.f32.mrb[0].mxu0
    %v3966 = vadd.f32 %v3613, %v3965
    %v3967 = vpop.f32.mrb[0].mxu0
    %v3968 = vadd.f32 %v3615, %v3967
    %3969 = vmatprep.mubr.bf16.mxu0 %v1440
    %3970 = vmatmul.mubr.bf16.gmra.mrb[0].mxu0 %v1439
    %v3971 = vpop.f32.mrb[0].mxu0
    %v3972 = vadd.f32 %v3619, %v3971
    %v3973 = vpop.f32.mrb[0].mxu0
    %v3974 = vadd.f32 %v3621, %v3973
    %v3975 = vpop.f32.mrb[0].mxu0
    %v3976 = vadd.f32 %v3623, %v3975
    %v3977 = vpop.f32.mrb[0].mxu0
    %v3978 = vadd.f32 %v3625, %v3977
    %3979 = vmatprep.mubr.bf16.mxu0 %v1448
    %3980 = vmatmul.mubr.bf16.gmra.mrb[0].mxu0 %v1447
    %v3981 = vpop.f32.mrb[0].mxu0
    %v3982 = vadd.f32 %v3629, %v3981
    %v3983 = vpop.f32.mrb[0].mxu0
    %v3984 = vadd.f32 %v3631, %v3983
    %v3985 = vpop.f32.mrb[0].mxu0
    %v3986 = vadd.f32 %v3633, %v3985
    %v3987 = vpop.f32.mrb[0].mxu0
    %v3988 = vadd.f32 %v3635, %v3987
    %3989 = vmatprep.mubr.bf16.mxu0 %v1456
    %3990 = vmatmul.mubr.bf16.gmra.mrb[0].mxu0 %v1455
    %v3991 = vpop.f32.mrb[0].mxu0
    %v3992 = vadd.f32 %v3639, %v3991
    %v3993 = vpop.f32.mrb[0].mxu0
    %v3994 = vadd.f32 %v3641, %v3993
    %v3995 = vpop.f32.mrb[0].mxu0
    %v3996 = vadd.f32 %v3643, %v3995
    %v3997 = vpop.f32.mrb[0].mxu0
    %v3998 = vadd.f32 %v3645, %v3997
    %3999 = vmatprep.mubr.bf16.mxu0 %v1464
    %4000 = vmatmul.mubr.bf16.gmra.mrb[0].mxu0 %v1463
    %v4001 = vpop.f32.mrb[0].mxu0
    %v4002 = vadd.f32 %v3649, %v4001
    %v4003 = vpop.f32.mrb[0].mxu0
    %v4004 = vadd.f32 %v3651, %v4003
    %v4005 = vpop.f32.mrb[0].mxu0
    %v4006 = vadd.f32 %v3653, %v4005
    %v4007 = vpop.f32.mrb[0].mxu0
    %v4008 = vadd.f32 %v3655, %v4007
    %4009 = vmatprep.mubr.bf16.mxu0 %v1472
    %4010 = vmatmul.mubr.bf16.gmra.mrb[0].mxu0 %v1471
    %v4011 = vpop.f32.mrb[0].mxu0
    %v4012 = vadd.f32 %v3659, %v4011
    %v4013 = vpop.f32.mrb[0].mxu0
    %v4014 = vadd.f32 %v3661, %v4013
    %v4015 = vpop.f32.mrb[0].mxu0
    %v4016 = vadd.f32 %v3663, %v4015
    %v4017 = vpop.f32.mrb[0].mxu0
    %v4018 = vadd.f32 %v3665, %v4017
    %4019 = vmatprep.mubr.bf16.mxu0 %v1480
    %4020 = vmatmul.mubr.bf16.gmra.mrb[0].mxu0 %v1479
    %v4021 = vpop.f32.mrb[0].mxu0
    %v4022 = vadd.f32 %v3669, %v4021
    %v4023 = vpop.f32.mrb[0].mxu0
    %v4024 = vadd.f32 %v3671, %v4023
    %v4025 = vpop.f32.mrb[0].mxu0
    %v4026 = vadd.f32 %v3673, %v4025
    %v4027 = vpop.f32.mrb[0].mxu0
    %v4028 = vadd.f32 %v3675, %v4027
    %4029 = vmatprep.mubr.bf16.mxu0 %v1488
    %4030 = vmatmul.mubr.bf16.gmra.mrb[0].mxu0 %v1487
    %v4031 = vpop.f32.mrb[0].mxu0
    %v4032 = vadd.f32 %v3679, %v4031
    %v4033 = vpop.f32.mrb[0].mxu0
    %v4034 = vadd.f32 %v3681, %v4033
    %v4035 = vpop.f32.mrb[0].mxu0
    %v4036 = vadd.f32 %v3683, %v4035
    %v4037 = vpop.f32.mrb[0].mxu0
    %v4038 = vadd.f32 %v3685, %v4037
    %4039 = vmatprep.mubr.bf16.mxu0 %v1496
    %4040 = vmatmul.mubr.bf16.gmra.mrb[0].mxu0 %v1495
    %v4041 = vpop.f32.mrb[0].mxu0
    %v4042 = vadd.f32 %v3689, %v4041
    %v4043 = vpop.f32.mrb[0].mxu0
    %v4044 = vadd.f32 %v3691, %v4043
    %v4045 = vpop.f32.mrb[0].mxu0
    %v4046 = vadd.f32 %v3693, %v4045
    %v4047 = vpop.f32.mrb[0].mxu0
    %v4048 = vadd.f32 %v3695, %v4047
    %4049 = vmatprep.mubr.bf16.mxu0 %v1504
    %4050 = vmatmul.mubr.bf16.gmra.mrb[0].mxu0 %v1503
    %v4051 = vpop.f32.mrb[0].mxu0
    %v4052 = vadd.f32 %v3699, %v4051
    %v4053 = vpop.f32.mrb[0].mxu0
    %v4054 = vadd.f32 %v3701, %v4053
    %v4055 = vpop.f32.mrb[0].mxu0
    %v4056 = vadd.f32 %v3703, %v4055
    %v4057 = vpop.f32.mrb[0].mxu0
    %v4058 = vadd.f32 %v3705, %v4057
    %4059 = vmatprep.mubr.bf16.mxu0 %v1512
    %4060 = vmatmul.mubr.bf16.gmra.mrb[0].mxu0 %v1511
    %v4061 = vpop.f32.mrb[0].mxu0
    %v4062 = vadd.f32 %v3709, %v4061
    %v4063 = vpop.f32.mrb[0].mxu0
    %v4064 = vadd.f32 %v3711, %v4063
    %v4065 = vpop.f32.mrb[0].mxu0
    %v4066 = vadd.f32 %v3713, %v4065
    %v4067 = vpop.f32.mrb[0].mxu0
    %v4068 = vadd.f32 %v3715, %v4067
    %4069 = vmatprep.mubr.bf16.mxu0 %v1520
    %4070 = vmatmul.mubr.bf16.gmra.mrb[0].mxu0 %v1519
    %v4071 = vpop.f32.mrb[0].mxu0
    %v4072 = vadd.f32 %v3719, %v4071
    %v4073 = vpop.f32.mrb[0].mxu0
    %v4074 = vadd.f32 %v3721, %v4073
    %v4075 = vpop.f32.mrb[0].mxu0
    %v4076 = vadd.f32 %v3723, %v4075
    %v4077 = vpop.f32.mrb[0].mxu0
    %v4078 = vadd.f32 %v3725, %v4077
    %4079 = vmatprep.mubr.bf16.mxu0 %v1528
    %4080 = vmatmul.mubr.bf16.gmra.mrb[0].mxu0 %v1527
    %v4081 = vpop.f32.mrb[0].mxu0
    %v4082 = vadd.f32 %v3729, %v4081
    %v4083 = vpop.f32.mrb[0].mxu0
    %v4084 = vadd.f32 %v3731, %v4083
    %v4085 = vpop.f32.mrb[0].mxu0
    %v4086 = vadd.f32 %v3733, %v4085
    %v4087 = vpop.f32.mrb[0].mxu0
    %v4088 = vadd.f32 %v3735, %v4087
    %4089 = vmatprep.mubr.bf16.mxu0 %v1536
    %4090 = vmatmul.mubr.bf16.gmra.mrb[0].mxu0 %v1535
    %v4091 = vpop.f32.mrb[0].mxu0
    %v4092 = vadd.f32 %v3739, %v4091
    %v4093 = vpop.f32.mrb[0].mxu0
    %v4094 = vadd.f32 %v3741, %v4093
    %v4095 = vpop.f32.mrb[0].mxu0
    %v4096 = vadd.f32 %v3743, %v4095
    %v4097 = vpop.f32.mrb[0].mxu0
    %v4098 = vadd.f32 %v3745, %v4097
    %4099 = vmatprep.mubr.bf16.mxu0 %v1544
    %4100 = vmatmul.mubr.bf16.gmra.mrb[0].mxu0 %v1543
    %v4101 = vpop.f32.mrb[0].mxu0
    %v4102 = vadd.f32 %v3749, %v4101
    %v4103 = vpop.f32.mrb[0].mxu0
    %v4104 = vadd.f32 %v3751, %v4103
    %v4105 = vpop.f32.mrb[0].mxu0
    %v4106 = vadd.f32 %v3753, %v4105
    %v4107 = vpop.f32.mrb[0].mxu0
    %v4108 = vadd.f32 %v3755, %v4107
    %4109 = vmatprep.mubr.bf16.mxu0 %v1552
    %4110 = vmatmul.mubr.bf16.gmra.mrb[0].mxu0 %v1551
    %v4111 = vpop.f32.mrb[0].mxu0
    %v4112 = vadd.f32 %v3759, %v4111
    %v4113 = vpop.f32.mrb[0].mxu0
    %v4114 = vadd.f32 %v3761, %v4113
    %v4115 = vpop.f32.mrb[0].mxu0
    %v4116 = vadd.f32 %v3763, %v4115
    %v4117 = vpop.f32.mrb[0].mxu0
    %v4118 = vadd.f32 %v3765, %v4117
    %4119 = vmatprep.mubr.bf16.mxu0 %v1560
    %4120 = vmatmul.mubr.bf16.gmra.mrb[0].mxu0 %v1559
    %v4121 = vpop.f32.mrb[0].mxu0
    %v4122 = vadd.f32 %v3769, %v4121
    %v4123 = vpop.f32.mrb[0].mxu0
    %v4124 = vadd.f32 %v3771, %v4123
    %v4125 = vpop.f32.mrb[0].mxu0
    %v4126 = vadd.f32 %v3773, %v4125
    %v4127 = vpop.f32.mrb[0].mxu0
    %v4128 = vadd.f32 %v3775, %v4127
    %4129 = vmatprep.mubr.bf16.mxu0 %v1568
    %4130 = vmatmul.mubr.bf16.gmra.mrb[0].mxu0 %v1567
    %v4131 = vpop.f32.mrb[0].mxu0
    %v4132 = vadd.f32 %v3779, %v4131
    %v4133 = vpop.f32.mrb[0].mxu0
    %v4134 = vadd.f32 %v3781, %v4133
    %v4135 = vpop.f32.mrb[0].mxu0
    %v4136 = vadd.f32 %v3783, %v4135
    %v4137 = vpop.f32.mrb[0].mxu0
    %v4138 = vadd.f32 %v3785, %v4137
    %4139 = vmatprep.mubr.bf16.mxu0 %v1576
    %4140 = vmatmul.mubr.bf16.gmra.mrb[0].mxu0 %v1575
    %v4141 = vpop.f32.mrb[0].mxu0
    %v4142 = vadd.f32 %v3789, %v4141
    %v4143 = vpop.f32.mrb[0].mxu0
    %v4144 = vadd.f32 %v3791, %v4143
    %v4145 = vpop.f32.mrb[0].mxu0
    %v4146 = vadd.f32 %v3793, %v4145
    %v4147 = vpop.f32.mrb[0].mxu0
    %v4148 = vadd.f32 %v3795, %v4147
    %4149 = vmatprep.mubr.bf16.mxu0 %v1584
    %4150 = vmatmul.mubr.bf16.gmra.mrb[0].mxu0 %v1583
    %v4151 = vpop.f32.mrb[0].mxu0
    %v4152 = vadd.f32 %v3799, %v4151
    %v4153 = vpop.f32.mrb[0].mxu0
    %v4154 = vadd.f32 %v3801, %v4153
    %v4155 = vpop.f32.mrb[0].mxu0
    %v4156 = vadd.f32 %v3803, %v4155
    %v4157 = vpop.f32.mrb[0].mxu0
    %v4158 = vadd.f32 %v3805, %v4157
    %4159 = vmatprep.mubr.bf16.mxu0 %v1592
    %4160 = vmatmul.mubr.bf16.gmra.mrb[0].mxu0 %v1591
    %v4161 = vpop.f32.mrb[0].mxu0
    %v4162 = vadd.f32 %v3809, %v4161
    %v4163 = vpop.f32.mrb[0].mxu0
    %v4164 = vadd.f32 %v3811, %v4163
    %v4165 = vpop.f32.mrb[0].mxu0
    %v4166 = vadd.f32 %v3813, %v4165
    %v4167 = vpop.f32.mrb[0].mxu0
    %v4168 = vadd.f32 %v3815, %v4167
    %4169 = vmatprep.mubr.bf16.mxu0 %v1600
    %4170 = vmatmul.mubr.bf16.gmra.mrb[0].mxu0 %v1599
    %v4171 = vpop.f32.mrb[0].mxu0
    %v4172 = vadd.f32 %v3819, %v4171
    %v4173 = vpop.f32.mrb[0].mxu0
    %v4174 = vadd.f32 %v3821, %v4173
    %v4175 = vpop.f32.mrb[0].mxu0
    %v4176 = vadd.f32 %v3823, %v4175
    %v4177 = vpop.f32.mrb[0].mxu0
    %v4178 = vadd.f32 %v3825, %v4177
    %4179 = vmatprep.mubr.bf16.mxu0 %v1608
    %4180 = vmatmul.mubr.bf16.gmra.mrb[0].mxu0 %v1607
    %v4181 = vpop.f32.mrb[0].mxu0
    %v4182 = vadd.f32 %v3829, %v4181
    %v4183 = vpop.f32.mrb[0].mxu0
    %v4184 = vadd.f32 %v3831, %v4183
    %v4185 = vpop.f32.mrb[0].mxu0
    %v4186 = vadd.f32 %v3833, %v4185
    %v4187 = vpop.f32.mrb[0].mxu0
    %v4188 = vadd.f32 %v3835, %v4187
    %4189 = vmatprep.mubr.bf16.mxu0 %v1616
    %4190 = vmatmul.mubr.bf16.gmra.mrb[0].mxu0 %v1615
    %v4191 = vpop.f32.mrb[0].mxu0
    %v4192 = vadd.f32 %v3839, %v4191
    %v4193 = vpop.f32.mrb[0].mxu0
    %v4194 = vadd.f32 %v3841, %v4193
    %v4195 = vpop.f32.mrb[0].mxu0
    %v4196 = vadd.f32 %v3843, %v4195
    %v4197 = vpop.f32.mrb[0].mxu0
    %v4198 = vadd.f32 %v3845, %v4197
    %4199 = vmatprep.mubr.bf16.mxu0 %v1624
    %4200 = vmatmul.mubr.bf16.gmra.mrb[0].mxu0 %v1623
    %v4201 = vpop.f32.mrb[0].mxu0
    %v4202 = vadd.f32 %v3849, %v4201
    %v4203 = vpop.f32.mrb[0].mxu0
    %v4204 = vadd.f32 %v3851, %v4203
    %v4205 = vpop.f32.mrb[0].mxu0
    %v4206 = vadd.f32 %v3853, %v4205
    %v4207 = vpop.f32.mrb[0].mxu0
    %v4208 = vadd.f32 %v3855, %v4207
    %4209 = vmatprep.mubr.bf16.mxu0 %v1632
    %4210 = vmatmul.mubr.bf16.gmra.mrb[0].mxu0 %v1631
    %v4211 = vpop.f32.mrb[0].mxu0
    %v4212 = vadd.f32 %v3859, %v4211
    %v4213 = vpop.f32.mrb[0].mxu0
    %v4214 = vadd.f32 %v3861, %v4213
    %v4215 = vpop.f32.mrb[0].mxu0
    %v4216 = vadd.f32 %v3863, %v4215
    %v4217 = vpop.f32.mrb[0].mxu0
    %v4218 = vadd.f32 %v3865, %v4217
    %4219 = vmatprep.mubr.bf16.mxu0 %v1640
    %4220 = vmatmul.mubr.bf16.gmra.mrb[0].mxu0 %v1639
    %v4221 = vpop.f32.mrb[0].mxu0
    %v4222 = vadd.f32 %v3869, %v4221
    %v4223 = vpop.f32.mrb[0].mxu0
    %v4224 = vadd.f32 %v3871, %v4223
    %v4225 = vpop.f32.mrb[0].mxu0
    %v4226 = vadd.f32 %v3873, %v4225
    %v4227 = vpop.f32.mrb[0].mxu0
    %v4228 = vadd.f32 %v3875, %v4227
    %4229 = vmatprep.mubr.bf16.mxu0 %v1648
    %4230 = vmatmul.mubr.bf16.gmra.mrb[0].mxu0 %v1647
    %v4231 = vpop.f32.mrb[0].mxu0
    %v4232 = vadd.f32 %v3879, %v4231
    %v4233 = vpop.f32.mrb[0].mxu0
    %v4234 = vadd.f32 %v3881, %v4233
    %v4235 = vpop.f32.mrb[0].mxu0
    %v4236 = vadd.f32 %v3883, %v4235
    %v4237 = vpop.f32.mrb[0].mxu0
    %v4238 = vadd.f32 %v3885, %v4237
    %4239 = vmatprep.mubr.bf16.mxu0 %v1656
    %4240 = vmatmul.mubr.bf16.gmra.mrb[0].mxu0 %v1655
    %v4241 = vpop.f32.mrb[0].mxu0
    %v4242 = vadd.f32 %v3889, %v4241
    %v4243 = vpop.f32.mrb[0].mxu0
    %v4244 = vadd.f32 %v3891, %v4243
    %v4245 = vpop.f32.mrb[0].mxu0
    %v4246 = vadd.f32 %v3893, %v4245
    %v4247 = vpop.f32.mrb[0].mxu0
    %v4248 = vadd.f32 %v3895, %v4247
    %4249 = vmatprep.mubr.bf16.mxu0 %v1664
    %4250 = vmatmul.mubr.bf16.gmra.mrb[0].mxu0 %v1663
    %v4251 = vpop.f32.mrb[0].mxu0
    %v4252 = vadd.f32 %v3899, %v4251
    %v4253 = vpop.f32.mrb[0].mxu0
    %v4254 = vadd.f32 %v3901, %v4253
    %v4255 = vpop.f32.mrb[0].mxu0
    %v4256 = vadd.f32 %v3903, %v4255
    %v4257 = vpop.f32.mrb[0].mxu0
    %v4258 = vadd.f32 %v3905, %v4257
    %4259 = vmatprep.mubr.bf16.mxu0 %v1672
    %4260 = vmatmul.mubr.bf16.gmra.mrb[0].mxu0 %v1671
    %v4261 = vpop.f32.mrb[0].mxu0
    %v4262 = vadd.f32 %v3909, %v4261
    %v4263 = vpop.f32.mrb[0].mxu0
    %v4264 = vadd.f32 %v3911, %v4263
    %v4265 = vpop.f32.mrb[0].mxu0
    %v4266 = vadd.f32 %v3913, %v4265
    %v4267 = vpop.f32.mrb[0].mxu0
    %v4268 = vadd.f32 %v3915, %v4267
    %4269 = vdwg.mxu0
    %4270 = vmatprep.subr.bf16.mxu0 %v2892
    %4271 = vmatpush1.bf16.msra.mxu0 %v2891
    %4272 = vmatprep.subr.bf16.mxu0 %v2896
    %4273 = vmatpush1.bf16.msra.mxu0 %v2895
    %4274 = vmatprep.subr.bf16.mxu0 %v2900
    %4275 = vmatpush1.bf16.msra.mxu0 %v2899
    %4276 = vmatprep.subr.bf16.mxu0 %v2904
    %4277 = vmatpush1.bf16.msra.mxu0 %v2903
    %4278 = vmatprep.subr.bf16.mxu0 %v2908
    %4279 = vmatpush1.bf16.msra.mxu0 %v2907
    %4280 = vmatprep.subr.bf16.mxu0 %v2912
    %4281 = vmatpush1.bf16.msra.mxu0 %v2911
    %4282 = vmatprep.subr.bf16.mxu0 %v2916
    %4283 = vmatpush1.bf16.msra.mxu0 %v2915
    %4284 = vmatprep.subr.bf16.mxu0 %v2920
    %4285 = vmatpush1.bf16.msra.mxu0 %v2919
    %4286 = vmatprep.subr.bf16.mxu0 %v2924
    %4287 = vmatpush1.bf16.msra.mxu0 %v2923
    %4288 = vmatprep.subr.bf16.mxu0 %v2928
    %4289 = vmatpush1.bf16.msra.mxu0 %v2927
    %4290 = vmatprep.subr.bf16.mxu0 %v2932
    %4291 = vmatpush1.bf16.msra.mxu0 %v2931
    %4292 = vmatprep.subr.bf16.mxu0 %v2936
    %4293 = vmatpush1.bf16.msra.mxu0 %v2935
    %4294 = vmatprep.subr.bf16.mxu0 %v2940
    %4295 = vmatpush1.bf16.msra.mxu0 %v2939
    %4296 = vmatprep.subr.bf16.mxu0 %v2944
    %4297 = vmatpush1.bf16.msra.mxu0 %v2943
    %4298 = vmatprep.subr.bf16.mxu0 %v2948
    %4299 = vmatpush1.bf16.msra.mxu0 %v2947
    %4300 = vmatprep.subr.bf16.mxu0 %v2952
    %4301 = vmatpush1.bf16.msra.mxu0 %v2951
    %4302 = vmatprep.mubr.bf16.mxu0 %v1426
    %4303 = vmatmul.mubr.bf16.gmra.mrb[0].mxu0 %v1425
    %v4304 = vpop.f32.mrb[0].mxu0
    %v4305 = vadd.f32 %v3952, %v4304
    %v4306 = vpop.f32.mrb[0].mxu0
    %v4307 = vadd.f32 %v3954, %v4306
    %v4308 = vpop.f32.mrb[0].mxu0
    %v4309 = vadd.f32 %v3956, %v4308
    %v4310 = vpop.f32.mrb[0].mxu0
    %v4311 = vadd.f32 %v3958, %v4310
    %4312 = vmatprep.mubr.bf16.mxu0 %v1434
    %4313 = vmatmul.mubr.bf16.gmra.mrb[0].mxu0 %v1433
    %v4314 = vpop.f32.mrb[0].mxu0
    %v4315 = vadd.f32 %v3962, %v4314
    %v4316 = vpop.f32.mrb[0].mxu0
    %v4317 = vadd.f32 %v3964, %v4316
    %v4318 = vpop.f32.mrb[0].mxu0
    %v4319 = vadd.f32 %v3966, %v4318
    %v4320 = vpop.f32.mrb[0].mxu0
    %v4321 = vadd.f32 %v3968, %v4320
    %4322 = vmatprep.mubr.bf16.mxu0 %v1442
    %4323 = vmatmul.mubr.bf16.gmra.mrb[0].mxu0 %v1441
    %v4324 = vpop.f32.mrb[0].mxu0
    %v4325 = vadd.f32 %v3972, %v4324
    %v4326 = vpop.f32.mrb[0].mxu0
    %v4327 = vadd.f32 %v3974, %v4326
    %v4328 = vpop.f32.mrb[0].mxu0
    %v4329 = vadd.f32 %v3976, %v4328
    %v4330 = vpop.f32.mrb[0].mxu0
    %v4331 = vadd.f32 %v3978, %v4330
    %4332 = vmatprep.mubr.bf16.mxu0 %v1450
    %4333 = vmatmul.mubr.bf16.gmra.mrb[0].mxu0 %v1449
    %v4334 = vpop.f32.mrb[0].mxu0
    %v4335 = vadd.f32 %v3982, %v4334
    %v4336 = vpop.f32.mrb[0].mxu0
    %v4337 = vadd.f32 %v3984, %v4336
    %v4338 = vpop.f32.mrb[0].mxu0
    %v4339 = vadd.f32 %v3986, %v4338
    %v4340 = vpop.f32.mrb[0].mxu0
    %v4341 = vadd.f32 %v3988, %v4340
    %4342 = vmatprep.mubr.bf16.mxu0 %v1458
    %4343 = vmatmul.mubr.bf16.gmra.mrb[0].mxu0 %v1457
    %v4344 = vpop.f32.mrb[0].mxu0
    %v4345 = vadd.f32 %v3992, %v4344
    %v4346 = vpop.f32.mrb[0].mxu0
    %v4347 = vadd.f32 %v3994, %v4346
    %v4348 = vpop.f32.mrb[0].mxu0
    %v4349 = vadd.f32 %v3996, %v4348
    %v4350 = vpop.f32.mrb[0].mxu0
    %v4351 = vadd.f32 %v3998, %v4350
    %4352 = vmatprep.mubr.bf16.mxu0 %v1466
    %4353 = vmatmul.mubr.bf16.gmra.mrb[0].mxu0 %v1465
    %v4354 = vpop.f32.mrb[0].mxu0
    %v4355 = vadd.f32 %v4002, %v4354
    %v4356 = vpop.f32.mrb[0].mxu0
    %v4357 = vadd.f32 %v4004, %v4356
    %v4358 = vpop.f32.mrb[0].mxu0
    %v4359 = vadd.f32 %v4006, %v4358
    %v4360 = vpop.f32.mrb[0].mxu0
    %v4361 = vadd.f32 %v4008, %v4360
    %4362 = vmatprep.mubr.bf16.mxu0 %v1474
    %4363 = vmatmul.mubr.bf16.gmra.mrb[0].mxu0 %v1473
    %v4364 = vpop.f32.mrb[0].mxu0
    %v4365 = vadd.f32 %v4012, %v4364
    %v4366 = vpop.f32.mrb[0].mxu0
    %v4367 = vadd.f32 %v4014, %v4366
    %v4368 = vpop.f32.mrb[0].mxu0
    %v4369 = vadd.f32 %v4016, %v4368
    %v4370 = vpop.f32.mrb[0].mxu0
    %v4371 = vadd.f32 %v4018, %v4370
    %4372 = vmatprep.mubr.bf16.mxu0 %v1482
    %4373 = vmatmul.mubr.bf16.gmra.mrb[0].mxu0 %v1481
    %v4374 = vpop.f32.mrb[0].mxu0
    %v4375 = vadd.f32 %v4022, %v4374
    %v4376 = vpop.f32.mrb[0].mxu0
    %v4377 = vadd.f32 %v4024, %v4376
    %v4378 = vpop.f32.mrb[0].mxu0
    %v4379 = vadd.f32 %v4026, %v4378
    %v4380 = vpop.f32.mrb[0].mxu0
    %v4381 = vadd.f32 %v4028, %v4380
    %4382 = vmatprep.mubr.bf16.mxu0 %v1490
    %4383 = vmatmul.mubr.bf16.gmra.mrb[0].mxu0 %v1489
    %v4384 = vpop.f32.mrb[0].mxu0
    %v4385 = vadd.f32 %v4032, %v4384
    %v4386 = vpop.f32.mrb[0].mxu0
    %v4387 = vadd.f32 %v4034, %v4386
    %v4388 = vpop.f32.mrb[0].mxu0
    %v4389 = vadd.f32 %v4036, %v4388
    %v4390 = vpop.f32.mrb[0].mxu0
    %v4391 = vadd.f32 %v4038, %v4390
    %4392 = vmatprep.mubr.bf16.mxu0 %v1498
    %4393 = vmatmul.mubr.bf16.gmra.mrb[0].mxu0 %v1497
    %v4394 = vpop.f32.mrb[0].mxu0
    %v4395 = vadd.f32 %v4042, %v4394
    %v4396 = vpop.f32.mrb[0].mxu0
    %v4397 = vadd.f32 %v4044, %v4396
    %v4398 = vpop.f32.mrb[0].mxu0
    %v4399 = vadd.f32 %v4046, %v4398
    %v4400 = vpop.f32.mrb[0].mxu0
    %v4401 = vadd.f32 %v4048, %v4400
    %4402 = vmatprep.mubr.bf16.mxu0 %v1506
    %4403 = vmatmul.mubr.bf16.gmra.mrb[0].mxu0 %v1505
    %v4404 = vpop.f32.mrb[0].mxu0
    %v4405 = vadd.f32 %v4052, %v4404
    %v4406 = vpop.f32.mrb[0].mxu0
    %v4407 = vadd.f32 %v4054, %v4406
    %v4408 = vpop.f32.mrb[0].mxu0
    %v4409 = vadd.f32 %v4056, %v4408
    %v4410 = vpop.f32.mrb[0].mxu0
    %v4411 = vadd.f32 %v4058, %v4410
    %4412 = vmatprep.mubr.bf16.mxu0 %v1514
    %4413 = vmatmul.mubr.bf16.gmra.mrb[0].mxu0 %v1513
    %v4414 = vpop.f32.mrb[0].mxu0
    %v4415 = vadd.f32 %v4062, %v4414
    %v4416 = vpop.f32.mrb[0].mxu0
    %v4417 = vadd.f32 %v4064, %v4416
    %v4418 = vpop.f32.mrb[0].mxu0
    %v4419 = vadd.f32 %v4066, %v4418
    %v4420 = vpop.f32.mrb[0].mxu0
    %v4421 = vadd.f32 %v4068, %v4420
    %4422 = vmatprep.mubr.bf16.mxu0 %v1522
    %4423 = vmatmul.mubr.bf16.gmra.mrb[0].mxu0 %v1521
    %v4424 = vpop.f32.mrb[0].mxu0
    %v4425 = vadd.f32 %v4072, %v4424
    %v4426 = vpop.f32.mrb[0].mxu0
    %v4427 = vadd.f32 %v4074, %v4426
    %v4428 = vpop.f32.mrb[0].mxu0
    %v4429 = vadd.f32 %v4076, %v4428
    %v4430 = vpop.f32.mrb[0].mxu0
    %v4431 = vadd.f32 %v4078, %v4430
    %4432 = vmatprep.mubr.bf16.mxu0 %v1530
    %4433 = vmatmul.mubr.bf16.gmra.mrb[0].mxu0 %v1529
    %v4434 = vpop.f32.mrb[0].mxu0
    %v4435 = vadd.f32 %v4082, %v4434
    %v4436 = vpop.f32.mrb[0].mxu0
    %v4437 = vadd.f32 %v4084, %v4436
    %v4438 = vpop.f32.mrb[0].mxu0
    %v4439 = vadd.f32 %v4086, %v4438
    %v4440 = vpop.f32.mrb[0].mxu0
    %v4441 = vadd.f32 %v4088, %v4440
    %4442 = vmatprep.mubr.bf16.mxu0 %v1538
    %4443 = vmatmul.mubr.bf16.gmra.mrb[0].mxu0 %v1537
    %v4444 = vpop.f32.mrb[0].mxu0
    %v4445 = vadd.f32 %v4092, %v4444
    %v4446 = vpop.f32.mrb[0].mxu0
    %v4447 = vadd.f32 %v4094, %v4446
    %v4448 = vpop.f32.mrb[0].mxu0
    %v4449 = vadd.f32 %v4096, %v4448
    %v4450 = vpop.f32.mrb[0].mxu0
    %v4451 = vadd.f32 %v4098, %v4450
    %4452 = vmatprep.mubr.bf16.mxu0 %v1546
    %4453 = vmatmul.mubr.bf16.gmra.mrb[0].mxu0 %v1545
    %v4454 = vpop.f32.mrb[0].mxu0
    %v4455 = vadd.f32 %v4102, %v4454
    %v4456 = vpop.f32.mrb[0].mxu0
    %v4457 = vadd.f32 %v4104, %v4456
    %v4458 = vpop.f32.mrb[0].mxu0
    %v4459 = vadd.f32 %v4106, %v4458
    %v4460 = vpop.f32.mrb[0].mxu0
    %v4461 = vadd.f32 %v4108, %v4460
    %4462 = vmatprep.mubr.bf16.mxu0 %v1554
    %4463 = vmatmul.mubr.bf16.gmra.mrb[0].mxu0 %v1553
    %v4464 = vpop.f32.mrb[0].mxu0
    %v4465 = vadd.f32 %v4112, %v4464
    %v4466 = vpop.f32.mrb[0].mxu0
    %v4467 = vadd.f32 %v4114, %v4466
    %v4468 = vpop.f32.mrb[0].mxu0
    %v4469 = vadd.f32 %v4116, %v4468
    %v4470 = vpop.f32.mrb[0].mxu0
    %v4471 = vadd.f32 %v4118, %v4470
    %4472 = vmatprep.mubr.bf16.mxu0 %v1562
    %4473 = vmatmul.mubr.bf16.gmra.mrb[0].mxu0 %v1561
    %v4474 = vpop.f32.mrb[0].mxu0
    %v4475 = vadd.f32 %v4122, %v4474
    %v4476 = vpop.f32.mrb[0].mxu0
    %v4477 = vadd.f32 %v4124, %v4476
    %v4478 = vpop.f32.mrb[0].mxu0
    %v4479 = vadd.f32 %v4126, %v4478
    %v4480 = vpop.f32.mrb[0].mxu0
    %v4481 = vadd.f32 %v4128, %v4480
    %4482 = vmatprep.mubr.bf16.mxu0 %v1570
    %4483 = vmatmul.mubr.bf16.gmra.mrb[0].mxu0 %v1569
    %v4484 = vpop.f32.mrb[0].mxu0
    %v4485 = vadd.f32 %v4132, %v4484
    %v4486 = vpop.f32.mrb[0].mxu0
    %v4487 = vadd.f32 %v4134, %v4486
    %v4488 = vpop.f32.mrb[0].mxu0
    %v4489 = vadd.f32 %v4136, %v4488
    %v4490 = vpop.f32.mrb[0].mxu0
    %v4491 = vadd.f32 %v4138, %v4490
    %4492 = vmatprep.mubr.bf16.mxu0 %v1578
    %4493 = vmatmul.mubr.bf16.gmra.mrb[0].mxu0 %v1577
    %v4494 = vpop.f32.mrb[0].mxu0
    %v4495 = vadd.f32 %v4142, %v4494
    %v4496 = vpop.f32.mrb[0].mxu0
    %v4497 = vadd.f32 %v4144, %v4496
    %v4498 = vpop.f32.mrb[0].mxu0
    %v4499 = vadd.f32 %v4146, %v4498
    %v4500 = vpop.f32.mrb[0].mxu0
    %v4501 = vadd.f32 %v4148, %v4500
    %4502 = vmatprep.mubr.bf16.mxu0 %v1586
    %4503 = vmatmul.mubr.bf16.gmra.mrb[0].mxu0 %v1585
    %v4504 = vpop.f32.mrb[0].mxu0
    %v4505 = vadd.f32 %v4152, %v4504
    %v4506 = vpop.f32.mrb[0].mxu0
    %v4507 = vadd.f32 %v4154, %v4506
    %v4508 = vpop.f32.mrb[0].mxu0
    %v4509 = vadd.f32 %v4156, %v4508
    %v4510 = vpop.f32.mrb[0].mxu0
    %v4511 = vadd.f32 %v4158, %v4510
    %4512 = vmatprep.mubr.bf16.mxu0 %v1594
    %4513 = vmatmul.mubr.bf16.gmra.mrb[0].mxu0 %v1593
    %v4514 = vpop.f32.mrb[0].mxu0
    %v4515 = vadd.f32 %v4162, %v4514
    %v4516 = vpop.f32.mrb[0].mxu0
    %v4517 = vadd.f32 %v4164, %v4516
    %v4518 = vpop.f32.mrb[0].mxu0
    %v4519 = vadd.f32 %v4166, %v4518
    %v4520 = vpop.f32.mrb[0].mxu0
    %v4521 = vadd.f32 %v4168, %v4520
    %4522 = vmatprep.mubr.bf16.mxu0 %v1602
    %4523 = vmatmul.mubr.bf16.gmra.mrb[0].mxu0 %v1601
    %v4524 = vpop.f32.mrb[0].mxu0
    %v4525 = vadd.f32 %v4172, %v4524
    %v4526 = vpop.f32.mrb[0].mxu0
    %v4527 = vadd.f32 %v4174, %v4526
    %v4528 = vpop.f32.mrb[0].mxu0
    %v4529 = vadd.f32 %v4176, %v4528
    %v4530 = vpop.f32.mrb[0].mxu0
    %v4531 = vadd.f32 %v4178, %v4530
    %4532 = vmatprep.mubr.bf16.mxu0 %v1610
    %4533 = vmatmul.mubr.bf16.gmra.mrb[0].mxu0 %v1609
    %v4534 = vpop.f32.mrb[0].mxu0
    %v4535 = vadd.f32 %v4182, %v4534
    %v4536 = vpop.f32.mrb[0].mxu0
    %v4537 = vadd.f32 %v4184, %v4536
    %v4538 = vpop.f32.mrb[0].mxu0
    %v4539 = vadd.f32 %v4186, %v4538
    %v4540 = vpop.f32.mrb[0].mxu0
    %v4541 = vadd.f32 %v4188, %v4540
    %4542 = vmatprep.mubr.bf16.mxu0 %v1618
    %4543 = vmatmul.mubr.bf16.gmra.mrb[0].mxu0 %v1617
    %v4544 = vpop.f32.mrb[0].mxu0
    %v4545 = vadd.f32 %v4192, %v4544
    %v4546 = vpop.f32.mrb[0].mxu0
    %v4547 = vadd.f32 %v4194, %v4546
    %v4548 = vpop.f32.mrb[0].mxu0
    %v4549 = vadd.f32 %v4196, %v4548
    %v4550 = vpop.f32.mrb[0].mxu0
    %v4551 = vadd.f32 %v4198, %v4550
    %4552 = vmatprep.mubr.bf16.mxu0 %v1626
    %4553 = vmatmul.mubr.bf16.gmra.mrb[0].mxu0 %v1625
    %v4554 = vpop.f32.mrb[0].mxu0
    %v4555 = vadd.f32 %v4202, %v4554
    %v4556 = vpop.f32.mrb[0].mxu0
    %v4557 = vadd.f32 %v4204, %v4556
    %v4558 = vpop.f32.mrb[0].mxu0
    %v4559 = vadd.f32 %v4206, %v4558
    %v4560 = vpop.f32.mrb[0].mxu0
    %v4561 = vadd.f32 %v4208, %v4560
    %4562 = vmatprep.mubr.bf16.mxu0 %v1634
    %4563 = vmatmul.mubr.bf16.gmra.mrb[0].mxu0 %v1633
    %v4564 = vpop.f32.mrb[0].mxu0
    %v4565 = vadd.f32 %v4212, %v4564
    %v4566 = vpop.f32.mrb[0].mxu0
    %v4567 = vadd.f32 %v4214, %v4566
    %v4568 = vpop.f32.mrb[0].mxu0
    %v4569 = vadd.f32 %v4216, %v4568
    %v4570 = vpop.f32.mrb[0].mxu0
    %v4571 = vadd.f32 %v4218, %v4570
    %4572 = vmatprep.mubr.bf16.mxu0 %v1642
    %4573 = vmatmul.mubr.bf16.gmra.mrb[0].mxu0 %v1641
    %v4574 = vpop.f32.mrb[0].mxu0
    %v4575 = vadd.f32 %v4222, %v4574
    %v4576 = vpop.f32.mrb[0].mxu0
    %v4577 = vadd.f32 %v4224, %v4576
    %v4578 = vpop.f32.mrb[0].mxu0
    %v4579 = vadd.f32 %v4226, %v4578
    %v4580 = vpop.f32.mrb[0].mxu0
    %v4581 = vadd.f32 %v4228, %v4580
    %4582 = vmatprep.mubr.bf16.mxu0 %v1650
    %4583 = vmatmul.mubr.bf16.gmra.mrb[0].mxu0 %v1649
    %v4584 = vpop.f32.mrb[0].mxu0
    %v4585 = vadd.f32 %v4232, %v4584
    %v4586 = vpop.f32.mrb[0].mxu0
    %v4587 = vadd.f32 %v4234, %v4586
    %v4588 = vpop.f32.mrb[0].mxu0
    %v4589 = vadd.f32 %v4236, %v4588
    %v4590 = vpop.f32.mrb[0].mxu0
    %v4591 = vadd.f32 %v4238, %v4590
    %4592 = vmatprep.mubr.bf16.mxu0 %v1658
    %4593 = vmatmul.mubr.bf16.gmra.mrb[0].mxu0 %v1657
    %v4594 = vpop.f32.mrb[0].mxu0
    %v4595 = vadd.f32 %v4242, %v4594
    %v4596 = vpop.f32.mrb[0].mxu0
    %v4597 = vadd.f32 %v4244, %v4596
    %v4598 = vpop.f32.mrb[0].mxu0
    %v4599 = vadd.f32 %v4246, %v4598
    %v4600 = vpop.f32.mrb[0].mxu0
    %v4601 = vadd.f32 %v4248, %v4600
    %4602 = vmatprep.mubr.bf16.mxu0 %v1666
    %4603 = vmatmul.mubr.bf16.gmra.mrb[0].mxu0 %v1665
    %v4604 = vpop.f32.mrb[0].mxu0
    %v4605 = vadd.f32 %v4252, %v4604
    %v4606 = vpop.f32.mrb[0].mxu0
    %v4607 = vadd.f32 %v4254, %v4606
    %v4608 = vpop.f32.mrb[0].mxu0
    %v4609 = vadd.f32 %v4256, %v4608
    %v4610 = vpop.f32.mrb[0].mxu0
    %v4611 = vadd.f32 %v4258, %v4610
    %4612 = vmatprep.mubr.bf16.mxu0 %v1674
    %4613 = vmatmul.mubr.bf16.gmra.mrb[0].mxu0 %v1673
    %v4614 = vpop.f32.mrb[0].mxu0
    %v4615 = vadd.f32 %v4262, %v4614
    %v4616 = vpop.f32.mrb[0].mxu0
    %v4617 = vadd.f32 %v4264, %v4616
    %v4618 = vpop.f32.mrb[0].mxu0
    %v4619 = vadd.f32 %v4266, %v4618
    %v4620 = vpop.f32.mrb[0].mxu0
    %v4621 = vadd.f32 %v4268, %v4620
    %4622 = vdwg.mxu0
    %4623 = vmatprep.subr.bf16.mxu0 %v2702
    %4624 = vmatpush1.bf16.msra.mxu0 %v2701
    %4625 = vmatprep.subr.bf16.mxu0 %v2706
    %4626 = vmatpush1.bf16.msra.mxu0 %v2705
    %4627 = vmatprep.subr.bf16.mxu0 %v2710
    %4628 = vmatpush1.bf16.msra.mxu0 %v2709
    %4629 = vmatprep.subr.bf16.mxu0 %v2714
    %4630 = vmatpush1.bf16.msra.mxu0 %v2713
    %4631 = vmatprep.subr.bf16.mxu0 %v2718
    %4632 = vmatpush1.bf16.msra.mxu0 %v2717
    %4633 = vmatprep.subr.bf16.mxu0 %v2722
    %4634 = vmatpush1.bf16.msra.mxu0 %v2721
    %4635 = vmatprep.subr.bf16.mxu0 %v2726
    %4636 = vmatpush1.bf16.msra.mxu0 %v2725
    %4637 = vmatprep.subr.bf16.mxu0 %v2730
    %4638 = vmatpush1.bf16.msra.mxu0 %v2729
    %4639 = vmatprep.subr.bf16.mxu0 %v2734
    %4640 = vmatpush1.bf16.msra.mxu0 %v2733
    %4641 = vmatprep.subr.bf16.mxu0 %v2738
    %4642 = vmatpush1.bf16.msra.mxu0 %v2737
    %4643 = vmatprep.subr.bf16.mxu0 %v2742
    %4644 = vmatpush1.bf16.msra.mxu0 %v2741
    %4645 = vmatprep.subr.bf16.mxu0 %v2746
    %4646 = vmatpush1.bf16.msra.mxu0 %v2745
    %4647 = vmatprep.subr.bf16.mxu0 %v2750
    %4648 = vmatpush1.bf16.msra.mxu0 %v2749
    %4649 = vmatprep.subr.bf16.mxu0 %v2754
    %4650 = vmatpush1.bf16.msra.mxu0 %v2753
    %4651 = vmatprep.subr.bf16.mxu0 %v2758
    %4652 = vmatpush1.bf16.msra.mxu0 %v2757
    %4653 = vmatprep.subr.bf16.mxu0 %v2762
    %4654 = vmatpush1.bf16.msra.mxu0 %v2761
    %4655 = vmatprep.mubr.bf16.mxu0 %v1420
    %4656 = vmatmul.mubr.bf16.gmra.mrb[0].mxu0 %v1419
    %v4657 = vpop.f32.mrb[0].mxu0
    %v4658 = vadd.f32 %v642, %v4657
    %v4659 = vpop.f32.mrb[0].mxu0
    %v4660 = vadd.f32 %v646, %v4659
    %v4661 = vpop.f32.mrb[0].mxu0
    %v4662 = vadd.f32 %v642, %v4661
    %v4663 = vpop.f32.mrb[0].mxu0
    %v4664 = vadd.f32 %v646, %v4663
    %4665 = vmatprep.mubr.bf16.mxu0 %v1428
    %4666 = vmatmul.mubr.bf16.gmra.mrb[0].mxu0 %v1427
    %v4667 = vpop.f32.mrb[0].mxu0
    %v4668 = vadd.f32 %v642, %v4667
    %v4669 = vpop.f32.mrb[0].mxu0
    %v4670 = vadd.f32 %v646, %v4669
    %v4671 = vpop.f32.mrb[0].mxu0
    %v4672 = vadd.f32 %v642, %v4671
    %v4673 = vpop.f32.mrb[0].mxu0
    %v4674 = vadd.f32 %v646, %v4673
    %4675 = vmatprep.mubr.bf16.mxu0 %v1436
    %4676 = vmatmul.mubr.bf16.gmra.mrb[0].mxu0 %v1435
    %v4677 = vpop.f32.mrb[0].mxu0
    %v4678 = vadd.f32 %v642, %v4677
    %v4679 = vpop.f32.mrb[0].mxu0
    %v4680 = vadd.f32 %v646, %v4679
    %v4681 = vpop.f32.mrb[0].mxu0
    %v4682 = vadd.f32 %v642, %v4681
    %v4683 = vpop.f32.mrb[0].mxu0
    %v4684 = vadd.f32 %v646, %v4683
    %4685 = vmatprep.mubr.bf16.mxu0 %v1444
    %4686 = vmatmul.mubr.bf16.gmra.mrb[0].mxu0 %v1443
    %v4687 = vpop.f32.mrb[0].mxu0
    %v4688 = vadd.f32 %v642, %v4687
    %v4689 = vpop.f32.mrb[0].mxu0
    %v4690 = vadd.f32 %v646, %v4689
    %v4691 = vpop.f32.mrb[0].mxu0
    %v4692 = vadd.f32 %v642, %v4691
    %v4693 = vpop.f32.mrb[0].mxu0
    %v4694 = vadd.f32 %v646, %v4693
    %4695 = vmatprep.mubr.bf16.mxu0 %v1452
    %4696 = vmatmul.mubr.bf16.gmra.mrb[0].mxu0 %v1451
    %v4697 = vpop.f32.mrb[0].mxu0
    %v4698 = vadd.f32 %v642, %v4697
    %v4699 = vpop.f32.mrb[0].mxu0
    %v4700 = vadd.f32 %v646, %v4699
    %v4701 = vpop.f32.mrb[0].mxu0
    %v4702 = vadd.f32 %v642, %v4701
    %v4703 = vpop.f32.mrb[0].mxu0
    %v4704 = vadd.f32 %v646, %v4703
    %4705 = vmatprep.mubr.bf16.mxu0 %v1460
    %4706 = vmatmul.mubr.bf16.gmra.mrb[0].mxu0 %v1459
    %v4707 = vpop.f32.mrb[0].mxu0
    %v4708 = vadd.f32 %v642, %v4707
    %v4709 = vpop.f32.mrb[0].mxu0
    %v4710 = vadd.f32 %v646, %v4709
    %v4711 = vpop.f32.mrb[0].mxu0
    %v4712 = vadd.f32 %v642, %v4711
    %v4713 = vpop.f32.mrb[0].mxu0
    %v4714 = vadd.f32 %v646, %v4713
    %4715 = vmatprep.mubr.bf16.mxu0 %v1468
    %4716 = vmatmul.mubr.bf16.gmra.mrb[0].mxu0 %v1467
    %v4717 = vpop.f32.mrb[0].mxu0
    %v4718 = vadd.f32 %v642, %v4717
    %v4719 = vpop.f32.mrb[0].mxu0
    %v4720 = vadd.f32 %v646, %v4719
    %v4721 = vpop.f32.mrb[0].mxu0
    %v4722 = vadd.f32 %v642, %v4721
    %v4723 = vpop.f32.mrb[0].mxu0
    %v4724 = vadd.f32 %v646, %v4723
    %4725 = vmatprep.mubr.bf16.mxu0 %v1476
    %4726 = vmatmul.mubr.bf16.gmra.mrb[0].mxu0 %v1475
    %v4727 = vpop.f32.mrb[0].mxu0
    %v4728 = vadd.f32 %v642, %v4727
    %v4729 = vpop.f32.mrb[0].mxu0
    %v4730 = vadd.f32 %v646, %v4729
    %v4731 = vpop.f32.mrb[0].mxu0
    %v4732 = vadd.f32 %v642, %v4731
    %v4733 = vpop.f32.mrb[0].mxu0
    %v4734 = vadd.f32 %v646, %v4733
    %4735 = vmatprep.mubr.bf16.mxu0 %v1484
    %4736 = vmatmul.mubr.bf16.gmra.mrb[0].mxu0 %v1483
    %v4737 = vpop.f32.mrb[0].mxu0
    %v4738 = vadd.f32 %v642, %v4737
    %v4739 = vpop.f32.mrb[0].mxu0
    %v4740 = vadd.f32 %v646, %v4739
    %v4741 = vpop.f32.mrb[0].mxu0
    %v4742 = vadd.f32 %v642, %v4741
    %v4743 = vpop.f32.mrb[0].mxu0
    %v4744 = vadd.f32 %v646, %v4743
    %4745 = vmatprep.mubr.bf16.mxu0 %v1492
    %4746 = vmatmul.mubr.bf16.gmra.mrb[0].mxu0 %v1491
    %v4747 = vpop.f32.mrb[0].mxu0
    %v4748 = vadd.f32 %v642, %v4747
    %v4749 = vpop.f32.mrb[0].mxu0
    %v4750 = vadd.f32 %v646, %v4749
    %v4751 = vpop.f32.mrb[0].mxu0
    %v4752 = vadd.f32 %v642, %v4751
    %v4753 = vpop.f32.mrb[0].mxu0
    %v4754 = vadd.f32 %v646, %v4753
    %4755 = vmatprep.mubr.bf16.mxu0 %v1500
    %4756 = vmatmul.mubr.bf16.gmra.mrb[0].mxu0 %v1499
    %v4757 = vpop.f32.mrb[0].mxu0
    %v4758 = vadd.f32 %v642, %v4757
    %v4759 = vpop.f32.mrb[0].mxu0
    %v4760 = vadd.f32 %v646, %v4759
    %v4761 = vpop.f32.mrb[0].mxu0
    %v4762 = vadd.f32 %v642, %v4761
    %v4763 = vpop.f32.mrb[0].mxu0
    %v4764 = vadd.f32 %v646, %v4763
    %4765 = vmatprep.mubr.bf16.mxu0 %v1508
    %4766 = vmatmul.mubr.bf16.gmra.mrb[0].mxu0 %v1507
    %v4767 = vpop.f32.mrb[0].mxu0
    %v4768 = vadd.f32 %v642, %v4767
    %v4769 = vpop.f32.mrb[0].mxu0
    %v4770 = vadd.f32 %v646, %v4769
    %v4771 = vpop.f32.mrb[0].mxu0
    %v4772 = vadd.f32 %v642, %v4771
    %v4773 = vpop.f32.mrb[0].mxu0
    %v4774 = vadd.f32 %v646, %v4773
    %4775 = vmatprep.mubr.bf16.mxu0 %v1516
    %4776 = vmatmul.mubr.bf16.gmra.mrb[0].mxu0 %v1515
    %v4777 = vpop.f32.mrb[0].mxu0
    %v4778 = vadd.f32 %v642, %v4777
    %v4779 = vpop.f32.mrb[0].mxu0
    %v4780 = vadd.f32 %v646, %v4779
    %v4781 = vpop.f32.mrb[0].mxu0
    %v4782 = vadd.f32 %v642, %v4781
    %v4783 = vpop.f32.mrb[0].mxu0
    %v4784 = vadd.f32 %v646, %v4783
    %4785 = vmatprep.mubr.bf16.mxu0 %v1524
    %4786 = vmatmul.mubr.bf16.gmra.mrb[0].mxu0 %v1523
    %v4787 = vpop.f32.mrb[0].mxu0
    %v4788 = vadd.f32 %v642, %v4787
    %v4789 = vpop.f32.mrb[0].mxu0
    %v4790 = vadd.f32 %v646, %v4789
    %v4791 = vpop.f32.mrb[0].mxu0
    %v4792 = vadd.f32 %v642, %v4791
    %v4793 = vpop.f32.mrb[0].mxu0
    %v4794 = vadd.f32 %v646, %v4793
    %4795 = vmatprep.mubr.bf16.mxu0 %v1532
    %4796 = vmatmul.mubr.bf16.gmra.mrb[0].mxu0 %v1531
    %v4797 = vpop.f32.mrb[0].mxu0
    %v4798 = vadd.f32 %v642, %v4797
    %v4799 = vpop.f32.mrb[0].mxu0
    %v4800 = vadd.f32 %v646, %v4799
    %v4801 = vpop.f32.mrb[0].mxu0
    %v4802 = vadd.f32 %v642, %v4801
    %v4803 = vpop.f32.mrb[0].mxu0
    %v4804 = vadd.f32 %v646, %v4803
    %4805 = vmatprep.mubr.bf16.mxu0 %v1540
    %4806 = vmatmul.mubr.bf16.gmra.mrb[0].mxu0 %v1539
    %v4807 = vpop.f32.mrb[0].mxu0
    %v4808 = vadd.f32 %v642, %v4807
    %v4809 = vpop.f32.mrb[0].mxu0
    %v4810 = vadd.f32 %v646, %v4809
    %v4811 = vpop.f32.mrb[0].mxu0
    %v4812 = vadd.f32 %v642, %v4811
    %v4813 = vpop.f32.mrb[0].mxu0
    %v4814 = vadd.f32 %v646, %v4813
    %4815 = vmatprep.mubr.bf16.mxu0 %v1548
    %4816 = vmatmul.mubr.bf16.gmra.mrb[0].mxu0 %v1547
    %v4817 = vpop.f32.mrb[0].mxu0
    %v4818 = vadd.f32 %v642, %v4817
    %v4819 = vpop.f32.mrb[0].mxu0
    %v4820 = vadd.f32 %v646, %v4819
    %v4821 = vpop.f32.mrb[0].mxu0
    %v4822 = vadd.f32 %v642, %v4821
    %v4823 = vpop.f32.mrb[0].mxu0
    %v4824 = vadd.f32 %v646, %v4823
    %4825 = vmatprep.mubr.bf16.mxu0 %v1556
    %4826 = vmatmul.mubr.bf16.gmra.mrb[0].mxu0 %v1555
    %v4827 = vpop.f32.mrb[0].mxu0
    %v4828 = vadd.f32 %v642, %v4827
    %v4829 = vpop.f32.mrb[0].mxu0
    %v4830 = vadd.f32 %v646, %v4829
    %v4831 = vpop.f32.mrb[0].mxu0
    %v4832 = vadd.f32 %v642, %v4831
    %v4833 = vpop.f32.mrb[0].mxu0
    %v4834 = vadd.f32 %v646, %v4833
    %4835 = vmatprep.mubr.bf16.mxu0 %v1564
    %4836 = vmatmul.mubr.bf16.gmra.mrb[0].mxu0 %v1563
    %v4837 = vpop.f32.mrb[0].mxu0
    %v4838 = vadd.f32 %v642, %v4837
    %v4839 = vpop.f32.mrb[0].mxu0
    %v4840 = vadd.f32 %v646, %v4839
    %v4841 = vpop.f32.mrb[0].mxu0
    %v4842 = vadd.f32 %v642, %v4841
    %v4843 = vpop.f32.mrb[0].mxu0
    %v4844 = vadd.f32 %v646, %v4843
    %4845 = vmatprep.mubr.bf16.mxu0 %v1572
    %4846 = vmatmul.mubr.bf16.gmra.mrb[0].mxu0 %v1571
    %v4847 = vpop.f32.mrb[0].mxu0
    %v4848 = vadd.f32 %v642, %v4847
    %v4849 = vpop.f32.mrb[0].mxu0
    %v4850 = vadd.f32 %v646, %v4849
    %v4851 = vpop.f32.mrb[0].mxu0
    %v4852 = vadd.f32 %v642, %v4851
    %v4853 = vpop.f32.mrb[0].mxu0
    %v4854 = vadd.f32 %v646, %v4853
    %4855 = vmatprep.mubr.bf16.mxu0 %v1580
    %4856 = vmatmul.mubr.bf16.gmra.mrb[0].mxu0 %v1579
    %v4857 = vpop.f32.mrb[0].mxu0
    %v4858 = vadd.f32 %v642, %v4857
    %v4859 = vpop.f32.mrb[0].mxu0
    %v4860 = vadd.f32 %v646, %v4859
    %v4861 = vpop.f32.mrb[0].mxu0
    %v4862 = vadd.f32 %v642, %v4861
    %v4863 = vpop.f32.mrb[0].mxu0
    %v4864 = vadd.f32 %v646, %v4863
    %4865 = vmatprep.mubr.bf16.mxu0 %v1588
    %4866 = vmatmul.mubr.bf16.gmra.mrb[0].mxu0 %v1587
    %v4867 = vpop.f32.mrb[0].mxu0
    %v4868 = vadd.f32 %v642, %v4867
    %v4869 = vpop.f32.mrb[0].mxu0
    %v4870 = vadd.f32 %v646, %v4869
    %v4871 = vpop.f32.mrb[0].mxu0
    %v4872 = vadd.f32 %v642, %v4871
    %v4873 = vpop.f32.mrb[0].mxu0
    %v4874 = vadd.f32 %v646, %v4873
    %4875 = vmatprep.mubr.bf16.mxu0 %v1596
    %4876 = vmatmul.mubr.bf16.gmra.mrb[0].mxu0 %v1595
    %v4877 = vpop.f32.mrb[0].mxu0
    %v4878 = vadd.f32 %v642, %v4877
    %v4879 = vpop.f32.mrb[0].mxu0
    %v4880 = vadd.f32 %v646, %v4879
    %v4881 = vpop.f32.mrb[0].mxu0
    %v4882 = vadd.f32 %v642, %v4881
    %v4883 = vpop.f32.mrb[0].mxu0
    %v4884 = vadd.f32 %v646, %v4883
    %4885 = vmatprep.mubr.bf16.mxu0 %v1604
    %4886 = vmatmul.mubr.bf16.gmra.mrb[0].mxu0 %v1603
    %v4887 = vpop.f32.mrb[0].mxu0
    %v4888 = vadd.f32 %v642, %v4887
    %v4889 = vpop.f32.mrb[0].mxu0
    %v4890 = vadd.f32 %v646, %v4889
    %v4891 = vpop.f32.mrb[0].mxu0
    %v4892 = vadd.f32 %v642, %v4891
    %v4893 = vpop.f32.mrb[0].mxu0
    %v4894 = vadd.f32 %v646, %v4893
    %4895 = vmatprep.mubr.bf16.mxu0 %v1612
    %4896 = vmatmul.mubr.bf16.gmra.mrb[0].mxu0 %v1611
    %v4897 = vpop.f32.mrb[0].mxu0
    %v4898 = vadd.f32 %v642, %v4897
    %v4899 = vpop.f32.mrb[0].mxu0
    %v4900 = vadd.f32 %v646, %v4899
    %v4901 = vpop.f32.mrb[0].mxu0
    %v4902 = vadd.f32 %v642, %v4901
    %v4903 = vpop.f32.mrb[0].mxu0
    %v4904 = vadd.f32 %v646, %v4903
    %4905 = vmatprep.mubr.bf16.mxu0 %v1620
    %4906 = vmatmul.mubr.bf16.gmra.mrb[0].mxu0 %v1619
    %v4907 = vpop.f32.mrb[0].mxu0
    %v4908 = vadd.f32 %v642, %v4907
    %v4909 = vpop.f32.mrb[0].mxu0
    %v4910 = vadd.f32 %v646, %v4909
    %v4911 = vpop.f32.mrb[0].mxu0
    %v4912 = vadd.f32 %v642, %v4911
    %v4913 = vpop.f32.mrb[0].mxu0
    %v4914 = vadd.f32 %v646, %v4913
    %4915 = vmatprep.mubr.bf16.mxu0 %v1628
    %4916 = vmatmul.mubr.bf16.gmra.mrb[0].mxu0 %v1627
    %v4917 = vpop.f32.mrb[0].mxu0
    %v4918 = vadd.f32 %v642, %v4917
    %v4919 = vpop.f32.mrb[0].mxu0
    %v4920 = vadd.f32 %v646, %v4919
    %v4921 = vpop.f32.mrb[0].mxu0
    %v4922 = vadd.f32 %v642, %v4921
    %v4923 = vpop.f32.mrb[0].mxu0
    %v4924 = vadd.f32 %v646, %v4923
    %4925 = vmatprep.mubr.bf16.mxu0 %v1636
    %4926 = vmatmul.mubr.bf16.gmra.mrb[0].mxu0 %v1635
    %v4927 = vpop.f32.mrb[0].mxu0
    %v4928 = vadd.f32 %v642, %v4927
    %v4929 = vpop.f32.mrb[0].mxu0
    %v4930 = vadd.f32 %v646, %v4929
    %v4931 = vpop.f32.mrb[0].mxu0
    %v4932 = vadd.f32 %v642, %v4931
    %v4933 = vpop.f32.mrb[0].mxu0
    %v4934 = vadd.f32 %v646, %v4933
    %4935 = vmatprep.mubr.bf16.mxu0 %v1644
    %4936 = vmatmul.mubr.bf16.gmra.mrb[0].mxu0 %v1643
    %v4937 = vpop.f32.mrb[0].mxu0
    %v4938 = vadd.f32 %v642, %v4937
    %v4939 = vpop.f32.mrb[0].mxu0
    %v4940 = vadd.f32 %v646, %v4939
    %v4941 = vpop.f32.mrb[0].mxu0
    %v4942 = vadd.f32 %v642, %v4941
    %v4943 = vpop.f32.mrb[0].mxu0
    %v4944 = vadd.f32 %v646, %v4943
    %4945 = vmatprep.mubr.bf16.mxu0 %v1652
    %4946 = vmatmul.mubr.bf16.gmra.mrb[0].mxu0 %v1651
    %v4947 = vpop.f32.mrb[0].mxu0
    %v4948 = vadd.f32 %v642, %v4947
    %v4949 = vpop.f32.mrb[0].mxu0
    %v4950 = vadd.f32 %v646, %v4949
    %v4951 = vpop.f32.mrb[0].mxu0
    %v4952 = vadd.f32 %v642, %v4951
    %v4953 = vpop.f32.mrb[0].mxu0
    %v4954 = vadd.f32 %v646, %v4953
    %4955 = vmatprep.mubr.bf16.mxu0 %v1660
    %4956 = vmatmul.mubr.bf16.gmra.mrb[0].mxu0 %v1659
    %v4957 = vpop.f32.mrb[0].mxu0
    %v4958 = vadd.f32 %v642, %v4957
    %v4959 = vpop.f32.mrb[0].mxu0
    %v4960 = vadd.f32 %v646, %v4959
    %v4961 = vpop.f32.mrb[0].mxu0
    %v4962 = vadd.f32 %v642, %v4961
    %v4963 = vpop.f32.mrb[0].mxu0
    %v4964 = vadd.f32 %v646, %v4963
    %4965 = vmatprep.mubr.bf16.mxu0 %v1668
    %4966 = vmatmul.mubr.bf16.gmra.mrb[0].mxu0 %v1667
    %v4967 = vpop.f32.mrb[0].mxu0
    %v4968 = vadd.f32 %v642, %v4967
    %v4969 = vpop.f32.mrb[0].mxu0
    %v4970 = vadd.f32 %v646, %v4969
    %v4971 = vpop.f32.mrb[0].mxu0
    %v4972 = vadd.f32 %v642, %v4971
    %v4973 = vpop.f32.mrb[0].mxu0
    %v4974 = vadd.f32 %v646, %v4973
    %4975 = vdwg.mxu0
    %4976 = vmatprep.subr.bf16.mxu0 %v2766
    %4977 = vmatpush1.bf16.msra.mxu0 %v2765
    %4978 = vmatprep.subr.bf16.mxu0 %v2770
    %4979 = vmatpush1.bf16.msra.mxu0 %v2769
    %4980 = vmatprep.subr.bf16.mxu0 %v2774
    %4981 = vmatpush1.bf16.msra.mxu0 %v2773
    %4982 = vmatprep.subr.bf16.mxu0 %v2778
    %4983 = vmatpush1.bf16.msra.mxu0 %v2777
    %4984 = vmatprep.subr.bf16.mxu0 %v2782
    %4985 = vmatpush1.bf16.msra.mxu0 %v2781
    %4986 = vmatprep.subr.bf16.mxu0 %v2786
    %4987 = vmatpush1.bf16.msra.mxu0 %v2785
    %4988 = vmatprep.subr.bf16.mxu0 %v2790
    %4989 = vmatpush1.bf16.msra.mxu0 %v2789
    %4990 = vmatprep.subr.bf16.mxu0 %v2794
    %4991 = vmatpush1.bf16.msra.mxu0 %v2793
    %4992 = vmatprep.subr.bf16.mxu0 %v2798
    %4993 = vmatpush1.bf16.msra.mxu0 %v2797
    %4994 = vmatprep.subr.bf16.mxu0 %v2802
    %4995 = vmatpush1.bf16.msra.mxu0 %v2801
    %4996 = vmatprep.subr.bf16.mxu0 %v2806
    %4997 = vmatpush1.bf16.msra.mxu0 %v2805
    %4998 = vmatprep.subr.bf16.mxu0 %v2810
    %4999 = vmatpush1.bf16.msra.mxu0 %v2809
    %5000 = vmatprep.subr.bf16.mxu0 %v2814
    %5001 = vmatpush1.bf16.msra.mxu0 %v2813
    %5002 = vmatprep.subr.bf16.mxu0 %v2818
    %5003 = vmatpush1.bf16.msra.mxu0 %v2817
    %5004 = vmatprep.subr.bf16.mxu0 %v2822
    %5005 = vmatpush1.bf16.msra.mxu0 %v2821
    %5006 = vmatprep.subr.bf16.mxu0 %v2826
    %5007 = vmatpush1.bf16.msra.mxu0 %v2825
    %5008 = vmatprep.mubr.bf16.mxu0 %v1422
    %5009 = vmatmul.mubr.bf16.gmra.mrb[0].mxu0 %v1421
    %v5010 = vpop.f32.mrb[0].mxu0
    %v5011 = vadd.f32 %v4658, %v5010
    %v5012 = vpop.f32.mrb[0].mxu0
    %v5013 = vadd.f32 %v4660, %v5012
    %v5014 = vpop.f32.mrb[0].mxu0
    %v5015 = vadd.f32 %v4662, %v5014
    %v5016 = vpop.f32.mrb[0].mxu0
    %v5017 = vadd.f32 %v4664, %v5016
    %5018 = vmatprep.mubr.bf16.mxu0 %v1430
    %5019 = vmatmul.mubr.bf16.gmra.mrb[0].mxu0 %v1429
    %v5020 = vpop.f32.mrb[0].mxu0
    %v5021 = vadd.f32 %v4668, %v5020
    %v5022 = vpop.f32.mrb[0].mxu0
    %v5023 = vadd.f32 %v4670, %v5022
    %v5024 = vpop.f32.mrb[0].mxu0
    %v5025 = vadd.f32 %v4672, %v5024
    %v5026 = vpop.f32.mrb[0].mxu0
    %v5027 = vadd.f32 %v4674, %v5026
    %5028 = vmatprep.mubr.bf16.mxu0 %v1438
    %5029 = vmatmul.mubr.bf16.gmra.mrb[0].mxu0 %v1437
    %v5030 = vpop.f32.mrb[0].mxu0
    %v5031 = vadd.f32 %v4678, %v5030
    %v5032 = vpop.f32.mrb[0].mxu0
    %v5033 = vadd.f32 %v4680, %v5032
    %v5034 = vpop.f32.mrb[0].mxu0
    %v5035 = vadd.f32 %v4682, %v5034
    %v5036 = vpop.f32.mrb[0].mxu0
    %v5037 = vadd.f32 %v4684, %v5036
    %5038 = vmatprep.mubr.bf16.mxu0 %v1446
    %5039 = vmatmul.mubr.bf16.gmra.mrb[0].mxu0 %v1445
    %v5040 = vpop.f32.mrb[0].mxu0
    %v5041 = vadd.f32 %v4688, %v5040
    %v5042 = vpop.f32.mrb[0].mxu0
    %v5043 = vadd.f32 %v4690, %v5042
    %v5044 = vpop.f32.mrb[0].mxu0
    %v5045 = vadd.f32 %v4692, %v5044
    %v5046 = vpop.f32.mrb[0].mxu0
    %v5047 = vadd.f32 %v4694, %v5046
    %5048 = vmatprep.mubr.bf16.mxu0 %v1454
    %5049 = vmatmul.mubr.bf16.gmra.mrb[0].mxu0 %v1453
    %v5050 = vpop.f32.mrb[0].mxu0
    %v5051 = vadd.f32 %v4698, %v5050
    %v5052 = vpop.f32.mrb[0].mxu0
    %v5053 = vadd.f32 %v4700, %v5052
    %v5054 = vpop.f32.mrb[0].mxu0
    %v5055 = vadd.f32 %v4702, %v5054
    %v5056 = vpop.f32.mrb[0].mxu0
    %v5057 = vadd.f32 %v4704, %v5056
    %5058 = vmatprep.mubr.bf16.mxu0 %v1462
    %5059 = vmatmul.mubr.bf16.gmra.mrb[0].mxu0 %v1461
    %v5060 = vpop.f32.mrb[0].mxu0
    %v5061 = vadd.f32 %v4708, %v5060
    %v5062 = vpop.f32.mrb[0].mxu0
    %v5063 = vadd.f32 %v4710, %v5062
    %v5064 = vpop.f32.mrb[0].mxu0
    %v5065 = vadd.f32 %v4712, %v5064
    %v5066 = vpop.f32.mrb[0].mxu0
    %v5067 = vadd.f32 %v4714, %v5066
    %5068 = vmatprep.mubr.bf16.mxu0 %v1470
    %5069 = vmatmul.mubr.bf16.gmra.mrb[0].mxu0 %v1469
    %v5070 = vpop.f32.mrb[0].mxu0
    %v5071 = vadd.f32 %v4718, %v5070
    %v5072 = vpop.f32.mrb[0].mxu0
    %v5073 = vadd.f32 %v4720, %v5072
    %v5074 = vpop.f32.mrb[0].mxu0
    %v5075 = vadd.f32 %v4722, %v5074
    %v5076 = vpop.f32.mrb[0].mxu0
    %v5077 = vadd.f32 %v4724, %v5076
    %5078 = vmatprep.mubr.bf16.mxu0 %v1478
    %5079 = vmatmul.mubr.bf16.gmra.mrb[0].mxu0 %v1477
    %v5080 = vpop.f32.mrb[0].mxu0
    %v5081 = vadd.f32 %v4728, %v5080
    %v5082 = vpop.f32.mrb[0].mxu0
    %v5083 = vadd.f32 %v4730, %v5082
    %v5084 = vpop.f32.mrb[0].mxu0
    %v5085 = vadd.f32 %v4732, %v5084
    %v5086 = vpop.f32.mrb[0].mxu0
    %v5087 = vadd.f32 %v4734, %v5086
    %5088 = vmatprep.mubr.bf16.mxu0 %v1486
    %5089 = vmatmul.mubr.bf16.gmra.mrb[0].mxu0 %v1485
    %v5090 = vpop.f32.mrb[0].mxu0
    %v5091 = vadd.f32 %v4738, %v5090
    %v5092 = vpop.f32.mrb[0].mxu0
    %v5093 = vadd.f32 %v4740, %v5092
    %v5094 = vpop.f32.mrb[0].mxu0
    %v5095 = vadd.f32 %v4742, %v5094
    %v5096 = vpop.f32.mrb[0].mxu0
    %v5097 = vadd.f32 %v4744, %v5096
    %5098 = vmatprep.mubr.bf16.mxu0 %v1494
    %5099 = vmatmul.mubr.bf16.gmra.mrb[0].mxu0 %v1493
    %v5100 = vpop.f32.mrb[0].mxu0
    %v5101 = vadd.f32 %v4748, %v5100
    %v5102 = vpop.f32.mrb[0].mxu0
    %v5103 = vadd.f32 %v4750, %v5102
    %v5104 = vpop.f32.mrb[0].mxu0
    %v5105 = vadd.f32 %v4752, %v5104
    %v5106 = vpop.f32.mrb[0].mxu0
    %v5107 = vadd.f32 %v4754, %v5106
    %5108 = vmatprep.mubr.bf16.mxu0 %v1502
    %5109 = vmatmul.mubr.bf16.gmra.mrb[0].mxu0 %v1501
    %v5110 = vpop.f32.mrb[0].mxu0
    %v5111 = vadd.f32 %v4758, %v5110
    %v5112 = vpop.f32.mrb[0].mxu0
    %v5113 = vadd.f32 %v4760, %v5112
    %v5114 = vpop.f32.mrb[0].mxu0
    %v5115 = vadd.f32 %v4762, %v5114
    %v5116 = vpop.f32.mrb[0].mxu0
    %v5117 = vadd.f32 %v4764, %v5116
    %5118 = vmatprep.mubr.bf16.mxu0 %v1510
    %5119 = vmatmul.mubr.bf16.gmra.mrb[0].mxu0 %v1509
    %v5120 = vpop.f32.mrb[0].mxu0
    %v5121 = vadd.f32 %v4768, %v5120
    %v5122 = vpop.f32.mrb[0].mxu0
    %v5123 = vadd.f32 %v4770, %v5122
    %v5124 = vpop.f32.mrb[0].mxu0
    %v5125 = vadd.f32 %v4772, %v5124
    %v5126 = vpop.f32.mrb[0].mxu0
    %v5127 = vadd.f32 %v4774, %v5126
    %5128 = vmatprep.mubr.bf16.mxu0 %v1518
    %5129 = vmatmul.mubr.bf16.gmra.mrb[0].mxu0 %v1517
    %v5130 = vpop.f32.mrb[0].mxu0
    %v5131 = vadd.f32 %v4778, %v5130
    %v5132 = vpop.f32.mrb[0].mxu0
    %v5133 = vadd.f32 %v4780, %v5132
    %v5134 = vpop.f32.mrb[0].mxu0
    %v5135 = vadd.f32 %v4782, %v5134
    %v5136 = vpop.f32.mrb[0].mxu0
    %v5137 = vadd.f32 %v4784, %v5136
    %5138 = vmatprep.mubr.bf16.mxu0 %v1526
    %5139 = vmatmul.mubr.bf16.gmra.mrb[0].mxu0 %v1525
    %v5140 = vpop.f32.mrb[0].mxu0
    %v5141 = vadd.f32 %v4788, %v5140
    %v5142 = vpop.f32.mrb[0].mxu0
    %v5143 = vadd.f32 %v4790, %v5142
    %v5144 = vpop.f32.mrb[0].mxu0
    %v5145 = vadd.f32 %v4792, %v5144
    %v5146 = vpop.f32.mrb[0].mxu0
    %v5147 = vadd.f32 %v4794, %v5146
    %5148 = vmatprep.mubr.bf16.mxu0 %v1534
    %5149 = vmatmul.mubr.bf16.gmra.mrb[0].mxu0 %v1533
    %v5150 = vpop.f32.mrb[0].mxu0
    %v5151 = vadd.f32 %v4798, %v5150
    %v5152 = vpop.f32.mrb[0].mxu0
    %v5153 = vadd.f32 %v4800, %v5152
    %v5154 = vpop.f32.mrb[0].mxu0
    %v5155 = vadd.f32 %v4802, %v5154
    %v5156 = vpop.f32.mrb[0].mxu0
    %v5157 = vadd.f32 %v4804, %v5156
    %5158 = vmatprep.mubr.bf16.mxu0 %v1542
    %5159 = vmatmul.mubr.bf16.gmra.mrb[0].mxu0 %v1541
    %v5160 = vpop.f32.mrb[0].mxu0
    %v5161 = vadd.f32 %v4808, %v5160
    %v5162 = vpop.f32.mrb[0].mxu0
    %v5163 = vadd.f32 %v4810, %v5162
    %v5164 = vpop.f32.mrb[0].mxu0
    %v5165 = vadd.f32 %v4812, %v5164
    %v5166 = vpop.f32.mrb[0].mxu0
    %v5167 = vadd.f32 %v4814, %v5166
    %5168 = vmatprep.mubr.bf16.mxu0 %v1550
    %5169 = vmatmul.mubr.bf16.gmra.mrb[0].mxu0 %v1549
    %v5170 = vpop.f32.mrb[0].mxu0
    %v5171 = vadd.f32 %v4818, %v5170
    %v5172 = vpop.f32.mrb[0].mxu0
    %v5173 = vadd.f32 %v4820, %v5172
    %v5174 = vpop.f32.mrb[0].mxu0
    %v5175 = vadd.f32 %v4822, %v5174
    %v5176 = vpop.f32.mrb[0].mxu0
    %v5177 = vadd.f32 %v4824, %v5176
    %5178 = vmatprep.mubr.bf16.mxu0 %v1558
    %5179 = vmatmul.mubr.bf16.gmra.mrb[0].mxu0 %v1557
    %v5180 = vpop.f32.mrb[0].mxu0
    %v5181 = vadd.f32 %v4828, %v5180
    %v5182 = vpop.f32.mrb[0].mxu0
    %v5183 = vadd.f32 %v4830, %v5182
    %v5184 = vpop.f32.mrb[0].mxu0
    %v5185 = vadd.f32 %v4832, %v5184
    %v5186 = vpop.f32.mrb[0].mxu0
    %v5187 = vadd.f32 %v4834, %v5186
    %5188 = vmatprep.mubr.bf16.mxu0 %v1566
    %5189 = vmatmul.mubr.bf16.gmra.mrb[0].mxu0 %v1565
    %v5190 = vpop.f32.mrb[0].mxu0
    %v5191 = vadd.f32 %v4838, %v5190
    %v5192 = vpop.f32.mrb[0].mxu0
    %v5193 = vadd.f32 %v4840, %v5192
    %v5194 = vpop.f32.mrb[0].mxu0
    %v5195 = vadd.f32 %v4842, %v5194
    %v5196 = vpop.f32.mrb[0].mxu0
    %v5197 = vadd.f32 %v4844, %v5196
    %5198 = vmatprep.mubr.bf16.mxu0 %v1574
    %5199 = vmatmul.mubr.bf16.gmra.mrb[0].mxu0 %v1573
    %v5200 = vpop.f32.mrb[0].mxu0
    %v5201 = vadd.f32 %v4848, %v5200
    %v5202 = vpop.f32.mrb[0].mxu0
    %v5203 = vadd.f32 %v4850, %v5202
    %v5204 = vpop.f32.mrb[0].mxu0
    %v5205 = vadd.f32 %v4852, %v5204
    %v5206 = vpop.f32.mrb[0].mxu0
    %v5207 = vadd.f32 %v4854, %v5206
    %5208 = vmatprep.mubr.bf16.mxu0 %v1582
    %5209 = vmatmul.mubr.bf16.gmra.mrb[0].mxu0 %v1581
    %v5210 = vpop.f32.mrb[0].mxu0
    %v5211 = vadd.f32 %v4858, %v5210
    %v5212 = vpop.f32.mrb[0].mxu0
    %v5213 = vadd.f32 %v4860, %v5212
    %v5214 = vpop.f32.mrb[0].mxu0
    %v5215 = vadd.f32 %v4862, %v5214
    %v5216 = vpop.f32.mrb[0].mxu0
    %v5217 = vadd.f32 %v4864, %v5216
    %5218 = vmatprep.mubr.bf16.mxu0 %v1590
    %5219 = vmatmul.mubr.bf16.gmra.mrb[0].mxu0 %v1589
    %v5220 = vpop.f32.mrb[0].mxu0
    %v5221 = vadd.f32 %v4868, %v5220
    %v5222 = vpop.f32.mrb[0].mxu0
    %v5223 = vadd.f32 %v4870, %v5222
    %v5224 = vpop.f32.mrb[0].mxu0
    %v5225 = vadd.f32 %v4872, %v5224
    %v5226 = vpop.f32.mrb[0].mxu0
    %v5227 = vadd.f32 %v4874, %v5226
    %5228 = vmatprep.mubr.bf16.mxu0 %v1598
    %5229 = vmatmul.mubr.bf16.gmra.mrb[0].mxu0 %v1597
    %v5230 = vpop.f32.mrb[0].mxu0
    %v5231 = vadd.f32 %v4878, %v5230
    %v5232 = vpop.f32.mrb[0].mxu0
    %v5233 = vadd.f32 %v4880, %v5232
    %v5234 = vpop.f32.mrb[0].mxu0
    %v5235 = vadd.f32 %v4882, %v5234
    %v5236 = vpop.f32.mrb[0].mxu0
    %v5237 = vadd.f32 %v4884, %v5236
    %5238 = vmatprep.mubr.bf16.mxu0 %v1606
    %5239 = vmatmul.mubr.bf16.gmra.mrb[0].mxu0 %v1605
    %v5240 = vpop.f32.mrb[0].mxu0
    %v5241 = vadd.f32 %v4888, %v5240
    %v5242 = vpop.f32.mrb[0].mxu0
    %v5243 = vadd.f32 %v4890, %v5242
    %v5244 = vpop.f32.mrb[0].mxu0
    %v5245 = vadd.f32 %v4892, %v5244
    %v5246 = vpop.f32.mrb[0].mxu0
    %v5247 = vadd.f32 %v4894, %v5246
    %5248 = vmatprep.mubr.bf16.mxu0 %v1614
    %5249 = vmatmul.mubr.bf16.gmra.mrb[0].mxu0 %v1613
    %v5250 = vpop.f32.mrb[0].mxu0
    %v5251 = vadd.f32 %v4898, %v5250
    %v5252 = vpop.f32.mrb[0].mxu0
    %v5253 = vadd.f32 %v4900, %v5252
    %v5254 = vpop.f32.mrb[0].mxu0
    %v5255 = vadd.f32 %v4902, %v5254
    %v5256 = vpop.f32.mrb[0].mxu0
    %v5257 = vadd.f32 %v4904, %v5256
    %5258 = vmatprep.mubr.bf16.mxu0 %v1622
    %5259 = vmatmul.mubr.bf16.gmra.mrb[0].mxu0 %v1621
    %v5260 = vpop.f32.mrb[0].mxu0
    %v5261 = vadd.f32 %v4908, %v5260
    %v5262 = vpop.f32.mrb[0].mxu0
    %v5263 = vadd.f32 %v4910, %v5262
    %v5264 = vpop.f32.mrb[0].mxu0
    %v5265 = vadd.f32 %v4912, %v5264
    %v5266 = vpop.f32.mrb[0].mxu0
    %v5267 = vadd.f32 %v4914, %v5266
    %5268 = vmatprep.mubr.bf16.mxu0 %v1630
    %5269 = vmatmul.mubr.bf16.gmra.mrb[0].mxu0 %v1629
    %v5270 = vpop.f32.mrb[0].mxu0
    %v5271 = vadd.f32 %v4918, %v5270
    %v5272 = vpop.f32.mrb[0].mxu0
    %v5273 = vadd.f32 %v4920, %v5272
    %v5274 = vpop.f32.mrb[0].mxu0
    %v5275 = vadd.f32 %v4922, %v5274
    %v5276 = vpop.f32.mrb[0].mxu0
    %v5277 = vadd.f32 %v4924, %v5276
    %5278 = vmatprep.mubr.bf16.mxu0 %v1638
    %5279 = vmatmul.mubr.bf16.gmra.mrb[0].mxu0 %v1637
    %v5280 = vpop.f32.mrb[0].mxu0
    %v5281 = vadd.f32 %v4928, %v5280
    %v5282 = vpop.f32.mrb[0].mxu0
    %v5283 = vadd.f32 %v4930, %v5282
    %v5284 = vpop.f32.mrb[0].mxu0
    %v5285 = vadd.f32 %v4932, %v5284
    %v5286 = vpop.f32.mrb[0].mxu0
    %v5287 = vadd.f32 %v4934, %v5286
    %5288 = vmatprep.mubr.bf16.mxu0 %v1646
    %5289 = vmatmul.mubr.bf16.gmra.mrb[0].mxu0 %v1645
    %v5290 = vpop.f32.mrb[0].mxu0
    %v5291 = vadd.f32 %v4938, %v5290
    %v5292 = vpop.f32.mrb[0].mxu0
    %v5293 = vadd.f32 %v4940, %v5292
    %v5294 = vpop.f32.mrb[0].mxu0
    %v5295 = vadd.f32 %v4942, %v5294
    %v5296 = vpop.f32.mrb[0].mxu0
    %v5297 = vadd.f32 %v4944, %v5296
    %5298 = vmatprep.mubr.bf16.mxu0 %v1654
    %5299 = vmatmul.mubr.bf16.gmra.mrb[0].mxu0 %v1653
    %v5300 = vpop.f32.mrb[0].mxu0
    %v5301 = vadd.f32 %v4948, %v5300
    %v5302 = vpop.f32.mrb[0].mxu0
    %v5303 = vadd.f32 %v4950, %v5302
    %v5304 = vpop.f32.mrb[0].mxu0
    %v5305 = vadd.f32 %v4952, %v5304
    %v5306 = vpop.f32.mrb[0].mxu0
    %v5307 = vadd.f32 %v4954, %v5306
    %5308 = vmatprep.mubr.bf16.mxu0 %v1662
    %5309 = vmatmul.mubr.bf16.gmra.mrb[0].mxu0 %v1661
    %v5310 = vpop.f32.mrb[0].mxu0
    %v5311 = vadd.f32 %v4958, %v5310
    %v5312 = vpop.f32.mrb[0].mxu0
    %v5313 = vadd.f32 %v4960, %v5312
    %v5314 = vpop.f32.mrb[0].mxu0
    %v5315 = vadd.f32 %v4962, %v5314
    %v5316 = vpop.f32.mrb[0].mxu0
    %v5317 = vadd.f32 %v4964, %v5316
    %5318 = vmatprep.mubr.bf16.mxu0 %v1670
    %5319 = vmatmul.mubr.bf16.gmra.mrb[0].mxu0 %v1669
    %v5320 = vpop.f32.mrb[0].mxu0
    %v5321 = vadd.f32 %v4968, %v5320
    %v5322 = vpop.f32.mrb[0].mxu0
    %v5323 = vadd.f32 %v4970, %v5322
    %v5324 = vpop.f32.mrb[0].mxu0
    %v5325 = vadd.f32 %v4972, %v5324
    %v5326 = vpop.f32.mrb[0].mxu0
    %v5327 = vadd.f32 %v4974, %v5326
    %5328 = vdwg.mxu0
    %5329 = vmatprep.subr.bf16.mxu0 %v2830
    %5330 = vmatpush1.bf16.msra.mxu0 %v2829
    %5331 = vmatprep.subr.bf16.mxu0 %v2834
    %5332 = vmatpush1.bf16.msra.mxu0 %v2833
    %5333 = vmatprep.subr.bf16.mxu0 %v2838
    %5334 = vmatpush1.bf16.msra.mxu0 %v2837
    %5335 = vmatprep.subr.bf16.mxu0 %v2842
    %5336 = vmatpush1.bf16.msra.mxu0 %v2841
    %5337 = vmatprep.subr.bf16.mxu0 %v2846
    %5338 = vmatpush1.bf16.msra.mxu0 %v2845
    %5339 = vmatprep.subr.bf16.mxu0 %v2850
    %5340 = vmatpush1.bf16.msra.mxu0 %v2849
    %5341 = vmatprep.subr.bf16.mxu0 %v2854
    %5342 = vmatpush1.bf16.msra.mxu0 %v2853
    %5343 = vmatprep.subr.bf16.mxu0 %v2858
    %5344 = vmatpush1.bf16.msra.mxu0 %v2857
    %5345 = vmatprep.subr.bf16.mxu0 %v2862
    %5346 = vmatpush1.bf16.msra.mxu0 %v2861
    %5347 = vmatprep.subr.bf16.mxu0 %v2866
    %5348 = vmatpush1.bf16.msra.mxu0 %v2865
    %5349 = vmatprep.subr.bf16.mxu0 %v2870
    %5350 = vmatpush1.bf16.msra.mxu0 %v2869
    %5351 = vmatprep.subr.bf16.mxu0 %v2874
    %5352 = vmatpush1.bf16.msra.mxu0 %v2873
    %5353 = vmatprep.subr.bf16.mxu0 %v2878
    %5354 = vmatpush1.bf16.msra.mxu0 %v2877
    %5355 = vmatprep.subr.bf16.mxu0 %v2882
    %5356 = vmatpush1.bf16.msra.mxu0 %v2881
    %5357 = vmatprep.subr.bf16.mxu0 %v2886
    %5358 = vmatpush1.bf16.msra.mxu0 %v2885
    %5359 = vmatprep.subr.bf16.mxu0 %v2890
    %5360 = vmatpush1.bf16.msra.mxu0 %v2889
    %5361 = vmatprep.mubr.bf16.mxu0 %v1424
    %5362 = vmatmul.mubr.bf16.gmra.mrb[0].mxu0 %v1423
    %v5363 = vpop.f32.mrb[0].mxu0
    %v5364 = vadd.f32 %v5011, %v5363
    %v5365 = vpop.f32.mrb[0].mxu0
    %v5366 = vadd.f32 %v5013, %v5365
    %v5367 = vpop.f32.mrb[0].mxu0
    %v5368 = vadd.f32 %v5015, %v5367
    %v5369 = vpop.f32.mrb[0].mxu0
    %v5370 = vadd.f32 %v5017, %v5369
    %5371 = vmatprep.mubr.bf16.mxu0 %v1432
    %5372 = vmatmul.mubr.bf16.gmra.mrb[0].mxu0 %v1431
    %v5373 = vpop.f32.mrb[0].mxu0
    %v5374 = vadd.f32 %v5021, %v5373
    %v5375 = vpop.f32.mrb[0].mxu0
    %v5376 = vadd.f32 %v5023, %v5375
    %v5377 = vpop.f32.mrb[0].mxu0
    %v5378 = vadd.f32 %v5025, %v5377
    %v5379 = vpop.f32.mrb[0].mxu0
    %v5380 = vadd.f32 %v5027, %v5379
    %5381 = vmatprep.mubr.bf16.mxu0 %v1440
    %5382 = vmatmul.mubr.bf16.gmra.mrb[0].mxu0 %v1439
    %v5383 = vpop.f32.mrb[0].mxu0
    %v5384 = vadd.f32 %v5031, %v5383
    %v5385 = vpop.f32.mrb[0].mxu0
    %v5386 = vadd.f32 %v5033, %v5385
    %v5387 = vpop.f32.mrb[0].mxu0
    %v5388 = vadd.f32 %v5035, %v5387
    %v5389 = vpop.f32.mrb[0].mxu0
    %v5390 = vadd.f32 %v5037, %v5389
    %5391 = vmatprep.mubr.bf16.mxu0 %v1448
    %5392 = vmatmul.mubr.bf16.gmra.mrb[0].mxu0 %v1447
    %v5393 = vpop.f32.mrb[0].mxu0
    %v5394 = vadd.f32 %v5041, %v5393
    %v5395 = vpop.f32.mrb[0].mxu0
    %v5396 = vadd.f32 %v5043, %v5395
    %v5397 = vpop.f32.mrb[0].mxu0
    %v5398 = vadd.f32 %v5045, %v5397
    %v5399 = vpop.f32.mrb[0].mxu0
    %v5400 = vadd.f32 %v5047, %v5399
    %5401 = vmatprep.mubr.bf16.mxu0 %v1456
    %5402 = vmatmul.mubr.bf16.gmra.mrb[0].mxu0 %v1455
    %v5403 = vpop.f32.mrb[0].mxu0
    %v5404 = vadd.f32 %v5051, %v5403
    %v5405 = vpop.f32.mrb[0].mxu0
    %v5406 = vadd.f32 %v5053, %v5405
    %v5407 = vpop.f32.mrb[0].mxu0
    %v5408 = vadd.f32 %v5055, %v5407
    %v5409 = vpop.f32.mrb[0].mxu0
    %v5410 = vadd.f32 %v5057, %v5409
    %5411 = vmatprep.mubr.bf16.mxu0 %v1464
    %5412 = vmatmul.mubr.bf16.gmra.mrb[0].mxu0 %v1463
    %v5413 = vpop.f32.mrb[0].mxu0
    %v5414 = vadd.f32 %v5061, %v5413
    %v5415 = vpop.f32.mrb[0].mxu0
    %v5416 = vadd.f32 %v5063, %v5415
    %v5417 = vpop.f32.mrb[0].mxu0
    %v5418 = vadd.f32 %v5065, %v5417
    %v5419 = vpop.f32.mrb[0].mxu0
    %v5420 = vadd.f32 %v5067, %v5419
    %5421 = vmatprep.mubr.bf16.mxu0 %v1472
    %5422 = vmatmul.mubr.bf16.gmra.mrb[0].mxu0 %v1471
    %v5423 = vpop.f32.mrb[0].mxu0
    %v5424 = vadd.f32 %v5071, %v5423
    %v5425 = vpop.f32.mrb[0].mxu0
    %v5426 = vadd.f32 %v5073, %v5425
    %v5427 = vpop.f32.mrb[0].mxu0
    %v5428 = vadd.f32 %v5075, %v5427
    %v5429 = vpop.f32.mrb[0].mxu0
    %v5430 = vadd.f32 %v5077, %v5429
    %5431 = vmatprep.mubr.bf16.mxu0 %v1480
    %5432 = vmatmul.mubr.bf16.gmra.mrb[0].mxu0 %v1479
    %v5433 = vpop.f32.mrb[0].mxu0
    %v5434 = vadd.f32 %v5081, %v5433
    %v5435 = vpop.f32.mrb[0].mxu0
    %v5436 = vadd.f32 %v5083, %v5435
    %v5437 = vpop.f32.mrb[0].mxu0
    %v5438 = vadd.f32 %v5085, %v5437
    %v5439 = vpop.f32.mrb[0].mxu0
    %v5440 = vadd.f32 %v5087, %v5439
    %5441 = vmatprep.mubr.bf16.mxu0 %v1488
    %5442 = vmatmul.mubr.bf16.gmra.mrb[0].mxu0 %v1487
    %v5443 = vpop.f32.mrb[0].mxu0
    %v5444 = vadd.f32 %v5091, %v5443
    %v5445 = vpop.f32.mrb[0].mxu0
    %v5446 = vadd.f32 %v5093, %v5445
    %v5447 = vpop.f32.mrb[0].mxu0
    %v5448 = vadd.f32 %v5095, %v5447
    %v5449 = vpop.f32.mrb[0].mxu0
    %v5450 = vadd.f32 %v5097, %v5449
    %5451 = vmatprep.mubr.bf16.mxu0 %v1496
    %5452 = vmatmul.mubr.bf16.gmra.mrb[0].mxu0 %v1495
    %v5453 = vpop.f32.mrb[0].mxu0
    %v5454 = vadd.f32 %v5101, %v5453
    %v5455 = vpop.f32.mrb[0].mxu0
    %v5456 = vadd.f32 %v5103, %v5455
    %v5457 = vpop.f32.mrb[0].mxu0
    %v5458 = vadd.f32 %v5105, %v5457
    %v5459 = vpop.f32.mrb[0].mxu0
    %v5460 = vadd.f32 %v5107, %v5459
    %5461 = vmatprep.mubr.bf16.mxu0 %v1504
    %5462 = vmatmul.mubr.bf16.gmra.mrb[0].mxu0 %v1503
    %v5463 = vpop.f32.mrb[0].mxu0
    %v5464 = vadd.f32 %v5111, %v5463
    %v5465 = vpop.f32.mrb[0].mxu0
    %v5466 = vadd.f32 %v5113, %v5465
    %v5467 = vpop.f32.mrb[0].mxu0
    %v5468 = vadd.f32 %v5115, %v5467
    %v5469 = vpop.f32.mrb[0].mxu0
    %v5470 = vadd.f32 %v5117, %v5469
    %5471 = vmatprep.mubr.bf16.mxu0 %v1512
    %5472 = vmatmul.mubr.bf16.gmra.mrb[0].mxu0 %v1511
    %v5473 = vpop.f32.mrb[0].mxu0
    %v5474 = vadd.f32 %v5121, %v5473
    %v5475 = vpop.f32.mrb[0].mxu0
    %v5476 = vadd.f32 %v5123, %v5475
    %v5477 = vpop.f32.mrb[0].mxu0
    %v5478 = vadd.f32 %v5125, %v5477
    %v5479 = vpop.f32.mrb[0].mxu0
    %v5480 = vadd.f32 %v5127, %v5479
    %5481 = vmatprep.mubr.bf16.mxu0 %v1520
    %5482 = vmatmul.mubr.bf16.gmra.mrb[0].mxu0 %v1519
    %v5483 = vpop.f32.mrb[0].mxu0
    %v5484 = vadd.f32 %v5131, %v5483
    %v5485 = vpop.f32.mrb[0].mxu0
    %v5486 = vadd.f32 %v5133, %v5485
    %v5487 = vpop.f32.mrb[0].mxu0
    %v5488 = vadd.f32 %v5135, %v5487
    %v5489 = vpop.f32.mrb[0].mxu0
    %v5490 = vadd.f32 %v5137, %v5489
    %5491 = vmatprep.mubr.bf16.mxu0 %v1528
    %5492 = vmatmul.mubr.bf16.gmra.mrb[0].mxu0 %v1527
    %v5493 = vpop.f32.mrb[0].mxu0
    %v5494 = vadd.f32 %v5141, %v5493
    %v5495 = vpop.f32.mrb[0].mxu0
    %v5496 = vadd.f32 %v5143, %v5495
    %v5497 = vpop.f32.mrb[0].mxu0
    %v5498 = vadd.f32 %v5145, %v5497
    %v5499 = vpop.f32.mrb[0].mxu0
    %v5500 = vadd.f32 %v5147, %v5499
    %5501 = vmatprep.mubr.bf16.mxu0 %v1536
    %5502 = vmatmul.mubr.bf16.gmra.mrb[0].mxu0 %v1535
    %v5503 = vpop.f32.mrb[0].mxu0
    %v5504 = vadd.f32 %v5151, %v5503
    %v5505 = vpop.f32.mrb[0].mxu0
    %v5506 = vadd.f32 %v5153, %v5505
    %v5507 = vpop.f32.mrb[0].mxu0
    %v5508 = vadd.f32 %v5155, %v5507
    %v5509 = vpop.f32.mrb[0].mxu0
    %v5510 = vadd.f32 %v5157, %v5509
    %5511 = vmatprep.mubr.bf16.mxu0 %v1544
    %5512 = vmatmul.mubr.bf16.gmra.mrb[0].mxu0 %v1543
    %v5513 = vpop.f32.mrb[0].mxu0
    %v5514 = vadd.f32 %v5161, %v5513
    %v5515 = vpop.f32.mrb[0].mxu0
    %v5516 = vadd.f32 %v5163, %v5515
    %v5517 = vpop.f32.mrb[0].mxu0
    %v5518 = vadd.f32 %v5165, %v5517
    %v5519 = vpop.f32.mrb[0].mxu0
    %v5520 = vadd.f32 %v5167, %v5519
    %5521 = vmatprep.mubr.bf16.mxu0 %v1552
    %5522 = vmatmul.mubr.bf16.gmra.mrb[0].mxu0 %v1551
    %v5523 = vpop.f32.mrb[0].mxu0
    %v5524 = vadd.f32 %v5171, %v5523
    %v5525 = vpop.f32.mrb[0].mxu0
    %v5526 = vadd.f32 %v5173, %v5525
    %v5527 = vpop.f32.mrb[0].mxu0
    %v5528 = vadd.f32 %v5175, %v5527
    %v5529 = vpop.f32.mrb[0].mxu0
    %v5530 = vadd.f32 %v5177, %v5529
    %5531 = vmatprep.mubr.bf16.mxu0 %v1560
    %5532 = vmatmul.mubr.bf16.gmra.mrb[0].mxu0 %v1559
    %v5533 = vpop.f32.mrb[0].mxu0
    %v5534 = vadd.f32 %v5181, %v5533
    %v5535 = vpop.f32.mrb[0].mxu0
    %v5536 = vadd.f32 %v5183, %v5535
    %v5537 = vpop.f32.mrb[0].mxu0
    %v5538 = vadd.f32 %v5185, %v5537
    %v5539 = vpop.f32.mrb[0].mxu0
    %v5540 = vadd.f32 %v5187, %v5539
    %5541 = vmatprep.mubr.bf16.mxu0 %v1568
    %5542 = vmatmul.mubr.bf16.gmra.mrb[0].mxu0 %v1567
    %v5543 = vpop.f32.mrb[0].mxu0
    %v5544 = vadd.f32 %v5191, %v5543
    %v5545 = vpop.f32.mrb[0].mxu0
    %v5546 = vadd.f32 %v5193, %v5545
    %v5547 = vpop.f32.mrb[0].mxu0
    %v5548 = vadd.f32 %v5195, %v5547
    %v5549 = vpop.f32.mrb[0].mxu0
    %v5550 = vadd.f32 %v5197, %v5549
    %5551 = vmatprep.mubr.bf16.mxu0 %v1576
    %5552 = vmatmul.mubr.bf16.gmra.mrb[0].mxu0 %v1575
    %v5553 = vpop.f32.mrb[0].mxu0
    %v5554 = vadd.f32 %v5201, %v5553
    %v5555 = vpop.f32.mrb[0].mxu0
    %v5556 = vadd.f32 %v5203, %v5555
    %v5557 = vpop.f32.mrb[0].mxu0
    %v5558 = vadd.f32 %v5205, %v5557
    %v5559 = vpop.f32.mrb[0].mxu0
    %v5560 = vadd.f32 %v5207, %v5559
    %5561 = vmatprep.mubr.bf16.mxu0 %v1584
    %5562 = vmatmul.mubr.bf16.gmra.mrb[0].mxu0 %v1583
    %v5563 = vpop.f32.mrb[0].mxu0
    %v5564 = vadd.f32 %v5211, %v5563
    %v5565 = vpop.f32.mrb[0].mxu0
    %v5566 = vadd.f32 %v5213, %v5565
    %v5567 = vpop.f32.mrb[0].mxu0
    %v5568 = vadd.f32 %v5215, %v5567
    %v5569 = vpop.f32.mrb[0].mxu0
    %v5570 = vadd.f32 %v5217, %v5569
    %5571 = vmatprep.mubr.bf16.mxu0 %v1592
    %5572 = vmatmul.mubr.bf16.gmra.mrb[0].mxu0 %v1591
    %v5573 = vpop.f32.mrb[0].mxu0
    %v5574 = vadd.f32 %v5221, %v5573
    %v5575 = vpop.f32.mrb[0].mxu0
    %v5576 = vadd.f32 %v5223, %v5575
    %v5577 = vpop.f32.mrb[0].mxu0
    %v5578 = vadd.f32 %v5225, %v5577
    %v5579 = vpop.f32.mrb[0].mxu0
    %v5580 = vadd.f32 %v5227, %v5579
    %5581 = vmatprep.mubr.bf16.mxu0 %v1600
    %5582 = vmatmul.mubr.bf16.gmra.mrb[0].mxu0 %v1599
    %v5583 = vpop.f32.mrb[0].mxu0
    %v5584 = vadd.f32 %v5231, %v5583
    %v5585 = vpop.f32.mrb[0].mxu0
    %v5586 = vadd.f32 %v5233, %v5585
    %v5587 = vpop.f32.mrb[0].mxu0
    %v5588 = vadd.f32 %v5235, %v5587
    %v5589 = vpop.f32.mrb[0].mxu0
    %v5590 = vadd.f32 %v5237, %v5589
    %5591 = vmatprep.mubr.bf16.mxu0 %v1608
    %5592 = vmatmul.mubr.bf16.gmra.mrb[0].mxu0 %v1607
    %v5593 = vpop.f32.mrb[0].mxu0
    %v5594 = vadd.f32 %v5241, %v5593
    %v5595 = vpop.f32.mrb[0].mxu0
    %v5596 = vadd.f32 %v5243, %v5595
    %v5597 = vpop.f32.mrb[0].mxu0
    %v5598 = vadd.f32 %v5245, %v5597
    %v5599 = vpop.f32.mrb[0].mxu0
    %v5600 = vadd.f32 %v5247, %v5599
    %5601 = vmatprep.mubr.bf16.mxu0 %v1616
    %5602 = vmatmul.mubr.bf16.gmra.mrb[0].mxu0 %v1615
    %v5603 = vpop.f32.mrb[0].mxu0
    %v5604 = vadd.f32 %v5251, %v5603
    %v5605 = vpop.f32.mrb[0].mxu0
    %v5606 = vadd.f32 %v5253, %v5605
    %v5607 = vpop.f32.mrb[0].mxu0
    %v5608 = vadd.f32 %v5255, %v5607
    %v5609 = vpop.f32.mrb[0].mxu0
    %v5610 = vadd.f32 %v5257, %v5609
    %5611 = vmatprep.mubr.bf16.mxu0 %v1624
    %5612 = vmatmul.mubr.bf16.gmra.mrb[0].mxu0 %v1623
    %v5613 = vpop.f32.mrb[0].mxu0
    %v5614 = vadd.f32 %v5261, %v5613
    %v5615 = vpop.f32.mrb[0].mxu0
    %v5616 = vadd.f32 %v5263, %v5615
    %v5617 = vpop.f32.mrb[0].mxu0
    %v5618 = vadd.f32 %v5265, %v5617
    %v5619 = vpop.f32.mrb[0].mxu0
    %v5620 = vadd.f32 %v5267, %v5619
    %5621 = vmatprep.mubr.bf16.mxu0 %v1632
    %5622 = vmatmul.mubr.bf16.gmra.mrb[0].mxu0 %v1631
    %v5623 = vpop.f32.mrb[0].mxu0
    %v5624 = vadd.f32 %v5271, %v5623
    %v5625 = vpop.f32.mrb[0].mxu0
    %v5626 = vadd.f32 %v5273, %v5625
    %v5627 = vpop.f32.mrb[0].mxu0
    %v5628 = vadd.f32 %v5275, %v5627
    %v5629 = vpop.f32.mrb[0].mxu0
    %v5630 = vadd.f32 %v5277, %v5629
    %5631 = vmatprep.mubr.bf16.mxu0 %v1640
    %5632 = vmatmul.mubr.bf16.gmra.mrb[0].mxu0 %v1639
    %v5633 = vpop.f32.mrb[0].mxu0
    %v5634 = vadd.f32 %v5281, %v5633
    %v5635 = vpop.f32.mrb[0].mxu0
    %v5636 = vadd.f32 %v5283, %v5635
    %v5637 = vpop.f32.mrb[0].mxu0
    %v5638 = vadd.f32 %v5285, %v5637
    %v5639 = vpop.f32.mrb[0].mxu0
    %v5640 = vadd.f32 %v5287, %v5639
    %5641 = vmatprep.mubr.bf16.mxu0 %v1648
    %5642 = vmatmul.mubr.bf16.gmra.mrb[0].mxu0 %v1647
    %v5643 = vpop.f32.mrb[0].mxu0
    %v5644 = vadd.f32 %v5291, %v5643
    %v5645 = vpop.f32.mrb[0].mxu0
    %v5646 = vadd.f32 %v5293, %v5645
    %v5647 = vpop.f32.mrb[0].mxu0
    %v5648 = vadd.f32 %v5295, %v5647
    %v5649 = vpop.f32.mrb[0].mxu0
    %v5650 = vadd.f32 %v5297, %v5649
    %5651 = vmatprep.mubr.bf16.mxu0 %v1656
    %5652 = vmatmul.mubr.bf16.gmra.mrb[0].mxu0 %v1655
    %v5653 = vpop.f32.mrb[0].mxu0
    %v5654 = vadd.f32 %v5301, %v5653
    %v5655 = vpop.f32.mrb[0].mxu0
    %v5656 = vadd.f32 %v5303, %v5655
    %v5657 = vpop.f32.mrb[0].mxu0
    %v5658 = vadd.f32 %v5305, %v5657
    %v5659 = vpop.f32.mrb[0].mxu0
    %v5660 = vadd.f32 %v5307, %v5659
    %5661 = vmatprep.mubr.bf16.mxu0 %v1664
    %5662 = vmatmul.mubr.bf16.gmra.mrb[0].mxu0 %v1663
    %v5663 = vpop.f32.mrb[0].mxu0
    %v5664 = vadd.f32 %v5311, %v5663
    %v5665 = vpop.f32.mrb[0].mxu0
    %v5666 = vadd.f32 %v5313, %v5665
    %v5667 = vpop.f32.mrb[0].mxu0
    %v5668 = vadd.f32 %v5315, %v5667
    %v5669 = vpop.f32.mrb[0].mxu0
    %v5670 = vadd.f32 %v5317, %v5669
    %5671 = vmatprep.mubr.bf16.mxu0 %v1672
    %5672 = vmatmul.mubr.bf16.gmra.mrb[0].mxu0 %v1671
    %v5673 = vpop.f32.mrb[0].mxu0
    %v5674 = vadd.f32 %v5321, %v5673
    %v5675 = vpop.f32.mrb[0].mxu0
    %v5676 = vadd.f32 %v5323, %v5675
    %v5677 = vpop.f32.mrb[0].mxu0
    %v5678 = vadd.f32 %v5325, %v5677
    %v5679 = vpop.f32.mrb[0].mxu0
    %v5680 = vadd.f32 %v5327, %v5679
    %5681 = vdwg.mxu0
    %5682 = vmatprep.subr.bf16.mxu0 %v2894
    %5683 = vmatpush1.bf16.msra.mxu0 %v2893
    %5684 = vmatprep.subr.bf16.mxu0 %v2898
    %5685 = vmatpush1.bf16.msra.mxu0 %v2897
    %5686 = vmatprep.subr.bf16.mxu0 %v2902
    %5687 = vmatpush1.bf16.msra.mxu0 %v2901
    %5688 = vmatprep.subr.bf16.mxu0 %v2906
    %5689 = vmatpush1.bf16.msra.mxu0 %v2905
    %5690 = vmatprep.subr.bf16.mxu0 %v2910
    %5691 = vmatpush1.bf16.msra.mxu0 %v2909
    %5692 = vmatprep.subr.bf16.mxu0 %v2914
    %5693 = vmatpush1.bf16.msra.mxu0 %v2913
    %5694 = vmatprep.subr.bf16.mxu0 %v2918
    %5695 = vmatpush1.bf16.msra.mxu0 %v2917
    %5696 = vmatprep.subr.bf16.mxu0 %v2922
    %5697 = vmatpush1.bf16.msra.mxu0 %v2921
    %5698 = vmatprep.subr.bf16.mxu0 %v2926
    %5699 = vmatpush1.bf16.msra.mxu0 %v2925
    %5700 = vmatprep.subr.bf16.mxu0 %v2930
    %5701 = vmatpush1.bf16.msra.mxu0 %v2929
    %5702 = vmatprep.subr.bf16.mxu0 %v2934
    %5703 = vmatpush1.bf16.msra.mxu0 %v2933
    %5704 = vmatprep.subr.bf16.mxu0 %v2938
    %5705 = vmatpush1.bf16.msra.mxu0 %v2937
    %5706 = vmatprep.subr.bf16.mxu0 %v2942
    %5707 = vmatpush1.bf16.msra.mxu0 %v2941
    %5708 = vmatprep.subr.bf16.mxu0 %v2946
    %5709 = vmatpush1.bf16.msra.mxu0 %v2945
    %5710 = vmatprep.subr.bf16.mxu0 %v2950
    %5711 = vmatpush1.bf16.msra.mxu0 %v2949
    %5712 = vmatprep.subr.bf16.mxu0 %v2954
    %5713 = vmatpush1.bf16.msra.mxu0 %v2953
    %5714 = vmatprep.mubr.bf16.mxu0 %v1426
    %5715 = vmatmul.mubr.bf16.gmra.mrb[0].mxu0 %v1425
    %v5716 = vpop.f32.mrb[0].mxu0
    %v5717 = vadd.f32 %v5364, %v5716
    %v5718 = vpop.f32.mrb[0].mxu0
    %v5719 = vadd.f32 %v5366, %v5718
    %v5720 = vpop.f32.mrb[0].mxu0
    %v5721 = vadd.f32 %v5368, %v5720
    %v5722 = vpop.f32.mrb[0].mxu0
    %v5723 = vadd.f32 %v5370, %v5722
    %5724 = vmatprep.mubr.bf16.mxu0 %v1434
    %5725 = vmatmul.mubr.bf16.gmra.mrb[0].mxu0 %v1433
    %v5726 = vpop.f32.mrb[0].mxu0
    %v5727 = vadd.f32 %v5374, %v5726
    %v5728 = vpop.f32.mrb[0].mxu0
    %v5729 = vadd.f32 %v5376, %v5728
    %v5730 = vpop.f32.mrb[0].mxu0
    %v5731 = vadd.f32 %v5378, %v5730
    %v5732 = vpop.f32.mrb[0].mxu0
    %v5733 = vadd.f32 %v5380, %v5732
    %5734 = vmatprep.mubr.bf16.mxu0 %v1442
    %5735 = vmatmul.mubr.bf16.gmra.mrb[0].mxu0 %v1441
    %v5736 = vpop.f32.mrb[0].mxu0
    %v5737 = vadd.f32 %v5384, %v5736
    %v5738 = vpop.f32.mrb[0].mxu0
    %v5739 = vadd.f32 %v5386, %v5738
    %v5740 = vpop.f32.mrb[0].mxu0
    %v5741 = vadd.f32 %v5388, %v5740
    %v5742 = vpop.f32.mrb[0].mxu0
    %v5743 = vadd.f32 %v5390, %v5742
    %5744 = vmatprep.mubr.bf16.mxu0 %v1450
    %5745 = vmatmul.mubr.bf16.gmra.mrb[0].mxu0 %v1449
    %v5746 = vpop.f32.mrb[0].mxu0
    %v5747 = vadd.f32 %v5394, %v5746
    %v5748 = vpop.f32.mrb[0].mxu0
    %v5749 = vadd.f32 %v5396, %v5748
    %v5750 = vpop.f32.mrb[0].mxu0
    %v5751 = vadd.f32 %v5398, %v5750
    %v5752 = vpop.f32.mrb[0].mxu0
    %v5753 = vadd.f32 %v5400, %v5752
    %5754 = vmatprep.mubr.bf16.mxu0 %v1458
    %5755 = vmatmul.mubr.bf16.gmra.mrb[0].mxu0 %v1457
    %v5756 = vpop.f32.mrb[0].mxu0
    %v5757 = vadd.f32 %v5404, %v5756
    %v5758 = vpop.f32.mrb[0].mxu0
    %v5759 = vadd.f32 %v5406, %v5758
    %v5760 = vpop.f32.mrb[0].mxu0
    %v5761 = vadd.f32 %v5408, %v5760
    %v5762 = vpop.f32.mrb[0].mxu0
    %v5763 = vadd.f32 %v5410, %v5762
    %5764 = vmatprep.mubr.bf16.mxu0 %v1466
    %5765 = vmatmul.mubr.bf16.gmra.mrb[0].mxu0 %v1465
    %v5766 = vpop.f32.mrb[0].mxu0
    %v5767 = vadd.f32 %v5414, %v5766
    %v5768 = vpop.f32.mrb[0].mxu0
    %v5769 = vadd.f32 %v5416, %v5768
    %v5770 = vpop.f32.mrb[0].mxu0
    %v5771 = vadd.f32 %v5418, %v5770
    %v5772 = vpop.f32.mrb[0].mxu0
    %v5773 = vadd.f32 %v5420, %v5772
    %5774 = vmatprep.mubr.bf16.mxu0 %v1474
    %5775 = vmatmul.mubr.bf16.gmra.mrb[0].mxu0 %v1473
    %v5776 = vpop.f32.mrb[0].mxu0
    %v5777 = vadd.f32 %v5424, %v5776
    %v5778 = vpop.f32.mrb[0].mxu0
    %v5779 = vadd.f32 %v5426, %v5778
    %v5780 = vpop.f32.mrb[0].mxu0
    %v5781 = vadd.f32 %v5428, %v5780
    %v5782 = vpop.f32.mrb[0].mxu0
    %v5783 = vadd.f32 %v5430, %v5782
    %5784 = vmatprep.mubr.bf16.mxu0 %v1482
    %5785 = vmatmul.mubr.bf16.gmra.mrb[0].mxu0 %v1481
    %v5786 = vpop.f32.mrb[0].mxu0
    %v5787 = vadd.f32 %v5434, %v5786
    %v5788 = vpop.f32.mrb[0].mxu0
    %v5789 = vadd.f32 %v5436, %v5788
    %v5790 = vpop.f32.mrb[0].mxu0
    %v5791 = vadd.f32 %v5438, %v5790
    %v5792 = vpop.f32.mrb[0].mxu0
    %v5793 = vadd.f32 %v5440, %v5792
    %5794 = vmatprep.mubr.bf16.mxu0 %v1490
    %5795 = vmatmul.mubr.bf16.gmra.mrb[0].mxu0 %v1489
    %v5796 = vpop.f32.mrb[0].mxu0
    %v5797 = vadd.f32 %v5444, %v5796
    %v5798 = vpop.f32.mrb[0].mxu0
    %v5799 = vadd.f32 %v5446, %v5798
    %v5800 = vpop.f32.mrb[0].mxu0
    %v5801 = vadd.f32 %v5448, %v5800
    %v5802 = vpop.f32.mrb[0].mxu0
    %v5803 = vadd.f32 %v5450, %v5802
    %5804 = vmatprep.mubr.bf16.mxu0 %v1498
    %5805 = vmatmul.mubr.bf16.gmra.mrb[0].mxu0 %v1497
    %v5806 = vpop.f32.mrb[0].mxu0
    %v5807 = vadd.f32 %v5454, %v5806
    %v5808 = vpop.f32.mrb[0].mxu0
    %v5809 = vadd.f32 %v5456, %v5808
    %v5810 = vpop.f32.mrb[0].mxu0
    %v5811 = vadd.f32 %v5458, %v5810
    %v5812 = vpop.f32.mrb[0].mxu0
    %v5813 = vadd.f32 %v5460, %v5812
    %5814 = vmatprep.mubr.bf16.mxu0 %v1506
    %5815 = vmatmul.mubr.bf16.gmra.mrb[0].mxu0 %v1505
    %v5816 = vpop.f32.mrb[0].mxu0
    %v5817 = vadd.f32 %v5464, %v5816
    %v5818 = vpop.f32.mrb[0].mxu0
    %v5819 = vadd.f32 %v5466, %v5818
    %v5820 = vpop.f32.mrb[0].mxu0
    %v5821 = vadd.f32 %v5468, %v5820
    %v5822 = vpop.f32.mrb[0].mxu0
    %v5823 = vadd.f32 %v5470, %v5822
    %5824 = vmatprep.mubr.bf16.mxu0 %v1514
    %5825 = vmatmul.mubr.bf16.gmra.mrb[0].mxu0 %v1513
    %v5826 = vpop.f32.mrb[0].mxu0
    %v5827 = vadd.f32 %v5474, %v5826
    %v5828 = vpop.f32.mrb[0].mxu0
    %v5829 = vadd.f32 %v5476, %v5828
    %v5830 = vpop.f32.mrb[0].mxu0
    %v5831 = vadd.f32 %v5478, %v5830
    %v5832 = vpop.f32.mrb[0].mxu0
    %v5833 = vadd.f32 %v5480, %v5832
    %5834 = vmatprep.mubr.bf16.mxu0 %v1522
    %5835 = vmatmul.mubr.bf16.gmra.mrb[0].mxu0 %v1521
    %v5836 = vpop.f32.mrb[0].mxu0
    %v5837 = vadd.f32 %v5484, %v5836
    %v5838 = vpop.f32.mrb[0].mxu0
    %v5839 = vadd.f32 %v5486, %v5838
    %v5840 = vpop.f32.mrb[0].mxu0
    %v5841 = vadd.f32 %v5488, %v5840
    %v5842 = vpop.f32.mrb[0].mxu0
    %v5843 = vadd.f32 %v5490, %v5842
    %5844 = vmatprep.mubr.bf16.mxu0 %v1530
    %5845 = vmatmul.mubr.bf16.gmra.mrb[0].mxu0 %v1529
    %v5846 = vpop.f32.mrb[0].mxu0
    %v5847 = vadd.f32 %v5494, %v5846
    %v5848 = vpop.f32.mrb[0].mxu0
    %v5849 = vadd.f32 %v5496, %v5848
    %v5850 = vpop.f32.mrb[0].mxu0
    %v5851 = vadd.f32 %v5498, %v5850
    %v5852 = vpop.f32.mrb[0].mxu0
    %v5853 = vadd.f32 %v5500, %v5852
    %5854 = vmatprep.mubr.bf16.mxu0 %v1538
    %5855 = vmatmul.mubr.bf16.gmra.mrb[0].mxu0 %v1537
    %v5856 = vpop.f32.mrb[0].mxu0
    %v5857 = vadd.f32 %v5504, %v5856
    %v5858 = vpop.f32.mrb[0].mxu0
    %v5859 = vadd.f32 %v5506, %v5858
    %v5860 = vpop.f32.mrb[0].mxu0
    %v5861 = vadd.f32 %v5508, %v5860
    %v5862 = vpop.f32.mrb[0].mxu0
    %v5863 = vadd.f32 %v5510, %v5862
    %5864 = vmatprep.mubr.bf16.mxu0 %v1546
    %5865 = vmatmul.mubr.bf16.gmra.mrb[0].mxu0 %v1545
    %v5866 = vpop.f32.mrb[0].mxu0
    %v5867 = vadd.f32 %v5514, %v5866
    %v5868 = vpop.f32.mrb[0].mxu0
    %v5869 = vadd.f32 %v5516, %v5868
    %v5870 = vpop.f32.mrb[0].mxu0
    %v5871 = vadd.f32 %v5518, %v5870
    %v5872 = vpop.f32.mrb[0].mxu0
    %v5873 = vadd.f32 %v5520, %v5872
    %5874 = vmatprep.mubr.bf16.mxu0 %v1554
    %5875 = vmatmul.mubr.bf16.gmra.mrb[0].mxu0 %v1553
    %v5876 = vpop.f32.mrb[0].mxu0
    %v5877 = vadd.f32 %v5524, %v5876
    %v5878 = vpop.f32.mrb[0].mxu0
    %v5879 = vadd.f32 %v5526, %v5878
    %v5880 = vpop.f32.mrb[0].mxu0
    %v5881 = vadd.f32 %v5528, %v5880
    %v5882 = vpop.f32.mrb[0].mxu0
    %v5883 = vadd.f32 %v5530, %v5882
    %5884 = vmatprep.mubr.bf16.mxu0 %v1562
    %5885 = vmatmul.mubr.bf16.gmra.mrb[0].mxu0 %v1561
    %v5886 = vpop.f32.mrb[0].mxu0
    %v5887 = vadd.f32 %v5534, %v5886
    %v5888 = vpop.f32.mrb[0].mxu0
    %v5889 = vadd.f32 %v5536, %v5888
    %v5890 = vpop.f32.mrb[0].mxu0
    %v5891 = vadd.f32 %v5538, %v5890
    %v5892 = vpop.f32.mrb[0].mxu0
    %v5893 = vadd.f32 %v5540, %v5892
    %5894 = vmatprep.mubr.bf16.mxu0 %v1570
    %5895 = vmatmul.mubr.bf16.gmra.mrb[0].mxu0 %v1569
    %v5896 = vpop.f32.mrb[0].mxu0
    %v5897 = vadd.f32 %v5544, %v5896
    %v5898 = vpop.f32.mrb[0].mxu0
    %v5899 = vadd.f32 %v5546, %v5898
    %v5900 = vpop.f32.mrb[0].mxu0
    %v5901 = vadd.f32 %v5548, %v5900
    %v5902 = vpop.f32.mrb[0].mxu0
    %v5903 = vadd.f32 %v5550, %v5902
    %5904 = vmatprep.mubr.bf16.mxu0 %v1578
    %5905 = vmatmul.mubr.bf16.gmra.mrb[0].mxu0 %v1577
    %v5906 = vpop.f32.mrb[0].mxu0
    %v5907 = vadd.f32 %v5554, %v5906
    %v5908 = vpop.f32.mrb[0].mxu0
    %v5909 = vadd.f32 %v5556, %v5908
    %v5910 = vpop.f32.mrb[0].mxu0
    %v5911 = vadd.f32 %v5558, %v5910
    %v5912 = vpop.f32.mrb[0].mxu0
    %v5913 = vadd.f32 %v5560, %v5912
    %5914 = vmatprep.mubr.bf16.mxu0 %v1586
    %5915 = vmatmul.mubr.bf16.gmra.mrb[0].mxu0 %v1585
    %v5916 = vpop.f32.mrb[0].mxu0
    %v5917 = vadd.f32 %v5564, %v5916
    %v5918 = vpop.f32.mrb[0].mxu0
    %v5919 = vadd.f32 %v5566, %v5918
    %v5920 = vpop.f32.mrb[0].mxu0
    %v5921 = vadd.f32 %v5568, %v5920
    %v5922 = vpop.f32.mrb[0].mxu0
    %v5923 = vadd.f32 %v5570, %v5922
    %5924 = vmatprep.mubr.bf16.mxu0 %v1594
    %5925 = vmatmul.mubr.bf16.gmra.mrb[0].mxu0 %v1593
    %v5926 = vpop.f32.mrb[0].mxu0
    %v5927 = vadd.f32 %v5574, %v5926
    %v5928 = vpop.f32.mrb[0].mxu0
    %v5929 = vadd.f32 %v5576, %v5928
    %v5930 = vpop.f32.mrb[0].mxu0
    %v5931 = vadd.f32 %v5578, %v5930
    %v5932 = vpop.f32.mrb[0].mxu0
    %v5933 = vadd.f32 %v5580, %v5932
    %5934 = vmatprep.mubr.bf16.mxu0 %v1602
    %5935 = vmatmul.mubr.bf16.gmra.mrb[0].mxu0 %v1601
    %v5936 = vpop.f32.mrb[0].mxu0
    %v5937 = vadd.f32 %v5584, %v5936
    %v5938 = vpop.f32.mrb[0].mxu0
    %v5939 = vadd.f32 %v5586, %v5938
    %v5940 = vpop.f32.mrb[0].mxu0
    %v5941 = vadd.f32 %v5588, %v5940
    %v5942 = vpop.f32.mrb[0].mxu0
    %v5943 = vadd.f32 %v5590, %v5942
    %5944 = vmatprep.mubr.bf16.mxu0 %v1610
    %5945 = vmatmul.mubr.bf16.gmra.mrb[0].mxu0 %v1609
    %v5946 = vpop.f32.mrb[0].mxu0
    %v5947 = vadd.f32 %v5594, %v5946
    %v5948 = vpop.f32.mrb[0].mxu0
    %v5949 = vadd.f32 %v5596, %v5948
    %v5950 = vpop.f32.mrb[0].mxu0
    %v5951 = vadd.f32 %v5598, %v5950
    %v5952 = vpop.f32.mrb[0].mxu0
    %v5953 = vadd.f32 %v5600, %v5952
    %5954 = vmatprep.mubr.bf16.mxu0 %v1618
    %5955 = vmatmul.mubr.bf16.gmra.mrb[0].mxu0 %v1617
    %v5956 = vpop.f32.mrb[0].mxu0
    %v5957 = vadd.f32 %v5604, %v5956
    %v5958 = vpop.f32.mrb[0].mxu0
    %v5959 = vadd.f32 %v5606, %v5958
    %v5960 = vpop.f32.mrb[0].mxu0
    %v5961 = vadd.f32 %v5608, %v5960
    %v5962 = vpop.f32.mrb[0].mxu0
    %v5963 = vadd.f32 %v5610, %v5962
    %5964 = vmatprep.mubr.bf16.mxu0 %v1626
    %5965 = vmatmul.mubr.bf16.gmra.mrb[0].mxu0 %v1625
    %v5966 = vpop.f32.mrb[0].mxu0
    %v5967 = vadd.f32 %v5614, %v5966
    %v5968 = vpop.f32.mrb[0].mxu0
    %v5969 = vadd.f32 %v5616, %v5968
    %v5970 = vpop.f32.mrb[0].mxu0
    %v5971 = vadd.f32 %v5618, %v5970
    %v5972 = vpop.f32.mrb[0].mxu0
    %v5973 = vadd.f32 %v5620, %v5972
    %5974 = vmatprep.mubr.bf16.mxu0 %v1634
    %5975 = vmatmul.mubr.bf16.gmra.mrb[0].mxu0 %v1633
    %v5976 = vpop.f32.mrb[0].mxu0
    %v5977 = vadd.f32 %v5624, %v5976
    %v5978 = vpop.f32.mrb[0].mxu0
    %v5979 = vadd.f32 %v5626, %v5978
    %v5980 = vpop.f32.mrb[0].mxu0
    %v5981 = vadd.f32 %v5628, %v5980
    %v5982 = vpop.f32.mrb[0].mxu0
    %v5983 = vadd.f32 %v5630, %v5982
    %5984 = vmatprep.mubr.bf16.mxu0 %v1642
    %5985 = vmatmul.mubr.bf16.gmra.mrb[0].mxu0 %v1641
    %v5986 = vpop.f32.mrb[0].mxu0
    %v5987 = vadd.f32 %v5634, %v5986
    %v5988 = vpop.f32.mrb[0].mxu0
    %v5989 = vadd.f32 %v5636, %v5988
    %v5990 = vpop.f32.mrb[0].mxu0
    %v5991 = vadd.f32 %v5638, %v5990
    %v5992 = vpop.f32.mrb[0].mxu0
    %v5993 = vadd.f32 %v5640, %v5992
    %5994 = vmatprep.mubr.bf16.mxu0 %v1650
    %5995 = vmatmul.mubr.bf16.gmra.mrb[0].mxu0 %v1649
    %v5996 = vpop.f32.mrb[0].mxu0
    %v5997 = vadd.f32 %v5644, %v5996
    %v5998 = vpop.f32.mrb[0].mxu0
    %v5999 = vadd.f32 %v5646, %v5998
    %v6000 = vpop.f32.mrb[0].mxu0
    %v6001 = vadd.f32 %v5648, %v6000
    %v6002 = vpop.f32.mrb[0].mxu0
    %v6003 = vadd.f32 %v5650, %v6002
    %6004 = vmatprep.mubr.bf16.mxu0 %v1658
    %6005 = vmatmul.mubr.bf16.gmra.mrb[0].mxu0 %v1657
    %v6006 = vpop.f32.mrb[0].mxu0
    %v6007 = vadd.f32 %v5654, %v6006
    %v6008 = vpop.f32.mrb[0].mxu0
    %v6009 = vadd.f32 %v5656, %v6008
    %v6010 = vpop.f32.mrb[0].mxu0
    %v6011 = vadd.f32 %v5658, %v6010
    %v6012 = vpop.f32.mrb[0].mxu0
    %v6013 = vadd.f32 %v5660, %v6012
    %6014 = vmatprep.mubr.bf16.mxu0 %v1666
    %6015 = vmatmul.mubr.bf16.gmra.mrb[0].mxu0 %v1665
    %v6016 = vpop.f32.mrb[0].mxu0
    %v6017 = vadd.f32 %v5664, %v6016
    %v6018 = vpop.f32.mrb[0].mxu0
    %v6019 = vadd.f32 %v5666, %v6018
    %v6020 = vpop.f32.mrb[0].mxu0
    %v6021 = vadd.f32 %v5668, %v6020
    %v6022 = vpop.f32.mrb[0].mxu0
    %v6023 = vadd.f32 %v5670, %v6022
    %6024 = vmatprep.mubr.bf16.mxu0 %v1674
    %6025 = vmatmul.mubr.bf16.gmra.mrb[0].mxu0 %v1673
    %v6026 = vpop.f32.mrb[0].mxu0
    %v6027 = vadd.f32 %v5674, %v6026
    %v6028 = vpop.f32.mrb[0].mxu0
    %v6029 = vadd.f32 %v5676, %v6028
    %v6030 = vpop.f32.mrb[0].mxu0
    %v6031 = vadd.f32 %v5678, %v6030
    %v6032 = vpop.f32.mrb[0].mxu0
    %v6033 = vadd.f32 %v5680, %v6032
    %6034 = vdwg.mxu0
    %v6035 = vmax.f32 %v4305, 0.0
    %v6036 = vmax.f32 %v4307, 0.0
    %v6037 = vmax.f32 %v5717, 0.0
    %v6038 = vmax.f32 %v5719, 0.0
    %v6039 = vmax.f32 %v4309, 0.0
    %v6040 = vmax.f32 %v4311, 0.0
    %v6041 = vmax.f32 %v5721, 0.0
    %v6042 = vmax.f32 %v5723, 0.0
    %v6043 = vmax.f32 %v4315, 0.0
    %v6044 = vmax.f32 %v4317, 0.0
    %v6045 = vmax.f32 %v5727, 0.0
    %v6046 = vmax.f32 %v5729, 0.0
    %v6047 = vmax.f32 %v4319, 0.0
    %v6048 = vmax.f32 %v4321, 0.0
    %v6049 = vmax.f32 %v5731, 0.0
    %v6050 = vmax.f32 %v5733, 0.0
    %v6051 = vmax.f32 %v4325, 0.0
    %v6052 = vmax.f32 %v4327, 0.0
    %v6053 = vmax.f32 %v5737, 0.0
    %v6054 = vmax.f32 %v5739, 0.0
    %v6055 = vmax.f32 %v4329, 0.0
    %v6056 = vmax.f32 %v4331, 0.0
    %v6057 = vmax.f32 %v5741, 0.0
    %v6058 = vmax.f32 %v5743, 0.0
    %v6059 = vmax.f32 %v4335, 0.0
    %v6060 = vmax.f32 %v4337, 0.0
    %v6061 = vmax.f32 %v5747, 0.0
    %v6062 = vmax.f32 %v5749, 0.0
    %v6063 = vmax.f32 %v4339, 0.0
    %v6064 = vmax.f32 %v4341, 0.0
    %v6065 = vmax.f32 %v5751, 0.0
    %v6066 = vmax.f32 %v5753, 0.0
    %v6067 = vmax.f32 %v4345, 0.0
    %v6068 = vmax.f32 %v4347, 0.0
    %v6069 = vmax.f32 %v5757, 0.0
    %v6070 = vmax.f32 %v5759, 0.0
    %v6071 = vmax.f32 %v4349, 0.0
    %v6072 = vmax.f32 %v4351, 0.0
    %v6073 = vmax.f32 %v5761, 0.0
    %v6074 = vmax.f32 %v5763, 0.0
    %v6075 = vmax.f32 %v4355, 0.0
    %v6076 = vmax.f32 %v4357, 0.0
    %v6077 = vmax.f32 %v5767, 0.0
    %v6078 = vmax.f32 %v5769, 0.0
    %v6079 = vmax.f32 %v4359, 0.0
    %v6080 = vmax.f32 %v4361, 0.0
    %v6081 = vmax.f32 %v5771, 0.0
    %v6082 = vmax.f32 %v5773, 0.0
    %v6083 = vmax.f32 %v4365, 0.0
    %v6084 = vmax.f32 %v4367, 0.0
    %v6085 = vmax.f32 %v5777, 0.0
    %v6086 = vmax.f32 %v5779, 0.0
    %v6087 = vmax.f32 %v4369, 0.0
    %v6088 = vmax.f32 %v4371, 0.0
    %v6089 = vmax.f32 %v5781, 0.0
    %v6090 = vmax.f32 %v5783, 0.0
    %v6091 = vmax.f32 %v4375, 0.0
    %v6092 = vmax.f32 %v4377, 0.0
    %v6093 = vmax.f32 %v5787, 0.0
    %v6094 = vmax.f32 %v5789, 0.0
    %v6095 = vmax.f32 %v4379, 0.0
    %v6096 = vmax.f32 %v4381, 0.0
    %v6097 = vmax.f32 %v5791, 0.0
    %v6098 = vmax.f32 %v5793, 0.0
    %v6099 = vmax.f32 %v4385, 0.0
    %v6100 = vmax.f32 %v4387, 0.0
    %v6101 = vmax.f32 %v5797, 0.0
    %v6102 = vmax.f32 %v5799, 0.0
    %v6103 = vmax.f32 %v4389, 0.0
    %v6104 = vmax.f32 %v4391, 0.0
    %v6105 = vmax.f32 %v5801, 0.0
    %v6106 = vmax.f32 %v5803, 0.0
    %v6107 = vmax.f32 %v4395, 0.0
    %v6108 = vmax.f32 %v4397, 0.0
    %v6109 = vmax.f32 %v5807, 0.0
    %v6110 = vmax.f32 %v5809, 0.0
    %v6111 = vmax.f32 %v4399, 0.0
    %v6112 = vmax.f32 %v4401, 0.0
    %v6113 = vmax.f32 %v5811, 0.0
    %v6114 = vmax.f32 %v5813, 0.0
    %v6115 = vmax.f32 %v4405, 0.0
    %v6116 = vmax.f32 %v4407, 0.0
    %v6117 = vmax.f32 %v5817, 0.0
    %v6118 = vmax.f32 %v5819, 0.0
    %v6119 = vmax.f32 %v4409, 0.0
    %v6120 = vmax.f32 %v4411, 0.0
    %v6121 = vmax.f32 %v5821, 0.0
    %v6122 = vmax.f32 %v5823, 0.0
    %v6123 = vmax.f32 %v4415, 0.0
    %v6124 = vmax.f32 %v4417, 0.0
    %v6125 = vmax.f32 %v5827, 0.0
    %v6126 = vmax.f32 %v5829, 0.0
    %v6127 = vmax.f32 %v4419, 0.0
    %v6128 = vmax.f32 %v4421, 0.0
    %v6129 = vmax.f32 %v5831, 0.0
    %v6130 = vmax.f32 %v5833, 0.0
    %v6131 = vmax.f32 %v4425, 0.0
    %v6132 = vmax.f32 %v4427, 0.0
    %v6133 = vmax.f32 %v5837, 0.0
    %v6134 = vmax.f32 %v5839, 0.0
    %v6135 = vmax.f32 %v4429, 0.0
    %v6136 = vmax.f32 %v4431, 0.0
    %v6137 = vmax.f32 %v5841, 0.0
    %v6138 = vmax.f32 %v5843, 0.0
    %v6139 = vmax.f32 %v4435, 0.0
    %v6140 = vmax.f32 %v4437, 0.0
    %v6141 = vmax.f32 %v5847, 0.0
    %v6142 = vmax.f32 %v5849, 0.0
    %v6143 = vmax.f32 %v4439, 0.0
    %v6144 = vmax.f32 %v4441, 0.0
    %v6145 = vmax.f32 %v5851, 0.0
    %v6146 = vmax.f32 %v5853, 0.0
    %v6147 = vmax.f32 %v4445, 0.0
    %v6148 = vmax.f32 %v4447, 0.0
    %v6149 = vmax.f32 %v5857, 0.0
    %v6150 = vmax.f32 %v5859, 0.0
    %v6151 = vmax.f32 %v4449, 0.0
    %v6152 = vmax.f32 %v4451, 0.0
    %v6153 = vmax.f32 %v5861, 0.0
    %v6154 = vmax.f32 %v5863, 0.0
    %v6155 = vmax.f32 %v4455, 0.0
    %v6156 = vmax.f32 %v4457, 0.0
    %v6157 = vmax.f32 %v5867, 0.0
    %v6158 = vmax.f32 %v5869, 0.0
    %v6159 = vmax.f32 %v4459, 0.0
    %v6160 = vmax.f32 %v4461, 0.0
    %v6161 = vmax.f32 %v5871, 0.0
    %v6162 = vmax.f32 %v5873, 0.0
    %v6163 = vmax.f32 %v4465, 0.0
    %v6164 = vmax.f32 %v4467, 0.0
    %v6165 = vmax.f32 %v5877, 0.0
    %v6166 = vmax.f32 %v5879, 0.0
    %v6167 = vmax.f32 %v4469, 0.0
    %v6168 = vmax.f32 %v4471, 0.0
    %v6169 = vmax.f32 %v5881, 0.0
    %v6170 = vmax.f32 %v5883, 0.0
    %v6171 = vmax.f32 %v4475, 0.0
    %v6172 = vmax.f32 %v4477, 0.0
    %v6173 = vmax.f32 %v5887, 0.0
    %v6174 = vmax.f32 %v5889, 0.0
    %v6175 = vmax.f32 %v4479, 0.0
    %v6176 = vmax.f32 %v4481, 0.0
    %v6177 = vmax.f32 %v5891, 0.0
    %v6178 = vmax.f32 %v5893, 0.0
    %v6179 = vmax.f32 %v4485, 0.0
    %v6180 = vmax.f32 %v4487, 0.0
    %v6181 = vmax.f32 %v5897, 0.0
    %v6182 = vmax.f32 %v5899, 0.0
    %v6183 = vmax.f32 %v4489, 0.0
    %v6184 = vmax.f32 %v4491, 0.0
    %v6185 = vmax.f32 %v5901, 0.0
    %v6186 = vmax.f32 %v5903, 0.0
    %v6187 = vmax.f32 %v4495, 0.0
    %v6188 = vmax.f32 %v4497, 0.0
    %v6189 = vmax.f32 %v5907, 0.0
    %v6190 = vmax.f32 %v5909, 0.0
    %v6191 = vmax.f32 %v4499, 0.0
    %v6192 = vmax.f32 %v4501, 0.0
    %v6193 = vmax.f32 %v5911, 0.0
    %v6194 = vmax.f32 %v5913, 0.0
    %v6195 = vmax.f32 %v4505, 0.0
    %v6196 = vmax.f32 %v4507, 0.0
    %v6197 = vmax.f32 %v5917, 0.0
    %v6198 = vmax.f32 %v5919, 0.0
    %v6199 = vmax.f32 %v4509, 0.0
    %v6200 = vmax.f32 %v4511, 0.0
    %v6201 = vmax.f32 %v5921, 0.0
    %v6202 = vmax.f32 %v5923, 0.0
    %v6203 = vmax.f32 %v4515, 0.0
    %v6204 = vmax.f32 %v4517, 0.0
    %v6205 = vmax.f32 %v5927, 0.0
    %v6206 = vmax.f32 %v5929, 0.0
    %v6207 = vmax.f32 %v4519, 0.0
    %v6208 = vmax.f32 %v4521, 0.0
    %v6209 = vmax.f32 %v5931, 0.0
    %v6210 = vmax.f32 %v5933, 0.0
    %v6211 = vmax.f32 %v4525, 0.0
    %v6212 = vmax.f32 %v4527, 0.0
    %v6213 = vmax.f32 %v5937, 0.0
    %v6214 = vmax.f32 %v5939, 0.0
    %v6215 = vmax.f32 %v4529, 0.0
    %v6216 = vmax.f32 %v4531, 0.0
    %v6217 = vmax.f32 %v5941, 0.0
    %v6218 = vmax.f32 %v5943, 0.0
    %v6219 = vmax.f32 %v4535, 0.0
    %v6220 = vmax.f32 %v4537, 0.0
    %v6221 = vmax.f32 %v5947, 0.0
    %v6222 = vmax.f32 %v5949, 0.0
    %v6223 = vmax.f32 %v4539, 0.0
    %v6224 = vmax.f32 %v4541, 0.0
    %v6225 = vmax.f32 %v5951, 0.0
    %v6226 = vmax.f32 %v5953, 0.0
    %v6227 = vmax.f32 %v4545, 0.0
    %v6228 = vmax.f32 %v4547, 0.0
    %v6229 = vmax.f32 %v5957, 0.0
    %v6230 = vmax.f32 %v5959, 0.0
    %v6231 = vmax.f32 %v4549, 0.0
    %v6232 = vmax.f32 %v4551, 0.0
    %v6233 = vmax.f32 %v5961, 0.0
    %v6234 = vmax.f32 %v5963, 0.0
    %v6235 = vmax.f32 %v4555, 0.0
    %v6236 = vmax.f32 %v4557, 0.0
    %v6237 = vmax.f32 %v5967, 0.0
    %v6238 = vmax.f32 %v5969, 0.0
    %v6239 = vmax.f32 %v4559, 0.0
    %v6240 = vmax.f32 %v4561, 0.0
    %v6241 = vmax.f32 %v5971, 0.0
    %v6242 = vmax.f32 %v5973, 0.0
    %v6243 = vmax.f32 %v4565, 0.0
    %v6244 = vmax.f32 %v4567, 0.0
    %v6245 = vmax.f32 %v5977, 0.0
    %v6246 = vmax.f32 %v5979, 0.0
    %v6247 = vmax.f32 %v4569, 0.0
    %v6248 = vmax.f32 %v4571, 0.0
    %v6249 = vmax.f32 %v5981, 0.0
    %v6250 = vmax.f32 %v5983, 0.0
    %v6251 = vmax.f32 %v4575, 0.0
    %v6252 = vmax.f32 %v4577, 0.0
    %v6253 = vmax.f32 %v5987, 0.0
    %v6254 = vmax.f32 %v5989, 0.0
    %v6255 = vmax.f32 %v4579, 0.0
    %v6256 = vmax.f32 %v4581, 0.0
    %v6257 = vmax.f32 %v5991, 0.0
    %v6258 = vmax.f32 %v5993, 0.0
    %v6259 = vmax.f32 %v4585, 0.0
    %v6260 = vmax.f32 %v4587, 0.0
    %v6261 = vmax.f32 %v5997, 0.0
    %v6262 = vmax.f32 %v5999, 0.0
    %v6263 = vmax.f32 %v4589, 0.0
    %v6264 = vmax.f32 %v4591, 0.0
    %v6265 = vmax.f32 %v6001, 0.0
    %v6266 = vmax.f32 %v6003, 0.0
    %v6267 = vmax.f32 %v4595, 0.0
    %v6268 = vmax.f32 %v4597, 0.0
    %v6269 = vmax.f32 %v6007, 0.0
    %v6270 = vmax.f32 %v6009, 0.0
    %v6271 = vmax.f32 %v4599, 0.0
    %v6272 = vmax.f32 %v4601, 0.0
    %v6273 = vmax.f32 %v6011, 0.0
    %v6274 = vmax.f32 %v6013, 0.0
    %v6275 = vmax.f32 %v4605, 0.0
    %v6276 = vmax.f32 %v4607, 0.0
    %v6277 = vmax.f32 %v6017, 0.0
    %v6278 = vmax.f32 %v6019, 0.0
    %v6279 = vmax.f32 %v4609, 0.0
    %v6280 = vmax.f32 %v4611, 0.0
    %v6281 = vmax.f32 %v6021, 0.0
    %v6282 = vmax.f32 %v6023, 0.0
    %v6283 = vmax.f32 %v4615, 0.0
    %v6284 = vmax.f32 %v4617, 0.0
    %v6285 = vmax.f32 %v6027, 0.0
    %v6286 = vmax.f32 %v6029, 0.0
    %v6287 = vmax.f32 %v4619, 0.0
    %v6288 = vmax.f32 %v4621, 0.0
    %v6289 = vmax.f32 %v6031, 0.0
    %v6290 = vmax.f32 %v6033, 0.0
    %v6291 = vlaneseq
    %v6292 = vshrl.u32 %v6291, 7
    %v6293 = vadd.s32 %v6292, 8
    %v6294 = vadd.s32 %v6292, 16
    %v6295 = vadd.s32 %v6292, 24
    %v6296 = vadd.s32 %v6292, 32
    %v6297 = vadd.s32 %v6292, 40
    %v6298 = vadd.s32 %v6292, 48
    %v6299 = vadd.s32 %v6292, 56
    %v6300 = vadd.s32 %v6292, 64
    %v6301 = vadd.s32 %v6292, 72
    %v6302 = vadd.s32 %v6292, 80
    %v6303 = vadd.s32 %v6292, 88
    %v6304 = vadd.s32 %v6292, 96
    %v6305 = vadd.s32 %v6292, 104
    %v6306 = vadd.s32 %v6292, 112
    %v6307 = vadd.s32 %v6292, 120
    %v6308 = vadd.s32 %v6292, 128
    %v6309 = vadd.s32 %v6292, 136
    %v6310 = vadd.s32 %v6292, 144
    %v6311 = vadd.s32 %v6292, 152
    %v6312 = vadd.s32 %v6292, 160
    %v6313 = vadd.s32 %v6292, 168
    %v6314 = vadd.s32 %v6292, 176
    %v6315 = vadd.s32 %v6292, 184
    %v6316 = vadd.s32 %v6292, 192
    %v6317 = vadd.s32 %v6292, 200
    %v6318 = vadd.s32 %v6292, 208
    %v6319 = vadd.s32 %v6292, 216
    %v6320 = vadd.s32 %v6292, 224
    %v6321 = vadd.s32 %v6292, 232
    %v6322 = vadd.s32 %v6292, 240
    %v6323 = vadd.s32 %v6292, 248
    %v6324 = vadd.s32 %v6292, 256
    %v6325 = vadd.s32 %v6292, 264
    %v6326 = vadd.s32 %v6292, 272
    %v6327 = vadd.s32 %v6292, 280
    %v6328 = vadd.s32 %v6292, 288
    %v6329 = vadd.s32 %v6292, 296
    %v6330 = vadd.s32 %v6292, 304
    %v6331 = vadd.s32 %v6292, 312
    %v6332 = vadd.s32 %v6292, 320
    %v6333 = vadd.s32 %v6292, 328
    %v6334 = vadd.s32 %v6292, 336
    %v6335 = vadd.s32 %v6292, 344
    %v6336 = vadd.s32 %v6292, 352
    %v6337 = vadd.s32 %v6292, 360
    %v6338 = vadd.s32 %v6292, 368
    %v6339 = vadd.s32 %v6292, 376
    %v6340 = vadd.s32 %v6292, 384
    %v6341 = vadd.s32 %v6292, 392
    %v6342 = vadd.s32 %v6292, 400
    %v6343 = vadd.s32 %v6292, 408
    %v6344 = vadd.s32 %v6292, 416
    %v6345 = vadd.s32 %v6292, 424
    %v6346 = vadd.s32 %v6292, 432
    %v6347 = vadd.s32 %v6292, 440
    %v6348 = vadd.s32 %v6292, 448
    %v6349 = vadd.s32 %v6292, 456
    %v6350 = vadd.s32 %v6292, 464
    %v6351 = vadd.s32 %v6292, 472
    %v6352 = vadd.s32 %v6292, 480
    %v6353 = vadd.s32 %v6292, 488
    %v6354 = vadd.s32 %v6292, 496
    %v6355 = vadd.s32 %v6292, 504
    %s6356 = smul.u32 0, 512
    %v6357 = vstv %s6356
    %v6358 = vadd.s32 %v6292, %v6357
    %v6359 = vadd.s32 %v6293, %v6357
    %v6360 = vadd.s32 %v6294, %v6357
    %v6361 = vadd.s32 %v6295, %v6357
    %v6362 = vadd.s32 %v6296, %v6357
    %v6363 = vadd.s32 %v6297, %v6357
    %v6364 = vadd.s32 %v6298, %v6357
    %v6365 = vadd.s32 %v6299, %v6357
    %v6366 = vadd.s32 %v6300, %v6357
    %v6367 = vadd.s32 %v6301, %v6357
    %v6368 = vadd.s32 %v6302, %v6357
    %v6369 = vadd.s32 %v6303, %v6357
    %v6370 = vadd.s32 %v6304, %v6357
    %v6371 = vadd.s32 %v6305, %v6357
    %v6372 = vadd.s32 %v6306, %v6357
    %v6373 = vadd.s32 %v6307, %v6357
    %v6374 = vadd.s32 %v6308, %v6357
    %v6375 = vadd.s32 %v6309, %v6357
    %v6376 = vadd.s32 %v6310, %v6357
    %v6377 = vadd.s32 %v6311, %v6357
    %v6378 = vadd.s32 %v6312, %v6357
    %v6379 = vadd.s32 %v6313, %v6357
    %v6380 = vadd.s32 %v6314, %v6357
    %v6381 = vadd.s32 %v6315, %v6357
    %v6382 = vadd.s32 %v6316, %v6357
    %v6383 = vadd.s32 %v6317, %v6357
    %v6384 = vadd.s32 %v6318, %v6357
    %v6385 = vadd.s32 %v6319, %v6357
    %v6386 = vadd.s32 %v6320, %v6357
    %v6387 = vadd.s32 %v6321, %v6357
    %v6388 = vadd.s32 %v6322, %v6357
    %v6389 = vadd.s32 %v6323, %v6357
    %v6390 = vadd.s32 %v6324, %v6357
    %v6391 = vadd.s32 %v6325, %v6357
    %v6392 = vadd.s32 %v6326, %v6357
    %v6393 = vadd.s32 %v6327, %v6357
    %v6394 = vadd.s32 %v6328, %v6357
    %v6395 = vadd.s32 %v6329, %v6357
    %v6396 = vadd.s32 %v6330, %v6357
    %v6397 = vadd.s32 %v6331, %v6357
    %v6398 = vadd.s32 %v6332, %v6357
    %v6399 = vadd.s32 %v6333, %v6357
    %v6400 = vadd.s32 %v6334, %v6357
    %v6401 = vadd.s32 %v6335, %v6357
    %v6402 = vadd.s32 %v6336, %v6357
    %v6403 = vadd.s32 %v6337, %v6357
    %v6404 = vadd.s32 %v6338, %v6357
    %v6405 = vadd.s32 %v6339, %v6357
    %v6406 = vadd.s32 %v6340, %v6357
    %v6407 = vadd.s32 %v6341, %v6357
    %v6408 = vadd.s32 %v6342, %v6357
    %v6409 = vadd.s32 %v6343, %v6357
    %v6410 = vadd.s32 %v6344, %v6357
    %v6411 = vadd.s32 %v6345, %v6357
    %v6412 = vadd.s32 %v6346, %v6357
    %v6413 = vadd.s32 %v6347, %v6357
    %v6414 = vadd.s32 %v6348, %v6357
    %v6415 = vadd.s32 %v6349, %v6357
    %v6416 = vadd.s32 %v6350, %v6357
    %v6417 = vadd.s32 %v6351, %v6357
    %v6418 = vadd.s32 %v6352, %v6357
    %v6419 = vadd.s32 %v6353, %v6357
    %v6420 = vadd.s32 %v6354, %v6357
    %v6421 = vadd.s32 %v6355, %v6357
    %vm6422 = vcmp.lt.s32.totalorder %v6358, 16
    %vm6423 = vcmp.lt.s32.totalorder %v6359, 16
    %vm6424 = vcmp.lt.s32.totalorder %v6360, 16
    %vm6425 = vcmp.lt.s32.totalorder %v6361, 16
    %vm6426 = vcmp.lt.s32.totalorder %v6362, 16
    %vm6427 = vcmp.lt.s32.totalorder %v6363, 16
    %vm6428 = vcmp.lt.s32.totalorder %v6364, 16
    %vm6429 = vcmp.lt.s32.totalorder %v6365, 16
    %vm6430 = vcmp.lt.s32.totalorder %v6366, 16
    %vm6431 = vcmp.lt.s32.totalorder %v6367, 16
    %vm6432 = vcmp.lt.s32.totalorder %v6368, 16
    %vm6433 = vcmp.lt.s32.totalorder %v6369, 16
    %vm6434 = vcmp.lt.s32.totalorder %v6370, 16
    %vm6435 = vcmp.lt.s32.totalorder %v6371, 16
    %vm6436 = vcmp.lt.s32.totalorder %v6372, 16
    %vm6437 = vcmp.lt.s32.totalorder %v6373, 16
    %vm6438 = vcmp.lt.s32.totalorder %v6374, 16
    %vm6439 = vcmp.lt.s32.totalorder %v6375, 16
    %vm6440 = vcmp.lt.s32.totalorder %v6376, 16
    %vm6441 = vcmp.lt.s32.totalorder %v6377, 16
    %vm6442 = vcmp.lt.s32.totalorder %v6378, 16
    %vm6443 = vcmp.lt.s32.totalorder %v6379, 16
    %vm6444 = vcmp.lt.s32.totalorder %v6380, 16
    %vm6445 = vcmp.lt.s32.totalorder %v6381, 16
    %vm6446 = vcmp.lt.s32.totalorder %v6382, 16
    %vm6447 = vcmp.lt.s32.totalorder %v6383, 16
    %vm6448 = vcmp.lt.s32.totalorder %v6384, 16
    %vm6449 = vcmp.lt.s32.totalorder %v6385, 16
    %vm6450 = vcmp.lt.s32.totalorder %v6386, 16
    %vm6451 = vcmp.lt.s32.totalorder %v6387, 16
    %vm6452 = vcmp.lt.s32.totalorder %v6388, 16
    %vm6453 = vcmp.lt.s32.totalorder %v6389, 16
    %vm6454 = vcmp.lt.s32.totalorder %v6390, 16
    %vm6455 = vcmp.lt.s32.totalorder %v6391, 16
    %vm6456 = vcmp.lt.s32.totalorder %v6392, 16
    %vm6457 = vcmp.lt.s32.totalorder %v6393, 16
    %vm6458 = vcmp.lt.s32.totalorder %v6394, 16
    %vm6459 = vcmp.lt.s32.totalorder %v6395, 16
    %vm6460 = vcmp.lt.s32.totalorder %v6396, 16
    %vm6461 = vcmp.lt.s32.totalorder %v6397, 16
    %vm6462 = vcmp.lt.s32.totalorder %v6398, 16
    %vm6463 = vcmp.lt.s32.totalorder %v6399, 16
    %vm6464 = vcmp.lt.s32.totalorder %v6400, 16
    %vm6465 = vcmp.lt.s32.totalorder %v6401, 16
    %vm6466 = vcmp.lt.s32.totalorder %v6402, 16
    %vm6467 = vcmp.lt.s32.totalorder %v6403, 16
    %vm6468 = vcmp.lt.s32.totalorder %v6404, 16
    %vm6469 = vcmp.lt.s32.totalorder %v6405, 16
    %vm6470 = vcmp.lt.s32.totalorder %v6406, 16
    %vm6471 = vcmp.lt.s32.totalorder %v6407, 16
    %vm6472 = vcmp.lt.s32.totalorder %v6408, 16
    %vm6473 = vcmp.lt.s32.totalorder %v6409, 16
    %vm6474 = vcmp.lt.s32.totalorder %v6410, 16
    %vm6475 = vcmp.lt.s32.totalorder %v6411, 16
    %vm6476 = vcmp.lt.s32.totalorder %v6412, 16
    %vm6477 = vcmp.lt.s32.totalorder %v6413, 16
    %vm6478 = vcmp.lt.s32.totalorder %v6414, 16
    %vm6479 = vcmp.lt.s32.totalorder %v6415, 16
    %vm6480 = vcmp.lt.s32.totalorder %v6416, 16
    %vm6481 = vcmp.lt.s32.totalorder %v6417, 16
    %vm6482 = vcmp.lt.s32.totalorder %v6418, 16
    %vm6483 = vcmp.lt.s32.totalorder %v6419, 16
    %vm6484 = vcmp.lt.s32.totalorder %v6420, 16
    %vm6485 = vcmp.lt.s32.totalorder %v6421, 16
    %v6486 = vpack.c.bf16 %v6039, %v6035
    %v6487 = vpack.c.bf16 %v6040, %v6036
    %v6488 = vpack.c.bf16 %v6047, %v6043
    %v6489 = vpack.c.bf16 %v6048, %v6044
    %v6490 = vpack.c.bf16 %v6055, %v6051
    %v6491 = vpack.c.bf16 %v6056, %v6052
    %v6492 = vpack.c.bf16 %v6063, %v6059
    %v6493 = vpack.c.bf16 %v6064, %v6060
    %v6494 = vpack.c.bf16 %v6071, %v6067
    %v6495 = vpack.c.bf16 %v6072, %v6068
    %v6496 = vpack.c.bf16 %v6079, %v6075
    %v6497 = vpack.c.bf16 %v6080, %v6076
    %v6498 = vpack.c.bf16 %v6087, %v6083
    %v6499 = vpack.c.bf16 %v6088, %v6084
    %v6500 = vpack.c.bf16 %v6095, %v6091
    %v6501 = vpack.c.bf16 %v6096, %v6092
    %v6502 = vpack.c.bf16 %v6103, %v6099
    %v6503 = vpack.c.bf16 %v6104, %v6100
    %v6504 = vpack.c.bf16 %v6111, %v6107
    %v6505 = vpack.c.bf16 %v6112, %v6108
    %v6506 = vpack.c.bf16 %v6119, %v6115
    %v6507 = vpack.c.bf16 %v6120, %v6116
    %v6508 = vpack.c.bf16 %v6127, %v6123
    %v6509 = vpack.c.bf16 %v6128, %v6124
    %v6510 = vpack.c.bf16 %v6135, %v6131
    %v6511 = vpack.c.bf16 %v6136, %v6132
    %v6512 = vpack.c.bf16 %v6143, %v6139
    %v6513 = vpack.c.bf16 %v6144, %v6140
    %v6514 = vpack.c.bf16 %v6151, %v6147
    %v6515 = vpack.c.bf16 %v6152, %v6148
    %v6516 = vpack.c.bf16 %v6159, %v6155
    %v6517 = vpack.c.bf16 %v6160, %v6156
    %v6518 = vpack.c.bf16 %v6167, %v6163
    %v6519 = vpack.c.bf16 %v6168, %v6164
    %v6520 = vpack.c.bf16 %v6175, %v6171
    %v6521 = vpack.c.bf16 %v6176, %v6172
    %v6522 = vpack.c.bf16 %v6183, %v6179
    %v6523 = vpack.c.bf16 %v6184, %v6180
    %v6524 = vpack.c.bf16 %v6191, %v6187
    %v6525 = vpack.c.bf16 %v6192, %v6188
    %v6526 = vpack.c.bf16 %v6199, %v6195
    %v6527 = vpack.c.bf16 %v6200, %v6196
    %v6528 = vpack.c.bf16 %v6207, %v6203
    %v6529 = vpack.c.bf16 %v6208, %v6204
    %v6530 = vpack.c.bf16 %v6215, %v6211
    %v6531 = vpack.c.bf16 %v6216, %v6212
    %v6532 = vpack.c.bf16 %v6223, %v6219
    %v6533 = vpack.c.bf16 %v6224, %v6220
    %v6534 = vpack.c.bf16 %v6231, %v6227
    %v6535 = vpack.c.bf16 %v6232, %v6228
    %v6536 = vpack.c.bf16 %v6239, %v6235
    %v6537 = vpack.c.bf16 %v6240, %v6236
    %v6538 = vpack.c.bf16 %v6247, %v6243
    %v6539 = vpack.c.bf16 %v6248, %v6244
    %v6540 = vpack.c.bf16 %v6255, %v6251
    %v6541 = vpack.c.bf16 %v6256, %v6252
    %v6542 = vpack.c.bf16 %v6263, %v6259
    %v6543 = vpack.c.bf16 %v6264, %v6260
    %v6544 = vpack.c.bf16 %v6271, %v6267
    %v6545 = vpack.c.bf16 %v6272, %v6268
    %v6546 = vpack.c.bf16 %v6279, %v6275
    %v6547 = vpack.c.bf16 %v6280, %v6276
    %v6548 = vpack.c.bf16 %v6287, %v6283
    %v6549 = vpack.c.bf16 %v6288, %v6284
    %v6550 = vld [vmem:[#allocation11] sm:$0xf]
    %v6551 = vld [vmem:[#allocation11 + $0x4] sm:$0xf]
    %v6552 = vld [vmem:[#allocation11 + $0x8] sm:$0xf]
    %v6553 = vld [vmem:[#allocation11 + $0xc] sm:$0xf]
    %v6554 = vld [vmem:[#allocation11 + $0x10] sm:$0xf]
    %v6555 = vld [vmem:[#allocation11 + $0x14] sm:$0xf]
    %v6556 = vld [vmem:[#allocation11 + $0x18] sm:$0xf]
    %v6557 = vld [vmem:[#allocation11 + $0x1c] sm:$0xf]
    %v6558 = vld [vmem:[#allocation11 + $0x20] sm:$0xf]
    %v6559 = vld [vmem:[#allocation11 + $0x24] sm:$0xf]
    %v6560 = vld [vmem:[#allocation11 + $0x28] sm:$0xf]
    %v6561 = vld [vmem:[#allocation11 + $0x2c] sm:$0xf]
    %v6562 = vld [vmem:[#allocation11 + $0x30] sm:$0xf]
    %v6563 = vld [vmem:[#allocation11 + $0x34] sm:$0xf]
    %v6564 = vld [vmem:[#allocation11 + $0x38] sm:$0xf]
    %v6565 = vld [vmem:[#allocation11 + $0x3c] sm:$0xf]
    %v6566 = vld [vmem:[#allocation11 + $0x40] sm:$0xf]
    %v6567 = vld [vmem:[#allocation11 + $0x44] sm:$0xf]
    %v6568 = vld [vmem:[#allocation11 + $0x48] sm:$0xf]
    %v6569 = vld [vmem:[#allocation11 + $0x4c] sm:$0xf]
    %v6570 = vld [vmem:[#allocation11 + $0x50] sm:$0xf]
    %v6571 = vld [vmem:[#allocation11 + $0x54] sm:$0xf]
    %v6572 = vld [vmem:[#allocation11 + $0x58] sm:$0xf]
    %v6573 = vld [vmem:[#allocation11 + $0x5c] sm:$0xf]
    %v6574 = vld [vmem:[#allocation11 + $0x60] sm:$0xf]
    %v6575 = vld [vmem:[#allocation11 + $0x64] sm:$0xf]
    %v6576 = vld [vmem:[#allocation11 + $0x68] sm:$0xf]
    %v6577 = vld [vmem:[#allocation11 + $0x6c] sm:$0xf]
    %v6578 = vld [vmem:[#allocation11 + $0x70] sm:$0xf]
    %v6579 = vld [vmem:[#allocation11 + $0x74] sm:$0xf]
    %v6580 = vld [vmem:[#allocation11 + $0x78] sm:$0xf]
    %v6581 = vld [vmem:[#allocation11 + $0x7c] sm:$0xf]
    %v6582 = vld [vmem:[%s4] sm:$0x1]
    %v6584 = vlaneseq
    %v6585 = vshrl.u32 %v6584, 7
    %v6586 = vsub.s32 0, %v6585
    %v6587 = vrot.slane %v6582, %v6586
    %v6621 = vunpack.c.l.b16 %v6550
    %v6622 = vunpack.c.l.b16 %v6551
    %v6623 = vunpack.c.l.b16 %v6552
    %v6624 = vunpack.c.l.b16 %v6553
    %v6625 = vunpack.c.l.b16 %v6554
    %v6626 = vunpack.c.l.b16 %v6555
    %v6627 = vunpack.c.l.b16 %v6556
    %v6628 = vunpack.c.l.b16 %v6557
    %v6629 = vunpack.c.l.b16 %v6558
    %v6630 = vunpack.c.l.b16 %v6559
    %v6631 = vunpack.c.l.b16 %v6560
    %v6632 = vunpack.c.l.b16 %v6561
    %v6633 = vunpack.c.l.b16 %v6562
    %v6634 = vunpack.c.l.b16 %v6563
    %v6635 = vunpack.c.l.b16 %v6564
    %v6636 = vunpack.c.l.b16 %v6565
    %v6637 = vunpack.c.l.b16 %v6566
    %v6638 = vunpack.c.l.b16 %v6567
    %v6639 = vunpack.c.l.b16 %v6568
    %v6640 = vunpack.c.l.b16 %v6569
    %v6641 = vunpack.c.l.b16 %v6570
    %v6642 = vunpack.c.l.b16 %v6571
    %v6643 = vunpack.c.l.b16 %v6572
    %v6644 = vunpack.c.l.b16 %v6573
    %v6645 = vunpack.c.l.b16 %v6574
    %v6646 = vunpack.c.l.b16 %v6575
    %v6647 = vunpack.c.l.b16 %v6576
    %v6648 = vunpack.c.l.b16 %v6577
    %v6649 = vunpack.c.l.b16 %v6578
    %v6650 = vunpack.c.l.b16 %v6579
    %v6651 = vunpack.c.l.b16 %v6580
    %v6652 = vunpack.c.l.b16 %v6581
    %v6653 = vpack.c.b16 %v6622, %v6621
    %v6654 = vpack.c.b16 %v6624, %v6623
    %v6655 = vpack.c.b16 %v6626, %v6625
    %v6656 = vpack.c.b16 %v6628, %v6627
    %v6657 = vpack.c.b16 %v6630, %v6629
    %v6658 = vpack.c.b16 %v6632, %v6631
    %v6659 = vpack.c.b16 %v6634, %v6633
    %v6660 = vpack.c.b16 %v6636, %v6635
    %v6661 = vpack.c.b16 %v6638, %v6637
    %v6662 = vpack.c.b16 %v6640, %v6639
    %v6663 = vpack.c.b16 %v6642, %v6641
    %v6664 = vpack.c.b16 %v6644, %v6643
    %v6665 = vpack.c.b16 %v6646, %v6645
    %v6666 = vpack.c.b16 %v6648, %v6647
    %v6667 = vpack.c.b16 %v6650, %v6649
    %v6668 = vpack.c.b16 %v6652, %v6651
    %6685 = vmatprep.subr.bf16.mxu0 0
    %6686 = vmatpush1.bf16.msra.mxu0 %v6653
    %6687 = vmatprep.subr.bf16.mxu0 0
    %6688 = vmatpush1.bf16.msra.mxu0 %v6654
    %6689 = vmatprep.subr.bf16.mxu0 0
    %6690 = vmatpush1.bf16.msra.mxu0 %v6655
    %6691 = vmatprep.subr.bf16.mxu0 0
    %6692 = vmatpush1.bf16.msra.mxu0 %v6656
    %6693 = vmatprep.subr.bf16.mxu0 0
    %6694 = vmatpush1.bf16.msra.mxu0 %v6657
    %6695 = vmatprep.subr.bf16.mxu0 0
    %6696 = vmatpush1.bf16.msra.mxu0 %v6658
    %6697 = vmatprep.subr.bf16.mxu0 0
    %6698 = vmatpush1.bf16.msra.mxu0 %v6659
    %6699 = vmatprep.subr.bf16.mxu0 0
    %6700 = vmatpush1.bf16.msra.mxu0 %v6660
    %6701 = vmatprep.subr.bf16.mxu0 0
    %6702 = vmatpush1.bf16.msra.mxu0 %v6661
    %6703 = vmatprep.subr.bf16.mxu0 0
    %6704 = vmatpush1.bf16.msra.mxu0 %v6662
    %6705 = vmatprep.subr.bf16.mxu0 0
    %6706 = vmatpush1.bf16.msra.mxu0 %v6663
    %6707 = vmatprep.subr.bf16.mxu0 0
    %6708 = vmatpush1.bf16.msra.mxu0 %v6664
    %6709 = vmatprep.subr.bf16.mxu0 0
    %6710 = vmatpush1.bf16.msra.mxu0 %v6665
    %6711 = vmatprep.subr.bf16.mxu0 0
    %6712 = vmatpush1.bf16.msra.mxu0 %v6666
    %6713 = vmatprep.subr.bf16.mxu0 0
    %6714 = vmatpush1.bf16.msra.mxu0 %v6667
    %6715 = vmatprep.subr.bf16.mxu0 0
    %6716 = vmatpush1.bf16.msra.mxu0 %v6668
    %6717 = vmatprep.mubr.bf16.mxu0 %v6487
    %6718 = vmatmul.mubr.bf16.gmra.mrb[0].mxu0 %v6486
    %v6719 = vpop.f32.mrb[0].mxu0
    %v6720 = vadd.f32 %v6587, %v6719
    %v6721 = vpop.f32.mrb[0].mxu0
    %v6722 = vpop.f32.mrb[0].mxu0
    %v6723 = vadd.f32 %v6587, %v6722
    %v6724 = vpop.f32.mrb[0].mxu0
    %6725 = vmatprep.mubr.bf16.mxu0 %v6489
    %6726 = vmatmul.mubr.bf16.gmra.mrb[0].mxu0 %v6488
    %v6727 = vpop.f32.mrb[0].mxu0
    %v6728 = vadd.f32 %v6587, %v6727
    %v6729 = vpop.f32.mrb[0].mxu0
    %v6730 = vpop.f32.mrb[0].mxu0
    %v6731 = vadd.f32 %v6587, %v6730
    %v6732 = vpop.f32.mrb[0].mxu0
    %6733 = vmatprep.mubr.bf16.mxu0 %v6491
    %6734 = vmatmul.mubr.bf16.gmra.mrb[0].mxu0 %v6490
    %v6735 = vpop.f32.mrb[0].mxu0
    %v6736 = vadd.f32 %v6587, %v6735
    %v6737 = vpop.f32.mrb[0].mxu0
    %v6738 = vpop.f32.mrb[0].mxu0
    %v6739 = vadd.f32 %v6587, %v6738
    %v6740 = vpop.f32.mrb[0].mxu0
    %6741 = vmatprep.mubr.bf16.mxu0 %v6493
    %6742 = vmatmul.mubr.bf16.gmra.mrb[0].mxu0 %v6492
    %v6743 = vpop.f32.mrb[0].mxu0
    %v6744 = vadd.f32 %v6587, %v6743
    %v6745 = vpop.f32.mrb[0].mxu0
    %v6746 = vpop.f32.mrb[0].mxu0
    %v6747 = vadd.f32 %v6587, %v6746
    %v6748 = vpop.f32.mrb[0].mxu0
    %6749 = vmatprep.mubr.bf16.mxu0 %v6495
    %6750 = vmatmul.mubr.bf16.gmra.mrb[0].mxu0 %v6494
    %v6751 = vpop.f32.mrb[0].mxu0
    %v6752 = vadd.f32 %v6587, %v6751
    %v6753 = vpop.f32.mrb[0].mxu0
    %v6754 = vpop.f32.mrb[0].mxu0
    %v6755 = vadd.f32 %v6587, %v6754
    %v6756 = vpop.f32.mrb[0].mxu0
    %6757 = vmatprep.mubr.bf16.mxu0 %v6497
    %6758 = vmatmul.mubr.bf16.gmra.mrb[0].mxu0 %v6496
    %v6759 = vpop.f32.mrb[0].mxu0
    %v6760 = vadd.f32 %v6587, %v6759
    %v6761 = vpop.f32.mrb[0].mxu0
    %v6762 = vpop.f32.mrb[0].mxu0
    %v6763 = vadd.f32 %v6587, %v6762
    %v6764 = vpop.f32.mrb[0].mxu0
    %6765 = vmatprep.mubr.bf16.mxu0 %v6499
    %6766 = vmatmul.mubr.bf16.gmra.mrb[0].mxu0 %v6498
    %v6767 = vpop.f32.mrb[0].mxu0
    %v6768 = vadd.f32 %v6587, %v6767
    %v6769 = vpop.f32.mrb[0].mxu0
    %v6770 = vpop.f32.mrb[0].mxu0
    %v6771 = vadd.f32 %v6587, %v6770
    %v6772 = vpop.f32.mrb[0].mxu0
    %6773 = vmatprep.mubr.bf16.mxu0 %v6501
    %6774 = vmatmul.mubr.bf16.gmra.mrb[0].mxu0 %v6500
    %v6775 = vpop.f32.mrb[0].mxu0
    %v6776 = vadd.f32 %v6587, %v6775
    %v6777 = vpop.f32.mrb[0].mxu0
    %v6778 = vpop.f32.mrb[0].mxu0
    %v6779 = vadd.f32 %v6587, %v6778
    %v6780 = vpop.f32.mrb[0].mxu0
    %6781 = vmatprep.mubr.bf16.mxu0 %v6503
    %6782 = vmatmul.mubr.bf16.gmra.mrb[0].mxu0 %v6502
    %v6783 = vpop.f32.mrb[0].mxu0
    %v6784 = vadd.f32 %v6587, %v6783
    %v6785 = vpop.f32.mrb[0].mxu0
    %v6786 = vpop.f32.mrb[0].mxu0
    %v6787 = vadd.f32 %v6587, %v6786
    %v6788 = vpop.f32.mrb[0].mxu0
    %6789 = vmatprep.mubr.bf16.mxu0 %v6505
    %6790 = vmatmul.mubr.bf16.gmra.mrb[0].mxu0 %v6504
    %v6791 = vpop.f32.mrb[0].mxu0
    %v6792 = vadd.f32 %v6587, %v6791
    %v6793 = vpop.f32.mrb[0].mxu0
    %v6794 = vpop.f32.mrb[0].mxu0
    %v6795 = vadd.f32 %v6587, %v6794
    %v6796 = vpop.f32.mrb[0].mxu0
    %6797 = vmatprep.mubr.bf16.mxu0 %v6507
    %6798 = vmatmul.mubr.bf16.gmra.mrb[0].mxu0 %v6506
    %v6799 = vpop.f32.mrb[0].mxu0
    %v6800 = vadd.f32 %v6587, %v6799
    %v6801 = vpop.f32.mrb[0].mxu0
    %v6802 = vpop.f32.mrb[0].mxu0
    %v6803 = vadd.f32 %v6587, %v6802
    %v6804 = vpop.f32.mrb[0].mxu0
    %6805 = vmatprep.mubr.bf16.mxu0 %v6509
    %6806 = vmatmul.mubr.bf16.gmra.mrb[0].mxu0 %v6508
    %v6807 = vpop.f32.mrb[0].mxu0
    %v6808 = vadd.f32 %v6587, %v6807
    %v6809 = vpop.f32.mrb[0].mxu0
    %v6810 = vpop.f32.mrb[0].mxu0
    %v6811 = vadd.f32 %v6587, %v6810
    %v6812 = vpop.f32.mrb[0].mxu0
    %6813 = vmatprep.mubr.bf16.mxu0 %v6511
    %6814 = vmatmul.mubr.bf16.gmra.mrb[0].mxu0 %v6510
    %v6815 = vpop.f32.mrb[0].mxu0
    %v6816 = vadd.f32 %v6587, %v6815
    %v6817 = vpop.f32.mrb[0].mxu0
    %v6818 = vpop.f32.mrb[0].mxu0
    %v6819 = vadd.f32 %v6587, %v6818
    %v6820 = vpop.f32.mrb[0].mxu0
    %6821 = vmatprep.mubr.bf16.mxu0 %v6513
    %6822 = vmatmul.mubr.bf16.gmra.mrb[0].mxu0 %v6512
    %v6823 = vpop.f32.mrb[0].mxu0
    %v6824 = vadd.f32 %v6587, %v6823
    %v6825 = vpop.f32.mrb[0].mxu0
    %v6826 = vpop.f32.mrb[0].mxu0
    %v6827 = vadd.f32 %v6587, %v6826
    %v6828 = vpop.f32.mrb[0].mxu0
    %6829 = vmatprep.mubr.bf16.mxu0 %v6515
    %6830 = vmatmul.mubr.bf16.gmra.mrb[0].mxu0 %v6514
    %v6831 = vpop.f32.mrb[0].mxu0
    %v6832 = vadd.f32 %v6587, %v6831
    %v6833 = vpop.f32.mrb[0].mxu0
    %v6834 = vpop.f32.mrb[0].mxu0
    %v6835 = vadd.f32 %v6587, %v6834
    %v6836 = vpop.f32.mrb[0].mxu0
    %6837 = vmatprep.mubr.bf16.mxu0 %v6517
    %6838 = vmatmul.mubr.bf16.gmra.mrb[0].mxu0 %v6516
    %v6839 = vpop.f32.mrb[0].mxu0
    %v6840 = vadd.f32 %v6587, %v6839
    %v6841 = vpop.f32.mrb[0].mxu0
    %v6842 = vpop.f32.mrb[0].mxu0
    %v6843 = vadd.f32 %v6587, %v6842
    %v6844 = vpop.f32.mrb[0].mxu0
    %6845 = vmatprep.mubr.bf16.mxu0 %v6519
    %6846 = vmatmul.mubr.bf16.gmra.mrb[0].mxu0 %v6518
    %v6847 = vpop.f32.mrb[0].mxu0
    %v6848 = vadd.f32 %v6587, %v6847
    %v6849 = vpop.f32.mrb[0].mxu0
    %v6850 = vpop.f32.mrb[0].mxu0
    %v6851 = vadd.f32 %v6587, %v6850
    %v6852 = vpop.f32.mrb[0].mxu0
    %6853 = vmatprep.mubr.bf16.mxu0 %v6521
    %6854 = vmatmul.mubr.bf16.gmra.mrb[0].mxu0 %v6520
    %v6855 = vpop.f32.mrb[0].mxu0
    %v6856 = vadd.f32 %v6587, %v6855
    %v6857 = vpop.f32.mrb[0].mxu0
    %v6858 = vpop.f32.mrb[0].mxu0
    %v6859 = vadd.f32 %v6587, %v6858
    %v6860 = vpop.f32.mrb[0].mxu0
    %6861 = vmatprep.mubr.bf16.mxu0 %v6523
    %6862 = vmatmul.mubr.bf16.gmra.mrb[0].mxu0 %v6522
    %v6863 = vpop.f32.mrb[0].mxu0
    %v6864 = vadd.f32 %v6587, %v6863
    %v6865 = vpop.f32.mrb[0].mxu0
    %v6866 = vpop.f32.mrb[0].mxu0
    %v6867 = vadd.f32 %v6587, %v6866
    %v6868 = vpop.f32.mrb[0].mxu0
    %6869 = vmatprep.mubr.bf16.mxu0 %v6525
    %6870 = vmatmul.mubr.bf16.gmra.mrb[0].mxu0 %v6524
    %v6871 = vpop.f32.mrb[0].mxu0
    %v6872 = vadd.f32 %v6587, %v6871
    %v6873 = vpop.f32.mrb[0].mxu0
    %v6874 = vpop.f32.mrb[0].mxu0
    %v6875 = vadd.f32 %v6587, %v6874
    %v6876 = vpop.f32.mrb[0].mxu0
    %6877 = vmatprep.mubr.bf16.mxu0 %v6527
    %6878 = vmatmul.mubr.bf16.gmra.mrb[0].mxu0 %v6526
    %v6879 = vpop.f32.mrb[0].mxu0
    %v6880 = vadd.f32 %v6587, %v6879
    %v6881 = vpop.f32.mrb[0].mxu0
    %v6882 = vpop.f32.mrb[0].mxu0
    %v6883 = vadd.f32 %v6587, %v6882
    %v6884 = vpop.f32.mrb[0].mxu0
    %6885 = vmatprep.mubr.bf16.mxu0 %v6529
    %6886 = vmatmul.mubr.bf16.gmra.mrb[0].mxu0 %v6528
    %v6887 = vpop.f32.mrb[0].mxu0
    %v6888 = vadd.f32 %v6587, %v6887
    %v6889 = vpop.f32.mrb[0].mxu0
    %v6890 = vpop.f32.mrb[0].mxu0
    %v6891 = vadd.f32 %v6587, %v6890
    %v6892 = vpop.f32.mrb[0].mxu0
    %6893 = vmatprep.mubr.bf16.mxu0 %v6531
    %6894 = vmatmul.mubr.bf16.gmra.mrb[0].mxu0 %v6530
    %v6895 = vpop.f32.mrb[0].mxu0
    %v6896 = vadd.f32 %v6587, %v6895
    %v6897 = vpop.f32.mrb[0].mxu0
    %v6898 = vpop.f32.mrb[0].mxu0
    %v6899 = vadd.f32 %v6587, %v6898
    %v6900 = vpop.f32.mrb[0].mxu0
    %6901 = vmatprep.mubr.bf16.mxu0 %v6533
    %6902 = vmatmul.mubr.bf16.gmra.mrb[0].mxu0 %v6532
    %v6903 = vpop.f32.mrb[0].mxu0
    %v6904 = vadd.f32 %v6587, %v6903
    %v6905 = vpop.f32.mrb[0].mxu0
    %v6906 = vpop.f32.mrb[0].mxu0
    %v6907 = vadd.f32 %v6587, %v6906
    %v6908 = vpop.f32.mrb[0].mxu0
    %6909 = vmatprep.mubr.bf16.mxu0 %v6535
    %6910 = vmatmul.mubr.bf16.gmra.mrb[0].mxu0 %v6534
    %v6911 = vpop.f32.mrb[0].mxu0
    %v6912 = vadd.f32 %v6587, %v6911
    %v6913 = vpop.f32.mrb[0].mxu0
    %v6914 = vpop.f32.mrb[0].mxu0
    %v6915 = vadd.f32 %v6587, %v6914
    %v6916 = vpop.f32.mrb[0].mxu0
    %6917 = vmatprep.mubr.bf16.mxu0 %v6537
    %6918 = vmatmul.mubr.bf16.gmra.mrb[0].mxu0 %v6536
    %v6919 = vpop.f32.mrb[0].mxu0
    %v6920 = vadd.f32 %v6587, %v6919
    %v6921 = vpop.f32.mrb[0].mxu0
    %v6922 = vpop.f32.mrb[0].mxu0
    %v6923 = vadd.f32 %v6587, %v6922
    %v6924 = vpop.f32.mrb[0].mxu0
    %6925 = vmatprep.mubr.bf16.mxu0 %v6539
    %6926 = vmatmul.mubr.bf16.gmra.mrb[0].mxu0 %v6538
    %v6927 = vpop.f32.mrb[0].mxu0
    %v6928 = vadd.f32 %v6587, %v6927
    %v6929 = vpop.f32.mrb[0].mxu0
    %v6930 = vpop.f32.mrb[0].mxu0
    %v6931 = vadd.f32 %v6587, %v6930
    %v6932 = vpop.f32.mrb[0].mxu0
    %6933 = vmatprep.mubr.bf16.mxu0 %v6541
    %6934 = vmatmul.mubr.bf16.gmra.mrb[0].mxu0 %v6540
    %v6935 = vpop.f32.mrb[0].mxu0
    %v6936 = vadd.f32 %v6587, %v6935
    %v6937 = vpop.f32.mrb[0].mxu0
    %v6938 = vpop.f32.mrb[0].mxu0
    %v6939 = vadd.f32 %v6587, %v6938
    %v6940 = vpop.f32.mrb[0].mxu0
    %6941 = vmatprep.mubr.bf16.mxu0 %v6543
    %6942 = vmatmul.mubr.bf16.gmra.mrb[0].mxu0 %v6542
    %v6943 = vpop.f32.mrb[0].mxu0
    %v6944 = vadd.f32 %v6587, %v6943
    %v6945 = vpop.f32.mrb[0].mxu0
    %v6946 = vpop.f32.mrb[0].mxu0
    %v6947 = vadd.f32 %v6587, %v6946
    %v6948 = vpop.f32.mrb[0].mxu0
    %6949 = vmatprep.mubr.bf16.mxu0 %v6545
    %6950 = vmatmul.mubr.bf16.gmra.mrb[0].mxu0 %v6544
    %v6951 = vpop.f32.mrb[0].mxu0
    %v6952 = vadd.f32 %v6587, %v6951
    %v6953 = vpop.f32.mrb[0].mxu0
    %v6954 = vpop.f32.mrb[0].mxu0
    %v6955 = vadd.f32 %v6587, %v6954
    %v6956 = vpop.f32.mrb[0].mxu0
    %6957 = vmatprep.mubr.bf16.mxu0 %v6547
    %6958 = vmatmul.mubr.bf16.gmra.mrb[0].mxu0 %v6546
    %v6959 = vpop.f32.mrb[0].mxu0
    %v6960 = vadd.f32 %v6587, %v6959
    %v6961 = vpop.f32.mrb[0].mxu0
    %v6962 = vpop.f32.mrb[0].mxu0
    %v6963 = vadd.f32 %v6587, %v6962
    %v6964 = vpop.f32.mrb[0].mxu0
    %6965 = vmatprep.mubr.bf16.mxu0 %v6549
    %6966 = vmatmul.mubr.bf16.gmra.mrb[0].mxu0 %v6548
    %v6967 = vpop.f32.mrb[0].mxu0
    %v6968 = vadd.f32 %v6587, %v6967
    %v6969 = vpop.f32.mrb[0].mxu0
    %v6970 = vpop.f32.mrb[0].mxu0
    %v6971 = vadd.f32 %v6587, %v6970
    %v6972 = vpop.f32.mrb[0].mxu0
    %6973 = vdwg.mxu0
    %v6974 = vtanh.pop %v6720
    %v6975 = vtanh.pop %v6723
    %v6976 = vtanh.pop %v6728
    %v6977 = vtanh.pop %v6731
    %v6978 = vtanh.pop %v6736
    %v6979 = vtanh.pop %v6739
    %v6980 = vtanh.pop %v6744
    %v6981 = vtanh.pop %v6747
    %v6982 = vtanh.pop %v6752
    %v6983 = vtanh.pop %v6755
    %v6984 = vtanh.pop %v6760
    %v6985 = vtanh.pop %v6763
    %v6986 = vtanh.pop %v6768
    %v6987 = vtanh.pop %v6771
    %v6988 = vtanh.pop %v6776
    %v6989 = vtanh.pop %v6779
    %v6990 = vtanh.pop %v6784
    %v6991 = vtanh.pop %v6787
    %v6992 = vtanh.pop %v6792
    %v6993 = vtanh.pop %v6795
    %v6994 = vtanh.pop %v6800
    %v6995 = vtanh.pop %v6803
    %v6996 = vtanh.pop %v6808
    %v6997 = vtanh.pop %v6811
    %v6998 = vtanh.pop %v6816
    %v6999 = vtanh.pop %v6819
    %v7000 = vtanh.pop %v6824
    %v7001 = vtanh.pop %v6827
    %v7002 = vtanh.pop %v6832
    %v7003 = vtanh.pop %v6835
    %v7004 = vtanh.pop %v6840
    %v7005 = vtanh.pop %v6843
    %v7006 = vtanh.pop %v6848
    %v7007 = vtanh.pop %v6851
    %v7008 = vtanh.pop %v6856
    %v7009 = vtanh.pop %v6859
    %v7010 = vtanh.pop %v6864
    %v7011 = vtanh.pop %v6867
    %v7012 = vtanh.pop %v6872
    %v7013 = vtanh.pop %v6875
    %v7014 = vtanh.pop %v6880
    %v7015 = vtanh.pop %v6883
    %v7016 = vtanh.pop %v6888
    %v7017 = vtanh.pop %v6891
    %v7018 = vtanh.pop %v6896
    %v7019 = vtanh.pop %v6899
    %v7020 = vtanh.pop %v6904
    %v7021 = vtanh.pop %v6907
    %v7022 = vtanh.pop %v6912
    %v7023 = vtanh.pop %v6915
    %v7024 = vtanh.pop %v6920
    %v7025 = vtanh.pop %v6923
    %v7026 = vtanh.pop %v6928
    %v7027 = vtanh.pop %v6931
    %v7028 = vtanh.pop %v6936
    %v7029 = vtanh.pop %v6939
    %v7030 = vtanh.pop %v6944
    %v7031 = vtanh.pop %v6947
    %v7032 = vtanh.pop %v6952
    %v7033 = vtanh.pop %v6955
    %v7034 = vtanh.pop %v6960
    %v7035 = vtanh.pop %v6963
    %v7036 = vtanh.pop %v6968
    %v7037 = vtanh.pop %v6971
    %v7038 = vld [vmem:[#allocation12] sm:$0xf]
    %v7039 = vld [vmem:[#allocation12 + $0x4] sm:$0xf]
    %v7040 = vld [vmem:[#allocation12 + $0x8] sm:$0xf]
    %v7041 = vld [vmem:[#allocation12 + $0xc] sm:$0xf]
    %v7042 = vld [vmem:[#allocation12 + $0x10] sm:$0xf]
    %v7043 = vld [vmem:[#allocation12 + $0x14] sm:$0xf]
    %v7044 = vld [vmem:[#allocation12 + $0x18] sm:$0xf]
    %v7045 = vld [vmem:[#allocation12 + $0x1c] sm:$0xf]
    %v7046 = vld [vmem:[#allocation12 + $0x20] sm:$0xf]
    %v7047 = vld [vmem:[#allocation12 + $0x24] sm:$0xf]
    %v7048 = vld [vmem:[#allocation12 + $0x28] sm:$0xf]
    %v7049 = vld [vmem:[#allocation12 + $0x2c] sm:$0xf]
    %v7050 = vld [vmem:[#allocation12 + $0x30] sm:$0xf]
    %v7051 = vld [vmem:[#allocation12 + $0x34] sm:$0xf]
    %v7052 = vld [vmem:[#allocation12 + $0x38] sm:$0xf]
    %v7053 = vld [vmem:[#allocation12 + $0x3c] sm:$0xf]
    %v7054 = vld [vmem:[#allocation12 + $0x40] sm:$0xf]
    %v7055 = vld [vmem:[#allocation12 + $0x44] sm:$0xf]
    %v7056 = vld [vmem:[#allocation12 + $0x48] sm:$0xf]
    %v7057 = vld [vmem:[#allocation12 + $0x4c] sm:$0xf]
    %v7058 = vld [vmem:[#allocation12 + $0x50] sm:$0xf]
    %v7059 = vld [vmem:[#allocation12 + $0x54] sm:$0xf]
    %v7060 = vld [vmem:[#allocation12 + $0x58] sm:$0xf]
    %v7061 = vld [vmem:[#allocation12 + $0x5c] sm:$0xf]
    %v7062 = vld [vmem:[#allocation12 + $0x60] sm:$0xf]
    %v7063 = vld [vmem:[#allocation12 + $0x64] sm:$0xf]
    %v7064 = vld [vmem:[#allocation12 + $0x68] sm:$0xf]
    %v7065 = vld [vmem:[#allocation12 + $0x6c] sm:$0xf]
    %v7066 = vld [vmem:[#allocation12 + $0x70] sm:$0xf]
    %v7067 = vld [vmem:[#allocation12 + $0x74] sm:$0xf]
    %v7068 = vld [vmem:[#allocation12 + $0x78] sm:$0xf]
    %v7069 = vld [vmem:[#allocation12 + $0x7c] sm:$0xf]
    %v7070 = vld [vmem:[%s6] sm:$0x1]
    %v7072 = vlaneseq
    %v7073 = vshrl.u32 %v7072, 7
    %v7074 = vsub.s32 0, %v7073
    %v7075 = vrot.slane %v7070, %v7074
    %v7109 = vunpack.c.l.b16 %v7038
    %v7110 = vunpack.c.l.b16 %v7039
    %v7111 = vunpack.c.l.b16 %v7040
    %v7112 = vunpack.c.l.b16 %v7041
    %v7113 = vunpack.c.l.b16 %v7042
    %v7114 = vunpack.c.l.b16 %v7043
    %v7115 = vunpack.c.l.b16 %v7044
    %v7116 = vunpack.c.l.b16 %v7045
    %v7117 = vunpack.c.l.b16 %v7046
    %v7118 = vunpack.c.l.b16 %v7047
    %v7119 = vunpack.c.l.b16 %v7048
    %v7120 = vunpack.c.l.b16 %v7049
    %v7121 = vunpack.c.l.b16 %v7050
    %v7122 = vunpack.c.l.b16 %v7051
    %v7123 = vunpack.c.l.b16 %v7052
    %v7124 = vunpack.c.l.b16 %v7053
    %v7125 = vunpack.c.l.b16 %v7054
    %v7126 = vunpack.c.l.b16 %v7055
    %v7127 = vunpack.c.l.b16 %v7056
    %v7128 = vunpack.c.l.b16 %v7057
    %v7129 = vunpack.c.l.b16 %v7058
    %v7130 = vunpack.c.l.b16 %v7059
    %v7131 = vunpack.c.l.b16 %v7060
    %v7132 = vunpack.c.l.b16 %v7061
    %v7133 = vunpack.c.l.b16 %v7062
    %v7134 = vunpack.c.l.b16 %v7063
    %v7135 = vunpack.c.l.b16 %v7064
    %v7136 = vunpack.c.l.b16 %v7065
    %v7137 = vunpack.c.l.b16 %v7066
    %v7138 = vunpack.c.l.b16 %v7067
    %v7139 = vunpack.c.l.b16 %v7068
    %v7140 = vunpack.c.l.b16 %v7069
    %v7141 = vpack.c.b16 %v7110, %v7109
    %v7142 = vpack.c.b16 %v7112, %v7111
    %v7143 = vpack.c.b16 %v7114, %v7113
    %v7144 = vpack.c.b16 %v7116, %v7115
    %v7145 = vpack.c.b16 %v7118, %v7117
    %v7146 = vpack.c.b16 %v7120, %v7119
    %v7147 = vpack.c.b16 %v7122, %v7121
    %v7148 = vpack.c.b16 %v7124, %v7123
    %v7149 = vpack.c.b16 %v7126, %v7125
    %v7150 = vpack.c.b16 %v7128, %v7127
    %v7151 = vpack.c.b16 %v7130, %v7129
    %v7152 = vpack.c.b16 %v7132, %v7131
    %v7153 = vpack.c.b16 %v7134, %v7133
    %v7154 = vpack.c.b16 %v7136, %v7135
    %v7155 = vpack.c.b16 %v7138, %v7137
    %v7156 = vpack.c.b16 %v7140, %v7139
    %7173 = vmatprep.subr.bf16.mxu0 0
    %7174 = vmatpush1.bf16.msra.mxu0 %v7141
    %7175 = vmatprep.subr.bf16.mxu0 0
    %7176 = vmatpush1.bf16.msra.mxu0 %v7142
    %7177 = vmatprep.subr.bf16.mxu0 0
    %7178 = vmatpush1.bf16.msra.mxu0 %v7143
    %7179 = vmatprep.subr.bf16.mxu0 0
    %7180 = vmatpush1.bf16.msra.mxu0 %v7144
    %7181 = vmatprep.subr.bf16.mxu0 0
    %7182 = vmatpush1.bf16.msra.mxu0 %v7145
    %7183 = vmatprep.subr.bf16.mxu0 0
    %7184 = vmatpush1.bf16.msra.mxu0 %v7146
    %7185 = vmatprep.subr.bf16.mxu0 0
    %7186 = vmatpush1.bf16.msra.mxu0 %v7147
    %7187 = vmatprep.subr.bf16.mxu0 0
    %7188 = vmatpush1.bf16.msra.mxu0 %v7148
    %7189 = vmatprep.subr.bf16.mxu0 0
    %7190 = vmatpush1.bf16.msra.mxu0 %v7149
    %7191 = vmatprep.subr.bf16.mxu0 0
    %7192 = vmatpush1.bf16.msra.mxu0 %v7150
    %7193 = vmatprep.subr.bf16.mxu0 0
    %7194 = vmatpush1.bf16.msra.mxu0 %v7151
    %7195 = vmatprep.subr.bf16.mxu0 0
    %7196 = vmatpush1.bf16.msra.mxu0 %v7152
    %7197 = vmatprep.subr.bf16.mxu0 0
    %7198 = vmatpush1.bf16.msra.mxu0 %v7153
    %7199 = vmatprep.subr.bf16.mxu0 0
    %7200 = vmatpush1.bf16.msra.mxu0 %v7154
    %7201 = vmatprep.subr.bf16.mxu0 0
    %7202 = vmatpush1.bf16.msra.mxu0 %v7155
    %7203 = vmatprep.subr.bf16.mxu0 0
    %7204 = vmatpush1.bf16.msra.mxu0 %v7156
    %7205 = vmatprep.mubr.bf16.mxu0 %v6487
    %7206 = vmatmul.mubr.bf16.gmra.mrb[0].mxu0 %v6486
    %v7207 = vpop.f32.mrb[0].mxu0
    %v7208 = vadd.f32 %v7075, %v7207
    %v7209 = vpop.f32.mrb[0].mxu0
    %v7210 = vpop.f32.mrb[0].mxu0
    %v7211 = vadd.f32 %v7075, %v7210
    %v7212 = vpop.f32.mrb[0].mxu0
    %7213 = vmatprep.mubr.bf16.mxu0 %v6489
    %7214 = vmatmul.mubr.bf16.gmra.mrb[0].mxu0 %v6488
    %v7215 = vpop.f32.mrb[0].mxu0
    %v7216 = vadd.f32 %v7075, %v7215
    %v7217 = vpop.f32.mrb[0].mxu0
    %v7218 = vpop.f32.mrb[0].mxu0
    %v7219 = vadd.f32 %v7075, %v7218
    %v7220 = vpop.f32.mrb[0].mxu0
    %7221 = vmatprep.mubr.bf16.mxu0 %v6491
    %7222 = vmatmul.mubr.bf16.gmra.mrb[0].mxu0 %v6490
    %v7223 = vpop.f32.mrb[0].mxu0
    %v7224 = vadd.f32 %v7075, %v7223
    %v7225 = vpop.f32.mrb[0].mxu0
    %v7226 = vpop.f32.mrb[0].mxu0
    %v7227 = vadd.f32 %v7075, %v7226
    %v7228 = vpop.f32.mrb[0].mxu0
    %7229 = vmatprep.mubr.bf16.mxu0 %v6493
    %7230 = vmatmul.mubr.bf16.gmra.mrb[0].mxu0 %v6492
    %v7231 = vpop.f32.mrb[0].mxu0
    %v7232 = vadd.f32 %v7075, %v7231
    %v7233 = vpop.f32.mrb[0].mxu0
    %v7234 = vpop.f32.mrb[0].mxu0
    %v7235 = vadd.f32 %v7075, %v7234
    %v7236 = vpop.f32.mrb[0].mxu0
    %7237 = vmatprep.mubr.bf16.mxu0 %v6495
    %7238 = vmatmul.mubr.bf16.gmra.mrb[0].mxu0 %v6494
    %v7239 = vpop.f32.mrb[0].mxu0
    %v7240 = vadd.f32 %v7075, %v7239
    %v7241 = vpop.f32.mrb[0].mxu0
    %v7242 = vpop.f32.mrb[0].mxu0
    %v7243 = vadd.f32 %v7075, %v7242
    %v7244 = vpop.f32.mrb[0].mxu0
    %7245 = vmatprep.mubr.bf16.mxu0 %v6497
    %7246 = vmatmul.mubr.bf16.gmra.mrb[0].mxu0 %v6496
    %v7247 = vpop.f32.mrb[0].mxu0
    %v7248 = vadd.f32 %v7075, %v7247
    %v7249 = vpop.f32.mrb[0].mxu0
    %v7250 = vpop.f32.mrb[0].mxu0
    %v7251 = vadd.f32 %v7075, %v7250
    %v7252 = vpop.f32.mrb[0].mxu0
    %7253 = vmatprep.mubr.bf16.mxu0 %v6499
    %7254 = vmatmul.mubr.bf16.gmra.mrb[0].mxu0 %v6498
    %v7255 = vpop.f32.mrb[0].mxu0
    %v7256 = vadd.f32 %v7075, %v7255
    %v7257 = vpop.f32.mrb[0].mxu0
    %v7258 = vpop.f32.mrb[0].mxu0
    %v7259 = vadd.f32 %v7075, %v7258
    %v7260 = vpop.f32.mrb[0].mxu0
    %7261 = vmatprep.mubr.bf16.mxu0 %v6501
    %7262 = vmatmul.mubr.bf16.gmra.mrb[0].mxu0 %v6500
    %v7263 = vpop.f32.mrb[0].mxu0
    %v7264 = vadd.f32 %v7075, %v7263
    %v7265 = vpop.f32.mrb[0].mxu0
    %v7266 = vpop.f32.mrb[0].mxu0
    %v7267 = vadd.f32 %v7075, %v7266
    %v7268 = vpop.f32.mrb[0].mxu0
    %7269 = vmatprep.mubr.bf16.mxu0 %v6503
    %7270 = vmatmul.mubr.bf16.gmra.mrb[0].mxu0 %v6502
    %v7271 = vpop.f32.mrb[0].mxu0
    %v7272 = vadd.f32 %v7075, %v7271
    %v7273 = vpop.f32.mrb[0].mxu0
    %v7274 = vpop.f32.mrb[0].mxu0
    %v7275 = vadd.f32 %v7075, %v7274
    %v7276 = vpop.f32.mrb[0].mxu0
    %7277 = vmatprep.mubr.bf16.mxu0 %v6505
    %7278 = vmatmul.mubr.bf16.gmra.mrb[0].mxu0 %v6504
    %v7279 = vpop.f32.mrb[0].mxu0
    %v7280 = vadd.f32 %v7075, %v7279
    %v7281 = vpop.f32.mrb[0].mxu0
    %v7282 = vpop.f32.mrb[0].mxu0
    %v7283 = vadd.f32 %v7075, %v7282
    %v7284 = vpop.f32.mrb[0].mxu0
    %7285 = vmatprep.mubr.bf16.mxu0 %v6507
    %7286 = vmatmul.mubr.bf16.gmra.mrb[0].mxu0 %v6506
    %v7287 = vpop.f32.mrb[0].mxu0
    %v7288 = vadd.f32 %v7075, %v7287
    %v7289 = vpop.f32.mrb[0].mxu0
    %v7290 = vpop.f32.mrb[0].mxu0
    %v7291 = vadd.f32 %v7075, %v7290
    %v7292 = vpop.f32.mrb[0].mxu0
    %7293 = vmatprep.mubr.bf16.mxu0 %v6509
    %7294 = vmatmul.mubr.bf16.gmra.mrb[0].mxu0 %v6508
    %v7295 = vpop.f32.mrb[0].mxu0
    %v7296 = vadd.f32 %v7075, %v7295
    %v7297 = vpop.f32.mrb[0].mxu0
    %v7298 = vpop.f32.mrb[0].mxu0
    %v7299 = vadd.f32 %v7075, %v7298
    %v7300 = vpop.f32.mrb[0].mxu0
    %7301 = vmatprep.mubr.bf16.mxu0 %v6511
    %7302 = vmatmul.mubr.bf16.gmra.mrb[0].mxu0 %v6510
    %v7303 = vpop.f32.mrb[0].mxu0
    %v7304 = vadd.f32 %v7075, %v7303
    %v7305 = vpop.f32.mrb[0].mxu0
    %v7306 = vpop.f32.mrb[0].mxu0
    %v7307 = vadd.f32 %v7075, %v7306
    %v7308 = vpop.f32.mrb[0].mxu0
    %7309 = vmatprep.mubr.bf16.mxu0 %v6513
    %7310 = vmatmul.mubr.bf16.gmra.mrb[0].mxu0 %v6512
    %v7311 = vpop.f32.mrb[0].mxu0
    %v7312 = vadd.f32 %v7075, %v7311
    %v7313 = vpop.f32.mrb[0].mxu0
    %v7314 = vpop.f32.mrb[0].mxu0
    %v7315 = vadd.f32 %v7075, %v7314
    %v7316 = vpop.f32.mrb[0].mxu0
    %7317 = vmatprep.mubr.bf16.mxu0 %v6515
    %7318 = vmatmul.mubr.bf16.gmra.mrb[0].mxu0 %v6514
    %v7319 = vpop.f32.mrb[0].mxu0
    %v7320 = vadd.f32 %v7075, %v7319
    %v7321 = vpop.f32.mrb[0].mxu0
    %v7322 = vpop.f32.mrb[0].mxu0
    %v7323 = vadd.f32 %v7075, %v7322
    %v7324 = vpop.f32.mrb[0].mxu0
    %7325 = vmatprep.mubr.bf16.mxu0 %v6517
    %7326 = vmatmul.mubr.bf16.gmra.mrb[0].mxu0 %v6516
    %v7327 = vpop.f32.mrb[0].mxu0
    %v7328 = vadd.f32 %v7075, %v7327
    %v7329 = vpop.f32.mrb[0].mxu0
    %v7330 = vpop.f32.mrb[0].mxu0
    %v7331 = vadd.f32 %v7075, %v7330
    %v7332 = vpop.f32.mrb[0].mxu0
    %7333 = vmatprep.mubr.bf16.mxu0 %v6519
    %7334 = vmatmul.mubr.bf16.gmra.mrb[0].mxu0 %v6518
    %v7335 = vpop.f32.mrb[0].mxu0
    %v7336 = vadd.f32 %v7075, %v7335
    %v7337 = vpop.f32.mrb[0].mxu0
    %v7338 = vpop.f32.mrb[0].mxu0
    %v7339 = vadd.f32 %v7075, %v7338
    %v7340 = vpop.f32.mrb[0].mxu0
    %7341 = vmatprep.mubr.bf16.mxu0 %v6521
    %7342 = vmatmul.mubr.bf16.gmra.mrb[0].mxu0 %v6520
    %v7343 = vpop.f32.mrb[0].mxu0
    %v7344 = vadd.f32 %v7075, %v7343
    %v7345 = vpop.f32.mrb[0].mxu0
    %v7346 = vpop.f32.mrb[0].mxu0
    %v7347 = vadd.f32 %v7075, %v7346
    %v7348 = vpop.f32.mrb[0].mxu0
    %7349 = vmatprep.mubr.bf16.mxu0 %v6523
    %7350 = vmatmul.mubr.bf16.gmra.mrb[0].mxu0 %v6522
    %v7351 = vpop.f32.mrb[0].mxu0
    %v7352 = vadd.f32 %v7075, %v7351
    %v7353 = vpop.f32.mrb[0].mxu0
    %v7354 = vpop.f32.mrb[0].mxu0
    %v7355 = vadd.f32 %v7075, %v7354
    %v7356 = vpop.f32.mrb[0].mxu0
    %7357 = vmatprep.mubr.bf16.mxu0 %v6525
    %7358 = vmatmul.mubr.bf16.gmra.mrb[0].mxu0 %v6524
    %v7359 = vpop.f32.mrb[0].mxu0
    %v7360 = vadd.f32 %v7075, %v7359
    %v7361 = vpop.f32.mrb[0].mxu0
    %v7362 = vpop.f32.mrb[0].mxu0
    %v7363 = vadd.f32 %v7075, %v7362
    %v7364 = vpop.f32.mrb[0].mxu0
    %7365 = vmatprep.mubr.bf16.mxu0 %v6527
    %7366 = vmatmul.mubr.bf16.gmra.mrb[0].mxu0 %v6526
    %v7367 = vpop.f32.mrb[0].mxu0
    %v7368 = vadd.f32 %v7075, %v7367
    %v7369 = vpop.f32.mrb[0].mxu0
    %v7370 = vpop.f32.mrb[0].mxu0
    %v7371 = vadd.f32 %v7075, %v7370
    %v7372 = vpop.f32.mrb[0].mxu0
    %7373 = vmatprep.mubr.bf16.mxu0 %v6529
    %7374 = vmatmul.mubr.bf16.gmra.mrb[0].mxu0 %v6528
    %v7375 = vpop.f32.mrb[0].mxu0
    %v7376 = vadd.f32 %v7075, %v7375
    %v7377 = vpop.f32.mrb[0].mxu0
    %v7378 = vpop.f32.mrb[0].mxu0
    %v7379 = vadd.f32 %v7075, %v7378
    %v7380 = vpop.f32.mrb[0].mxu0
    %7381 = vmatprep.mubr.bf16.mxu0 %v6531
    %7382 = vmatmul.mubr.bf16.gmra.mrb[0].mxu0 %v6530
    %v7383 = vpop.f32.mrb[0].mxu0
    %v7384 = vadd.f32 %v7075, %v7383
    %v7385 = vpop.f32.mrb[0].mxu0
    %v7386 = vpop.f32.mrb[0].mxu0
    %v7387 = vadd.f32 %v7075, %v7386
    %v7388 = vpop.f32.mrb[0].mxu0
    %7389 = vmatprep.mubr.bf16.mxu0 %v6533
    %7390 = vmatmul.mubr.bf16.gmra.mrb[0].mxu0 %v6532
    %v7391 = vpop.f32.mrb[0].mxu0
    %v7392 = vadd.f32 %v7075, %v7391
    %v7393 = vpop.f32.mrb[0].mxu0
    %v7394 = vpop.f32.mrb[0].mxu0
    %v7395 = vadd.f32 %v7075, %v7394
    %v7396 = vpop.f32.mrb[0].mxu0
    %7397 = vmatprep.mubr.bf16.mxu0 %v6535
    %7398 = vmatmul.mubr.bf16.gmra.mrb[0].mxu0 %v6534
    %v7399 = vpop.f32.mrb[0].mxu0
    %v7400 = vadd.f32 %v7075, %v7399
    %v7401 = vpop.f32.mrb[0].mxu0
    %v7402 = vpop.f32.mrb[0].mxu0
    %v7403 = vadd.f32 %v7075, %v7402
    %v7404 = vpop.f32.mrb[0].mxu0
    %7405 = vmatprep.mubr.bf16.mxu0 %v6537
    %7406 = vmatmul.mubr.bf16.gmra.mrb[0].mxu0 %v6536
    %v7407 = vpop.f32.mrb[0].mxu0
    %v7408 = vadd.f32 %v7075, %v7407
    %v7409 = vpop.f32.mrb[0].mxu0
    %v7410 = vpop.f32.mrb[0].mxu0
    %v7411 = vadd.f32 %v7075, %v7410
    %v7412 = vpop.f32.mrb[0].mxu0
    %7413 = vmatprep.mubr.bf16.mxu0 %v6539
    %7414 = vmatmul.mubr.bf16.gmra.mrb[0].mxu0 %v6538
    %v7415 = vpop.f32.mrb[0].mxu0
    %v7416 = vadd.f32 %v7075, %v7415
    %v7417 = vpop.f32.mrb[0].mxu0
    %v7418 = vpop.f32.mrb[0].mxu0
    %v7419 = vadd.f32 %v7075, %v7418
    %v7420 = vpop.f32.mrb[0].mxu0
    %7421 = vmatprep.mubr.bf16.mxu0 %v6541
    %7422 = vmatmul.mubr.bf16.gmra.mrb[0].mxu0 %v6540
    %v7423 = vpop.f32.mrb[0].mxu0
    %v7424 = vadd.f32 %v7075, %v7423
    %v7425 = vpop.f32.mrb[0].mxu0
    %v7426 = vpop.f32.mrb[0].mxu0
    %v7427 = vadd.f32 %v7075, %v7426
    %v7428 = vpop.f32.mrb[0].mxu0
    %7429 = vmatprep.mubr.bf16.mxu0 %v6543
    %7430 = vmatmul.mubr.bf16.gmra.mrb[0].mxu0 %v6542
    %v7431 = vpop.f32.mrb[0].mxu0
    %v7432 = vadd.f32 %v7075, %v7431
    %v7433 = vpop.f32.mrb[0].mxu0
    %v7434 = vpop.f32.mrb[0].mxu0
    %v7435 = vadd.f32 %v7075, %v7434
    %v7436 = vpop.f32.mrb[0].mxu0
    %7437 = vmatprep.mubr.bf16.mxu0 %v6545
    %7438 = vmatmul.mubr.bf16.gmra.mrb[0].mxu0 %v6544
    %v7439 = vpop.f32.mrb[0].mxu0
    %v7440 = vadd.f32 %v7075, %v7439
    %v7441 = vpop.f32.mrb[0].mxu0
    %v7442 = vpop.f32.mrb[0].mxu0
    %v7443 = vadd.f32 %v7075, %v7442
    %v7444 = vpop.f32.mrb[0].mxu0
    %7445 = vmatprep.mubr.bf16.mxu0 %v6547
    %7446 = vmatmul.mubr.bf16.gmra.mrb[0].mxu0 %v6546
    %v7447 = vpop.f32.mrb[0].mxu0
    %v7448 = vadd.f32 %v7075, %v7447
    %v7449 = vpop.f32.mrb[0].mxu0
    %v7450 = vpop.f32.mrb[0].mxu0
    %v7451 = vadd.f32 %v7075, %v7450
    %v7452 = vpop.f32.mrb[0].mxu0
    %7453 = vmatprep.mubr.bf16.mxu0 %v6549
    %7454 = vmatmul.mubr.bf16.gmra.mrb[0].mxu0 %v6548
    %v7455 = vpop.f32.mrb[0].mxu0
    %v7456 = vadd.f32 %v7075, %v7455
    %v7457 = vpop.f32.mrb[0].mxu0
    %v7458 = vpop.f32.mrb[0].mxu0
    %v7459 = vadd.f32 %v7075, %v7458
    %v7460 = vpop.f32.mrb[0].mxu0
    %7461 = vdwg.mxu0
    %v7462 = vxor.u32 %v7208, 2147483648
    %v7463 = vxor.u32 %v7211, 2147483648
    %v7464 = vxor.u32 %v7216, 2147483648
    %v7465 = vxor.u32 %v7219, 2147483648
    %v7466 = vxor.u32 %v7224, 2147483648
    %v7467 = vxor.u32 %v7227, 2147483648
    %v7468 = vxor.u32 %v7232, 2147483648
    %v7469 = vxor.u32 %v7235, 2147483648
    %v7470 = vxor.u32 %v7240, 2147483648
    %v7471 = vxor.u32 %v7243, 2147483648
    %v7472 = vxor.u32 %v7248, 2147483648
    %v7473 = vxor.u32 %v7251, 2147483648
    %v7474 = vxor.u32 %v7256, 2147483648
    %v7475 = vxor.u32 %v7259, 2147483648
    %v7476 = vxor.u32 %v7264, 2147483648
    %v7477 = vxor.u32 %v7267, 2147483648
    %v7478 = vxor.u32 %v7272, 2147483648
    %v7479 = vxor.u32 %v7275, 2147483648
    %v7480 = vxor.u32 %v7280, 2147483648
    %v7481 = vxor.u32 %v7283, 2147483648
    %v7482 = vxor.u32 %v7288, 2147483648
    %v7483 = vxor.u32 %v7291, 2147483648
    %v7484 = vxor.u32 %v7296, 2147483648
    %v7485 = vxor.u32 %v7299, 2147483648
    %v7486 = vxor.u32 %v7304, 2147483648
    %v7487 = vxor.u32 %v7307, 2147483648
    %v7488 = vxor.u32 %v7312, 2147483648
    %v7489 = vxor.u32 %v7315, 2147483648
    %v7490 = vxor.u32 %v7320, 2147483648
    %v7491 = vxor.u32 %v7323, 2147483648
    %v7492 = vxor.u32 %v7328, 2147483648
    %v7493 = vxor.u32 %v7331, 2147483648
    %v7494 = vxor.u32 %v7336, 2147483648
    %v7495 = vxor.u32 %v7339, 2147483648
    %v7496 = vxor.u32 %v7344, 2147483648
    %v7497 = vxor.u32 %v7347, 2147483648
    %v7498 = vxor.u32 %v7352, 2147483648
    %v7499 = vxor.u32 %v7355, 2147483648
    %v7500 = vxor.u32 %v7360, 2147483648
    %v7501 = vxor.u32 %v7363, 2147483648
    %v7502 = vxor.u32 %v7368, 2147483648
    %v7503 = vxor.u32 %v7371, 2147483648
    %v7504 = vxor.u32 %v7376, 2147483648
    %v7505 = vxor.u32 %v7379, 2147483648
    %v7506 = vxor.u32 %v7384, 2147483648
    %v7507 = vxor.u32 %v7387, 2147483648
    %v7508 = vxor.u32 %v7392, 2147483648
    %v7509 = vxor.u32 %v7395, 2147483648
    %v7510 = vxor.u32 %v7400, 2147483648
    %v7511 = vxor.u32 %v7403, 2147483648
    %v7512 = vxor.u32 %v7408, 2147483648
    %v7513 = vxor.u32 %v7411, 2147483648
    %v7514 = vxor.u32 %v7416, 2147483648
    %v7515 = vxor.u32 %v7419, 2147483648
    %v7516 = vxor.u32 %v7424, 2147483648
    %v7517 = vxor.u32 %v7427, 2147483648
    %v7518 = vxor.u32 %v7432, 2147483648
    %v7519 = vxor.u32 %v7435, 2147483648
    %v7520 = vxor.u32 %v7440, 2147483648
    %v7521 = vxor.u32 %v7443, 2147483648
    %v7522 = vxor.u32 %v7448, 2147483648
    %v7523 = vxor.u32 %v7451, 2147483648
    %v7524 = vxor.u32 %v7456, 2147483648
    %v7525 = vxor.u32 %v7459, 2147483648
    %v7526 = vmul.f32 %v7462, 1.442695
    %v7527 = vpow.pop %v7526
    %v7528 = vmul.f32 %v7463, 1.442695
    %v7529 = vpow.pop %v7528
    %v7530 = vmul.f32 %v7464, 1.442695
    %v7531 = vpow.pop %v7530
    %v7532 = vmul.f32 %v7465, 1.442695
    %v7533 = vpow.pop %v7532
    %v7534 = vmul.f32 %v7466, 1.442695
    %v7535 = vpow.pop %v7534
    %v7536 = vmul.f32 %v7467, 1.442695
    %v7537 = vpow.pop %v7536
    %v7538 = vmul.f32 %v7468, 1.442695
    %v7539 = vpow.pop %v7538
    %v7540 = vmul.f32 %v7469, 1.442695
    %v7541 = vpow.pop %v7540
    %v7542 = vmul.f32 %v7470, 1.442695
    %v7543 = vpow.pop %v7542
    %v7544 = vmul.f32 %v7471, 1.442695
    %v7545 = vpow.pop %v7544
    %v7546 = vmul.f32 %v7472, 1.442695
    %v7547 = vpow.pop %v7546
    %v7548 = vmul.f32 %v7473, 1.442695
    %v7549 = vpow.pop %v7548
    %v7550 = vmul.f32 %v7474, 1.442695
    %v7551 = vpow.pop %v7550
    %v7552 = vmul.f32 %v7475, 1.442695
    %v7553 = vpow.pop %v7552
    %v7554 = vmul.f32 %v7476, 1.442695
    %v7555 = vpow.pop %v7554
    %v7556 = vmul.f32 %v7477, 1.442695
    %v7557 = vpow.pop %v7556
    %v7558 = vmul.f32 %v7478, 1.442695
    %v7559 = vpow.pop %v7558
    %v7560 = vmul.f32 %v7479, 1.442695
    %v7561 = vpow.pop %v7560
    %v7562 = vmul.f32 %v7480, 1.442695
    %v7563 = vpow.pop %v7562
    %v7564 = vmul.f32 %v7481, 1.442695
    %v7565 = vpow.pop %v7564
    %v7566 = vmul.f32 %v7482, 1.442695
    %v7567 = vpow.pop %v7566
    %v7568 = vmul.f32 %v7483, 1.442695
    %v7569 = vpow.pop %v7568
    %v7570 = vmul.f32 %v7484, 1.442695
    %v7571 = vpow.pop %v7570
    %v7572 = vmul.f32 %v7485, 1.442695
    %v7573 = vpow.pop %v7572
    %v7574 = vmul.f32 %v7486, 1.442695
    %v7575 = vpow.pop %v7574
    %v7576 = vmul.f32 %v7487, 1.442695
    %v7577 = vpow.pop %v7576
    %v7578 = vmul.f32 %v7488, 1.442695
    %v7579 = vpow.pop %v7578
    %v7580 = vmul.f32 %v7489, 1.442695
    %v7581 = vpow.pop %v7580
    %v7582 = vmul.f32 %v7490, 1.442695
    %v7583 = vpow.pop %v7582
    %v7584 = vmul.f32 %v7491, 1.442695
    %v7585 = vpow.pop %v7584
    %v7586 = vmul.f32 %v7492, 1.442695
    %v7587 = vpow.pop %v7586
    %v7588 = vmul.f32 %v7493, 1.442695
    %v7589 = vpow.pop %v7588
    %v7590 = vmul.f32 %v7494, 1.442695
    %v7591 = vpow.pop %v7590
    %v7592 = vmul.f32 %v7495, 1.442695
    %v7593 = vpow.pop %v7592
    %v7594 = vmul.f32 %v7496, 1.442695
    %v7595 = vpow.pop %v7594
    %v7596 = vmul.f32 %v7497, 1.442695
    %v7597 = vpow.pop %v7596
    %v7598 = vmul.f32 %v7498, 1.442695
    %v7599 = vpow.pop %v7598
    %v7600 = vmul.f32 %v7499, 1.442695
    %v7601 = vpow.pop %v7600
    %v7602 = vmul.f32 %v7500, 1.442695
    %v7603 = vpow.pop %v7602
    %v7604 = vmul.f32 %v7501, 1.442695
    %v7605 = vpow.pop %v7604
    %v7606 = vmul.f32 %v7502, 1.442695
    %v7607 = vpow.pop %v7606
    %v7608 = vmul.f32 %v7503, 1.442695
    %v7609 = vpow.pop %v7608
    %v7610 = vmul.f32 %v7504, 1.442695
    %v7611 = vpow.pop %v7610
    %v7612 = vmul.f32 %v7505, 1.442695
    %v7613 = vpow.pop %v7612
    %v7614 = vmul.f32 %v7506, 1.442695
    %v7615 = vpow.pop %v7614
    %v7616 = vmul.f32 %v7507, 1.442695
    %v7617 = vpow.pop %v7616
    %v7618 = vmul.f32 %v7508, 1.442695
    %v7619 = vpow.pop %v7618
    %v7620 = vmul.f32 %v7509, 1.442695
    %v7621 = vpow.pop %v7620
    %v7622 = vmul.f32 %v7510, 1.442695
    %v7623 = vpow.pop %v7622
    %v7624 = vmul.f32 %v7511, 1.442695
    %v7625 = vpow.pop %v7624
    %v7626 = vmul.f32 %v7512, 1.442695
    %v7627 = vpow.pop %v7626
    %v7628 = vmul.f32 %v7513, 1.442695
    %v7629 = vpow.pop %v7628
    %v7630 = vmul.f32 %v7514, 1.442695
    %v7631 = vpow.pop %v7630
    %v7632 = vmul.f32 %v7515, 1.442695
    %v7633 = vpow.pop %v7632
    %v7634 = vmul.f32 %v7516, 1.442695
    %v7635 = vpow.pop %v7634
    %v7636 = vmul.f32 %v7517, 1.442695
    %v7637 = vpow.pop %v7636
    %v7638 = vmul.f32 %v7518, 1.442695
    %v7639 = vpow.pop %v7638
    %v7640 = vmul.f32 %v7519, 1.442695
    %v7641 = vpow.pop %v7640
    %v7642 = vmul.f32 %v7520, 1.442695
    %v7643 = vpow.pop %v7642
    %v7644 = vmul.f32 %v7521, 1.442695
    %v7645 = vpow.pop %v7644
    %v7646 = vmul.f32 %v7522, 1.442695
    %v7647 = vpow.pop %v7646
    %v7648 = vmul.f32 %v7523, 1.442695
    %v7649 = vpow.pop %v7648
    %v7650 = vmul.f32 %v7524, 1.442695
    %v7651 = vpow.pop %v7650
    %v7652 = vmul.f32 %v7525, 1.442695
    %v7653 = vpow.pop %v7652
    %v7654 = vadd.f32 %v7527, 1.0
    %v7655 = vadd.f32 %v7529, 1.0
    %v7656 = vadd.f32 %v7531, 1.0
    %v7657 = vadd.f32 %v7533, 1.0
    %v7658 = vadd.f32 %v7535, 1.0
    %v7659 = vadd.f32 %v7537, 1.0
    %v7660 = vadd.f32 %v7539, 1.0
    %v7661 = vadd.f32 %v7541, 1.0
    %v7662 = vadd.f32 %v7543, 1.0
    %v7663 = vadd.f32 %v7545, 1.0
    %v7664 = vadd.f32 %v7547, 1.0
    %v7665 = vadd.f32 %v7549, 1.0
    %v7666 = vadd.f32 %v7551, 1.0
    %v7667 = vadd.f32 %v7553, 1.0
    %v7668 = vadd.f32 %v7555, 1.0
    %v7669 = vadd.f32 %v7557, 1.0
    %v7670 = vadd.f32 %v7559, 1.0
    %v7671 = vadd.f32 %v7561, 1.0
    %v7672 = vadd.f32 %v7563, 1.0
    %v7673 = vadd.f32 %v7565, 1.0
    %v7674 = vadd.f32 %v7567, 1.0
    %v7675 = vadd.f32 %v7569, 1.0
    %v7676 = vadd.f32 %v7571, 1.0
    %v7677 = vadd.f32 %v7573, 1.0
    %v7678 = vadd.f32 %v7575, 1.0
    %v7679 = vadd.f32 %v7577, 1.0
    %v7680 = vadd.f32 %v7579, 1.0
    %v7681 = vadd.f32 %v7581, 1.0
    %v7682 = vadd.f32 %v7583, 1.0
    %v7683 = vadd.f32 %v7585, 1.0
    %v7684 = vadd.f32 %v7587, 1.0
    %v7685 = vadd.f32 %v7589, 1.0
    %v7686 = vadd.f32 %v7591, 1.0
    %v7687 = vadd.f32 %v7593, 1.0
    %v7688 = vadd.f32 %v7595, 1.0
    %v7689 = vadd.f32 %v7597, 1.0
    %v7690 = vadd.f32 %v7599, 1.0
    %v7691 = vadd.f32 %v7601, 1.0
    %v7692 = vadd.f32 %v7603, 1.0
    %v7693 = vadd.f32 %v7605, 1.0
    %v7694 = vadd.f32 %v7607, 1.0
    %v7695 = vadd.f32 %v7609, 1.0
    %v7696 = vadd.f32 %v7611, 1.0
    %v7697 = vadd.f32 %v7613, 1.0
    %v7698 = vadd.f32 %v7615, 1.0
    %v7699 = vadd.f32 %v7617, 1.0
    %v7700 = vadd.f32 %v7619, 1.0
    %v7701 = vadd.f32 %v7621, 1.0
    %v7702 = vadd.f32 %v7623, 1.0
    %v7703 = vadd.f32 %v7625, 1.0
    %v7704 = vadd.f32 %v7627, 1.0
    %v7705 = vadd.f32 %v7629, 1.0
    %v7706 = vadd.f32 %v7631, 1.0
    %v7707 = vadd.f32 %v7633, 1.0
    %v7708 = vadd.f32 %v7635, 1.0
    %v7709 = vadd.f32 %v7637, 1.0
    %v7710 = vadd.f32 %v7639, 1.0
    %v7711 = vadd.f32 %v7641, 1.0
    %v7712 = vadd.f32 %v7643, 1.0
    %v7713 = vadd.f32 %v7645, 1.0
    %v7714 = vadd.f32 %v7647, 1.0
    %v7715 = vadd.f32 %v7649, 1.0
    %v7716 = vadd.f32 %v7651, 1.0
    %v7717 = vadd.f32 %v7653, 1.0
    %v7718 = vrcp.pop %v7654
    %v7719 = vmul.f32 1.0, %v7718
    %v7720 = vrcp.pop %v7655
    %v7721 = vmul.f32 1.0, %v7720
    %v7722 = vrcp.pop %v7656
    %v7723 = vmul.f32 1.0, %v7722
    %v7724 = vrcp.pop %v7657
    %v7725 = vmul.f32 1.0, %v7724
    %v7726 = vrcp.pop %v7658
    %v7727 = vmul.f32 1.0, %v7726
    %v7728 = vrcp.pop %v7659
    %v7729 = vmul.f32 1.0, %v7728
    %v7730 = vrcp.pop %v7660
    %v7731 = vmul.f32 1.0, %v7730
    %v7732 = vrcp.pop %v7661
    %v7733 = vmul.f32 1.0, %v7732
    %v7734 = vrcp.pop %v7662
    %v7735 = vmul.f32 1.0, %v7734
    %v7736 = vrcp.pop %v7663
    %v7737 = vmul.f32 1.0, %v7736
    %v7738 = vrcp.pop %v7664
    %v7739 = vmul.f32 1.0, %v7738
    %v7740 = vrcp.pop %v7665
    %v7741 = vmul.f32 1.0, %v7740
    %v7742 = vrcp.pop %v7666
    %v7743 = vmul.f32 1.0, %v7742
    %v7744 = vrcp.pop %v7667
    %v7745 = vmul.f32 1.0, %v7744
    %v7746 = vrcp.pop %v7668
    %v7747 = vmul.f32 1.0, %v7746
    %v7748 = vrcp.pop %v7669
    %v7749 = vmul.f32 1.0, %v7748
    %v7750 = vrcp.pop %v7670
    %v7751 = vmul.f32 1.0, %v7750
    %v7752 = vrcp.pop %v7671
    %v7753 = vmul.f32 1.0, %v7752
    %v7754 = vrcp.pop %v7672
    %v7755 = vmul.f32 1.0, %v7754
    %v7756 = vrcp.pop %v7673
    %v7757 = vmul.f32 1.0, %v7756
    %v7758 = vrcp.pop %v7674
    %v7759 = vmul.f32 1.0, %v7758
    %v7760 = vrcp.pop %v7675
    %v7761 = vmul.f32 1.0, %v7760
    %v7762 = vrcp.pop %v7676
    %v7763 = vmul.f32 1.0, %v7762
    %v7764 = vrcp.pop %v7677
    %v7765 = vmul.f32 1.0, %v7764
    %v7766 = vrcp.pop %v7678
    %v7767 = vmul.f32 1.0, %v7766
    %v7768 = vrcp.pop %v7679
    %v7769 = vmul.f32 1.0, %v7768
    %v7770 = vrcp.pop %v7680
    %v7771 = vmul.f32 1.0, %v7770
    %v7772 = vrcp.pop %v7681
    %v7773 = vmul.f32 1.0, %v7772
    %v7774 = vrcp.pop %v7682
    %v7775 = vmul.f32 1.0, %v7774
    %v7776 = vrcp.pop %v7683
    %v7777 = vmul.f32 1.0, %v7776
    %v7778 = vrcp.pop %v7684
    %v7779 = vmul.f32 1.0, %v7778
    %v7780 = vrcp.pop %v7685
    %v7781 = vmul.f32 1.0, %v7780
    %v7782 = vrcp.pop %v7686
    %v7783 = vmul.f32 1.0, %v7782
    %v7784 = vrcp.pop %v7687
    %v7785 = vmul.f32 1.0, %v7784
    %v7786 = vrcp.pop %v7688
    %v7787 = vmul.f32 1.0, %v7786
    %v7788 = vrcp.pop %v7689
    %v7789 = vmul.f32 1.0, %v7788
    %v7790 = vrcp.pop %v7690
    %v7791 = vmul.f32 1.0, %v7790
    %v7792 = vrcp.pop %v7691
    %v7793 = vmul.f32 1.0, %v7792
    %v7794 = vrcp.pop %v7692
    %v7795 = vmul.f32 1.0, %v7794
    %v7796 = vrcp.pop %v7693
    %v7797 = vmul.f32 1.0, %v7796
    %v7798 = vrcp.pop %v7694
    %v7799 = vmul.f32 1.0, %v7798
    %v7800 = vrcp.pop %v7695
    %v7801 = vmul.f32 1.0, %v7800
    %v7802 = vrcp.pop %v7696
    %v7803 = vmul.f32 1.0, %v7802
    %v7804 = vrcp.pop %v7697
    %v7805 = vmul.f32 1.0, %v7804
    %v7806 = vrcp.pop %v7698
    %v7807 = vmul.f32 1.0, %v7806
    %v7808 = vrcp.pop %v7699
    %v7809 = vmul.f32 1.0, %v7808
    %v7810 = vrcp.pop %v7700
    %v7811 = vmul.f32 1.0, %v7810
    %v7812 = vrcp.pop %v7701
    %v7813 = vmul.f32 1.0, %v7812
    %v7814 = vrcp.pop %v7702
    %v7815 = vmul.f32 1.0, %v7814
    %v7816 = vrcp.pop %v7703
    %v7817 = vmul.f32 1.0, %v7816
    %v7818 = vrcp.pop %v7704
    %v7819 = vmul.f32 1.0, %v7818
    %v7820 = vrcp.pop %v7705
    %v7821 = vmul.f32 1.0, %v7820
    %v7822 = vrcp.pop %v7706
    %v7823 = vmul.f32 1.0, %v7822
    %v7824 = vrcp.pop %v7707
    %v7825 = vmul.f32 1.0, %v7824
    %v7826 = vrcp.pop %v7708
    %v7827 = vmul.f32 1.0, %v7826
    %v7828 = vrcp.pop %v7709
    %v7829 = vmul.f32 1.0, %v7828
    %v7830 = vrcp.pop %v7710
    %v7831 = vmul.f32 1.0, %v7830
    %v7832 = vrcp.pop %v7711
    %v7833 = vmul.f32 1.0, %v7832
    %v7834 = vrcp.pop %v7712
    %v7835 = vmul.f32 1.0, %v7834
    %v7836 = vrcp.pop %v7713
    %v7837 = vmul.f32 1.0, %v7836
    %v7838 = vrcp.pop %v7714
    %v7839 = vmul.f32 1.0, %v7838
    %v7840 = vrcp.pop %v7715
    %v7841 = vmul.f32 1.0, %v7840
    %v7842 = vrcp.pop %v7716
    %v7843 = vmul.f32 1.0, %v7842
    %v7844 = vrcp.pop %v7717
    %v7845 = vmul.f32 1.0, %v7844
    %v7846 = vmul.f32 %v6974, %v7719
    %v7847 = vmul.f32 %v6975, %v7721
    %v7848 = vmul.f32 %v6976, %v7723
    %v7849 = vmul.f32 %v6977, %v7725
    %v7850 = vmul.f32 %v6978, %v7727
    %v7851 = vmul.f32 %v6979, %v7729
    %v7852 = vmul.f32 %v6980, %v7731
    %v7853 = vmul.f32 %v6981, %v7733
    %v7854 = vmul.f32 %v6982, %v7735
    %v7855 = vmul.f32 %v6983, %v7737
    %v7856 = vmul.f32 %v6984, %v7739
    %v7857 = vmul.f32 %v6985, %v7741
    %v7858 = vmul.f32 %v6986, %v7743
    %v7859 = vmul.f32 %v6987, %v7745
    %v7860 = vmul.f32 %v6988, %v7747
    %v7861 = vmul.f32 %v6989, %v7749
    %v7862 = vmul.f32 %v6990, %v7751
    %v7863 = vmul.f32 %v6991, %v7753
    %v7864 = vmul.f32 %v6992, %v7755
    %v7865 = vmul.f32 %v6993, %v7757
    %v7866 = vmul.f32 %v6994, %v7759
    %v7867 = vmul.f32 %v6995, %v7761
    %v7868 = vmul.f32 %v6996, %v7763
    %v7869 = vmul.f32 %v6997, %v7765
    %v7870 = vmul.f32 %v6998, %v7767
    %v7871 = vmul.f32 %v6999, %v7769
    %v7872 = vmul.f32 %v7000, %v7771
    %v7873 = vmul.f32 %v7001, %v7773
    %v7874 = vmul.f32 %v7002, %v7775
    %v7875 = vmul.f32 %v7003, %v7777
    %v7876 = vmul.f32 %v7004, %v7779
    %v7877 = vmul.f32 %v7005, %v7781
    %v7878 = vmul.f32 %v7006, %v7783
    %v7879 = vmul.f32 %v7007, %v7785
    %v7880 = vmul.f32 %v7008, %v7787
    %v7881 = vmul.f32 %v7009, %v7789
    %v7882 = vmul.f32 %v7010, %v7791
    %v7883 = vmul.f32 %v7011, %v7793
    %v7884 = vmul.f32 %v7012, %v7795
    %v7885 = vmul.f32 %v7013, %v7797
    %v7886 = vmul.f32 %v7014, %v7799
    %v7887 = vmul.f32 %v7015, %v7801
    %v7888 = vmul.f32 %v7016, %v7803
    %v7889 = vmul.f32 %v7017, %v7805
    %v7890 = vmul.f32 %v7018, %v7807
    %v7891 = vmul.f32 %v7019, %v7809
    %v7892 = vmul.f32 %v7020, %v7811
    %v7893 = vmul.f32 %v7021, %v7813
    %v7894 = vmul.f32 %v7022, %v7815
    %v7895 = vmul.f32 %v7023, %v7817
    %v7896 = vmul.f32 %v7024, %v7819
    %v7897 = vmul.f32 %v7025, %v7821
    %v7898 = vmul.f32 %v7026, %v7823
    %v7899 = vmul.f32 %v7027, %v7825
    %v7900 = vmul.f32 %v7028, %v7827
    %v7901 = vmul.f32 %v7029, %v7829
    %v7902 = vmul.f32 %v7030, %v7831
    %v7903 = vmul.f32 %v7031, %v7833
    %v7904 = vmul.f32 %v7032, %v7835
    %v7905 = vmul.f32 %v7033, %v7837
    %v7906 = vmul.f32 %v7034, %v7839
    %v7907 = vmul.f32 %v7035, %v7841
    %v7908 = vmul.f32 %v7036, %v7843
    %v7909 = vmul.f32 %v7037, %v7845
    %v7910 = vld [vmem:[%s7] sm:$0x1]
    %v7912 = vlaneseq
    %v7913 = vshrl.u32 %v7912, 7
    %v7914 = vsub.s32 0, %v7913
    %v7915 = vrot.slane %v7910, %v7914
    %v7917 = vmul.f32 %v7846, %v7915
    %v7918 = vmul.f32 %v7847, %v7915
    %v7919 = vmul.f32 %v7848, %v7915
    %v7920 = vmul.f32 %v7849, %v7915
    %v7921 = vmul.f32 %v7850, %v7915
    %v7922 = vmul.f32 %v7851, %v7915
    %v7923 = vmul.f32 %v7852, %v7915
    %v7924 = vmul.f32 %v7853, %v7915
    %v7925 = vmul.f32 %v7854, %v7915
    %v7926 = vmul.f32 %v7855, %v7915
    %v7927 = vmul.f32 %v7856, %v7915
    %v7928 = vmul.f32 %v7857, %v7915
    %v7929 = vmul.f32 %v7858, %v7915
    %v7930 = vmul.f32 %v7859, %v7915
    %v7931 = vmul.f32 %v7860, %v7915
    %v7932 = vmul.f32 %v7861, %v7915
    %v7933 = vmul.f32 %v7862, %v7915
    %v7934 = vmul.f32 %v7863, %v7915
    %v7935 = vmul.f32 %v7864, %v7915
    %v7936 = vmul.f32 %v7865, %v7915
    %v7937 = vmul.f32 %v7866, %v7915
    %v7938 = vmul.f32 %v7867, %v7915
    %v7939 = vmul.f32 %v7868, %v7915
    %v7940 = vmul.f32 %v7869, %v7915
    %v7941 = vmul.f32 %v7870, %v7915
    %v7942 = vmul.f32 %v7871, %v7915
    %v7943 = vmul.f32 %v7872, %v7915
    %v7944 = vmul.f32 %v7873, %v7915
    %v7945 = vmul.f32 %v7874, %v7915
    %v7946 = vmul.f32 %v7875, %v7915
    %v7947 = vmul.f32 %v7876, %v7915
    %v7948 = vmul.f32 %v7877, %v7915
    %v7949 = vmul.f32 %v7878, %v7915
    %v7950 = vmul.f32 %v7879, %v7915
    %v7951 = vmul.f32 %v7880, %v7915
    %v7952 = vmul.f32 %v7881, %v7915
    %v7953 = vmul.f32 %v7882, %v7915
    %v7954 = vmul.f32 %v7883, %v7915
    %v7955 = vmul.f32 %v7884, %v7915
    %v7956 = vmul.f32 %v7885, %v7915
    %v7957 = vmul.f32 %v7886, %v7915
    %v7958 = vmul.f32 %v7887, %v7915
    %v7959 = vmul.f32 %v7888, %v7915
    %v7960 = vmul.f32 %v7889, %v7915
    %v7961 = vmul.f32 %v7890, %v7915
    %v7962 = vmul.f32 %v7891, %v7915
    %v7963 = vmul.f32 %v7892, %v7915
    %v7964 = vmul.f32 %v7893, %v7915
    %v7965 = vmul.f32 %v7894, %v7915
    %v7966 = vmul.f32 %v7895, %v7915
    %v7967 = vmul.f32 %v7896, %v7915
    %v7968 = vmul.f32 %v7897, %v7915
    %v7969 = vmul.f32 %v7898, %v7915
    %v7970 = vmul.f32 %v7899, %v7915
    %v7971 = vmul.f32 %v7900, %v7915
    %v7972 = vmul.f32 %v7901, %v7915
    %v7973 = vmul.f32 %v7902, %v7915
    %v7974 = vmul.f32 %v7903, %v7915
    %v7975 = vmul.f32 %v7904, %v7915
    %v7976 = vmul.f32 %v7905, %v7915
    %v7977 = vmul.f32 %v7906, %v7915
    %v7978 = vmul.f32 %v7907, %v7915
    %v7979 = vmul.f32 %v7908, %v7915
    %v7980 = vmul.f32 %v7909, %v7915
    %7981 = vadd.xlane.f32.xlu0 %v7917
    %v7982 = vpop.xlane.xlu0 %7981
    %7983 = vadd.xlane.f32.xlu0 %v7918
    %v7984 = vpop.xlane.xlu0 %7983
    %7985 = vadd.xlane.f32.xlu0 %v7919
    %v7986 = vpop.xlane.xlu0 %7985
    %7987 = vadd.xlane.f32.xlu0 %v7920
    %v7988 = vpop.xlane.xlu0 %7987
    %7989 = vadd.xlane.f32.xlu0 %v7921
    %v7990 = vpop.xlane.xlu0 %7989
    %7991 = vadd.xlane.f32.xlu0 %v7922
    %v7992 = vpop.xlane.xlu0 %7991
    %7993 = vadd.xlane.f32.xlu0 %v7923
    %v7994 = vpop.xlane.xlu0 %7993
    %7995 = vadd.xlane.f32.xlu0 %v7924
    %v7996 = vpop.xlane.xlu0 %7995
    %7997 = vadd.xlane.f32.xlu0 %v7925
    %v7998 = vpop.xlane.xlu0 %7997
    %7999 = vadd.xlane.f32.xlu0 %v7926
    %v8000 = vpop.xlane.xlu0 %7999
    %8001 = vadd.xlane.f32.xlu0 %v7927
    %v8002 = vpop.xlane.xlu0 %8001
    %8003 = vadd.xlane.f32.xlu0 %v7928
    %v8004 = vpop.xlane.xlu0 %8003
    %8005 = vadd.xlane.f32.xlu0 %v7929
    %v8006 = vpop.xlane.xlu0 %8005
    %8007 = vadd.xlane.f32.xlu0 %v7930
    %v8008 = vpop.xlane.xlu0 %8007
    %8009 = vadd.xlane.f32.xlu0 %v7931
    %v8010 = vpop.xlane.xlu0 %8009
    %8011 = vadd.xlane.f32.xlu0 %v7932
    %v8012 = vpop.xlane.xlu0 %8011
    %8013 = vadd.xlane.f32.xlu0 %v7933
    %v8014 = vpop.xlane.xlu0 %8013
    %8015 = vadd.xlane.f32.xlu0 %v7934
    %v8016 = vpop.xlane.xlu0 %8015
    %8017 = vadd.xlane.f32.xlu0 %v7935
    %v8018 = vpop.xlane.xlu0 %8017
    %8019 = vadd.xlane.f32.xlu0 %v7936
    %v8020 = vpop.xlane.xlu0 %8019
    %8021 = vadd.xlane.f32.xlu0 %v7937
    %v8022 = vpop.xlane.xlu0 %8021
    %8023 = vadd.xlane.f32.xlu0 %v7938
    %v8024 = vpop.xlane.xlu0 %8023
    %8025 = vadd.xlane.f32.xlu0 %v7939
    %v8026 = vpop.xlane.xlu0 %8025
    %8027 = vadd.xlane.f32.xlu0 %v7940
    %v8028 = vpop.xlane.xlu0 %8027
    %8029 = vadd.xlane.f32.xlu0 %v7941
    %v8030 = vpop.xlane.xlu0 %8029
    %8031 = vadd.xlane.f32.xlu0 %v7942
    %v8032 = vpop.xlane.xlu0 %8031
    %8033 = vadd.xlane.f32.xlu0 %v7943
    %v8034 = vpop.xlane.xlu0 %8033
    %8035 = vadd.xlane.f32.xlu0 %v7944
    %v8036 = vpop.xlane.xlu0 %8035
    %8037 = vadd.xlane.f32.xlu0 %v7945
    %v8038 = vpop.xlane.xlu0 %8037
    %8039 = vadd.xlane.f32.xlu0 %v7946
    %v8040 = vpop.xlane.xlu0 %8039
    %8041 = vadd.xlane.f32.xlu0 %v7947
    %v8042 = vpop.xlane.xlu0 %8041
    %8043 = vadd.xlane.f32.xlu0 %v7948
    %v8044 = vpop.xlane.xlu0 %8043
    %8045 = vadd.xlane.f32.xlu0 %v7949
    %v8046 = vpop.xlane.xlu0 %8045
    %8047 = vadd.xlane.f32.xlu0 %v7950
    %v8048 = vpop.xlane.xlu0 %8047
    %8049 = vadd.xlane.f32.xlu0 %v7951
    %v8050 = vpop.xlane.xlu0 %8049
    %8051 = vadd.xlane.f32.xlu0 %v7952
    %v8052 = vpop.xlane.xlu0 %8051
    %8053 = vadd.xlane.f32.xlu0 %v7953
    %v8054 = vpop.xlane.xlu0 %8053
    %8055 = vadd.xlane.f32.xlu0 %v7954
    %v8056 = vpop.xlane.xlu0 %8055
    %8057 = vadd.xlane.f32.xlu0 %v7955
    %v8058 = vpop.xlane.xlu0 %8057
    %8059 = vadd.xlane.f32.xlu0 %v7956
    %v8060 = vpop.xlane.xlu0 %8059
    %8061 = vadd.xlane.f32.xlu0 %v7957
    %v8062 = vpop.xlane.xlu0 %8061
    %8063 = vadd.xlane.f32.xlu0 %v7958
    %v8064 = vpop.xlane.xlu0 %8063
    %8065 = vadd.xlane.f32.xlu0 %v7959
    %v8066 = vpop.xlane.xlu0 %8065
    %8067 = vadd.xlane.f32.xlu0 %v7960
    %v8068 = vpop.xlane.xlu0 %8067
    %8069 = vadd.xlane.f32.xlu0 %v7961
    %v8070 = vpop.xlane.xlu0 %8069
    %8071 = vadd.xlane.f32.xlu0 %v7962
    %v8072 = vpop.xlane.xlu0 %8071
    %8073 = vadd.xlane.f32.xlu0 %v7963
    %v8074 = vpop.xlane.xlu0 %8073
    %8075 = vadd.xlane.f32.xlu0 %v7964
    %v8076 = vpop.xlane.xlu0 %8075
    %8077 = vadd.xlane.f32.xlu0 %v7965
    %v8078 = vpop.xlane.xlu0 %8077
    %8079 = vadd.xlane.f32.xlu0 %v7966
    %v8080 = vpop.xlane.xlu0 %8079
    %8081 = vadd.xlane.f32.xlu0 %v7967
    %v8082 = vpop.xlane.xlu0 %8081
    %8083 = vadd.xlane.f32.xlu0 %v7968
    %v8084 = vpop.xlane.xlu0 %8083
    %8085 = vadd.xlane.f32.xlu0 %v7969
    %v8086 = vpop.xlane.xlu0 %8085
    %8087 = vadd.xlane.f32.xlu0 %v7970
    %v8088 = vpop.xlane.xlu0 %8087
    %8089 = vadd.xlane.f32.xlu0 %v7971
    %v8090 = vpop.xlane.xlu0 %8089
    %8091 = vadd.xlane.f32.xlu0 %v7972
    %v8092 = vpop.xlane.xlu0 %8091
    %8093 = vadd.xlane.f32.xlu0 %v7973
    %v8094 = vpop.xlane.xlu0 %8093
    %8095 = vadd.xlane.f32.xlu0 %v7974
    %v8096 = vpop.xlane.xlu0 %8095
    %8097 = vadd.xlane.f32.xlu0 %v7975
    %v8098 = vpop.xlane.xlu0 %8097
    %8099 = vadd.xlane.f32.xlu0 %v7976
    %v8100 = vpop.xlane.xlu0 %8099
    %8101 = vadd.xlane.f32.xlu0 %v7977
    %v8102 = vpop.xlane.xlu0 %8101
    %8103 = vadd.xlane.f32.xlu0 %v7978
    %v8104 = vpop.xlane.xlu0 %8103
    %8105 = vadd.xlane.f32.xlu0 %v7979
    %v8106 = vpop.xlane.xlu0 %8105
    %8107 = vadd.xlane.f32.xlu0 %v7980
    %v8108 = vpop.xlane.xlu0 %8107
    %v8109 = vld [vmem:[%s8] sm:$0x1]
    %v8111 = vlaneseq
    %v8112 = vshrl.u32 %v8111, 7
    %v8113 = vsub.s32 0, %v8112
    %v8114 = vrot.slane %v8109, %v8113
    %v8116 = vadd.f32 %v7982, %v8114
    %v8117 = vadd.f32 %v7984, %v8114
    %v8118 = vadd.f32 %v7986, %v8114
    %v8119 = vadd.f32 %v7988, %v8114
    %v8120 = vadd.f32 %v7990, %v8114
    %v8121 = vadd.f32 %v7992, %v8114
    %v8122 = vadd.f32 %v7994, %v8114
    %v8123 = vadd.f32 %v7996, %v8114
    %v8124 = vadd.f32 %v7998, %v8114
    %v8125 = vadd.f32 %v8000, %v8114
    %v8126 = vadd.f32 %v8002, %v8114
    %v8127 = vadd.f32 %v8004, %v8114
    %v8128 = vadd.f32 %v8006, %v8114
    %v8129 = vadd.f32 %v8008, %v8114
    %v8130 = vadd.f32 %v8010, %v8114
    %v8131 = vadd.f32 %v8012, %v8114
    %v8132 = vadd.f32 %v8014, %v8114
    %v8133 = vadd.f32 %v8016, %v8114
    %v8134 = vadd.f32 %v8018, %v8114
    %v8135 = vadd.f32 %v8020, %v8114
    %v8136 = vadd.f32 %v8022, %v8114
    %v8137 = vadd.f32 %v8024, %v8114
    %v8138 = vadd.f32 %v8026, %v8114
    %v8139 = vadd.f32 %v8028, %v8114
    %v8140 = vadd.f32 %v8030, %v8114
    %v8141 = vadd.f32 %v8032, %v8114
    %v8142 = vadd.f32 %v8034, %v8114
    %v8143 = vadd.f32 %v8036, %v8114
    %v8144 = vadd.f32 %v8038, %v8114
    %v8145 = vadd.f32 %v8040, %v8114
    %v8146 = vadd.f32 %v8042, %v8114
    %v8147 = vadd.f32 %v8044, %v8114
    %v8148 = vadd.f32 %v8046, %v8114
    %v8149 = vadd.f32 %v8048, %v8114
    %v8150 = vadd.f32 %v8050, %v8114
    %v8151 = vadd.f32 %v8052, %v8114
    %v8152 = vadd.f32 %v8054, %v8114
    %v8153 = vadd.f32 %v8056, %v8114
    %v8154 = vadd.f32 %v8058, %v8114
    %v8155 = vadd.f32 %v8060, %v8114
    %v8156 = vadd.f32 %v8062, %v8114
    %v8157 = vadd.f32 %v8064, %v8114
    %v8158 = vadd.f32 %v8066, %v8114
    %v8159 = vadd.f32 %v8068, %v8114
    %v8160 = vadd.f32 %v8070, %v8114
    %v8161 = vadd.f32 %v8072, %v8114
    %v8162 = vadd.f32 %v8074, %v8114
    %v8163 = vadd.f32 %v8076, %v8114
    %v8164 = vadd.f32 %v8078, %v8114
    %v8165 = vadd.f32 %v8080, %v8114
    %v8166 = vadd.f32 %v8082, %v8114
    %v8167 = vadd.f32 %v8084, %v8114
    %v8168 = vadd.f32 %v8086, %v8114
    %v8169 = vadd.f32 %v8088, %v8114
    %v8170 = vadd.f32 %v8090, %v8114
    %v8171 = vadd.f32 %v8092, %v8114
    %v8172 = vadd.f32 %v8094, %v8114
    %v8173 = vadd.f32 %v8096, %v8114
    %v8174 = vadd.f32 %v8098, %v8114
    %v8175 = vadd.f32 %v8100, %v8114
    %v8176 = vadd.f32 %v8102, %v8114
    %v8177 = vadd.f32 %v8104, %v8114
    %v8178 = vadd.f32 %v8106, %v8114
    %v8179 = vadd.f32 %v8108, %v8114
    %v8180 = vsel %vm6422, %v8116, -inf
    %v8181 = vsel %vm6423, %v8117, -inf
    %v8182 = vsel %vm6424, %v8118, -inf
    %v8183 = vsel %vm6425, %v8119, -inf
    %v8184 = vsel %vm6426, %v8120, -inf
    %v8185 = vsel %vm6427, %v8121, -inf
    %v8186 = vsel %vm6428, %v8122, -inf
    %v8187 = vsel %vm6429, %v8123, -inf
    %v8188 = vsel %vm6430, %v8124, -inf
    %v8189 = vsel %vm6431, %v8125, -inf
    %v8190 = vsel %vm6432, %v8126, -inf
    %v8191 = vsel %vm6433, %v8127, -inf
    %v8192 = vsel %vm6434, %v8128, -inf
    %v8193 = vsel %vm6435, %v8129, -inf
    %v8194 = vsel %vm6436, %v8130, -inf
    %v8195 = vsel %vm6437, %v8131, -inf
    %v8196 = vsel %vm6438, %v8132, -inf
    %v8197 = vsel %vm6439, %v8133, -inf
    %v8198 = vsel %vm6440, %v8134, -inf
    %v8199 = vsel %vm6441, %v8135, -inf
    %v8200 = vsel %vm6442, %v8136, -inf
    %v8201 = vsel %vm6443, %v8137, -inf
    %v8202 = vsel %vm6444, %v8138, -inf
    %v8203 = vsel %vm6445, %v8139, -inf
    %v8204 = vsel %vm6446, %v8140, -inf
    %v8205 = vsel %vm6447, %v8141, -inf
    %v8206 = vsel %vm6448, %v8142, -inf
    %v8207 = vsel %vm6449, %v8143, -inf
    %v8208 = vsel %vm6450, %v8144, -inf
    %v8209 = vsel %vm6451, %v8145, -inf
    %v8210 = vsel %vm6452, %v8146, -inf
    %v8211 = vsel %vm6453, %v8147, -inf
    %v8212 = vsel %vm6454, %v8148, -inf
    %v8213 = vsel %vm6455, %v8149, -inf
    %v8214 = vsel %vm6456, %v8150, -inf
    %v8215 = vsel %vm6457, %v8151, -inf
    %v8216 = vsel %vm6458, %v8152, -inf
    %v8217 = vsel %vm6459, %v8153, -inf
    %v8218 = vsel %vm6460, %v8154, -inf
    %v8219 = vsel %vm6461, %v8155, -inf
    %v8220 = vsel %vm6462, %v8156, -inf
    %v8221 = vsel %vm6463, %v8157, -inf
    %v8222 = vsel %vm6464, %v8158, -inf
    %v8223 = vsel %vm6465, %v8159, -inf
    %v8224 = vsel %vm6466, %v8160, -inf
    %v8225 = vsel %vm6467, %v8161, -inf
    %v8226 = vsel %vm6468, %v8162, -inf
    %v8227 = vsel %vm6469, %v8163, -inf
    %v8228 = vsel %vm6470, %v8164, -inf
    %v8229 = vsel %vm6471, %v8165, -inf
    %v8230 = vsel %vm6472, %v8166, -inf
    %v8231 = vsel %vm6473, %v8167, -inf
    %v8232 = vsel %vm6474, %v8168, -inf
    %v8233 = vsel %vm6475, %v8169, -inf
    %v8234 = vsel %vm6476, %v8170, -inf
    %v8235 = vsel %vm6477, %v8171, -inf
    %v8236 = vsel %vm6478, %v8172, -inf
    %v8237 = vsel %vm6479, %v8173, -inf
    %v8238 = vsel %vm6480, %v8174, -inf
    %v8239 = vsel %vm6481, %v8175, -inf
    %v8240 = vsel %vm6482, %v8176, -inf
    %v8241 = vsel %vm6483, %v8177, -inf
    %v8242 = vsel %vm6484, %v8178, -inf
    %v8243 = vsel %vm6485, %v8179, -inf
    %v8244 = vld [vmem:[#allocation3] sm:$0x1]
    %vm8245 = vcmask 7168
    %v8246 = vsel %vm8245, %v8180, -inf
    %v8247 = vsel %vm8245, %v8181, -inf
    %v8248 = vsel %vm8245, %v8182, -inf
    %v8249 = vsel %vm8245, %v8183, -inf
    %v8250 = vsel %vm8245, %v8184, -inf
    %v8251 = vmax.f32 %v8246, %v8250
    %v8252 = vsel %vm8245, %v8185, -inf
    %v8253 = vmax.f32 %v8247, %v8252
    %v8254 = vsel %vm8245, %v8186, -inf
    %v8255 = vmax.f32 %v8248, %v8254
    %v8256 = vsel %vm8245, %v8187, -inf
    %v8257 = vmax.f32 %v8249, %v8256
    %v8258 = vsel %vm8245, %v8188, -inf
    %v8259 = vmax.f32 %v8251, %v8258
    %v8260 = vsel %vm8245, %v8189, -inf
    %v8261 = vmax.f32 %v8253, %v8260
    %v8262 = vsel %vm8245, %v8190, -inf
    %v8263 = vmax.f32 %v8255, %v8262
    %v8264 = vsel %vm8245, %v8191, -inf
    %v8265 = vmax.f32 %v8257, %v8264
    %v8266 = vsel %vm8245, %v8192, -inf
    %v8267 = vmax.f32 %v8259, %v8266
    %v8268 = vsel %vm8245, %v8193, -inf
    %v8269 = vmax.f32 %v8261, %v8268
    %v8270 = vsel %vm8245, %v8194, -inf
    %v8271 = vmax.f32 %v8263, %v8270
    %v8272 = vsel %vm8245, %v8195, -inf
    %v8273 = vmax.f32 %v8265, %v8272
    %v8274 = vsel %vm8245, %v8196, -inf
    %v8275 = vmax.f32 %v8267, %v8274
    %v8276 = vsel %vm8245, %v8197, -inf
    %v8277 = vmax.f32 %v8269, %v8276
    %v8278 = vsel %vm8245, %v8198, -inf
    %v8279 = vmax.f32 %v8271, %v8278
    %v8280 = vsel %vm8245, %v8199, -inf
    %v8281 = vmax.f32 %v8273, %v8280
    %v8282 = vsel %vm8245, %v8200, -inf
    %v8283 = vmax.f32 %v8275, %v8282
    %v8284 = vsel %vm8245, %v8201, -inf
    %v8285 = vmax.f32 %v8277, %v8284
    %v8286 = vsel %vm8245, %v8202, -inf
    %v8287 = vmax.f32 %v8279, %v8286
    %v8288 = vsel %vm8245, %v8203, -inf
    %v8289 = vmax.f32 %v8281, %v8288
    %v8290 = vsel %vm8245, %v8204, -inf
    %v8291 = vmax.f32 %v8283, %v8290
    %v8292 = vsel %vm8245, %v8205, -inf
    %v8293 = vmax.f32 %v8285, %v8292
    %v8294 = vsel %vm8245, %v8206, -inf
    %v8295 = vmax.f32 %v8287, %v8294
    %v8296 = vsel %vm8245, %v8207, -inf
    %v8297 = vmax.f32 %v8289, %v8296
    %v8298 = vsel %vm8245, %v8208, -inf
    %v8299 = vmax.f32 %v8291, %v8298
    %v8300 = vsel %vm8245, %v8209, -inf
    %v8301 = vmax.f32 %v8293, %v8300
    %v8302 = vsel %vm8245, %v8210, -inf
    %v8303 = vmax.f32 %v8295, %v8302
    %v8304 = vsel %vm8245, %v8211, -inf
    %v8305 = vmax.f32 %v8297, %v8304
    %v8306 = vsel %vm8245, %v8212, -inf
    %v8307 = vmax.f32 %v8299, %v8306
    %v8308 = vsel %vm8245, %v8213, -inf
    %v8309 = vmax.f32 %v8301, %v8308
    %v8310 = vsel %vm8245, %v8214, -inf
    %v8311 = vmax.f32 %v8303, %v8310
    %v8312 = vsel %vm8245, %v8215, -inf
    %v8313 = vmax.f32 %v8305, %v8312
    %v8314 = vsel %vm8245, %v8216, -inf
    %v8315 = vmax.f32 %v8307, %v8314
    %v8316 = vsel %vm8245, %v8217, -inf
    %v8317 = vmax.f32 %v8309, %v8316
    %v8318 = vsel %vm8245, %v8218, -inf
    %v8319 = vmax.f32 %v8311, %v8318
    %v8320 = vsel %vm8245, %v8219, -inf
    %v8321 = vmax.f32 %v8313, %v8320
    %v8322 = vsel %vm8245, %v8220, -inf
    %v8323 = vmax.f32 %v8315, %v8322
    %v8324 = vsel %vm8245, %v8221, -inf
    %v8325 = vmax.f32 %v8317, %v8324
    %v8326 = vsel %vm8245, %v8222, -inf
    %v8327 = vmax.f32 %v8319, %v8326
    %v8328 = vsel %vm8245, %v8223, -inf
    %v8329 = vmax.f32 %v8321, %v8328
    %v8330 = vsel %vm8245, %v8224, -inf
    %v8331 = vmax.f32 %v8323, %v8330
    %v8332 = vsel %vm8245, %v8225, -inf
    %v8333 = vmax.f32 %v8325, %v8332
    %v8334 = vsel %vm8245, %v8226, -inf
    %v8335 = vmax.f32 %v8327, %v8334
    %v8336 = vsel %vm8245, %v8227, -inf
    %v8337 = vmax.f32 %v8329, %v8336
    %v8338 = vsel %vm8245, %v8228, -inf
    %v8339 = vmax.f32 %v8331, %v8338
    %v8340 = vsel %vm8245, %v8229, -inf
    %v8341 = vmax.f32 %v8333, %v8340
    %v8342 = vsel %vm8245, %v8230, -inf
    %v8343 = vmax.f32 %v8335, %v8342
    %v8344 = vsel %vm8245, %v8231, -inf
    %v8345 = vmax.f32 %v8337, %v8344
    %v8346 = vsel %vm8245, %v8232, -inf
    %v8347 = vmax.f32 %v8339, %v8346
    %v8348 = vsel %vm8245, %v8233, -inf
    %v8349 = vmax.f32 %v8341, %v8348
    %v8350 = vsel %vm8245, %v8234, -inf
    %v8351 = vmax.f32 %v8343, %v8350
    %v8352 = vsel %vm8245, %v8235, -inf
    %v8353 = vmax.f32 %v8345, %v8352
    %v8354 = vsel %vm8245, %v8236, -inf
    %v8355 = vmax.f32 %v8347, %v8354
    %v8356 = vsel %vm8245, %v8237, -inf
    %v8357 = vmax.f32 %v8349, %v8356
    %v8358 = vsel %vm8245, %v8238, -inf
    %v8359 = vmax.f32 %v8351, %v8358
    %v8360 = vsel %vm8245, %v8239, -inf
    %v8361 = vmax.f32 %v8353, %v8360
    %v8362 = vsel %vm8245, %v8240, -inf
    %v8363 = vmax.f32 %v8355, %v8362
    %v8364 = vsel %vm8245, %v8241, -inf
    %v8365 = vmax.f32 %v8357, %v8364
    %v8366 = vsel %vm8245, %v8242, -inf
    %v8367 = vmax.f32 %v8359, %v8366
    %v8368 = vsel %vm8245, %v8243, -inf
    %v8369 = vmax.f32 %v8361, %v8368
    %v8370 = vmax.f32 %v8363, %v8365
    %v8371 = vmax.f32 %v8367, %v8369
    %v8372 = vmax.f32 %v8370, %v8371
    %v8373 = vrot.slane %v8372, 4
    %v8374 = vmax.f32 %v8372, %v8373
    %v8375 = vrot.slane %v8374, 2
    %v8376 = vmax.f32 %v8374, %v8375
    %v8377 = vrot.slane %v8376, 1
    %v8378 = vmax.f32 %v8376, %v8377
    %v8379 = vmax.f32 %v8244, %v8378
    %v8380 = vsub.f32 %v8244, %v8379
    %v8381 = vmul.f32 %v8380, 1.442695
    %v8382 = vpow.pop %v8381
    %v8384 = vlaneseq
    %v8385 = vshrl.u32 %v8384, 7
    %v8386 = vsub.s32 0, %v8385
    %v8387 = vrot.slane %v8379, %v8386
    %v8389 = vsub.f32 %v8180, %v8387
    %v8390 = vsub.f32 %v8181, %v8387
    %v8391 = vsub.f32 %v8182, %v8387
    %v8392 = vsub.f32 %v8183, %v8387
    %v8393 = vsub.f32 %v8184, %v8387
    %v8394 = vsub.f32 %v8185, %v8387
    %v8395 = vsub.f32 %v8186, %v8387
    %v8396 = vsub.f32 %v8187, %v8387
    %v8397 = vsub.f32 %v8188, %v8387
    %v8398 = vsub.f32 %v8189, %v8387
    %v8399 = vsub.f32 %v8190, %v8387
    %v8400 = vsub.f32 %v8191, %v8387
    %v8401 = vsub.f32 %v8192, %v8387
    %v8402 = vsub.f32 %v8193, %v8387
    %v8403 = vsub.f32 %v8194, %v8387
    %v8404 = vsub.f32 %v8195, %v8387
    %v8405 = vsub.f32 %v8196, %v8387
    %v8406 = vsub.f32 %v8197, %v8387
    %v8407 = vsub.f32 %v8198, %v8387
    %v8408 = vsub.f32 %v8199, %v8387
    %v8409 = vsub.f32 %v8200, %v8387
    %v8410 = vsub.f32 %v8201, %v8387
    %v8411 = vsub.f32 %v8202, %v8387
    %v8412 = vsub.f32 %v8203, %v8387
    %v8413 = vsub.f32 %v8204, %v8387
    %v8414 = vsub.f32 %v8205, %v8387
    %v8415 = vsub.f32 %v8206, %v8387
    %v8416 = vsub.f32 %v8207, %v8387
    %v8417 = vsub.f32 %v8208, %v8387
    %v8418 = vsub.f32 %v8209, %v8387
    %v8419 = vsub.f32 %v8210, %v8387
    %v8420 = vsub.f32 %v8211, %v8387
    %v8421 = vsub.f32 %v8212, %v8387
    %v8422 = vsub.f32 %v8213, %v8387
    %v8423 = vsub.f32 %v8214, %v8387
    %v8424 = vsub.f32 %v8215, %v8387
    %v8425 = vsub.f32 %v8216, %v8387
    %v8426 = vsub.f32 %v8217, %v8387
    %v8427 = vsub.f32 %v8218, %v8387
    %v8428 = vsub.f32 %v8219, %v8387
    %v8429 = vsub.f32 %v8220, %v8387
    %v8430 = vsub.f32 %v8221, %v8387
    %v8431 = vsub.f32 %v8222, %v8387
    %v8432 = vsub.f32 %v8223, %v8387
    %v8433 = vsub.f32 %v8224, %v8387
    %v8434 = vsub.f32 %v8225, %v8387
    %v8435 = vsub.f32 %v8226, %v8387
    %v8436 = vsub.f32 %v8227, %v8387
    %v8437 = vsub.f32 %v8228, %v8387
    %v8438 = vsub.f32 %v8229, %v8387
    %v8439 = vsub.f32 %v8230, %v8387
    %v8440 = vsub.f32 %v8231, %v8387
    %v8441 = vsub.f32 %v8232, %v8387
    %v8442 = vsub.f32 %v8233, %v8387
    %v8443 = vsub.f32 %v8234, %v8387
    %v8444 = vsub.f32 %v8235, %v8387
    %v8445 = vsub.f32 %v8236, %v8387
    %v8446 = vsub.f32 %v8237, %v8387
    %v8447 = vsub.f32 %v8238, %v8387
    %v8448 = vsub.f32 %v8239, %v8387
    %v8449 = vsub.f32 %v8240, %v8387
    %v8450 = vsub.f32 %v8241, %v8387
    %v8451 = vsub.f32 %v8242, %v8387
    %v8452 = vsub.f32 %v8243, %v8387
    %v8453 = vmul.f32 %v8389, 1.442695
    %v8454 = vpow.pop %v8453
    %v8455 = vmul.f32 %v8390, 1.442695
    %v8456 = vpow.pop %v8455
    %v8457 = vmul.f32 %v8391, 1.442695
    %v8458 = vpow.pop %v8457
    %v8459 = vmul.f32 %v8392, 1.442695
    %v8460 = vpow.pop %v8459
    %v8461 = vmul.f32 %v8393, 1.442695
    %v8462 = vpow.pop %v8461
    %v8463 = vmul.f32 %v8394, 1.442695
    %v8464 = vpow.pop %v8463
    %v8465 = vmul.f32 %v8395, 1.442695
    %v8466 = vpow.pop %v8465
    %v8467 = vmul.f32 %v8396, 1.442695
    %v8468 = vpow.pop %v8467
    %v8469 = vmul.f32 %v8397, 1.442695
    %v8470 = vpow.pop %v8469
    %v8471 = vmul.f32 %v8398, 1.442695
    %v8472 = vpow.pop %v8471
    %v8473 = vmul.f32 %v8399, 1.442695
    %v8474 = vpow.pop %v8473
    %v8475 = vmul.f32 %v8400, 1.442695
    %v8476 = vpow.pop %v8475
    %v8477 = vmul.f32 %v8401, 1.442695
    %v8478 = vpow.pop %v8477
    %v8479 = vmul.f32 %v8402, 1.442695
    %v8480 = vpow.pop %v8479
    %v8481 = vmul.f32 %v8403, 1.442695
    %v8482 = vpow.pop %v8481
    %v8483 = vmul.f32 %v8404, 1.442695
    %v8484 = vpow.pop %v8483
    %v8485 = vmul.f32 %v8405, 1.442695
    %v8486 = vpow.pop %v8485
    %v8487 = vmul.f32 %v8406, 1.442695
    %v8488 = vpow.pop %v8487
    %v8489 = vmul.f32 %v8407, 1.442695
    %v8490 = vpow.pop %v8489
    %v8491 = vmul.f32 %v8408, 1.442695
    %v8492 = vpow.pop %v8491
    %v8493 = vmul.f32 %v8409, 1.442695
    %v8494 = vpow.pop %v8493
    %v8495 = vmul.f32 %v8410, 1.442695
    %v8496 = vpow.pop %v8495
    %v8497 = vmul.f32 %v8411, 1.442695
    %v8498 = vpow.pop %v8497
    %v8499 = vmul.f32 %v8412, 1.442695
    %v8500 = vpow.pop %v8499
    %v8501 = vmul.f32 %v8413, 1.442695
    %v8502 = vpow.pop %v8501
    %v8503 = vmul.f32 %v8414, 1.442695
    %v8504 = vpow.pop %v8503
    %v8505 = vmul.f32 %v8415, 1.442695
    %v8506 = vpow.pop %v8505
    %v8507 = vmul.f32 %v8416, 1.442695
    %v8508 = vpow.pop %v8507
    %v8509 = vmul.f32 %v8417, 1.442695
    %v8510 = vpow.pop %v8509
    %v8511 = vmul.f32 %v8418, 1.442695
    %v8512 = vpow.pop %v8511
    %v8513 = vmul.f32 %v8419, 1.442695
    %v8514 = vpow.pop %v8513
    %v8515 = vmul.f32 %v8420, 1.442695
    %v8516 = vpow.pop %v8515
    %v8517 = vmul.f32 %v8421, 1.442695
    %v8518 = vpow.pop %v8517
    %v8519 = vmul.f32 %v8422, 1.442695
    %v8520 = vpow.pop %v8519
    %v8521 = vmul.f32 %v8423, 1.442695
    %v8522 = vpow.pop %v8521
    %v8523 = vmul.f32 %v8424, 1.442695
    %v8524 = vpow.pop %v8523
    %v8525 = vmul.f32 %v8425, 1.442695
    %v8526 = vpow.pop %v8525
    %v8527 = vmul.f32 %v8426, 1.442695
    %v8528 = vpow.pop %v8527
    %v8529 = vmul.f32 %v8427, 1.442695
    %v8530 = vpow.pop %v8529
    %v8531 = vmul.f32 %v8428, 1.442695
    %v8532 = vpow.pop %v8531
    %v8533 = vmul.f32 %v8429, 1.442695
    %v8534 = vpow.pop %v8533
    %v8535 = vmul.f32 %v8430, 1.442695
    %v8536 = vpow.pop %v8535
    %v8537 = vmul.f32 %v8431, 1.442695
    %v8538 = vpow.pop %v8537
    %v8539 = vmul.f32 %v8432, 1.442695
    %v8540 = vpow.pop %v8539
    %v8541 = vmul.f32 %v8433, 1.442695
    %v8542 = vpow.pop %v8541
    %v8543 = vmul.f32 %v8434, 1.442695
    %v8544 = vpow.pop %v8543
    %v8545 = vmul.f32 %v8435, 1.442695
    %v8546 = vpow.pop %v8545
    %v8547 = vmul.f32 %v8436, 1.442695
    %v8548 = vpow.pop %v8547
    %v8549 = vmul.f32 %v8437, 1.442695
    %v8550 = vpow.pop %v8549
    %v8551 = vmul.f32 %v8438, 1.442695
    %v8552 = vpow.pop %v8551
    %v8553 = vmul.f32 %v8439, 1.442695
    %v8554 = vpow.pop %v8553
    %v8555 = vmul.f32 %v8440, 1.442695
    %v8556 = vpow.pop %v8555
    %v8557 = vmul.f32 %v8441, 1.442695
    %v8558 = vpow.pop %v8557
    %v8559 = vmul.f32 %v8442, 1.442695
    %v8560 = vpow.pop %v8559
    %v8561 = vmul.f32 %v8443, 1.442695
    %v8562 = vpow.pop %v8561
    %v8563 = vmul.f32 %v8444, 1.442695
    %v8564 = vpow.pop %v8563
    %v8565 = vmul.f32 %v8445, 1.442695
    %v8566 = vpow.pop %v8565
    %v8567 = vmul.f32 %v8446, 1.442695
    %v8568 = vpow.pop %v8567
    %v8569 = vmul.f32 %v8447, 1.442695
    %v8570 = vpow.pop %v8569
    %v8571 = vmul.f32 %v8448, 1.442695
    %v8572 = vpow.pop %v8571
    %v8573 = vmul.f32 %v8449, 1.442695
    %v8574 = vpow.pop %v8573
    %v8575 = vmul.f32 %v8450, 1.442695
    %v8576 = vpow.pop %v8575
    %v8577 = vmul.f32 %v8451, 1.442695
    %v8578 = vpow.pop %v8577
    %v8579 = vmul.f32 %v8452, 1.442695
    %v8580 = vpow.pop %v8579
    %v8581 = vld [vmem:[#allocation4] sm:$0x1]
    %v8582 = vmul.f32 %v8382, %v8581
    %v8583 = vsel %vm8245, %v8454, 0.0
    %v8584 = vsel %vm8245, %v8456, 0.0
    %v8585 = vadd.f32 %v8583, %v8584
    %v8586 = vsel %vm8245, %v8458, 0.0
    %v8587 = vadd.f32 %v8585, %v8586
    %v8588 = vsel %vm8245, %v8460, 0.0
    %v8589 = vadd.f32 %v8587, %v8588
    %v8590 = vsel %vm8245, %v8462, 0.0
    %v8591 = vadd.f32 %v8589, %v8590
    %v8592 = vsel %vm8245, %v8464, 0.0
    %v8593 = vadd.f32 %v8591, %v8592
    %v8594 = vsel %vm8245, %v8466, 0.0
    %v8595 = vadd.f32 %v8593, %v8594
    %v8596 = vsel %vm8245, %v8468, 0.0
    %v8597 = vadd.f32 %v8595, %v8596
    %v8598 = vsel %vm8245, %v8470, 0.0
    %v8599 = vadd.f32 %v8597, %v8598
    %v8600 = vsel %vm8245, %v8472, 0.0
    %v8601 = vadd.f32 %v8599, %v8600
    %v8602 = vsel %vm8245, %v8474, 0.0
    %v8603 = vadd.f32 %v8601, %v8602
    %v8604 = vsel %vm8245, %v8476, 0.0
    %v8605 = vadd.f32 %v8603, %v8604
    %v8606 = vsel %vm8245, %v8478, 0.0
    %v8607 = vadd.f32 %v8605, %v8606
    %v8608 = vsel %vm8245, %v8480, 0.0
    %v8609 = vadd.f32 %v8607, %v8608
    %v8610 = vsel %vm8245, %v8482, 0.0
    %v8611 = vadd.f32 %v8609, %v8610
    %v8612 = vsel %vm8245, %v8484, 0.0
    %v8613 = vadd.f32 %v8611, %v8612
    %v8614 = vsel %vm8245, %v8486, 0.0
    %v8615 = vadd.f32 %v8613, %v8614
    %v8616 = vsel %vm8245, %v8488, 0.0
    %v8617 = vadd.f32 %v8615, %v8616
    %v8618 = vsel %vm8245, %v8490, 0.0
    %v8619 = vadd.f32 %v8617, %v8618
    %v8620 = vsel %vm8245, %v8492, 0.0
    %v8621 = vadd.f32 %v8619, %v8620
    %v8622 = vsel %vm8245, %v8494, 0.0
    %v8623 = vadd.f32 %v8621, %v8622
    %v8624 = vsel %vm8245, %v8496, 0.0
    %v8625 = vadd.f32 %v8623, %v8624
    %v8626 = vsel %vm8245, %v8498, 0.0
    %v8627 = vadd.f32 %v8625, %v8626
    %v8628 = vsel %vm8245, %v8500, 0.0
    %v8629 = vadd.f32 %v8627, %v8628
    %v8630 = vsel %vm8245, %v8502, 0.0
    %v8631 = vadd.f32 %v8629, %v8630
    %v8632 = vsel %vm8245, %v8504, 0.0
    %v8633 = vadd.f32 %v8631, %v8632
    %v8634 = vsel %vm8245, %v8506, 0.0
    %v8635 = vadd.f32 %v8633, %v8634
    %v8636 = vsel %vm8245, %v8508, 0.0
    %v8637 = vadd.f32 %v8635, %v8636
    %v8638 = vsel %vm8245, %v8510, 0.0
    %v8639 = vadd.f32 %v8637, %v8638
    %v8640 = vsel %vm8245, %v8512, 0.0
    %v8641 = vadd.f32 %v8639, %v8640
    %v8642 = vsel %vm8245, %v8514, 0.0
    %v8643 = vadd.f32 %v8641, %v8642
    %v8644 = vsel %vm8245, %v8516, 0.0
    %v8645 = vadd.f32 %v8643, %v8644
    %v8646 = vsel %vm8245, %v8518, 0.0
    %v8647 = vadd.f32 %v8645, %v8646
    %v8648 = vsel %vm8245, %v8520, 0.0
    %v8649 = vadd.f32 %v8647, %v8648
    %v8650 = vsel %vm8245, %v8522, 0.0
    %v8651 = vadd.f32 %v8649, %v8650
    %v8652 = vsel %vm8245, %v8524, 0.0
    %v8653 = vadd.f32 %v8651, %v8652
    %v8654 = vsel %vm8245, %v8526, 0.0
    %v8655 = vadd.f32 %v8653, %v8654
    %v8656 = vsel %vm8245, %v8528, 0.0
    %v8657 = vadd.f32 %v8655, %v8656
    %v8658 = vsel %vm8245, %v8530, 0.0
    %v8659 = vadd.f32 %v8657, %v8658
    %v8660 = vsel %vm8245, %v8532, 0.0
    %v8661 = vadd.f32 %v8659, %v8660
    %v8662 = vsel %vm8245, %v8534, 0.0
    %v8663 = vadd.f32 %v8661, %v8662
    %v8664 = vsel %vm8245, %v8536, 0.0
    %v8665 = vadd.f32 %v8663, %v8664
    %v8666 = vsel %vm8245, %v8538, 0.0
    %v8667 = vadd.f32 %v8665, %v8666
    %v8668 = vsel %vm8245, %v8540, 0.0
    %v8669 = vadd.f32 %v8667, %v8668
    %v8670 = vsel %vm8245, %v8542, 0.0
    %v8671 = vadd.f32 %v8669, %v8670
    %v8672 = vsel %vm8245, %v8544, 0.0
    %v8673 = vadd.f32 %v8671, %v8672
    %v8674 = vsel %vm8245, %v8546, 0.0
    %v8675 = vadd.f32 %v8673, %v8674
    %v8676 = vsel %vm8245, %v8548, 0.0
    %v8677 = vadd.f32 %v8675, %v8676
    %v8678 = vsel %vm8245, %v8550, 0.0
    %v8679 = vadd.f32 %v8677, %v8678
    %v8680 = vsel %vm8245, %v8552, 0.0
    %v8681 = vadd.f32 %v8679, %v8680
    %v8682 = vsel %vm8245, %v8554, 0.0
    %v8683 = vadd.f32 %v8681, %v8682
    %v8684 = vsel %vm8245, %v8556, 0.0
    %v8685 = vadd.f32 %v8683, %v8684
    %v8686 = vsel %vm8245, %v8558, 0.0
    %v8687 = vadd.f32 %v8685, %v8686
    %v8688 = vsel %vm8245, %v8560, 0.0
    %v8689 = vadd.f32 %v8687, %v8688
    %v8690 = vsel %vm8245, %v8562, 0.0
    %v8691 = vadd.f32 %v8689, %v8690
    %v8692 = vsel %vm8245, %v8564, 0.0
    %v8693 = vadd.f32 %v8691, %v8692
    %v8694 = vsel %vm8245, %v8566, 0.0
    %v8695 = vadd.f32 %v8693, %v8694
    %v8696 = vsel %vm8245, %v8568, 0.0
    %v8697 = vadd.f32 %v8695, %v8696
    %v8698 = vsel %vm8245, %v8570, 0.0
    %v8699 = vadd.f32 %v8697, %v8698
    %v8700 = vsel %vm8245, %v8572, 0.0
    %v8701 = vadd.f32 %v8699, %v8700
    %v8702 = vsel %vm8245, %v8574, 0.0
    %v8703 = vadd.f32 %v8701, %v8702
    %v8704 = vsel %vm8245, %v8576, 0.0
    %v8705 = vadd.f32 %v8703, %v8704
    %v8706 = vsel %vm8245, %v8578, 0.0
    %v8707 = vadd.f32 %v8705, %v8706
    %v8708 = vsel %vm8245, %v8580, 0.0
    %v8709 = vadd.f32 %v8707, %v8708
    %v8710 = vrot.slane %v8709, 4
    %v8711 = vadd.f32 %v8709, %v8710
    %v8712 = vrot.slane %v8711, 2
    %v8713 = vadd.f32 %v8711, %v8712
    %v8714 = vrot.slane %v8713, 1
    %v8715 = vadd.f32 %v8713, %v8714
    %v8716 = vadd.f32 %v8582, %v8715
    %vm8717 = vcmask 0
    %8718 = vst.msk [vmem:[#allocation4] sm:$0x1] %vm8717, %v8716
    %v8719 = vld [vmem:[#allocation2] sm:$0x3]
    %8721 = vset.pattern.permute.xlu0 0
    %8722 = vperm.xlu0 %8721, %v8382
    %v8723 = vpop.permute.xlu0 %8722
    %v8725 = vlaneseq
    %v8726 = vshrl.u32 %v8725, 7
    %v8727 = vsub.s32 0, %v8726
    %v8728 = vrot.slane %v8723, %v8727
    %v8729 = vmul.f32 %v8728, %v8719
    %8731 = vset.pattern.permute.xlu0 0
    %8732 = vperm.xlu0 %8731, %v8454
    %v8733 = vpop.permute.xlu0 %8732
    %8736 = vset.pattern.permute.xlu0 0
    %8737 = vperm.xlu0 %8736, %v8456
    %v8738 = vpop.permute.xlu0 %8737
    %8741 = vset.pattern.permute.xlu0 0
    %8742 = vperm.xlu0 %8741, %v8458
    %v8743 = vpop.permute.xlu0 %8742
    %8746 = vset.pattern.permute.xlu0 0
    %8747 = vperm.xlu0 %8746, %v8460
    %v8748 = vpop.permute.xlu0 %8747
    %8751 = vset.pattern.permute.xlu0 0
    %8752 = vperm.xlu0 %8751, %v8462
    %v8753 = vpop.permute.xlu0 %8752
    %8756 = vset.pattern.permute.xlu0 0
    %8757 = vperm.xlu0 %8756, %v8464
    %v8758 = vpop.permute.xlu0 %8757
    %8761 = vset.pattern.permute.xlu0 0
    %8762 = vperm.xlu0 %8761, %v8466
    %v8763 = vpop.permute.xlu0 %8762
    %8766 = vset.pattern.permute.xlu0 0
    %8767 = vperm.xlu0 %8766, %v8468
    %v8768 = vpop.permute.xlu0 %8767
    %8771 = vset.pattern.permute.xlu0 0
    %8772 = vperm.xlu0 %8771, %v8470
    %v8773 = vpop.permute.xlu0 %8772
    %8776 = vset.pattern.permute.xlu0 0
    %8777 = vperm.xlu0 %8776, %v8472
    %v8778 = vpop.permute.xlu0 %8777
    %8781 = vset.pattern.permute.xlu0 0
    %8782 = vperm.xlu0 %8781, %v8474
    %v8783 = vpop.permute.xlu0 %8782
    %8786 = vset.pattern.permute.xlu0 0
    %8787 = vperm.xlu0 %8786, %v8476
    %v8788 = vpop.permute.xlu0 %8787
    %8791 = vset.pattern.permute.xlu0 0
    %8792 = vperm.xlu0 %8791, %v8478
    %v8793 = vpop.permute.xlu0 %8792
    %8796 = vset.pattern.permute.xlu0 0
    %8797 = vperm.xlu0 %8796, %v8480
    %v8798 = vpop.permute.xlu0 %8797
    %8801 = vset.pattern.permute.xlu0 0
    %8802 = vperm.xlu0 %8801, %v8482
    %v8803 = vpop.permute.xlu0 %8802
    %8806 = vset.pattern.permute.xlu0 0
    %8807 = vperm.xlu0 %8806, %v8484
    %v8808 = vpop.permute.xlu0 %8807
    %8811 = vset.pattern.permute.xlu0 0
    %8812 = vperm.xlu0 %8811, %v8486
    %v8813 = vpop.permute.xlu0 %8812
    %8816 = vset.pattern.permute.xlu0 0
    %8817 = vperm.xlu0 %8816, %v8488
    %v8818 = vpop.permute.xlu0 %8817
    %8821 = vset.pattern.permute.xlu0 0
    %8822 = vperm.xlu0 %8821, %v8490
    %v8823 = vpop.permute.xlu0 %8822
    %8826 = vset.pattern.permute.xlu0 0
    %8827 = vperm.xlu0 %8826, %v8492
    %v8828 = vpop.permute.xlu0 %8827
    %8831 = vset.pattern.permute.xlu0 0
    %8832 = vperm.xlu0 %8831, %v8494
    %v8833 = vpop.permute.xlu0 %8832
    %8836 = vset.pattern.permute.xlu0 0
    %8837 = vperm.xlu0 %8836, %v8496
    %v8838 = vpop.permute.xlu0 %8837
    %8841 = vset.pattern.permute.xlu0 0
    %8842 = vperm.xlu0 %8841, %v8498
    %v8843 = vpop.permute.xlu0 %8842
    %8846 = vset.pattern.permute.xlu0 0
    %8847 = vperm.xlu0 %8846, %v8500
    %v8848 = vpop.permute.xlu0 %8847
    %8851 = vset.pattern.permute.xlu0 0
    %8852 = vperm.xlu0 %8851, %v8502
    %v8853 = vpop.permute.xlu0 %8852
    %8856 = vset.pattern.permute.xlu0 0
    %8857 = vperm.xlu0 %8856, %v8504
    %v8858 = vpop.permute.xlu0 %8857
    %8861 = vset.pattern.permute.xlu0 0
    %8862 = vperm.xlu0 %8861, %v8506
    %v8863 = vpop.permute.xlu0 %8862
    %8866 = vset.pattern.permute.xlu0 0
    %8867 = vperm.xlu0 %8866, %v8508
    %v8868 = vpop.permute.xlu0 %8867
    %8871 = vset.pattern.permute.xlu0 0
    %8872 = vperm.xlu0 %8871, %v8510
    %v8873 = vpop.permute.xlu0 %8872
    %8876 = vset.pattern.permute.xlu0 0
    %8877 = vperm.xlu0 %8876, %v8512
    %v8878 = vpop.permute.xlu0 %8877
    %8881 = vset.pattern.permute.xlu0 0
    %8882 = vperm.xlu0 %8881, %v8514
    %v8883 = vpop.permute.xlu0 %8882
    %8886 = vset.pattern.permute.xlu0 0
    %8887 = vperm.xlu0 %8886, %v8516
    %v8888 = vpop.permute.xlu0 %8887
    %8891 = vset.pattern.permute.xlu0 0
    %8892 = vperm.xlu0 %8891, %v8518
    %v8893 = vpop.permute.xlu0 %8892
    %8896 = vset.pattern.permute.xlu0 0
    %8897 = vperm.xlu0 %8896, %v8520
    %v8898 = vpop.permute.xlu0 %8897
    %8901 = vset.pattern.permute.xlu0 0
    %8902 = vperm.xlu0 %8901, %v8522
    %v8903 = vpop.permute.xlu0 %8902
    %8906 = vset.pattern.permute.xlu0 0
    %8907 = vperm.xlu0 %8906, %v8524
    %v8908 = vpop.permute.xlu0 %8907
    %8911 = vset.pattern.permute.xlu0 0
    %8912 = vperm.xlu0 %8911, %v8526
    %v8913 = vpop.permute.xlu0 %8912
    %8916 = vset.pattern.permute.xlu0 0
    %8917 = vperm.xlu0 %8916, %v8528
    %v8918 = vpop.permute.xlu0 %8917
    %8921 = vset.pattern.permute.xlu0 0
    %8922 = vperm.xlu0 %8921, %v8530
    %v8923 = vpop.permute.xlu0 %8922
    %8926 = vset.pattern.permute.xlu0 0
    %8927 = vperm.xlu0 %8926, %v8532
    %v8928 = vpop.permute.xlu0 %8927
    %8931 = vset.pattern.permute.xlu0 0
    %8932 = vperm.xlu0 %8931, %v8534
    %v8933 = vpop.permute.xlu0 %8932
    %8936 = vset.pattern.permute.xlu0 0
    %8937 = vperm.xlu0 %8936, %v8536
    %v8938 = vpop.permute.xlu0 %8937
    %8941 = vset.pattern.permute.xlu0 0
    %8942 = vperm.xlu0 %8941, %v8538
    %v8943 = vpop.permute.xlu0 %8942
    %8946 = vset.pattern.permute.xlu0 0
    %8947 = vperm.xlu0 %8946, %v8540
    %v8948 = vpop.permute.xlu0 %8947
    %8951 = vset.pattern.permute.xlu0 0
    %8952 = vperm.xlu0 %8951, %v8542
    %v8953 = vpop.permute.xlu0 %8952
    %8956 = vset.pattern.permute.xlu0 0
    %8957 = vperm.xlu0 %8956, %v8544
    %v8958 = vpop.permute.xlu0 %8957
    %8961 = vset.pattern.permute.xlu0 0
    %8962 = vperm.xlu0 %8961, %v8546
    %v8963 = vpop.permute.xlu0 %8962
    %8966 = vset.pattern.permute.xlu0 0
    %8967 = vperm.xlu0 %8966, %v8548
    %v8968 = vpop.permute.xlu0 %8967
    %8971 = vset.pattern.permute.xlu0 0
    %8972 = vperm.xlu0 %8971, %v8550
    %v8973 = vpop.permute.xlu0 %8972
    %8976 = vset.pattern.permute.xlu0 0
    %8977 = vperm.xlu0 %8976, %v8552
    %v8978 = vpop.permute.xlu0 %8977
    %8981 = vset.pattern.permute.xlu0 0
    %8982 = vperm.xlu0 %8981, %v8554
    %v8983 = vpop.permute.xlu0 %8982
    %8986 = vset.pattern.permute.xlu0 0
    %8987 = vperm.xlu0 %8986, %v8556
    %v8988 = vpop.permute.xlu0 %8987
    %8991 = vset.pattern.permute.xlu0 0
    %8992 = vperm.xlu0 %8991, %v8558
    %v8993 = vpop.permute.xlu0 %8992
    %8996 = vset.pattern.permute.xlu0 0
    %8997 = vperm.xlu0 %8996, %v8560
    %v8998 = vpop.permute.xlu0 %8997
    %9001 = vset.pattern.permute.xlu0 0
    %9002 = vperm.xlu0 %9001, %v8562
    %v9003 = vpop.permute.xlu0 %9002
    %9006 = vset.pattern.permute.xlu0 0
    %9007 = vperm.xlu0 %9006, %v8564
    %v9008 = vpop.permute.xlu0 %9007
    %9011 = vset.pattern.permute.xlu0 0
    %9012 = vperm.xlu0 %9011, %v8566
    %v9013 = vpop.permute.xlu0 %9012
    %9016 = vset.pattern.permute.xlu0 0
    %9017 = vperm.xlu0 %9016, %v8568
    %v9018 = vpop.permute.xlu0 %9017
    %9021 = vset.pattern.permute.xlu0 0
    %9022 = vperm.xlu0 %9021, %v8570
    %v9023 = vpop.permute.xlu0 %9022
    %9026 = vset.pattern.permute.xlu0 0
    %9027 = vperm.xlu0 %9026, %v8572
    %v9028 = vpop.permute.xlu0 %9027
    %9031 = vset.pattern.permute.xlu0 0
    %9032 = vperm.xlu0 %9031, %v8574
    %v9033 = vpop.permute.xlu0 %9032
    %9036 = vset.pattern.permute.xlu0 0
    %9037 = vperm.xlu0 %9036, %v8576
    %v9038 = vpop.permute.xlu0 %9037
    %9041 = vset.pattern.permute.xlu0 0
    %9042 = vperm.xlu0 %9041, %v8578
    %v9043 = vpop.permute.xlu0 %9042
    %9046 = vset.pattern.permute.xlu0 0
    %9047 = vperm.xlu0 %9046, %v8580
    %v9048 = vpop.permute.xlu0 %9047
    %v9050 = vmul.f32 %v8733, %v6035
    %v9051 = vmul.f32 %v8733, %v6036
    %v9052 = vmul.f32 %v8738, %v6039
    %v9053 = vmul.f32 %v8738, %v6040
    %v9054 = vmul.f32 %v8743, %v6043
    %v9055 = vmul.f32 %v8743, %v6044
    %v9056 = vmul.f32 %v8748, %v6047
    %v9057 = vmul.f32 %v8748, %v6048
    %v9058 = vmul.f32 %v8753, %v6051
    %v9059 = vmul.f32 %v8753, %v6052
    %v9060 = vmul.f32 %v8758, %v6055
    %v9061 = vmul.f32 %v8758, %v6056
    %v9062 = vmul.f32 %v8763, %v6059
    %v9063 = vmul.f32 %v8763, %v6060
    %v9064 = vmul.f32 %v8768, %v6063
    %v9065 = vmul.f32 %v8768, %v6064
    %v9066 = vmul.f32 %v8773, %v6067
    %v9067 = vmul.f32 %v8773, %v6068
    %v9068 = vmul.f32 %v8778, %v6071
    %v9069 = vmul.f32 %v8778, %v6072
    %v9070 = vmul.f32 %v8783, %v6075
    %v9071 = vmul.f32 %v8783, %v6076
    %v9072 = vmul.f32 %v8788, %v6079
    %v9073 = vmul.f32 %v8788, %v6080
    %v9074 = vmul.f32 %v8793, %v6083
    %v9075 = vmul.f32 %v8793, %v6084
    %v9076 = vmul.f32 %v8798, %v6087
    %v9077 = vmul.f32 %v8798, %v6088
    %v9078 = vmul.f32 %v8803, %v6091
    %v9079 = vmul.f32 %v8803, %v6092
    %v9080 = vmul.f32 %v8808, %v6095
    %v9081 = vmul.f32 %v8808, %v6096
    %v9082 = vmul.f32 %v8813, %v6099
    %v9083 = vmul.f32 %v8813, %v6100
    %v9084 = vmul.f32 %v8818, %v6103
    %v9085 = vmul.f32 %v8818, %v6104
    %v9086 = vmul.f32 %v8823, %v6107
    %v9087 = vmul.f32 %v8823, %v6108
    %v9088 = vmul.f32 %v8828, %v6111
    %v9089 = vmul.f32 %v8828, %v6112
    %v9090 = vmul.f32 %v8833, %v6115
    %v9091 = vmul.f32 %v8833, %v6116
    %v9092 = vmul.f32 %v8838, %v6119
    %v9093 = vmul.f32 %v8838, %v6120
    %v9094 = vmul.f32 %v8843, %v6123
    %v9095 = vmul.f32 %v8843, %v6124
    %v9096 = vmul.f32 %v8848, %v6127
    %v9097 = vmul.f32 %v8848, %v6128
    %v9098 = vmul.f32 %v8853, %v6131
    %v9099 = vmul.f32 %v8853, %v6132
    %v9100 = vmul.f32 %v8858, %v6135
    %v9101 = vmul.f32 %v8858, %v6136
    %v9102 = vmul.f32 %v8863, %v6139
    %v9103 = vmul.f32 %v8863, %v6140
    %v9104 = vmul.f32 %v8868, %v6143
    %v9105 = vmul.f32 %v8868, %v6144
    %v9106 = vmul.f32 %v8873, %v6147
    %v9107 = vmul.f32 %v8873, %v6148
    %v9108 = vmul.f32 %v8878, %v6151
    %v9109 = vmul.f32 %v8878, %v6152
    %v9110 = vmul.f32 %v8883, %v6155
    %v9111 = vmul.f32 %v8883, %v6156
    %v9112 = vmul.f32 %v8888, %v6159
    %v9113 = vmul.f32 %v8888, %v6160
    %v9114 = vmul.f32 %v8893, %v6163
    %v9115 = vmul.f32 %v8893, %v6164
    %v9116 = vmul.f32 %v8898, %v6167
    %v9117 = vmul.f32 %v8898, %v6168
    %v9118 = vmul.f32 %v8903, %v6171
    %v9119 = vmul.f32 %v8903, %v6172
    %v9120 = vmul.f32 %v8908, %v6175
    %v9121 = vmul.f32 %v8908, %v6176
    %v9122 = vmul.f32 %v8913, %v6179
    %v9123 = vmul.f32 %v8913, %v6180
    %v9124 = vmul.f32 %v8918, %v6183
    %v9125 = vmul.f32 %v8918, %v6184
    %v9126 = vmul.f32 %v8923, %v6187
    %v9127 = vmul.f32 %v8923, %v6188
    %v9128 = vmul.f32 %v8928, %v6191
    %v9129 = vmul.f32 %v8928, %v6192
    %v9130 = vmul.f32 %v8933, %v6195
    %v9131 = vmul.f32 %v8933, %v6196
    %v9132 = vmul.f32 %v8938, %v6199
    %v9133 = vmul.f32 %v8938, %v6200
    %v9134 = vmul.f32 %v8943, %v6203
    %v9135 = vmul.f32 %v8943, %v6204
    %v9136 = vmul.f32 %v8948, %v6207
    %v9137 = vmul.f32 %v8948, %v6208
    %v9138 = vmul.f32 %v8953, %v6211
    %v9139 = vmul.f32 %v8953, %v6212
    %v9140 = vmul.f32 %v8958, %v6215
    %v9141 = vmul.f32 %v8958, %v6216
    %v9142 = vmul.f32 %v8963, %v6219
    %v9143 = vmul.f32 %v8963, %v6220
    %v9144 = vmul.f32 %v8968, %v6223
    %v9145 = vmul.f32 %v8968, %v6224
    %v9146 = vmul.f32 %v8973, %v6227
    %v9147 = vmul.f32 %v8973, %v6228
    %v9148 = vmul.f32 %v8978, %v6231
    %v9149 = vmul.f32 %v8978, %v6232
    %v9150 = vmul.f32 %v8983, %v6235
    %v9151 = vmul.f32 %v8983, %v6236
    %v9152 = vmul.f32 %v8988, %v6239
    %v9153 = vmul.f32 %v8988, %v6240
    %v9154 = vmul.f32 %v8993, %v6243
    %v9155 = vmul.f32 %v8993, %v6244
    %v9156 = vmul.f32 %v8998, %v6247
    %v9157 = vmul.f32 %v8998, %v6248
    %v9158 = vmul.f32 %v9003, %v6251
    %v9159 = vmul.f32 %v9003, %v6252
    %v9160 = vmul.f32 %v9008, %v6255
    %v9161 = vmul.f32 %v9008, %v6256
    %v9162 = vmul.f32 %v9013, %v6259
    %v9163 = vmul.f32 %v9013, %v6260
    %v9164 = vmul.f32 %v9018, %v6263
    %v9165 = vmul.f32 %v9018, %v6264
    %v9166 = vmul.f32 %v9023, %v6267
    %v9167 = vmul.f32 %v9023, %v6268
    %v9168 = vmul.f32 %v9028, %v6271
    %v9169 = vmul.f32 %v9028, %v6272
    %v9170 = vmul.f32 %v9033, %v6275
    %v9171 = vmul.f32 %v9033, %v6276
    %v9172 = vmul.f32 %v9038, %v6279
    %v9173 = vmul.f32 %v9038, %v6280
    %v9174 = vmul.f32 %v9043, %v6283
    %v9175 = vmul.f32 %v9043, %v6284
    %v9176 = vmul.f32 %v9048, %v6287
    %v9177 = vmul.f32 %v9048, %v6288
    %v9178 = vadd.f32 %v9050, %v9052
    %v9179 = vadd.f32 %v9178, %v9054
    %v9180 = vadd.f32 %v9179, %v9056
    %v9181 = vadd.f32 %v9180, %v9058
    %v9182 = vadd.f32 %v9181, %v9060
    %v9183 = vadd.f32 %v9182, %v9062
    %v9184 = vadd.f32 %v9183, %v9064
    %v9185 = vadd.f32 %v9184, %v9066
    %v9186 = vadd.f32 %v9185, %v9068
    %v9187 = vadd.f32 %v9186, %v9070
    %v9188 = vadd.f32 %v9187, %v9072
    %v9189 = vadd.f32 %v9188, %v9074
    %v9190 = vadd.f32 %v9189, %v9076
    %v9191 = vadd.f32 %v9190, %v9078
    %v9192 = vadd.f32 %v9191, %v9080
    %v9193 = vadd.f32 %v9192, %v9082
    %v9194 = vadd.f32 %v9193, %v9084
    %v9195 = vadd.f32 %v9194, %v9086
    %v9196 = vadd.f32 %v9195, %v9088
    %v9197 = vadd.f32 %v9196, %v9090
    %v9198 = vadd.f32 %v9197, %v9092
    %v9199 = vadd.f32 %v9198, %v9094
    %v9200 = vadd.f32 %v9199, %v9096
    %v9201 = vadd.f32 %v9200, %v9098
    %v9202 = vadd.f32 %v9201, %v9100
    %v9203 = vadd.f32 %v9202, %v9102
    %v9204 = vadd.f32 %v9203, %v9104
    %v9205 = vadd.f32 %v9204, %v9106
    %v9206 = vadd.f32 %v9205, %v9108
    %v9207 = vadd.f32 %v9206, %v9110
    %v9208 = vadd.f32 %v9207, %v9112
    %v9209 = vadd.f32 %v9208, %v9114
    %v9210 = vadd.f32 %v9209, %v9116
    %v9211 = vadd.f32 %v9210, %v9118
    %v9212 = vadd.f32 %v9211, %v9120
    %v9213 = vadd.f32 %v9212, %v9122
    %v9214 = vadd.f32 %v9213, %v9124
    %v9215 = vadd.f32 %v9214, %v9126
    %v9216 = vadd.f32 %v9215, %v9128
    %v9217 = vadd.f32 %v9216, %v9130
    %v9218 = vadd.f32 %v9217, %v9132
    %v9219 = vadd.f32 %v9218, %v9134
    %v9220 = vadd.f32 %v9219, %v9136
    %v9221 = vadd.f32 %v9220, %v9138
    %v9222 = vadd.f32 %v9221, %v9140
    %v9223 = vadd.f32 %v9222, %v9142
    %v9224 = vadd.f32 %v9223, %v9144
    %v9225 = vadd.f32 %v9224, %v9146
    %v9226 = vadd.f32 %v9225, %v9148
    %v9227 = vadd.f32 %v9226, %v9150
    %v9228 = vadd.f32 %v9227, %v9152
    %v9229 = vadd.f32 %v9228, %v9154
    %v9230 = vadd.f32 %v9229, %v9156
    %v9231 = vadd.f32 %v9230, %v9158
    %v9232 = vadd.f32 %v9231, %v9160
    %v9233 = vadd.f32 %v9232, %v9162
    %v9234 = vadd.f32 %v9233, %v9164
    %v9235 = vadd.f32 %v9234, %v9166
    %v9236 = vadd.f32 %v9235, %v9168
    %v9237 = vadd.f32 %v9236, %v9170
    %v9238 = vadd.f32 %v9237, %v9172
    %v9239 = vadd.f32 %v9238, %v9174
    %v9240 = vadd.f32 %v9239, %v9176
    %v9241 = vrot.slane %v9240, 4
    %v9242 = vadd.f32 %v9240, %v9241
    %v9243 = vrot.slane %v9242, 2
    %v9244 = vadd.f32 %v9242, %v9243
    %v9245 = vrot.slane %v9244, 1
    %v9246 = vadd.f32 %v9244, %v9245
    %v9247 = vadd.f32 %v9051, %v9053
    %v9248 = vadd.f32 %v9247, %v9055
    %v9249 = vadd.f32 %v9248, %v9057
    %v9250 = vadd.f32 %v9249, %v9059
    %v9251 = vadd.f32 %v9250, %v9061
    %v9252 = vadd.f32 %v9251, %v9063
    %v9253 = vadd.f32 %v9252, %v9065
    %v9254 = vadd.f32 %v9253, %v9067
    %v9255 = vadd.f32 %v9254, %v9069
    %v9256 = vadd.f32 %v9255, %v9071
    %v9257 = vadd.f32 %v9256, %v9073
    %v9258 = vadd.f32 %v9257, %v9075
    %v9259 = vadd.f32 %v9258, %v9077
    %v9260 = vadd.f32 %v9259, %v9079
    %v9261 = vadd.f32 %v9260, %v9081
    %v9262 = vadd.f32 %v9261, %v9083
    %v9263 = vadd.f32 %v9262, %v9085
    %v9264 = vadd.f32 %v9263, %v9087
    %v9265 = vadd.f32 %v9264, %v9089
    %v9266 = vadd.f32 %v9265, %v9091
    %v9267 = vadd.f32 %v9266, %v9093
    %v9268 = vadd.f32 %v9267, %v9095
    %v9269 = vadd.f32 %v9268, %v9097
    %v9270 = vadd.f32 %v9269, %v9099
    %v9271 = vadd.f32 %v9270, %v9101
    %v9272 = vadd.f32 %v9271, %v9103
    %v9273 = vadd.f32 %v9272, %v9105
    %v9274 = vadd.f32 %v9273, %v9107
    %v9275 = vadd.f32 %v9274, %v9109
    %v9276 = vadd.f32 %v9275, %v9111
    %v9277 = vadd.f32 %v9276, %v9113
    %v9278 = vadd.f32 %v9277, %v9115
    %v9279 = vadd.f32 %v9278, %v9117
    %v9280 = vadd.f32 %v9279, %v9119
    %v9281 = vadd.f32 %v9280, %v9121
    %v9282 = vadd.f32 %v9281, %v9123
    %v9283 = vadd.f32 %v9282, %v9125
    %v9284 = vadd.f32 %v9283, %v9127
    %v9285 = vadd.f32 %v9284, %v9129
    %v9286 = vadd.f32 %v9285, %v9131
    %v9287 = vadd.f32 %v9286, %v9133
    %v9288 = vadd.f32 %v9287, %v9135
    %v9289 = vadd.f32 %v9288, %v9137
    %v9290 = vadd.f32 %v9289, %v9139
    %v9291 = vadd.f32 %v9290, %v9141
    %v9292 = vadd.f32 %v9291, %v9143
    %v9293 = vadd.f32 %v9292, %v9145
    %v9294 = vadd.f32 %v9293, %v9147
    %v9295 = vadd.f32 %v9294, %v9149
    %v9296 = vadd.f32 %v9295, %v9151
    %v9297 = vadd.f32 %v9296, %v9153
    %v9298 = vadd.f32 %v9297, %v9155
    %v9299 = vadd.f32 %v9298, %v9157
    %v9300 = vadd.f32 %v9299, %v9159
    %v9301 = vadd.f32 %v9300, %v9161
    %v9302 = vadd.f32 %v9301, %v9163
    %v9303 = vadd.f32 %v9302, %v9165
    %v9304 = vadd.f32 %v9303, %v9167
    %v9305 = vadd.f32 %v9304, %v9169
    %v9306 = vadd.f32 %v9305, %v9171
    %v9307 = vadd.f32 %v9306, %v9173
    %v9308 = vadd.f32 %v9307, %v9175
    %v9309 = vadd.f32 %v9308, %v9177
    %v9310 = vrot.slane %v9309, 4
    %v9311 = vadd.f32 %v9309, %v9310
    %v9312 = vrot.slane %v9311, 2
    %v9313 = vadd.f32 %v9311, %v9312
    %v9314 = vrot.slane %v9313, 1
    %v9315 = vadd.f32 %v9313, %v9314
    %v9318 = vcombine.low %v9246, %v9315
    %v9320 = vunpack.c.l.s4 1966171168
    %v9321 = vunpack.c.0.s8 %v9320
    %v9322 = vlaneseq
    %v9323 = vshrl.u32 %v9322, 7
    %v9324 = vsub.s32 %v9321, %v9323
    %v9325 = vrot.slane %v9318, %v9324
    %v9327 = vunpack.c.l.s4 1966171168
    %v9328 = vunpack.c.0.s8 %v9327
    %v9329 = vlaneseq
    %v9330 = vshrl.u32 %v9329, 7
    %v9331 = vsub.s32 %v9328, %v9330
    %v9332 = vrot.slane %v9325, %v9331
    %v9334 = vadd.f32 %v8729, %v9332
    %v9335 = vlaneseq
    %vm9336 = vcmp.ge.s32.totalorder %v9335, 0
    %vm9337 = vcmp.lt.s32.totalorder %v9335, 256
    %vm9338 = vmand %vm9336, %vm9337
    %9339 = vst.msk [vmem:[#allocation2] sm:$0x3] %vm9338, %v9334
    %9340 = vst.msk [vmem:[#allocation3] sm:$0x1] %vm8717, %v8379
    %v9341 = vpack.c.bf16 %v6041, %v6037
    %v9342 = vpack.c.bf16 %v6042, %v6038
    %v9343 = vpack.c.bf16 %v6049, %v6045
    %v9344 = vpack.c.bf16 %v6050, %v6046
    %v9345 = vpack.c.bf16 %v6057, %v6053
    %v9346 = vpack.c.bf16 %v6058, %v6054
    %v9347 = vpack.c.bf16 %v6065, %v6061
    %v9348 = vpack.c.bf16 %v6066, %v6062
    %v9349 = vpack.c.bf16 %v6073, %v6069
    %v9350 = vpack.c.bf16 %v6074, %v6070
    %v9351 = vpack.c.bf16 %v6081, %v6077
    %v9352 = vpack.c.bf16 %v6082, %v6078
    %v9353 = vpack.c.bf16 %v6089, %v6085
    %v9354 = vpack.c.bf16 %v6090, %v6086
    %v9355 = vpack.c.bf16 %v6097, %v6093
    %v9356 = vpack.c.bf16 %v6098, %v6094
    %v9357 = vpack.c.bf16 %v6105, %v6101
    %v9358 = vpack.c.bf16 %v6106, %v6102
    %v9359 = vpack.c.bf16 %v6113, %v6109
    %v9360 = vpack.c.bf16 %v6114, %v6110
    %v9361 = vpack.c.bf16 %v6121, %v6117
    %v9362 = vpack.c.bf16 %v6122, %v6118
    %v9363 = vpack.c.bf16 %v6129, %v6125
    %v9364 = vpack.c.bf16 %v6130, %v6126
    %v9365 = vpack.c.bf16 %v6137, %v6133
    %v9366 = vpack.c.bf16 %v6138, %v6134
    %v9367 = vpack.c.bf16 %v6145, %v6141
    %v9368 = vpack.c.bf16 %v6146, %v6142
    %v9369 = vpack.c.bf16 %v6153, %v6149
    %v9370 = vpack.c.bf16 %v6154, %v6150
    %v9371 = vpack.c.bf16 %v6161, %v6157
    %v9372 = vpack.c.bf16 %v6162, %v6158
    %v9373 = vpack.c.bf16 %v6169, %v6165
    %v9374 = vpack.c.bf16 %v6170, %v6166
    %v9375 = vpack.c.bf16 %v6177, %v6173
    %v9376 = vpack.c.bf16 %v6178, %v6174
    %v9377 = vpack.c.bf16 %v6185, %v6181
    %v9378 = vpack.c.bf16 %v6186, %v6182
    %v9379 = vpack.c.bf16 %v6193, %v6189
    %v9380 = vpack.c.bf16 %v6194, %v6190
    %v9381 = vpack.c.bf16 %v6201, %v6197
    %v9382 = vpack.c.bf16 %v6202, %v6198
    %v9383 = vpack.c.bf16 %v6209, %v6205
    %v9384 = vpack.c.bf16 %v6210, %v6206
    %v9385 = vpack.c.bf16 %v6217, %v6213
    %v9386 = vpack.c.bf16 %v6218, %v6214
    %v9387 = vpack.c.bf16 %v6225, %v6221
    %v9388 = vpack.c.bf16 %v6226, %v6222
    %v9389 = vpack.c.bf16 %v6233, %v6229
    %v9390 = vpack.c.bf16 %v6234, %v6230
    %v9391 = vpack.c.bf16 %v6241, %v6237
    %v9392 = vpack.c.bf16 %v6242, %v6238
    %v9393 = vpack.c.bf16 %v6249, %v6245
    %v9394 = vpack.c.bf16 %v6250, %v6246
    %v9395 = vpack.c.bf16 %v6257, %v6253
    %v9396 = vpack.c.bf16 %v6258, %v6254
    %v9397 = vpack.c.bf16 %v6265, %v6261
    %v9398 = vpack.c.bf16 %v6266, %v6262
    %v9399 = vpack.c.bf16 %v6273, %v6269
    %v9400 = vpack.c.bf16 %v6274, %v6270
    %v9401 = vpack.c.bf16 %v6281, %v6277
    %v9402 = vpack.c.bf16 %v6282, %v6278
    %v9403 = vpack.c.bf16 %v6289, %v6285
    %v9404 = vpack.c.bf16 %v6290, %v6286
    %s9405 = scalar_lea.vmem [#allocation11], 128
    %v9406 = vld [vmem:[%s9405] sm:$0xf]
    %v9407 = vld [vmem:[%s9405 + $0x4] sm:$0xf]
    %v9408 = vld [vmem:[%s9405 + $0x8] sm:$0xf]
    %v9409 = vld [vmem:[%s9405 + $0xc] sm:$0xf]
    %v9410 = vld [vmem:[%s9405 + $0x10] sm:$0xf]
    %v9411 = vld [vmem:[%s9405 + $0x14] sm:$0xf]
    %v9412 = vld [vmem:[%s9405 + $0x18] sm:$0xf]
    %v9413 = vld [vmem:[%s9405 + $0x1c] sm:$0xf]
    %v9414 = vld [vmem:[%s9405 + $0x20] sm:$0xf]
    %v9415 = vld [vmem:[%s9405 + $0x24] sm:$0xf]
    %v9416 = vld [vmem:[%s9405 + $0x28] sm:$0xf]
    %v9417 = vld [vmem:[%s9405 + $0x2c] sm:$0xf]
    %v9418 = vld [vmem:[%s9405 + $0x30] sm:$0xf]
    %v9419 = vld [vmem:[%s9405 + $0x34] sm:$0xf]
    %v9420 = vld [vmem:[%s9405 + $0x38] sm:$0xf]
    %v9421 = vld [vmem:[%s9405 + $0x3c] sm:$0xf]
    %v9422 = vld [vmem:[%s9405 + $0x40] sm:$0xf]
    %v9423 = vld [vmem:[%s9405 + $0x44] sm:$0xf]
    %v9424 = vld [vmem:[%s9405 + $0x48] sm:$0xf]
    %v9425 = vld [vmem:[%s9405 + $0x4c] sm:$0xf]
    %v9426 = vld [vmem:[%s9405 + $0x50] sm:$0xf]
    %v9427 = vld [vmem:[%s9405 + $0x54] sm:$0xf]
    %v9428 = vld [vmem:[%s9405 + $0x58] sm:$0xf]
    %v9429 = vld [vmem:[%s9405 + $0x5c] sm:$0xf]
    %v9430 = vld [vmem:[%s9405 + $0x60] sm:$0xf]
    %v9431 = vld [vmem:[%s9405 + $0x64] sm:$0xf]
    %v9432 = vld [vmem:[%s9405 + $0x68] sm:$0xf]
    %v9433 = vld [vmem:[%s9405 + $0x6c] sm:$0xf]
    %v9434 = vld [vmem:[%s9405 + $0x70] sm:$0xf]
    %v9435 = vld [vmem:[%s9405 + $0x74] sm:$0xf]
    %v9436 = vld [vmem:[%s9405 + $0x78] sm:$0xf]
    %v9437 = vld [vmem:[%s9405 + $0x7c] sm:$0xf]
    %s9438 = scalar_lea.vmem %s4, 1
    %v9439 = vld [vmem:[%s9438] sm:$0x1]
    %v9441 = vlaneseq
    %v9442 = vshrl.u32 %v9441, 7
    %v9443 = vsub.s32 0, %v9442
    %v9444 = vrot.slane %v9439, %v9443
    %v9478 = vunpack.c.l.b16 %v9406
    %v9479 = vunpack.c.l.b16 %v9407
    %v9480 = vunpack.c.l.b16 %v9408
    %v9481 = vunpack.c.l.b16 %v9409
    %v9482 = vunpack.c.l.b16 %v9410
    %v9483 = vunpack.c.l.b16 %v9411
    %v9484 = vunpack.c.l.b16 %v9412
    %v9485 = vunpack.c.l.b16 %v9413
    %v9486 = vunpack.c.l.b16 %v9414
    %v9487 = vunpack.c.l.b16 %v9415
    %v9488 = vunpack.c.l.b16 %v9416
    %v9489 = vunpack.c.l.b16 %v9417
    %v9490 = vunpack.c.l.b16 %v9418
    %v9491 = vunpack.c.l.b16 %v9419
    %v9492 = vunpack.c.l.b16 %v9420
    %v9493 = vunpack.c.l.b16 %v9421
    %v9494 = vunpack.c.l.b16 %v9422
    %v9495 = vunpack.c.l.b16 %v9423
    %v9496 = vunpack.c.l.b16 %v9424
    %v9497 = vunpack.c.l.b16 %v9425
    %v9498 = vunpack.c.l.b16 %v9426
    %v9499 = vunpack.c.l.b16 %v9427
    %v9500 = vunpack.c.l.b16 %v9428
    %v9501 = vunpack.c.l.b16 %v9429
    %v9502 = vunpack.c.l.b16 %v9430
    %v9503 = vunpack.c.l.b16 %v9431
    %v9504 = vunpack.c.l.b16 %v9432
    %v9505 = vunpack.c.l.b16 %v9433
    %v9506 = vunpack.c.l.b16 %v9434
    %v9507 = vunpack.c.l.b16 %v9435
    %v9508 = vunpack.c.l.b16 %v9436
    %v9509 = vunpack.c.l.b16 %v9437
    %v9510 = vpack.c.b16 %v9479, %v9478
    %v9511 = vpack.c.b16 %v9481, %v9480
    %v9512 = vpack.c.b16 %v9483, %v9482
    %v9513 = vpack.c.b16 %v9485, %v9484
    %v9514 = vpack.c.b16 %v9487, %v9486
    %v9515 = vpack.c.b16 %v9489, %v9488
    %v9516 = vpack.c.b16 %v9491, %v9490
    %v9517 = vpack.c.b16 %v9493, %v9492
    %v9518 = vpack.c.b16 %v9495, %v9494
    %v9519 = vpack.c.b16 %v9497, %v9496
    %v9520 = vpack.c.b16 %v9499, %v9498
    %v9521 = vpack.c.b16 %v9501, %v9500
    %v9522 = vpack.c.b16 %v9503, %v9502
    %v9523 = vpack.c.b16 %v9505, %v9504
    %v9524 = vpack.c.b16 %v9507, %v9506
    %v9525 = vpack.c.b16 %v9509, %v9508
    %9542 = vmatprep.subr.bf16.mxu0 0
    %9543 = vmatpush1.bf16.msra.mxu0 %v9510
    %9544 = vmatprep.subr.bf16.mxu0 0
    %9545 = vmatpush1.bf16.msra.mxu0 %v9511
    %9546 = vmatprep.subr.bf16.mxu0 0
    %9547 = vmatpush1.bf16.msra.mxu0 %v9512
    %9548 = vmatprep.subr.bf16.mxu0 0
    %9549 = vmatpush1.bf16.msra.mxu0 %v9513
    %9550 = vmatprep.subr.bf16.mxu0 0
    %9551 = vmatpush1.bf16.msra.mxu0 %v9514
    %9552 = vmatprep.subr.bf16.mxu0 0
    %9553 = vmatpush1.bf16.msra.mxu0 %v9515
    %9554 = vmatprep.subr.bf16.mxu0 0
    %9555 = vmatpush1.bf16.msra.mxu0 %v9516
    %9556 = vmatprep.subr.bf16.mxu0 0
    %9557 = vmatpush1.bf16.msra.mxu0 %v9517
    %9558 = vmatprep.subr.bf16.mxu0 0
    %9559 = vmatpush1.bf16.msra.mxu0 %v9518
    %9560 = vmatprep.subr.bf16.mxu0 0
    %9561 = vmatpush1.bf16.msra.mxu0 %v9519
    %9562 = vmatprep.subr.bf16.mxu0 0
    %9563 = vmatpush1.bf16.msra.mxu0 %v9520
    %9564 = vmatprep.subr.bf16.mxu0 0
    %9565 = vmatpush1.bf16.msra.mxu0 %v9521
    %9566 = vmatprep.subr.bf16.mxu0 0
    %9567 = vmatpush1.bf16.msra.mxu0 %v9522
    %9568 = vmatprep.subr.bf16.mxu0 0
    %9569 = vmatpush1.bf16.msra.mxu0 %v9523
    %9570 = vmatprep.subr.bf16.mxu0 0
    %9571 = vmatpush1.bf16.msra.mxu0 %v9524
    %9572 = vmatprep.subr.bf16.mxu0 0
    %9573 = vmatpush1.bf16.msra.mxu0 %v9525
    %9574 = vmatprep.mubr.bf16.mxu0 %v9342
    %9575 = vmatmul.mubr.bf16.gmra.mrb[0].mxu0 %v9341
    %v9576 = vpop.f32.mrb[0].mxu0
    %v9577 = vadd.f32 %v9444, %v9576
    %v9578 = vpop.f32.mrb[0].mxu0
    %v9579 = vpop.f32.mrb[0].mxu0
    %v9580 = vadd.f32 %v9444, %v9579
    %v9581 = vpop.f32.mrb[0].mxu0
    %9582 = vmatprep.mubr.bf16.mxu0 %v9344
    %9583 = vmatmul.mubr.bf16.gmra.mrb[0].mxu0 %v9343
    %v9584 = vpop.f32.mrb[0].mxu0
    %v9585 = vadd.f32 %v9444, %v9584
    %v9586 = vpop.f32.mrb[0].mxu0
    %v9587 = vpop.f32.mrb[0].mxu0
    %v9588 = vadd.f32 %v9444, %v9587
    %v9589 = vpop.f32.mrb[0].mxu0
    %9590 = vmatprep.mubr.bf16.mxu0 %v9346
    %9591 = vmatmul.mubr.bf16.gmra.mrb[0].mxu0 %v9345
    %v9592 = vpop.f32.mrb[0].mxu0
    %v9593 = vadd.f32 %v9444, %v9592
    %v9594 = vpop.f32.mrb[0].mxu0
    %v9595 = vpop.f32.mrb[0].mxu0
    %v9596 = vadd.f32 %v9444, %v9595
    %v9597 = vpop.f32.mrb[0].mxu0
    %9598 = vmatprep.mubr.bf16.mxu0 %v9348
    %9599 = vmatmul.mubr.bf16.gmra.mrb[0].mxu0 %v9347
    %v9600 = vpop.f32.mrb[0].mxu0
    %v9601 = vadd.f32 %v9444, %v9600
    %v9602 = vpop.f32.mrb[0].mxu0
    %v9603 = vpop.f32.mrb[0].mxu0
    %v9604 = vadd.f32 %v9444, %v9603
    %v9605 = vpop.f32.mrb[0].mxu0
    %9606 = vmatprep.mubr.bf16.mxu0 %v9350
    %9607 = vmatmul.mubr.bf16.gmra.mrb[0].mxu0 %v9349
    %v9608 = vpop.f32.mrb[0].mxu0
    %v9609 = vadd.f32 %v9444, %v9608
    %v9610 = vpop.f32.mrb[0].mxu0
    %v9611 = vpop.f32.mrb[0].mxu0
    %v9612 = vadd.f32 %v9444, %v9611
    %v9613 = vpop.f32.mrb[0].mxu0
    %9614 = vmatprep.mubr.bf16.mxu0 %v9352
    %9615 = vmatmul.mubr.bf16.gmra.mrb[0].mxu0 %v9351
    %v9616 = vpop.f32.mrb[0].mxu0
    %v9617 = vadd.f32 %v9444, %v9616
    %v9618 = vpop.f32.mrb[0].mxu0
    %v9619 = vpop.f32.mrb[0].mxu0
    %v9620 = vadd.f32 %v9444, %v9619
    %v9621 = vpop.f32.mrb[0].mxu0
    %9622 = vmatprep.mubr.bf16.mxu0 %v9354
    %9623 = vmatmul.mubr.bf16.gmra.mrb[0].mxu0 %v9353
    %v9624 = vpop.f32.mrb[0].mxu0
    %v9625 = vadd.f32 %v9444, %v9624
    %v9626 = vpop.f32.mrb[0].mxu0
    %v9627 = vpop.f32.mrb[0].mxu0
    %v9628 = vadd.f32 %v9444, %v9627
    %v9629 = vpop.f32.mrb[0].mxu0
    %9630 = vmatprep.mubr.bf16.mxu0 %v9356
    %9631 = vmatmul.mubr.bf16.gmra.mrb[0].mxu0 %v9355
    %v9632 = vpop.f32.mrb[0].mxu0
    %v9633 = vadd.f32 %v9444, %v9632
    %v9634 = vpop.f32.mrb[0].mxu0
    %v9635 = vpop.f32.mrb[0].mxu0
    %v9636 = vadd.f32 %v9444, %v9635
    %v9637 = vpop.f32.mrb[0].mxu0
    %9638 = vmatprep.mubr.bf16.mxu0 %v9358
    %9639 = vmatmul.mubr.bf16.gmra.mrb[0].mxu0 %v9357
    %v9640 = vpop.f32.mrb[0].mxu0
    %v9641 = vadd.f32 %v9444, %v9640
    %v9642 = vpop.f32.mrb[0].mxu0
    %v9643 = vpop.f32.mrb[0].mxu0
    %v9644 = vadd.f32 %v9444, %v9643
    %v9645 = vpop.f32.mrb[0].mxu0
    %9646 = vmatprep.mubr.bf16.mxu0 %v9360
    %9647 = vmatmul.mubr.bf16.gmra.mrb[0].mxu0 %v9359
    %v9648 = vpop.f32.mrb[0].mxu0
    %v9649 = vadd.f32 %v9444, %v9648
    %v9650 = vpop.f32.mrb[0].mxu0
    %v9651 = vpop.f32.mrb[0].mxu0
    %v9652 = vadd.f32 %v9444, %v9651
    %v9653 = vpop.f32.mrb[0].mxu0
    %9654 = vmatprep.mubr.bf16.mxu0 %v9362
    %9655 = vmatmul.mubr.bf16.gmra.mrb[0].mxu0 %v9361
    %v9656 = vpop.f32.mrb[0].mxu0
    %v9657 = vadd.f32 %v9444, %v9656
    %v9658 = vpop.f32.mrb[0].mxu0
    %v9659 = vpop.f32.mrb[0].mxu0
    %v9660 = vadd.f32 %v9444, %v9659
    %v9661 = vpop.f32.mrb[0].mxu0
    %9662 = vmatprep.mubr.bf16.mxu0 %v9364
    %9663 = vmatmul.mubr.bf16.gmra.mrb[0].mxu0 %v9363
    %v9664 = vpop.f32.mrb[0].mxu0
    %v9665 = vadd.f32 %v9444, %v9664
    %v9666 = vpop.f32.mrb[0].mxu0
    %v9667 = vpop.f32.mrb[0].mxu0
    %v9668 = vadd.f32 %v9444, %v9667
    %v9669 = vpop.f32.mrb[0].mxu0
    %9670 = vmatprep.mubr.bf16.mxu0 %v9366
    %9671 = vmatmul.mubr.bf16.gmra.mrb[0].mxu0 %v9365
    %v9672 = vpop.f32.mrb[0].mxu0
    %v9673 = vadd.f32 %v9444, %v9672
    %v9674 = vpop.f32.mrb[0].mxu0
    %v9675 = vpop.f32.mrb[0].mxu0
    %v9676 = vadd.f32 %v9444, %v9675
    %v9677 = vpop.f32.mrb[0].mxu0
    %9678 = vmatprep.mubr.bf16.mxu0 %v9368
    %9679 = vmatmul.mubr.bf16.gmra.mrb[0].mxu0 %v9367
    %v9680 = vpop.f32.mrb[0].mxu0
    %v9681 = vadd.f32 %v9444, %v9680
    %v9682 = vpop.f32.mrb[0].mxu0
    %v9683 = vpop.f32.mrb[0].mxu0
    %v9684 = vadd.f32 %v9444, %v9683
    %v9685 = vpop.f32.mrb[0].mxu0
    %9686 = vmatprep.mubr.bf16.mxu0 %v9370
    %9687 = vmatmul.mubr.bf16.gmra.mrb[0].mxu0 %v9369
    %v9688 = vpop.f32.mrb[0].mxu0
    %v9689 = vadd.f32 %v9444, %v9688
    %v9690 = vpop.f32.mrb[0].mxu0
    %v9691 = vpop.f32.mrb[0].mxu0
    %v9692 = vadd.f32 %v9444, %v9691
    %v9693 = vpop.f32.mrb[0].mxu0
    %9694 = vmatprep.mubr.bf16.mxu0 %v9372
    %9695 = vmatmul.mubr.bf16.gmra.mrb[0].mxu0 %v9371
    %v9696 = vpop.f32.mrb[0].mxu0
    %v9697 = vadd.f32 %v9444, %v9696
    %v9698 = vpop.f32.mrb[0].mxu0
    %v9699 = vpop.f32.mrb[0].mxu0
    %v9700 = vadd.f32 %v9444, %v9699
    %v9701 = vpop.f32.mrb[0].mxu0
    %9702 = vmatprep.mubr.bf16.mxu0 %v9374
    %9703 = vmatmul.mubr.bf16.gmra.mrb[0].mxu0 %v9373
    %v9704 = vpop.f32.mrb[0].mxu0
    %v9705 = vadd.f32 %v9444, %v9704
    %v9706 = vpop.f32.mrb[0].mxu0
    %v9707 = vpop.f32.mrb[0].mxu0
    %v9708 = vadd.f32 %v9444, %v9707
    %v9709 = vpop.f32.mrb[0].mxu0
    %9710 = vmatprep.mubr.bf16.mxu0 %v9376
    %9711 = vmatmul.mubr.bf16.gmra.mrb[0].mxu0 %v9375
    %v9712 = vpop.f32.mrb[0].mxu0
    %v9713 = vadd.f32 %v9444, %v9712
    %v9714 = vpop.f32.mrb[0].mxu0
    %v9715 = vpop.f32.mrb[0].mxu0
    %v9716 = vadd.f32 %v9444, %v9715
    %v9717 = vpop.f32.mrb[0].mxu0
    %9718 = vmatprep.mubr.bf16.mxu0 %v9378
    %9719 = vmatmul.mubr.bf16.gmra.mrb[0].mxu0 %v9377
    %v9720 = vpop.f32.mrb[0].mxu0
    %v9721 = vadd.f32 %v9444, %v9720
    %v9722 = vpop.f32.mrb[0].mxu0
    %v9723 = vpop.f32.mrb[0].mxu0
    %v9724 = vadd.f32 %v9444, %v9723
    %v9725 = vpop.f32.mrb[0].mxu0
    %9726 = vmatprep.mubr.bf16.mxu0 %v9380
    %9727 = vmatmul.mubr.bf16.gmra.mrb[0].mxu0 %v9379
    %v9728 = vpop.f32.mrb[0].mxu0
    %v9729 = vadd.f32 %v9444, %v9728
    %v9730 = vpop.f32.mrb[0].mxu0
    %v9731 = vpop.f32.mrb[0].mxu0
    %v9732 = vadd.f32 %v9444, %v9731
    %v9733 = vpop.f32.mrb[0].mxu0
    %9734 = vmatprep.mubr.bf16.mxu0 %v9382
    %9735 = vmatmul.mubr.bf16.gmra.mrb[0].mxu0 %v9381
    %v9736 = vpop.f32.mrb[0].mxu0
    %v9737 = vadd.f32 %v9444, %v9736
    %v9738 = vpop.f32.mrb[0].mxu0
    %v9739 = vpop.f32.mrb[0].mxu0
    %v9740 = vadd.f32 %v9444, %v9739
    %v9741 = vpop.f32.mrb[0].mxu0
    %9742 = vmatprep.mubr.bf16.mxu0 %v9384
    %9743 = vmatmul.mubr.bf16.gmra.mrb[0].mxu0 %v9383
    %v9744 = vpop.f32.mrb[0].mxu0
    %v9745 = vadd.f32 %v9444, %v9744
    %v9746 = vpop.f32.mrb[0].mxu0
    %v9747 = vpop.f32.mrb[0].mxu0
    %v9748 = vadd.f32 %v9444, %v9747
    %v9749 = vpop.f32.mrb[0].mxu0
    %9750 = vmatprep.mubr.bf16.mxu0 %v9386
    %9751 = vmatmul.mubr.bf16.gmra.mrb[0].mxu0 %v9385
    %v9752 = vpop.f32.mrb[0].mxu0
    %v9753 = vadd.f32 %v9444, %v9752
    %v9754 = vpop.f32.mrb[0].mxu0
    %v9755 = vpop.f32.mrb[0].mxu0
    %v9756 = vadd.f32 %v9444, %v9755
    %v9757 = vpop.f32.mrb[0].mxu0
    %9758 = vmatprep.mubr.bf16.mxu0 %v9388
    %9759 = vmatmul.mubr.bf16.gmra.mrb[0].mxu0 %v9387
    %v9760 = vpop.f32.mrb[0].mxu0
    %v9761 = vadd.f32 %v9444, %v9760
    %v9762 = vpop.f32.mrb[0].mxu0
    %v9763 = vpop.f32.mrb[0].mxu0
    %v9764 = vadd.f32 %v9444, %v9763
    %v9765 = vpop.f32.mrb[0].mxu0
    %9766 = vmatprep.mubr.bf16.mxu0 %v9390
    %9767 = vmatmul.mubr.bf16.gmra.mrb[0].mxu0 %v9389
    %v9768 = vpop.f32.mrb[0].mxu0
    %v9769 = vadd.f32 %v9444, %v9768
    %v9770 = vpop.f32.mrb[0].mxu0
    %v9771 = vpop.f32.mrb[0].mxu0
    %v9772 = vadd.f32 %v9444, %v9771
    %v9773 = vpop.f32.mrb[0].mxu0
    %9774 = vmatprep.mubr.bf16.mxu0 %v9392
    %9775 = vmatmul.mubr.bf16.gmra.mrb[0].mxu0 %v9391
    %v9776 = vpop.f32.mrb[0].mxu0
    %v9777 = vadd.f32 %v9444, %v9776
    %v9778 = vpop.f32.mrb[0].mxu0
    %v9779 = vpop.f32.mrb[0].mxu0
    %v9780 = vadd.f32 %v9444, %v9779
    %v9781 = vpop.f32.mrb[0].mxu0
    %9782 = vmatprep.mubr.bf16.mxu0 %v9394
    %9783 = vmatmul.mubr.bf16.gmra.mrb[0].mxu0 %v9393
    %v9784 = vpop.f32.mrb[0].mxu0
    %v9785 = vadd.f32 %v9444, %v9784
    %v9786 = vpop.f32.mrb[0].mxu0
    %v9787 = vpop.f32.mrb[0].mxu0
    %v9788 = vadd.f32 %v9444, %v9787
    %v9789 = vpop.f32.mrb[0].mxu0
    %9790 = vmatprep.mubr.bf16.mxu0 %v9396
    %9791 = vmatmul.mubr.bf16.gmra.mrb[0].mxu0 %v9395
    %v9792 = vpop.f32.mrb[0].mxu0
    %v9793 = vadd.f32 %v9444, %v9792
    %v9794 = vpop.f32.mrb[0].mxu0
    %v9795 = vpop.f32.mrb[0].mxu0
    %v9796 = vadd.f32 %v9444, %v9795
    %v9797 = vpop.f32.mrb[0].mxu0
    %9798 = vmatprep.mubr.bf16.mxu0 %v9398
    %9799 = vmatmul.mubr.bf16.gmra.mrb[0].mxu0 %v9397
    %v9800 = vpop.f32.mrb[0].mxu0
    %v9801 = vadd.f32 %v9444, %v9800
    %v9802 = vpop.f32.mrb[0].mxu0
    %v9803 = vpop.f32.mrb[0].mxu0
    %v9804 = vadd.f32 %v9444, %v9803
    %v9805 = vpop.f32.mrb[0].mxu0
    %9806 = vmatprep.mubr.bf16.mxu0 %v9400
    %9807 = vmatmul.mubr.bf16.gmra.mrb[0].mxu0 %v9399
    %v9808 = vpop.f32.mrb[0].mxu0
    %v9809 = vadd.f32 %v9444, %v9808
    %v9810 = vpop.f32.mrb[0].mxu0
    %v9811 = vpop.f32.mrb[0].mxu0
    %v9812 = vadd.f32 %v9444, %v9811
    %v9813 = vpop.f32.mrb[0].mxu0
    %9814 = vmatprep.mubr.bf16.mxu0 %v9402
    %9815 = vmatmul.mubr.bf16.gmra.mrb[0].mxu0 %v9401
    %v9816 = vpop.f32.mrb[0].mxu0
    %v9817 = vadd.f32 %v9444, %v9816
    %v9818 = vpop.f32.mrb[0].mxu0
    %v9819 = vpop.f32.mrb[0].mxu0
    %v9820 = vadd.f32 %v9444, %v9819
    %v9821 = vpop.f32.mrb[0].mxu0
    %9822 = vmatprep.mubr.bf16.mxu0 %v9404
    %9823 = vmatmul.mubr.bf16.gmra.mrb[0].mxu0 %v9403
    %v9824 = vpop.f32.mrb[0].mxu0
    %v9825 = vadd.f32 %v9444, %v9824
    %v9826 = vpop.f32.mrb[0].mxu0
    %v9827 = vpop.f32.mrb[0].mxu0
    %v9828 = vadd.f32 %v9444, %v9827
    %v9829 = vpop.f32.mrb[0].mxu0
    %9830 = vdwg.mxu0
    %v9831 = vtanh.pop %v9577
    %v9832 = vtanh.pop %v9580
    %v9833 = vtanh.pop %v9585
    %v9834 = vtanh.pop %v9588
    %v9835 = vtanh.pop %v9593
    %v9836 = vtanh.pop %v9596
    %v9837 = vtanh.pop %v9601
    %v9838 = vtanh.pop %v9604
    %v9839 = vtanh.pop %v9609
    %v9840 = vtanh.pop %v9612
    %v9841 = vtanh.pop %v9617
    %v9842 = vtanh.pop %v9620
    %v9843 = vtanh.pop %v9625
    %v9844 = vtanh.pop %v9628
    %v9845 = vtanh.pop %v9633
    %v9846 = vtanh.pop %v9636
    %v9847 = vtanh.pop %v9641
    %v9848 = vtanh.pop %v9644
    %v9849 = vtanh.pop %v9649
    %v9850 = vtanh.pop %v9652
    %v9851 = vtanh.pop %v9657
    %v9852 = vtanh.pop %v9660
    %v9853 = vtanh.pop %v9665
    %v9854 = vtanh.pop %v9668
    %v9855 = vtanh.pop %v9673
    %v9856 = vtanh.pop %v9676
    %v9857 = vtanh.pop %v9681
    %v9858 = vtanh.pop %v9684
    %v9859 = vtanh.pop %v9689
    %v9860 = vtanh.pop %v9692
    %v9861 = vtanh.pop %v9697
    %v9862 = vtanh.pop %v9700
    %v9863 = vtanh.pop %v9705
    %v9864 = vtanh.pop %v9708
    %v9865 = vtanh.pop %v9713
    %v9866 = vtanh.pop %v9716
    %v9867 = vtanh.pop %v9721
    %v9868 = vtanh.pop %v9724
    %v9869 = vtanh.pop %v9729
    %v9870 = vtanh.pop %v9732
    %v9871 = vtanh.pop %v9737
    %v9872 = vtanh.pop %v9740
    %v9873 = vtanh.pop %v9745
    %v9874 = vtanh.pop %v9748
    %v9875 = vtanh.pop %v9753
    %v9876 = vtanh.pop %v9756
    %v9877 = vtanh.pop %v9761
    %v9878 = vtanh.pop %v9764
    %v9879 = vtanh.pop %v9769
    %v9880 = vtanh.pop %v9772
    %v9881 = vtanh.pop %v9777
    %v9882 = vtanh.pop %v9780
    %v9883 = vtanh.pop %v9785
    %v9884 = vtanh.pop %v9788
    %v9885 = vtanh.pop %v9793
    %v9886 = vtanh.pop %v9796
    %v9887 = vtanh.pop %v9801
    %v9888 = vtanh.pop %v9804
    %v9889 = vtanh.pop %v9809
    %v9890 = vtanh.pop %v9812
    %v9891 = vtanh.pop %v9817
    %v9892 = vtanh.pop %v9820
    %v9893 = vtanh.pop %v9825
    %v9894 = vtanh.pop %v9828
    %s9895 = scalar_lea.vmem [#allocation12], 128
    %v9896 = vld [vmem:[%s9895] sm:$0xf]
    %v9897 = vld [vmem:[%s9895 + $0x4] sm:$0xf]
    %v9898 = vld [vmem:[%s9895 + $0x8] sm:$0xf]
    %v9899 = vld [vmem:[%s9895 + $0xc] sm:$0xf]
    %v9900 = vld [vmem:[%s9895 + $0x10] sm:$0xf]
    %v9901 = vld [vmem:[%s9895 + $0x14] sm:$0xf]
    %v9902 = vld [vmem:[%s9895 + $0x18] sm:$0xf]
    %v9903 = vld [vmem:[%s9895 + $0x1c] sm:$0xf]
    %v9904 = vld [vmem:[%s9895 + $0x20] sm:$0xf]
    %v9905 = vld [vmem:[%s9895 + $0x24] sm:$0xf]
    %v9906 = vld [vmem:[%s9895 + $0x28] sm:$0xf]
    %v9907 = vld [vmem:[%s9895 + $0x2c] sm:$0xf]
    %v9908 = vld [vmem:[%s9895 + $0x30] sm:$0xf]
    %v9909 = vld [vmem:[%s9895 + $0x34] sm:$0xf]
    %v9910 = vld [vmem:[%s9895 + $0x38] sm:$0xf]
    %v9911 = vld [vmem:[%s9895 + $0x3c] sm:$0xf]
    %v9912 = vld [vmem:[%s9895 + $0x40] sm:$0xf]
    %v9913 = vld [vmem:[%s9895 + $0x44] sm:$0xf]
    %v9914 = vld [vmem:[%s9895 + $0x48] sm:$0xf]
    %v9915 = vld [vmem:[%s9895 + $0x4c] sm:$0xf]
    %v9916 = vld [vmem:[%s9895 + $0x50] sm:$0xf]
    %v9917 = vld [vmem:[%s9895 + $0x54] sm:$0xf]
    %v9918 = vld [vmem:[%s9895 + $0x58] sm:$0xf]
    %v9919 = vld [vmem:[%s9895 + $0x5c] sm:$0xf]
    %v9920 = vld [vmem:[%s9895 + $0x60] sm:$0xf]
    %v9921 = vld [vmem:[%s9895 + $0x64] sm:$0xf]
    %v9922 = vld [vmem:[%s9895 + $0x68] sm:$0xf]
    %v9923 = vld [vmem:[%s9895 + $0x6c] sm:$0xf]
    %v9924 = vld [vmem:[%s9895 + $0x70] sm:$0xf]
    %v9925 = vld [vmem:[%s9895 + $0x74] sm:$0xf]
    %v9926 = vld [vmem:[%s9895 + $0x78] sm:$0xf]
    %v9927 = vld [vmem:[%s9895 + $0x7c] sm:$0xf]
    %s9928 = scalar_lea.vmem %s6, 1
    %v9929 = vld [vmem:[%s9928] sm:$0x1]
    %v9931 = vlaneseq
    %v9932 = vshrl.u32 %v9931, 7
    %v9933 = vsub.s32 0, %v9932
    %v9934 = vrot.slane %v9929, %v9933
    %v9968 = vunpack.c.l.b16 %v9896
    %v9969 = vunpack.c.l.b16 %v9897
    %v9970 = vunpack.c.l.b16 %v9898
    %v9971 = vunpack.c.l.b16 %v9899
    %v9972 = vunpack.c.l.b16 %v9900
    %v9973 = vunpack.c.l.b16 %v9901
    %v9974 = vunpack.c.l.b16 %v9902
    %v9975 = vunpack.c.l.b16 %v9903
    %v9976 = vunpack.c.l.b16 %v9904
    %v9977 = vunpack.c.l.b16 %v9905
    %v9978 = vunpack.c.l.b16 %v9906
    %v9979 = vunpack.c.l.b16 %v9907
    %v9980 = vunpack.c.l.b16 %v9908
    %v9981 = vunpack.c.l.b16 %v9909
    %v9982 = vunpack.c.l.b16 %v9910
    %v9983 = vunpack.c.l.b16 %v9911
    %v9984 = vunpack.c.l.b16 %v9912
    %v9985 = vunpack.c.l.b16 %v9913
    %v9986 = vunpack.c.l.b16 %v9914
    %v9987 = vunpack.c.l.b16 %v9915
    %v9988 = vunpack.c.l.b16 %v9916
    %v9989 = vunpack.c.l.b16 %v9917
    %v9990 = vunpack.c.l.b16 %v9918
    %v9991 = vunpack.c.l.b16 %v9919
    %v9992 = vunpack.c.l.b16 %v9920
    %v9993 = vunpack.c.l.b16 %v9921
    %v9994 = vunpack.c.l.b16 %v9922
    %v9995 = vunpack.c.l.b16 %v9923
    %v9996 = vunpack.c.l.b16 %v9924
    %v9997 = vunpack.c.l.b16 %v9925
    %v9998 = vunpack.c.l.b16 %v9926
    %v9999 = vunpack.c.l.b16 %v9927
    %v10000 = vpack.c.b16 %v9969, %v9968
    %v10001 = vpack.c.b16 %v9971, %v9970
    %v10002 = vpack.c.b16 %v9973, %v9972
    %v10003 = vpack.c.b16 %v9975, %v9974
    %v10004 = vpack.c.b16 %v9977, %v9976
    %v10005 = vpack.c.b16 %v9979, %v9978
    %v10006 = vpack.c.b16 %v9981, %v9980
    %v10007 = vpack.c.b16 %v9983, %v9982
    %v10008 = vpack.c.b16 %v9985, %v9984
    %v10009 = vpack.c.b16 %v9987, %v9986
    %v10010 = vpack.c.b16 %v9989, %v9988
    %v10011 = vpack.c.b16 %v9991, %v9990
    %v10012 = vpack.c.b16 %v9993, %v9992
    %v10013 = vpack.c.b16 %v9995, %v9994
    %v10014 = vpack.c.b16 %v9997, %v9996
    %v10015 = vpack.c.b16 %v9999, %v9998
    %10032 = vmatprep.subr.bf16.mxu0 0
    %10033 = vmatpush1.bf16.msra.mxu0 %v10000
    %10034 = vmatprep.subr.bf16.mxu0 0
    %10035 = vmatpush1.bf16.msra.mxu0 %v10001
    %10036 = vmatprep.subr.bf16.mxu0 0
    %10037 = vmatpush1.bf16.msra.mxu0 %v10002
    %10038 = vmatprep.subr.bf16.mxu0 0
    %10039 = vmatpush1.bf16.msra.mxu0 %v10003
    %10040 = vmatprep.subr.bf16.mxu0 0
    %10041 = vmatpush1.bf16.msra.mxu0 %v10004
    %10042 = vmatprep.subr.bf16.mxu0 0
    %10043 = vmatpush1.bf16.msra.mxu0 %v10005
    %10044 = vmatprep.subr.bf16.mxu0 0
    %10045 = vmatpush1.bf16.msra.mxu0 %v10006
    %10046 = vmatprep.subr.bf16.mxu0 0
    %10047 = vmatpush1.bf16.msra.mxu0 %v10007
    %10048 = vmatprep.subr.bf16.mxu0 0
    %10049 = vmatpush1.bf16.msra.mxu0 %v10008
    %10050 = vmatprep.subr.bf16.mxu0 0
    %10051 = vmatpush1.bf16.msra.mxu0 %v10009
    %10052 = vmatprep.subr.bf16.mxu0 0
    %10053 = vmatpush1.bf16.msra.mxu0 %v10010
    %10054 = vmatprep.subr.bf16.mxu0 0
    %10055 = vmatpush1.bf16.msra.mxu0 %v10011
    %10056 = vmatprep.subr.bf16.mxu0 0
    %10057 = vmatpush1.bf16.msra.mxu0 %v10012
    %10058 = vmatprep.subr.bf16.mxu0 0
    %10059 = vmatpush1.bf16.msra.mxu0 %v10013
    %10060 = vmatprep.subr.bf16.mxu0 0
    %10061 = vmatpush1.bf16.msra.mxu0 %v10014
    %10062 = vmatprep.subr.bf16.mxu0 0
    %10063 = vmatpush1.bf16.msra.mxu0 %v10015
    %10064 = vmatprep.mubr.bf16.mxu0 %v9342
    %10065 = vmatmul.mubr.bf16.gmra.mrb[0].mxu0 %v9341
    %v10066 = vpop.f32.mrb[0].mxu0
    %v10067 = vadd.f32 %v9934, %v10066
    %v10068 = vpop.f32.mrb[0].mxu0
    %v10069 = vpop.f32.mrb[0].mxu0
    %v10070 = vadd.f32 %v9934, %v10069
    %v10071 = vpop.f32.mrb[0].mxu0
    %10072 = vmatprep.mubr.bf16.mxu0 %v9344
    %10073 = vmatmul.mubr.bf16.gmra.mrb[0].mxu0 %v9343
    %v10074 = vpop.f32.mrb[0].mxu0
    %v10075 = vadd.f32 %v9934, %v10074
    %v10076 = vpop.f32.mrb[0].mxu0
    %v10077 = vpop.f32.mrb[0].mxu0
    %v10078 = vadd.f32 %v9934, %v10077
    %v10079 = vpop.f32.mrb[0].mxu0
    %10080 = vmatprep.mubr.bf16.mxu0 %v9346
    %10081 = vmatmul.mubr.bf16.gmra.mrb[0].mxu0 %v9345
    %v10082 = vpop.f32.mrb[0].mxu0
    %v10083 = vadd.f32 %v9934, %v10082
    %v10084 = vpop.f32.mrb[0].mxu0
    %v10085 = vpop.f32.mrb[0].mxu0
    %v10086 = vadd.f32 %v9934, %v10085
    %v10087 = vpop.f32.mrb[0].mxu0
    %10088 = vmatprep.mubr.bf16.mxu0 %v9348
    %10089 = vmatmul.mubr.bf16.gmra.mrb[0].mxu0 %v9347
    %v10090 = vpop.f32.mrb[0].mxu0
    %v10091 = vadd.f32 %v9934, %v10090
    %v10092 = vpop.f32.mrb[0].mxu0
    %v10093 = vpop.f32.mrb[0].mxu0
    %v10094 = vadd.f32 %v9934, %v10093
    %v10095 = vpop.f32.mrb[0].mxu0
    %10096 = vmatprep.mubr.bf16.mxu0 %v9350
    %10097 = vmatmul.mubr.bf16.gmra.mrb[0].mxu0 %v9349
    %v10098 = vpop.f32.mrb[0].mxu0
    %v10099 = vadd.f32 %v9934, %v10098
    %v10100 = vpop.f32.mrb[0].mxu0
    %v10101 = vpop.f32.mrb[0].mxu0
    %v10102 = vadd.f32 %v9934, %v10101
    %v10103 = vpop.f32.mrb[0].mxu0
    %10104 = vmatprep.mubr.bf16.mxu0 %v9352
    %10105 = vmatmul.mubr.bf16.gmra.mrb[0].mxu0 %v9351
    %v10106 = vpop.f32.mrb[0].mxu0
    %v10107 = vadd.f32 %v9934, %v10106
    %v10108 = vpop.f32.mrb[0].mxu0
    %v10109 = vpop.f32.mrb[0].mxu0
    %v10110 = vadd.f32 %v9934, %v10109
    %v10111 = vpop.f32.mrb[0].mxu0
    %10112 = vmatprep.mubr.bf16.mxu0 %v9354
    %10113 = vmatmul.mubr.bf16.gmra.mrb[0].mxu0 %v9353
    %v10114 = vpop.f32.mrb[0].mxu0
    %v10115 = vadd.f32 %v9934, %v10114
    %v10116 = vpop.f32.mrb[0].mxu0
    %v10117 = vpop.f32.mrb[0].mxu0
    %v10118 = vadd.f32 %v9934, %v10117
    %v10119 = vpop.f32.mrb[0].mxu0
    %10120 = vmatprep.mubr.bf16.mxu0 %v9356
    %10121 = vmatmul.mubr.bf16.gmra.mrb[0].mxu0 %v9355
    %v10122 = vpop.f32.mrb[0].mxu0
    %v10123 = vadd.f32 %v9934, %v10122
    %v10124 = vpop.f32.mrb[0].mxu0
    %v10125 = vpop.f32.mrb[0].mxu0
    %v10126 = vadd.f32 %v9934, %v10125
    %v10127 = vpop.f32.mrb[0].mxu0
    %10128 = vmatprep.mubr.bf16.mxu0 %v9358
    %10129 = vmatmul.mubr.bf16.gmra.mrb[0].mxu0 %v9357
    %v10130 = vpop.f32.mrb[0].mxu0
    %v10131 = vadd.f32 %v9934, %v10130
    %v10132 = vpop.f32.mrb[0].mxu0
    %v10133 = vpop.f32.mrb[0].mxu0
    %v10134 = vadd.f32 %v9934, %v10133
    %v10135 = vpop.f32.mrb[0].mxu0
    %10136 = vmatprep.mubr.bf16.mxu0 %v9360
    %10137 = vmatmul.mubr.bf16.gmra.mrb[0].mxu0 %v9359
    %v10138 = vpop.f32.mrb[0].mxu0
    %v10139 = vadd.f32 %v9934, %v10138
    %v10140 = vpop.f32.mrb[0].mxu0
    %v10141 = vpop.f32.mrb[0].mxu0
    %v10142 = vadd.f32 %v9934, %v10141
    %v10143 = vpop.f32.mrb[0].mxu0
    %10144 = vmatprep.mubr.bf16.mxu0 %v9362
    %10145 = vmatmul.mubr.bf16.gmra.mrb[0].mxu0 %v9361
    %v10146 = vpop.f32.mrb[0].mxu0
    %v10147 = vadd.f32 %v9934, %v10146
    %v10148 = vpop.f32.mrb[0].mxu0
    %v10149 = vpop.f32.mrb[0].mxu0
    %v10150 = vadd.f32 %v9934, %v10149
    %v10151 = vpop.f32.mrb[0].mxu0
    %10152 = vmatprep.mubr.bf16.mxu0 %v9364
    %10153 = vmatmul.mubr.bf16.gmra.mrb[0].mxu0 %v9363
    %v10154 = vpop.f32.mrb[0].mxu0
    %v10155 = vadd.f32 %v9934, %v10154
    %v10156 = vpop.f32.mrb[0].mxu0
    %v10157 = vpop.f32.mrb[0].mxu0
    %v10158 = vadd.f32 %v9934, %v10157
    %v10159 = vpop.f32.mrb[0].mxu0
    %10160 = vmatprep.mubr.bf16.mxu0 %v9366
    %10161 = vmatmul.mubr.bf16.gmra.mrb[0].mxu0 %v9365
    %v10162 = vpop.f32.mrb[0].mxu0
    %v10163 = vadd.f32 %v9934, %v10162
    %v10164 = vpop.f32.mrb[0].mxu0
    %v10165 = vpop.f32.mrb[0].mxu0
    %v10166 = vadd.f32 %v9934, %v10165
    %v10167 = vpop.f32.mrb[0].mxu0
    %10168 = vmatprep.mubr.bf16.mxu0 %v9368
    %10169 = vmatmul.mubr.bf16.gmra.mrb[0].mxu0 %v9367
    %v10170 = vpop.f32.mrb[0].mxu0
    %v10171 = vadd.f32 %v9934, %v10170
    %v10172 = vpop.f32.mrb[0].mxu0
    %v10173 = vpop.f32.mrb[0].mxu0
    %v10174 = vadd.f32 %v9934, %v10173
    %v10175 = vpop.f32.mrb[0].mxu0
    %10176 = vmatprep.mubr.bf16.mxu0 %v9370
    %10177 = vmatmul.mubr.bf16.gmra.mrb[0].mxu0 %v9369
    %v10178 = vpop.f32.mrb[0].mxu0
    %v10179 = vadd.f32 %v9934, %v10178
    %v10180 = vpop.f32.mrb[0].mxu0
    %v10181 = vpop.f32.mrb[0].mxu0
    %v10182 = vadd.f32 %v9934, %v10181
    %v10183 = vpop.f32.mrb[0].mxu0
    %10184 = vmatprep.mubr.bf16.mxu0 %v9372
    %10185 = vmatmul.mubr.bf16.gmra.mrb[0].mxu0 %v9371
    %v10186 = vpop.f32.mrb[0].mxu0
    %v10187 = vadd.f32 %v9934, %v10186
    %v10188 = vpop.f32.mrb[0].mxu0
    %v10189 = vpop.f32.mrb[0].mxu0
    %v10190 = vadd.f32 %v9934, %v10189
    %v10191 = vpop.f32.mrb[0].mxu0
    %10192 = vmatprep.mubr.bf16.mxu0 %v9374
    %10193 = vmatmul.mubr.bf16.gmra.mrb[0].mxu0 %v9373
    %v10194 = vpop.f32.mrb[0].mxu0
    %v10195 = vadd.f32 %v9934, %v10194
    %v10196 = vpop.f32.mrb[0].mxu0
    %v10197 = vpop.f32.mrb[0].mxu0
    %v10198 = vadd.f32 %v9934, %v10197
    %v10199 = vpop.f32.mrb[0].mxu0
    %10200 = vmatprep.mubr.bf16.mxu0 %v9376
    %10201 = vmatmul.mubr.bf16.gmra.mrb[0].mxu0 %v9375
    %v10202 = vpop.f32.mrb[0].mxu0
    %v10203 = vadd.f32 %v9934, %v10202
    %v10204 = vpop.f32.mrb[0].mxu0
    %v10205 = vpop.f32.mrb[0].mxu0
    %v10206 = vadd.f32 %v9934, %v10205
    %v10207 = vpop.f32.mrb[0].mxu0
    %10208 = vmatprep.mubr.bf16.mxu0 %v9378
    %10209 = vmatmul.mubr.bf16.gmra.mrb[0].mxu0 %v9377
    %v10210 = vpop.f32.mrb[0].mxu0
    %v10211 = vadd.f32 %v9934, %v10210
    %v10212 = vpop.f32.mrb[0].mxu0
    %v10213 = vpop.f32.mrb[0].mxu0
    %v10214 = vadd.f32 %v9934, %v10213
    %v10215 = vpop.f32.mrb[0].mxu0
    %10216 = vmatprep.mubr.bf16.mxu0 %v9380
    %10217 = vmatmul.mubr.bf16.gmra.mrb[0].mxu0 %v9379
    %v10218 = vpop.f32.mrb[0].mxu0
    %v10219 = vadd.f32 %v9934, %v10218
    %v10220 = vpop.f32.mrb[0].mxu0
    %v10221 = vpop.f32.mrb[0].mxu0
    %v10222 = vadd.f32 %v9934, %v10221
    %v10223 = vpop.f32.mrb[0].mxu0
    %10224 = vmatprep.mubr.bf16.mxu0 %v9382
    %10225 = vmatmul.mubr.bf16.gmra.mrb[0].mxu0 %v9381
    %v10226 = vpop.f32.mrb[0].mxu0
    %v10227 = vadd.f32 %v9934, %v10226
    %v10228 = vpop.f32.mrb[0].mxu0
    %v10229 = vpop.f32.mrb[0].mxu0
    %v10230 = vadd.f32 %v9934, %v10229
    %v10231 = vpop.f32.mrb[0].mxu0
    %10232 = vmatprep.mubr.bf16.mxu0 %v9384
    %10233 = vmatmul.mubr.bf16.gmra.mrb[0].mxu0 %v9383
    %v10234 = vpop.f32.mrb[0].mxu0
    %v10235 = vadd.f32 %v9934, %v10234
    %v10236 = vpop.f32.mrb[0].mxu0
    %v10237 = vpop.f32.mrb[0].mxu0
    %v10238 = vadd.f32 %v9934, %v10237
    %v10239 = vpop.f32.mrb[0].mxu0
    %10240 = vmatprep.mubr.bf16.mxu0 %v9386
    %10241 = vmatmul.mubr.bf16.gmra.mrb[0].mxu0 %v9385
    %v10242 = vpop.f32.mrb[0].mxu0
    %v10243 = vadd.f32 %v9934, %v10242
    %v10244 = vpop.f32.mrb[0].mxu0
    %v10245 = vpop.f32.mrb[0].mxu0
    %v10246 = vadd.f32 %v9934, %v10245
    %v10247 = vpop.f32.mrb[0].mxu0
    %10248 = vmatprep.mubr.bf16.mxu0 %v9388
    %10249 = vmatmul.mubr.bf16.gmra.mrb[0].mxu0 %v9387
    %v10250 = vpop.f32.mrb[0].mxu0
    %v10251 = vadd.f32 %v9934, %v10250
    %v10252 = vpop.f32.mrb[0].mxu0
    %v10253 = vpop.f32.mrb[0].mxu0
    %v10254 = vadd.f32 %v9934, %v10253
    %v10255 = vpop.f32.mrb[0].mxu0
    %10256 = vmatprep.mubr.bf16.mxu0 %v9390
    %10257 = vmatmul.mubr.bf16.gmra.mrb[0].mxu0 %v9389
    %v10258 = vpop.f32.mrb[0].mxu0
    %v10259 = vadd.f32 %v9934, %v10258
    %v10260 = vpop.f32.mrb[0].mxu0
    %v10261 = vpop.f32.mrb[0].mxu0
    %v10262 = vadd.f32 %v9934, %v10261
    %v10263 = vpop.f32.mrb[0].mxu0
    %10264 = vmatprep.mubr.bf16.mxu0 %v9392
    %10265 = vmatmul.mubr.bf16.gmra.mrb[0].mxu0 %v9391
    %v10266 = vpop.f32.mrb[0].mxu0
    %v10267 = vadd.f32 %v9934, %v10266
    %v10268 = vpop.f32.mrb[0].mxu0
    %v10269 = vpop.f32.mrb[0].mxu0
    %v10270 = vadd.f32 %v9934, %v10269
    %v10271 = vpop.f32.mrb[0].mxu0
    %10272 = vmatprep.mubr.bf16.mxu0 %v9394
    %10273 = vmatmul.mubr.bf16.gmra.mrb[0].mxu0 %v9393
    %v10274 = vpop.f32.mrb[0].mxu0
    %v10275 = vadd.f32 %v9934, %v10274
    %v10276 = vpop.f32.mrb[0].mxu0
    %v10277 = vpop.f32.mrb[0].mxu0
    %v10278 = vadd.f32 %v9934, %v10277
    %v10279 = vpop.f32.mrb[0].mxu0
    %10280 = vmatprep.mubr.bf16.mxu0 %v9396
    %10281 = vmatmul.mubr.bf16.gmra.mrb[0].mxu0 %v9395
    %v10282 = vpop.f32.mrb[0].mxu0
    %v10283 = vadd.f32 %v9934, %v10282
    %v10284 = vpop.f32.mrb[0].mxu0
    %v10285 = vpop.f32.mrb[0].mxu0
    %v10286 = vadd.f32 %v9934, %v10285
    %v10287 = vpop.f32.mrb[0].mxu0
    %10288 = vmatprep.mubr.bf16.mxu0 %v9398
    %10289 = vmatmul.mubr.bf16.gmra.mrb[0].mxu0 %v9397
    %v10290 = vpop.f32.mrb[0].mxu0
    %v10291 = vadd.f32 %v9934, %v10290
    %v10292 = vpop.f32.mrb[0].mxu0
    %v10293 = vpop.f32.mrb[0].mxu0
    %v10294 = vadd.f32 %v9934, %v10293
    %v10295 = vpop.f32.mrb[0].mxu0
    %10296 = vmatprep.mubr.bf16.mxu0 %v9400
    %10297 = vmatmul.mubr.bf16.gmra.mrb[0].mxu0 %v9399
    %v10298 = vpop.f32.mrb[0].mxu0
    %v10299 = vadd.f32 %v9934, %v10298
    %v10300 = vpop.f32.mrb[0].mxu0
    %v10301 = vpop.f32.mrb[0].mxu0
    %v10302 = vadd.f32 %v9934, %v10301
    %v10303 = vpop.f32.mrb[0].mxu0
    %10304 = vmatprep.mubr.bf16.mxu0 %v9402
    %10305 = vmatmul.mubr.bf16.gmra.mrb[0].mxu0 %v9401
    %v10306 = vpop.f32.mrb[0].mxu0
    %v10307 = vadd.f32 %v9934, %v10306
    %v10308 = vpop.f32.mrb[0].mxu0
    %v10309 = vpop.f32.mrb[0].mxu0
    %v10310 = vadd.f32 %v9934, %v10309
    %v10311 = vpop.f32.mrb[0].mxu0
    %10312 = vmatprep.mubr.bf16.mxu0 %v9404
    %10313 = vmatmul.mubr.bf16.gmra.mrb[0].mxu0 %v9403
    %v10314 = vpop.f32.mrb[0].mxu0
    %v10315 = vadd.f32 %v9934, %v10314
    %v10316 = vpop.f32.mrb[0].mxu0
    %v10317 = vpop.f32.mrb[0].mxu0
    %v10318 = vadd.f32 %v9934, %v10317
    %v10319 = vpop.f32.mrb[0].mxu0
    %10320 = vdwg.mxu0
    %v10321 = vxor.u32 %v10067, 2147483648
    %v10322 = vxor.u32 %v10070, 2147483648
    %v10323 = vxor.u32 %v10075, 2147483648
    %v10324 = vxor.u32 %v10078, 2147483648
    %v10325 = vxor.u32 %v10083, 2147483648
    %v10326 = vxor.u32 %v10086, 2147483648
    %v10327 = vxor.u32 %v10091, 2147483648
    %v10328 = vxor.u32 %v10094, 2147483648
    %v10329 = vxor.u32 %v10099, 2147483648
    %v10330 = vxor.u32 %v10102, 2147483648
    %v10331 = vxor.u32 %v10107, 2147483648
    %v10332 = vxor.u32 %v10110, 2147483648
    %v10333 = vxor.u32 %v10115, 2147483648
    %v10334 = vxor.u32 %v10118, 2147483648
    %v10335 = vxor.u32 %v10123, 2147483648
    %v10336 = vxor.u32 %v10126, 2147483648
    %v10337 = vxor.u32 %v10131, 2147483648
    %v10338 = vxor.u32 %v10134, 2147483648
    %v10339 = vxor.u32 %v10139, 2147483648
    %v10340 = vxor.u32 %v10142, 2147483648
    %v10341 = vxor.u32 %v10147, 2147483648
    %v10342 = vxor.u32 %v10150, 2147483648
    %v10343 = vxor.u32 %v10155, 2147483648
    %v10344 = vxor.u32 %v10158, 2147483648
    %v10345 = vxor.u32 %v10163, 2147483648
    %v10346 = vxor.u32 %v10166, 2147483648
    %v10347 = vxor.u32 %v10171, 2147483648
    %v10348 = vxor.u32 %v10174, 2147483648
    %v10349 = vxor.u32 %v10179, 2147483648
    %v10350 = vxor.u32 %v10182, 2147483648
    %v10351 = vxor.u32 %v10187, 2147483648
    %v10352 = vxor.u32 %v10190, 2147483648
    %v10353 = vxor.u32 %v10195, 2147483648
    %v10354 = vxor.u32 %v10198, 2147483648
    %v10355 = vxor.u32 %v10203, 2147483648
    %v10356 = vxor.u32 %v10206, 2147483648
    %v10357 = vxor.u32 %v10211, 2147483648
    %v10358 = vxor.u32 %v10214, 2147483648
    %v10359 = vxor.u32 %v10219, 2147483648
    %v10360 = vxor.u32 %v10222, 2147483648
    %v10361 = vxor.u32 %v10227, 2147483648
    %v10362 = vxor.u32 %v10230, 2147483648
    %v10363 = vxor.u32 %v10235, 2147483648
    %v10364 = vxor.u32 %v10238, 2147483648
    %v10365 = vxor.u32 %v10243, 2147483648
    %v10366 = vxor.u32 %v10246, 2147483648
    %v10367 = vxor.u32 %v10251, 2147483648
    %v10368 = vxor.u32 %v10254, 2147483648
    %v10369 = vxor.u32 %v10259, 2147483648
    %v10370 = vxor.u32 %v10262, 2147483648
    %v10371 = vxor.u32 %v10267, 2147483648
    %v10372 = vxor.u32 %v10270, 2147483648
    %v10373 = vxor.u32 %v10275, 2147483648
    %v10374 = vxor.u32 %v10278, 2147483648
    %v10375 = vxor.u32 %v10283, 2147483648
    %v10376 = vxor.u32 %v10286, 2147483648
    %v10377 = vxor.u32 %v10291, 2147483648
    %v10378 = vxor.u32 %v10294, 2147483648
    %v10379 = vxor.u32 %v10299, 2147483648
    %v10380 = vxor.u32 %v10302, 2147483648
    %v10381 = vxor.u32 %v10307, 2147483648
    %v10382 = vxor.u32 %v10310, 2147483648
    %v10383 = vxor.u32 %v10315, 2147483648
    %v10384 = vxor.u32 %v10318, 2147483648
    %v10385 = vmul.f32 %v10321, 1.442695
    %v10386 = vpow.pop %v10385
    %v10387 = vmul.f32 %v10322, 1.442695
    %v10388 = vpow.pop %v10387
    %v10389 = vmul.f32 %v10323, 1.442695
    %v10390 = vpow.pop %v10389
    %v10391 = vmul.f32 %v10324, 1.442695
    %v10392 = vpow.pop %v10391
    %v10393 = vmul.f32 %v10325, 1.442695
    %v10394 = vpow.pop %v10393
    %v10395 = vmul.f32 %v10326, 1.442695
    %v10396 = vpow.pop %v10395
    %v10397 = vmul.f32 %v10327, 1.442695
    %v10398 = vpow.pop %v10397
    %v10399 = vmul.f32 %v10328, 1.442695
    %v10400 = vpow.pop %v10399
    %v10401 = vmul.f32 %v10329, 1.442695
    %v10402 = vpow.pop %v10401
    %v10403 = vmul.f32 %v10330, 1.442695
    %v10404 = vpow.pop %v10403
    %v10405 = vmul.f32 %v10331, 1.442695
    %v10406 = vpow.pop %v10405
    %v10407 = vmul.f32 %v10332, 1.442695
    %v10408 = vpow.pop %v10407
    %v10409 = vmul.f32 %v10333, 1.442695
    %v10410 = vpow.pop %v10409
    %v10411 = vmul.f32 %v10334, 1.442695
    %v10412 = vpow.pop %v10411
    %v10413 = vmul.f32 %v10335, 1.442695
    %v10414 = vpow.pop %v10413
    %v10415 = vmul.f32 %v10336, 1.442695
    %v10416 = vpow.pop %v10415
    %v10417 = vmul.f32 %v10337, 1.442695
    %v10418 = vpow.pop %v10417
    %v10419 = vmul.f32 %v10338, 1.442695
    %v10420 = vpow.pop %v10419
    %v10421 = vmul.f32 %v10339, 1.442695
    %v10422 = vpow.pop %v10421
    %v10423 = vmul.f32 %v10340, 1.442695
    %v10424 = vpow.pop %v10423
    %v10425 = vmul.f32 %v10341, 1.442695
    %v10426 = vpow.pop %v10425
    %v10427 = vmul.f32 %v10342, 1.442695
    %v10428 = vpow.pop %v10427
    %v10429 = vmul.f32 %v10343, 1.442695
    %v10430 = vpow.pop %v10429
    %v10431 = vmul.f32 %v10344, 1.442695
    %v10432 = vpow.pop %v10431
    %v10433 = vmul.f32 %v10345, 1.442695
    %v10434 = vpow.pop %v10433
    %v10435 = vmul.f32 %v10346, 1.442695
    %v10436 = vpow.pop %v10435
    %v10437 = vmul.f32 %v10347, 1.442695
    %v10438 = vpow.pop %v10437
    %v10439 = vmul.f32 %v10348, 1.442695
    %v10440 = vpow.pop %v10439
    %v10441 = vmul.f32 %v10349, 1.442695
    %v10442 = vpow.pop %v10441
    %v10443 = vmul.f32 %v10350, 1.442695
    %v10444 = vpow.pop %v10443
    %v10445 = vmul.f32 %v10351, 1.442695
    %v10446 = vpow.pop %v10445
    %v10447 = vmul.f32 %v10352, 1.442695
    %v10448 = vpow.pop %v10447
    %v10449 = vmul.f32 %v10353, 1.442695
    %v10450 = vpow.pop %v10449
    %v10451 = vmul.f32 %v10354, 1.442695
    %v10452 = vpow.pop %v10451
    %v10453 = vmul.f32 %v10355, 1.442695
    %v10454 = vpow.pop %v10453
    %v10455 = vmul.f32 %v10356, 1.442695
    %v10456 = vpow.pop %v10455
    %v10457 = vmul.f32 %v10357, 1.442695
    %v10458 = vpow.pop %v10457
    %v10459 = vmul.f32 %v10358, 1.442695
    %v10460 = vpow.pop %v10459
    %v10461 = vmul.f32 %v10359, 1.442695
    %v10462 = vpow.pop %v10461
    %v10463 = vmul.f32 %v10360, 1.442695
    %v10464 = vpow.pop %v10463
    %v10465 = vmul.f32 %v10361, 1.442695
    %v10466 = vpow.pop %v10465
    %v10467 = vmul.f32 %v10362, 1.442695
    %v10468 = vpow.pop %v10467
    %v10469 = vmul.f32 %v10363, 1.442695
    %v10470 = vpow.pop %v10469
    %v10471 = vmul.f32 %v10364, 1.442695
    %v10472 = vpow.pop %v10471
    %v10473 = vmul.f32 %v10365, 1.442695
    %v10474 = vpow.pop %v10473
    %v10475 = vmul.f32 %v10366, 1.442695
    %v10476 = vpow.pop %v10475
    %v10477 = vmul.f32 %v10367, 1.442695
    %v10478 = vpow.pop %v10477
    %v10479 = vmul.f32 %v10368, 1.442695
    %v10480 = vpow.pop %v10479
    %v10481 = vmul.f32 %v10369, 1.442695
    %v10482 = vpow.pop %v10481
    %v10483 = vmul.f32 %v10370, 1.442695
    %v10484 = vpow.pop %v10483
    %v10485 = vmul.f32 %v10371, 1.442695
    %v10486 = vpow.pop %v10485
    %v10487 = vmul.f32 %v10372, 1.442695
    %v10488 = vpow.pop %v10487
    %v10489 = vmul.f32 %v10373, 1.442695
    %v10490 = vpow.pop %v10489
    %v10491 = vmul.f32 %v10374, 1.442695
    %v10492 = vpow.pop %v10491
    %v10493 = vmul.f32 %v10375, 1.442695
    %v10494 = vpow.pop %v10493
    %v10495 = vmul.f32 %v10376, 1.442695
    %v10496 = vpow.pop %v10495
    %v10497 = vmul.f32 %v10377, 1.442695
    %v10498 = vpow.pop %v10497
    %v10499 = vmul.f32 %v10378, 1.442695
    %v10500 = vpow.pop %v10499
    %v10501 = vmul.f32 %v10379, 1.442695
    %v10502 = vpow.pop %v10501
    %v10503 = vmul.f32 %v10380, 1.442695
    %v10504 = vpow.pop %v10503
    %v10505 = vmul.f32 %v10381, 1.442695
    %v10506 = vpow.pop %v10505
    %v10507 = vmul.f32 %v10382, 1.442695
    %v10508 = vpow.pop %v10507
    %v10509 = vmul.f32 %v10383, 1.442695
    %v10510 = vpow.pop %v10509
    %v10511 = vmul.f32 %v10384, 1.442695
    %v10512 = vpow.pop %v10511
    %v10513 = vadd.f32 %v10386, 1.0
    %v10514 = vadd.f32 %v10388, 1.0
    %v10515 = vadd.f32 %v10390, 1.0
    %v10516 = vadd.f32 %v10392, 1.0
    %v10517 = vadd.f32 %v10394, 1.0
    %v10518 = vadd.f32 %v10396, 1.0
    %v10519 = vadd.f32 %v10398, 1.0
    %v10520 = vadd.f32 %v10400, 1.0
    %v10521 = vadd.f32 %v10402, 1.0
    %v10522 = vadd.f32 %v10404, 1.0
    %v10523 = vadd.f32 %v10406, 1.0
    %v10524 = vadd.f32 %v10408, 1.0
    %v10525 = vadd.f32 %v10410, 1.0
    %v10526 = vadd.f32 %v10412, 1.0
    %v10527 = vadd.f32 %v10414, 1.0
    %v10528 = vadd.f32 %v10416, 1.0
    %v10529 = vadd.f32 %v10418, 1.0
    %v10530 = vadd.f32 %v10420, 1.0
    %v10531 = vadd.f32 %v10422, 1.0
    %v10532 = vadd.f32 %v10424, 1.0
    %v10533 = vadd.f32 %v10426, 1.0
    %v10534 = vadd.f32 %v10428, 1.0
    %v10535 = vadd.f32 %v10430, 1.0
    %v10536 = vadd.f32 %v10432, 1.0
    %v10537 = vadd.f32 %v10434, 1.0
    %v10538 = vadd.f32 %v10436, 1.0
    %v10539 = vadd.f32 %v10438, 1.0
    %v10540 = vadd.f32 %v10440, 1.0
    %v10541 = vadd.f32 %v10442, 1.0
    %v10542 = vadd.f32 %v10444, 1.0
    %v10543 = vadd.f32 %v10446, 1.0
    %v10544 = vadd.f32 %v10448, 1.0
    %v10545 = vadd.f32 %v10450, 1.0
    %v10546 = vadd.f32 %v10452, 1.0
    %v10547 = vadd.f32 %v10454, 1.0
    %v10548 = vadd.f32 %v10456, 1.0
    %v10549 = vadd.f32 %v10458, 1.0
    %v10550 = vadd.f32 %v10460, 1.0
    %v10551 = vadd.f32 %v10462, 1.0
    %v10552 = vadd.f32 %v10464, 1.0
    %v10553 = vadd.f32 %v10466, 1.0
    %v10554 = vadd.f32 %v10468, 1.0
    %v10555 = vadd.f32 %v10470, 1.0
    %v10556 = vadd.f32 %v10472, 1.0
    %v10557 = vadd.f32 %v10474, 1.0
    %v10558 = vadd.f32 %v10476, 1.0
    %v10559 = vadd.f32 %v10478, 1.0
    %v10560 = vadd.f32 %v10480, 1.0
    %v10561 = vadd.f32 %v10482, 1.0
    %v10562 = vadd.f32 %v10484, 1.0
    %v10563 = vadd.f32 %v10486, 1.0
    %v10564 = vadd.f32 %v10488, 1.0
    %v10565 = vadd.f32 %v10490, 1.0
    %v10566 = vadd.f32 %v10492, 1.0
    %v10567 = vadd.f32 %v10494, 1.0
    %v10568 = vadd.f32 %v10496, 1.0
    %v10569 = vadd.f32 %v10498, 1.0
    %v10570 = vadd.f32 %v10500, 1.0
    %v10571 = vadd.f32 %v10502, 1.0
    %v10572 = vadd.f32 %v10504, 1.0
    %v10573 = vadd.f32 %v10506, 1.0
    %v10574 = vadd.f32 %v10508, 1.0
    %v10575 = vadd.f32 %v10510, 1.0
    %v10576 = vadd.f32 %v10512, 1.0
    %v10577 = vrcp.pop %v10513
    %v10578 = vmul.f32 1.0, %v10577
    %v10579 = vrcp.pop %v10514
    %v10580 = vmul.f32 1.0, %v10579
    %v10581 = vrcp.pop %v10515
    %v10582 = vmul.f32 1.0, %v10581
    %v10583 = vrcp.pop %v10516
    %v10584 = vmul.f32 1.0, %v10583
    %v10585 = vrcp.pop %v10517
    %v10586 = vmul.f32 1.0, %v10585
    %v10587 = vrcp.pop %v10518
    %v10588 = vmul.f32 1.0, %v10587
    %v10589 = vrcp.pop %v10519
    %v10590 = vmul.f32 1.0, %v10589
    %v10591 = vrcp.pop %v10520
    %v10592 = vmul.f32 1.0, %v10591
    %v10593 = vrcp.pop %v10521
    %v10594 = vmul.f32 1.0, %v10593
    %v10595 = vrcp.pop %v10522
    %v10596 = vmul.f32 1.0, %v10595
    %v10597 = vrcp.pop %v10523
    %v10598 = vmul.f32 1.0, %v10597
    %v10599 = vrcp.pop %v10524
    %v10600 = vmul.f32 1.0, %v10599
    %v10601 = vrcp.pop %v10525
    %v10602 = vmul.f32 1.0, %v10601
    %v10603 = vrcp.pop %v10526
    %v10604 = vmul.f32 1.0, %v10603
    %v10605 = vrcp.pop %v10527
    %v10606 = vmul.f32 1.0, %v10605
    %v10607 = vrcp.pop %v10528
    %v10608 = vmul.f32 1.0, %v10607
    %v10609 = vrcp.pop %v10529
    %v10610 = vmul.f32 1.0, %v10609
    %v10611 = vrcp.pop %v10530
    %v10612 = vmul.f32 1.0, %v10611
    %v10613 = vrcp.pop %v10531
    %v10614 = vmul.f32 1.0, %v10613
    %v10615 = vrcp.pop %v10532
    %v10616 = vmul.f32 1.0, %v10615
    %v10617 = vrcp.pop %v10533
    %v10618 = vmul.f32 1.0, %v10617
    %v10619 = vrcp.pop %v10534
    %v10620 = vmul.f32 1.0, %v10619
    %v10621 = vrcp.pop %v10535
    %v10622 = vmul.f32 1.0, %v10621
    %v10623 = vrcp.pop %v10536
    %v10624 = vmul.f32 1.0, %v10623
    %v10625 = vrcp.pop %v10537
    %v10626 = vmul.f32 1.0, %v10625
    %v10627 = vrcp.pop %v10538
    %v10628 = vmul.f32 1.0, %v10627
    %v10629 = vrcp.pop %v10539
    %v10630 = vmul.f32 1.0, %v10629
    %v10631 = vrcp.pop %v10540
    %v10632 = vmul.f32 1.0, %v10631
    %v10633 = vrcp.pop %v10541
    %v10634 = vmul.f32 1.0, %v10633
    %v10635 = vrcp.pop %v10542
    %v10636 = vmul.f32 1.0, %v10635
    %v10637 = vrcp.pop %v10543
    %v10638 = vmul.f32 1.0, %v10637
    %v10639 = vrcp.pop %v10544
    %v10640 = vmul.f32 1.0, %v10639
    %v10641 = vrcp.pop %v10545
    %v10642 = vmul.f32 1.0, %v10641
    %v10643 = vrcp.pop %v10546
    %v10644 = vmul.f32 1.0, %v10643
    %v10645 = vrcp.pop %v10547
    %v10646 = vmul.f32 1.0, %v10645
    %v10647 = vrcp.pop %v10548
    %v10648 = vmul.f32 1.0, %v10647
    %v10649 = vrcp.pop %v10549
    %v10650 = vmul.f32 1.0, %v10649
    %v10651 = vrcp.pop %v10550
    %v10652 = vmul.f32 1.0, %v10651
    %v10653 = vrcp.pop %v10551
    %v10654 = vmul.f32 1.0, %v10653
    %v10655 = vrcp.pop %v10552
    %v10656 = vmul.f32 1.0, %v10655
    %v10657 = vrcp.pop %v10553
    %v10658 = vmul.f32 1.0, %v10657
    %v10659 = vrcp.pop %v10554
    %v10660 = vmul.f32 1.0, %v10659
    %v10661 = vrcp.pop %v10555
    %v10662 = vmul.f32 1.0, %v10661
    %v10663 = vrcp.pop %v10556
    %v10664 = vmul.f32 1.0, %v10663
    %v10665 = vrcp.pop %v10557
    %v10666 = vmul.f32 1.0, %v10665
    %v10667 = vrcp.pop %v10558
    %v10668 = vmul.f32 1.0, %v10667
    %v10669 = vrcp.pop %v10559
    %v10670 = vmul.f32 1.0, %v10669
    %v10671 = vrcp.pop %v10560
    %v10672 = vmul.f32 1.0, %v10671
    %v10673 = vrcp.pop %v10561
    %v10674 = vmul.f32 1.0, %v10673
    %v10675 = vrcp.pop %v10562
    %v10676 = vmul.f32 1.0, %v10675
    %v10677 = vrcp.pop %v10563
    %v10678 = vmul.f32 1.0, %v10677
    %v10679 = vrcp.pop %v10564
    %v10680 = vmul.f32 1.0, %v10679
    %v10681 = vrcp.pop %v10565
    %v10682 = vmul.f32 1.0, %v10681
    %v10683 = vrcp.pop %v10566
    %v10684 = vmul.f32 1.0, %v10683
    %v10685 = vrcp.pop %v10567
    %v10686 = vmul.f32 1.0, %v10685
    %v10687 = vrcp.pop %v10568
    %v10688 = vmul.f32 1.0, %v10687
    %v10689 = vrcp.pop %v10569
    %v10690 = vmul.f32 1.0, %v10689
    %v10691 = vrcp.pop %v10570
    %v10692 = vmul.f32 1.0, %v10691
    %v10693 = vrcp.pop %v10571
    %v10694 = vmul.f32 1.0, %v10693
    %v10695 = vrcp.pop %v10572
    %v10696 = vmul.f32 1.0, %v10695
    %v10697 = vrcp.pop %v10573
    %v10698 = vmul.f32 1.0, %v10697
    %v10699 = vrcp.pop %v10574
    %v10700 = vmul.f32 1.0, %v10699
    %v10701 = vrcp.pop %v10575
    %v10702 = vmul.f32 1.0, %v10701
    %v10703 = vrcp.pop %v10576
    %v10704 = vmul.f32 1.0, %v10703
    %v10705 = vmul.f32 %v9831, %v10578
    %v10706 = vmul.f32 %v9832, %v10580
    %v10707 = vmul.f32 %v9833, %v10582
    %v10708 = vmul.f32 %v9834, %v10584
    %v10709 = vmul.f32 %v9835, %v10586
    %v10710 = vmul.f32 %v9836, %v10588
    %v10711 = vmul.f32 %v9837, %v10590
    %v10712 = vmul.f32 %v9838, %v10592
    %v10713 = vmul.f32 %v9839, %v10594
    %v10714 = vmul.f32 %v9840, %v10596
    %v10715 = vmul.f32 %v9841, %v10598
    %v10716 = vmul.f32 %v9842, %v10600
    %v10717 = vmul.f32 %v9843, %v10602
    %v10718 = vmul.f32 %v9844, %v10604
    %v10719 = vmul.f32 %v9845, %v10606
    %v10720 = vmul.f32 %v9846, %v10608
    %v10721 = vmul.f32 %v9847, %v10610
    %v10722 = vmul.f32 %v9848, %v10612
    %v10723 = vmul.f32 %v9849, %v10614
    %v10724 = vmul.f32 %v9850, %v10616
    %v10725 = vmul.f32 %v9851, %v10618
    %v10726 = vmul.f32 %v9852, %v10620
    %v10727 = vmul.f32 %v9853, %v10622
    %v10728 = vmul.f32 %v9854, %v10624
    %v10729 = vmul.f32 %v9855, %v10626
    %v10730 = vmul.f32 %v9856, %v10628
    %v10731 = vmul.f32 %v9857, %v10630
    %v10732 = vmul.f32 %v9858, %v10632
    %v10733 = vmul.f32 %v9859, %v10634
    %v10734 = vmul.f32 %v9860, %v10636
    %v10735 = vmul.f32 %v9861, %v10638
    %v10736 = vmul.f32 %v9862, %v10640
    %v10737 = vmul.f32 %v9863, %v10642
    %v10738 = vmul.f32 %v9864, %v10644
    %v10739 = vmul.f32 %v9865, %v10646
    %v10740 = vmul.f32 %v9866, %v10648
    %v10741 = vmul.f32 %v9867, %v10650
    %v10742 = vmul.f32 %v9868, %v10652
    %v10743 = vmul.f32 %v9869, %v10654
    %v10744 = vmul.f32 %v9870, %v10656
    %v10745 = vmul.f32 %v9871, %v10658
    %v10746 = vmul.f32 %v9872, %v10660
    %v10747 = vmul.f32 %v9873, %v10662
    %v10748 = vmul.f32 %v9874, %v10664
    %v10749 = vmul.f32 %v9875, %v10666
    %v10750 = vmul.f32 %v9876, %v10668
    %v10751 = vmul.f32 %v9877, %v10670
    %v10752 = vmul.f32 %v9878, %v10672
    %v10753 = vmul.f32 %v9879, %v10674
    %v10754 = vmul.f32 %v9880, %v10676
    %v10755 = vmul.f32 %v9881, %v10678
    %v10756 = vmul.f32 %v9882, %v10680
    %v10757 = vmul.f32 %v9883, %v10682
    %v10758 = vmul.f32 %v9884, %v10684
    %v10759 = vmul.f32 %v9885, %v10686
    %v10760 = vmul.f32 %v9886, %v10688
    %v10761 = vmul.f32 %v9887, %v10690
    %v10762 = vmul.f32 %v9888, %v10692
    %v10763 = vmul.f32 %v9889, %v10694
    %v10764 = vmul.f32 %v9890, %v10696
    %v10765 = vmul.f32 %v9891, %v10698
    %v10766 = vmul.f32 %v9892, %v10700
    %v10767 = vmul.f32 %v9893, %v10702
    %v10768 = vmul.f32 %v9894, %v10704
    %s10769 = scalar_lea.vmem %s7, 1
    %v10770 = vld [vmem:[%s10769] sm:$0x1]
    %v10772 = vlaneseq
    %v10773 = vshrl.u32 %v10772, 7
    %v10774 = vsub.s32 0, %v10773
    %v10775 = vrot.slane %v10770, %v10774
    %v10777 = vmul.f32 %v10705, %v10775
    %v10778 = vmul.f32 %v10706, %v10775
    %v10779 = vmul.f32 %v10707, %v10775
    %v10780 = vmul.f32 %v10708, %v10775
    %v10781 = vmul.f32 %v10709, %v10775
    %v10782 = vmul.f32 %v10710, %v10775
    %v10783 = vmul.f32 %v10711, %v10775
    %v10784 = vmul.f32 %v10712, %v10775
    %v10785 = vmul.f32 %v10713, %v10775
    %v10786 = vmul.f32 %v10714, %v10775
    %v10787 = vmul.f32 %v10715, %v10775
    %v10788 = vmul.f32 %v10716, %v10775
    %v10789 = vmul.f32 %v10717, %v10775
    %v10790 = vmul.f32 %v10718, %v10775
    %v10791 = vmul.f32 %v10719, %v10775
    %v10792 = vmul.f32 %v10720, %v10775
    %v10793 = vmul.f32 %v10721, %v10775
    %v10794 = vmul.f32 %v10722, %v10775
    %v10795 = vmul.f32 %v10723, %v10775
    %v10796 = vmul.f32 %v10724, %v10775
    %v10797 = vmul.f32 %v10725, %v10775
    %v10798 = vmul.f32 %v10726, %v10775
    %v10799 = vmul.f32 %v10727, %v10775
    %v10800 = vmul.f32 %v10728, %v10775
    %v10801 = vmul.f32 %v10729, %v10775
    %v10802 = vmul.f32 %v10730, %v10775
    %v10803 = vmul.f32 %v10731, %v10775
    %v10804 = vmul.f32 %v10732, %v10775
    %v10805 = vmul.f32 %v10733, %v10775
    %v10806 = vmul.f32 %v10734, %v10775
    %v10807 = vmul.f32 %v10735, %v10775
    %v10808 = vmul.f32 %v10736, %v10775
    %v10809 = vmul.f32 %v10737, %v10775
    %v10810 = vmul.f32 %v10738, %v10775
    %v10811 = vmul.f32 %v10739, %v10775
    %v10812 = vmul.f32 %v10740, %v10775
    %v10813 = vmul.f32 %v10741, %v10775
    %v10814 = vmul.f32 %v10742, %v10775
    %v10815 = vmul.f32 %v10743, %v10775
    %v10816 = vmul.f32 %v10744, %v10775
    %v10817 = vmul.f32 %v10745, %v10775
    %v10818 = vmul.f32 %v10746, %v10775
    %v10819 = vmul.f32 %v10747, %v10775
    %v10820 = vmul.f32 %v10748, %v10775
    %v10821 = vmul.f32 %v10749, %v10775
    %v10822 = vmul.f32 %v10750, %v10775
    %v10823 = vmul.f32 %v10751, %v10775
    %v10824 = vmul.f32 %v10752, %v10775
    %v10825 = vmul.f32 %v10753, %v10775
    %v10826 = vmul.f32 %v10754, %v10775
    %v10827 = vmul.f32 %v10755, %v10775
    %v10828 = vmul.f32 %v10756, %v10775
    %v10829 = vmul.f32 %v10757, %v10775
    %v10830 = vmul.f32 %v10758, %v10775
    %v10831 = vmul.f32 %v10759, %v10775
    %v10832 = vmul.f32 %v10760, %v10775
    %v10833 = vmul.f32 %v10761, %v10775
    %v10834 = vmul.f32 %v10762, %v10775
    %v10835 = vmul.f32 %v10763, %v10775
    %v10836 = vmul.f32 %v10764, %v10775
    %v10837 = vmul.f32 %v10765, %v10775
    %v10838 = vmul.f32 %v10766, %v10775
    %v10839 = vmul.f32 %v10767, %v10775
    %v10840 = vmul.f32 %v10768, %v10775
    %10841 = vadd.xlane.f32.xlu0 %v10777
    %v10842 = vpop.xlane.xlu0 %10841
    %10843 = vadd.xlane.f32.xlu0 %v10778
    %v10844 = vpop.xlane.xlu0 %10843
    %10845 = vadd.xlane.f32.xlu0 %v10779
    %v10846 = vpop.xlane.xlu0 %10845
    %10847 = vadd.xlane.f32.xlu0 %v10780
    %v10848 = vpop.xlane.xlu0 %10847
    %10849 = vadd.xlane.f32.xlu0 %v10781
    %v10850 = vpop.xlane.xlu0 %10849
    %10851 = vadd.xlane.f32.xlu0 %v10782
    %v10852 = vpop.xlane.xlu0 %10851
    %10853 = vadd.xlane.f32.xlu0 %v10783
    %v10854 = vpop.xlane.xlu0 %10853
    %10855 = vadd.xlane.f32.xlu0 %v10784
    %v10856 = vpop.xlane.xlu0 %10855
    %10857 = vadd.xlane.f32.xlu0 %v10785
    %v10858 = vpop.xlane.xlu0 %10857
    %10859 = vadd.xlane.f32.xlu0 %v10786
    %v10860 = vpop.xlane.xlu0 %10859
    %10861 = vadd.xlane.f32.xlu0 %v10787
    %v10862 = vpop.xlane.xlu0 %10861
    %10863 = vadd.xlane.f32.xlu0 %v10788
    %v10864 = vpop.xlane.xlu0 %10863
    %10865 = vadd.xlane.f32.xlu0 %v10789
    %v10866 = vpop.xlane.xlu0 %10865
    %10867 = vadd.xlane.f32.xlu0 %v10790
    %v10868 = vpop.xlane.xlu0 %10867
    %10869 = vadd.xlane.f32.xlu0 %v10791
    %v10870 = vpop.xlane.xlu0 %10869
    %10871 = vadd.xlane.f32.xlu0 %v10792
    %v10872 = vpop.xlane.xlu0 %10871
    %10873 = vadd.xlane.f32.xlu0 %v10793
    %v10874 = vpop.xlane.xlu0 %10873
    %10875 = vadd.xlane.f32.xlu0 %v10794
    %v10876 = vpop.xlane.xlu0 %10875
    %10877 = vadd.xlane.f32.xlu0 %v10795
    %v10878 = vpop.xlane.xlu0 %10877
    %10879 = vadd.xlane.f32.xlu0 %v10796
    %v10880 = vpop.xlane.xlu0 %10879
    %10881 = vadd.xlane.f32.xlu0 %v10797
    %v10882 = vpop.xlane.xlu0 %10881
    %10883 = vadd.xlane.f32.xlu0 %v10798
    %v10884 = vpop.xlane.xlu0 %10883
    %10885 = vadd.xlane.f32.xlu0 %v10799
    %v10886 = vpop.xlane.xlu0 %10885
    %10887 = vadd.xlane.f32.xlu0 %v10800
    %v10888 = vpop.xlane.xlu0 %10887
    %10889 = vadd.xlane.f32.xlu0 %v10801
    %v10890 = vpop.xlane.xlu0 %10889
    %10891 = vadd.xlane.f32.xlu0 %v10802
    %v10892 = vpop.xlane.xlu0 %10891
    %10893 = vadd.xlane.f32.xlu0 %v10803
    %v10894 = vpop.xlane.xlu0 %10893
    %10895 = vadd.xlane.f32.xlu0 %v10804
    %v10896 = vpop.xlane.xlu0 %10895
    %10897 = vadd.xlane.f32.xlu0 %v10805
    %v10898 = vpop.xlane.xlu0 %10897
    %10899 = vadd.xlane.f32.xlu0 %v10806
    %v10900 = vpop.xlane.xlu0 %10899
    %10901 = vadd.xlane.f32.xlu0 %v10807
    %v10902 = vpop.xlane.xlu0 %10901
    %10903 = vadd.xlane.f32.xlu0 %v10808
    %v10904 = vpop.xlane.xlu0 %10903
    %10905 = vadd.xlane.f32.xlu0 %v10809
    %v10906 = vpop.xlane.xlu0 %10905
    %10907 = vadd.xlane.f32.xlu0 %v10810
    %v10908 = vpop.xlane.xlu0 %10907
    %10909 = vadd.xlane.f32.xlu0 %v10811
    %v10910 = vpop.xlane.xlu0 %10909
    %10911 = vadd.xlane.f32.xlu0 %v10812
    %v10912 = vpop.xlane.xlu0 %10911
    %10913 = vadd.xlane.f32.xlu0 %v10813
    %v10914 = vpop.xlane.xlu0 %10913
    %10915 = vadd.xlane.f32.xlu0 %v10814
    %v10916 = vpop.xlane.xlu0 %10915
    %10917 = vadd.xlane.f32.xlu0 %v10815
    %v10918 = vpop.xlane.xlu0 %10917
    %10919 = vadd.xlane.f32.xlu0 %v10816
    %v10920 = vpop.xlane.xlu0 %10919
    %10921 = vadd.xlane.f32.xlu0 %v10817
    %v10922 = vpop.xlane.xlu0 %10921
    %10923 = vadd.xlane.f32.xlu0 %v10818
    %v10924 = vpop.xlane.xlu0 %10923
    %10925 = vadd.xlane.f32.xlu0 %v10819
    %v10926 = vpop.xlane.xlu0 %10925
    %10927 = vadd.xlane.f32.xlu0 %v10820
    %v10928 = vpop.xlane.xlu0 %10927
    %10929 = vadd.xlane.f32.xlu0 %v10821
    %v10930 = vpop.xlane.xlu0 %10929
    %10931 = vadd.xlane.f32.xlu0 %v10822
    %v10932 = vpop.xlane.xlu0 %10931
    %10933 = vadd.xlane.f32.xlu0 %v10823
    %v10934 = vpop.xlane.xlu0 %10933
    %10935 = vadd.xlane.f32.xlu0 %v10824
    %v10936 = vpop.xlane.xlu0 %10935
    %10937 = vadd.xlane.f32.xlu0 %v10825
    %v10938 = vpop.xlane.xlu0 %10937
    %10939 = vadd.xlane.f32.xlu0 %v10826
    %v10940 = vpop.xlane.xlu0 %10939
    %10941 = vadd.xlane.f32.xlu0 %v10827
    %v10942 = vpop.xlane.xlu0 %10941
    %10943 = vadd.xlane.f32.xlu0 %v10828
    %v10944 = vpop.xlane.xlu0 %10943
    %10945 = vadd.xlane.f32.xlu0 %v10829
    %v10946 = vpop.xlane.xlu0 %10945
    %10947 = vadd.xlane.f32.xlu0 %v10830
    %v10948 = vpop.xlane.xlu0 %10947
    %10949 = vadd.xlane.f32.xlu0 %v10831
    %v10950 = vpop.xlane.xlu0 %10949
    %10951 = vadd.xlane.f32.xlu0 %v10832
    %v10952 = vpop.xlane.xlu0 %10951
    %10953 = vadd.xlane.f32.xlu0 %v10833
    %v10954 = vpop.xlane.xlu0 %10953
    %10955 = vadd.xlane.f32.xlu0 %v10834
    %v10956 = vpop.xlane.xlu0 %10955
    %10957 = vadd.xlane.f32.xlu0 %v10835
    %v10958 = vpop.xlane.xlu0 %10957
    %10959 = vadd.xlane.f32.xlu0 %v10836
    %v10960 = vpop.xlane.xlu0 %10959
    %10961 = vadd.xlane.f32.xlu0 %v10837
    %v10962 = vpop.xlane.xlu0 %10961
    %10963 = vadd.xlane.f32.xlu0 %v10838
    %v10964 = vpop.xlane.xlu0 %10963
    %10965 = vadd.xlane.f32.xlu0 %v10839
    %v10966 = vpop.xlane.xlu0 %10965
    %10967 = vadd.xlane.f32.xlu0 %v10840
    %v10968 = vpop.xlane.xlu0 %10967
    %s10969 = scalar_lea.vmem %s8, 1
    %v10970 = vld [vmem:[%s10969] sm:$0x1]
    %v10972 = vlaneseq
    %v10973 = vshrl.u32 %v10972, 7
    %v10974 = vsub.s32 0, %v10973
    %v10975 = vrot.slane %v10970, %v10974
    %v10977 = vadd.f32 %v10842, %v10975
    %v10978 = vadd.f32 %v10844, %v10975
    %v10979 = vadd.f32 %v10846, %v10975
    %v10980 = vadd.f32 %v10848, %v10975
    %v10981 = vadd.f32 %v10850, %v10975
    %v10982 = vadd.f32 %v10852, %v10975
    %v10983 = vadd.f32 %v10854, %v10975
    %v10984 = vadd.f32 %v10856, %v10975
    %v10985 = vadd.f32 %v10858, %v10975
    %v10986 = vadd.f32 %v10860, %v10975
    %v10987 = vadd.f32 %v10862, %v10975
    %v10988 = vadd.f32 %v10864, %v10975
    %v10989 = vadd.f32 %v10866, %v10975
    %v10990 = vadd.f32 %v10868, %v10975
    %v10991 = vadd.f32 %v10870, %v10975
    %v10992 = vadd.f32 %v10872, %v10975
    %v10993 = vadd.f32 %v10874, %v10975
    %v10994 = vadd.f32 %v10876, %v10975
    %v10995 = vadd.f32 %v10878, %v10975
    %v10996 = vadd.f32 %v10880, %v10975
    %v10997 = vadd.f32 %v10882, %v10975
    %v10998 = vadd.f32 %v10884, %v10975
    %v10999 = vadd.f32 %v10886, %v10975
    %v11000 = vadd.f32 %v10888, %v10975
    %v11001 = vadd.f32 %v10890, %v10975
    %v11002 = vadd.f32 %v10892, %v10975
    %v11003 = vadd.f32 %v10894, %v10975
    %v11004 = vadd.f32 %v10896, %v10975
    %v11005 = vadd.f32 %v10898, %v10975
    %v11006 = vadd.f32 %v10900, %v10975
    %v11007 = vadd.f32 %v10902, %v10975
    %v11008 = vadd.f32 %v10904, %v10975
    %v11009 = vadd.f32 %v10906, %v10975
    %v11010 = vadd.f32 %v10908, %v10975
    %v11011 = vadd.f32 %v10910, %v10975
    %v11012 = vadd.f32 %v10912, %v10975
    %v11013 = vadd.f32 %v10914, %v10975
    %v11014 = vadd.f32 %v10916, %v10975
    %v11015 = vadd.f32 %v10918, %v10975
    %v11016 = vadd.f32 %v10920, %v10975
    %v11017 = vadd.f32 %v10922, %v10975
    %v11018 = vadd.f32 %v10924, %v10975
    %v11019 = vadd.f32 %v10926, %v10975
    %v11020 = vadd.f32 %v10928, %v10975
    %v11021 = vadd.f32 %v10930, %v10975
    %v11022 = vadd.f32 %v10932, %v10975
    %v11023 = vadd.f32 %v10934, %v10975
    %v11024 = vadd.f32 %v10936, %v10975
    %v11025 = vadd.f32 %v10938, %v10975
    %v11026 = vadd.f32 %v10940, %v10975
    %v11027 = vadd.f32 %v10942, %v10975
    %v11028 = vadd.f32 %v10944, %v10975
    %v11029 = vadd.f32 %v10946, %v10975
    %v11030 = vadd.f32 %v10948, %v10975
    %v11031 = vadd.f32 %v10950, %v10975
    %v11032 = vadd.f32 %v10952, %v10975
    %v11033 = vadd.f32 %v10954, %v10975
    %v11034 = vadd.f32 %v10956, %v10975
    %v11035 = vadd.f32 %v10958, %v10975
    %v11036 = vadd.f32 %v10960, %v10975
    %v11037 = vadd.f32 %v10962, %v10975
    %v11038 = vadd.f32 %v10964, %v10975
    %v11039 = vadd.f32 %v10966, %v10975
    %v11040 = vadd.f32 %v10968, %v10975
    %v11041 = vsel %vm6422, %v10977, -inf
    %v11042 = vsel %vm6423, %v10978, -inf
    %v11043 = vsel %vm6424, %v10979, -inf
    %v11044 = vsel %vm6425, %v10980, -inf
    %v11045 = vsel %vm6426, %v10981, -inf
    %v11046 = vsel %vm6427, %v10982, -inf
    %v11047 = vsel %vm6428, %v10983, -inf
    %v11048 = vsel %vm6429, %v10984, -inf
    %v11049 = vsel %vm6430, %v10985, -inf
    %v11050 = vsel %vm6431, %v10986, -inf
    %v11051 = vsel %vm6432, %v10987, -inf
    %v11052 = vsel %vm6433, %v10988, -inf
    %v11053 = vsel %vm6434, %v10989, -inf
    %v11054 = vsel %vm6435, %v10990, -inf
    %v11055 = vsel %vm6436, %v10991, -inf
    %v11056 = vsel %vm6437, %v10992, -inf
    %v11057 = vsel %vm6438, %v10993, -inf
    %v11058 = vsel %vm6439, %v10994, -inf
    %v11059 = vsel %vm6440, %v10995, -inf
    %v11060 = vsel %vm6441, %v10996, -inf
    %v11061 = vsel %vm6442, %v10997, -inf
    %v11062 = vsel %vm6443, %v10998, -inf
    %v11063 = vsel %vm6444, %v10999, -inf
    %v11064 = vsel %vm6445, %v11000, -inf
    %v11065 = vsel %vm6446, %v11001, -inf
    %v11066 = vsel %vm6447, %v11002, -inf
    %v11067 = vsel %vm6448, %v11003, -inf
    %v11068 = vsel %vm6449, %v11004, -inf
    %v11069 = vsel %vm6450, %v11005, -inf
    %v11070 = vsel %vm6451, %v11006, -inf
    %v11071 = vsel %vm6452, %v11007, -inf
    %v11072 = vsel %vm6453, %v11008, -inf
    %v11073 = vsel %vm6454, %v11009, -inf
    %v11074 = vsel %vm6455, %v11010, -inf
    %v11075 = vsel %vm6456, %v11011, -inf
    %v11076 = vsel %vm6457, %v11012, -inf
    %v11077 = vsel %vm6458, %v11013, -inf
    %v11078 = vsel %vm6459, %v11014, -inf
    %v11079 = vsel %vm6460, %v11015, -inf
    %v11080 = vsel %vm6461, %v11016, -inf
    %v11081 = vsel %vm6462, %v11017, -inf
    %v11082 = vsel %vm6463, %v11018, -inf
    %v11083 = vsel %vm6464, %v11019, -inf
    %v11084 = vsel %vm6465, %v11020, -inf
    %v11085 = vsel %vm6466, %v11021, -inf
    %v11086 = vsel %vm6467, %v11022, -inf
    %v11087 = vsel %vm6468, %v11023, -inf
    %v11088 = vsel %vm6469, %v11024, -inf
    %v11089 = vsel %vm6470, %v11025, -inf
    %v11090 = vsel %vm6471, %v11026, -inf
    %v11091 = vsel %vm6472, %v11027, -inf
    %v11092 = vsel %vm6473, %v11028, -inf
    %v11093 = vsel %vm6474, %v11029, -inf
    %v11094 = vsel %vm6475, %v11030, -inf
    %v11095 = vsel %vm6476, %v11031, -inf
    %v11096 = vsel %vm6477, %v11032, -inf
    %v11097 = vsel %vm6478, %v11033, -inf
    %v11098 = vsel %vm6479, %v11034, -inf
    %v11099 = vsel %vm6480, %v11035, -inf
    %v11100 = vsel %vm6481, %v11036, -inf
    %v11101 = vsel %vm6482, %v11037, -inf
    %v11102 = vsel %vm6483, %v11038, -inf
    %v11103 = vsel %vm6484, %v11039, -inf
    %v11104 = vsel %vm6485, %v11040, -inf
    %s11105 = scalar_lea.vmem [#allocation3], 1
    %v11106 = vld [vmem:[%s11105] sm:$0x1]
    %v11107 = vsel %vm8245, %v11041, -inf
    %v11108 = vsel %vm8245, %v11042, -inf
    %v11109 = vsel %vm8245, %v11043, -inf
    %v11110 = vsel %vm8245, %v11044, -inf
    %v11111 = vsel %vm8245, %v11045, -inf
    %v11112 = vmax.f32 %v11107, %v11111
    %v11113 = vsel %vm8245, %v11046, -inf
    %v11114 = vmax.f32 %v11108, %v11113
    %v11115 = vsel %vm8245, %v11047, -inf
    %v11116 = vmax.f32 %v11109, %v11115
    %v11117 = vsel %vm8245, %v11048, -inf
    %v11118 = vmax.f32 %v11110, %v11117
    %v11119 = vsel %vm8245, %v11049, -inf
    %v11120 = vmax.f32 %v11112, %v11119
    %v11121 = vsel %vm8245, %v11050, -inf
    %v11122 = vmax.f32 %v11114, %v11121
    %v11123 = vsel %vm8245, %v11051, -inf
    %v11124 = vmax.f32 %v11116, %v11123
    %v11125 = vsel %vm8245, %v11052, -inf
    %v11126 = vmax.f32 %v11118, %v11125
    %v11127 = vsel %vm8245, %v11053, -inf
    %v11128 = vmax.f32 %v11120, %v11127
    %v11129 = vsel %vm8245, %v11054, -inf
    %v11130 = vmax.f32 %v11122, %v11129
    %v11131 = vsel %vm8245, %v11055, -inf
    %v11132 = vmax.f32 %v11124, %v11131
    %v11133 = vsel %vm8245, %v11056, -inf
    %v11134 = vmax.f32 %v11126, %v11133
    %v11135 = vsel %vm8245, %v11057, -inf
    %v11136 = vmax.f32 %v11128, %v11135
    %v11137 = vsel %vm8245, %v11058, -inf
    %v11138 = vmax.f32 %v11130, %v11137
    %v11139 = vsel %vm8245, %v11059, -inf
    %v11140 = vmax.f32 %v11132, %v11139
    %v11141 = vsel %vm8245, %v11060, -inf
    %v11142 = vmax.f32 %v11134, %v11141
    %v11143 = vsel %vm8245, %v11061, -inf
    %v11144 = vmax.f32 %v11136, %v11143
    %v11145 = vsel %vm8245, %v11062, -inf
    %v11146 = vmax.f32 %v11138, %v11145
    %v11147 = vsel %vm8245, %v11063, -inf
    %v11148 = vmax.f32 %v11140, %v11147
    %v11149 = vsel %vm8245, %v11064, -inf
    %v11150 = vmax.f32 %v11142, %v11149
    %v11151 = vsel %vm8245, %v11065, -inf
    %v11152 = vmax.f32 %v11144, %v11151
    %v11153 = vsel %vm8245, %v11066, -inf
    %v11154 = vmax.f32 %v11146, %v11153
    %v11155 = vsel %vm8245, %v11067, -inf
    %v11156 = vmax.f32 %v11148, %v11155
    %v11157 = vsel %vm8245, %v11068, -inf
    %v11158 = vmax.f32 %v11150, %v11157
    %v11159 = vsel %vm8245, %v11069, -inf
    %v11160 = vmax.f32 %v11152, %v11159
    %v11161 = vsel %vm8245, %v11070, -inf
    %v11162 = vmax.f32 %v11154, %v11161
    %v11163 = vsel %vm8245, %v11071, -inf
    %v11164 = vmax.f32 %v11156, %v11163
    %v11165 = vsel %vm8245, %v11072, -inf
    %v11166 = vmax.f32 %v11158, %v11165
    %v11167 = vsel %vm8245, %v11073, -inf
    %v11168 = vmax.f32 %v11160, %v11167
    %v11169 = vsel %vm8245, %v11074, -inf
    %v11170 = vmax.f32 %v11162, %v11169
    %v11171 = vsel %vm8245, %v11075, -inf
    %v11172 = vmax.f32 %v11164, %v11171
    %v11173 = vsel %vm8245, %v11076, -inf
    %v11174 = vmax.f32 %v11166, %v11173
    %v11175 = vsel %vm8245, %v11077, -inf
    %v11176 = vmax.f32 %v11168, %v11175
    %v11177 = vsel %vm8245, %v11078, -inf
    %v11178 = vmax.f32 %v11170, %v11177
    %v11179 = vsel %vm8245, %v11079, -inf
    %v11180 = vmax.f32 %v11172, %v11179
    %v11181 = vsel %vm8245, %v11080, -inf
    %v11182 = vmax.f32 %v11174, %v11181
    %v11183 = vsel %vm8245, %v11081, -inf
    %v11184 = vmax.f32 %v11176, %v11183
    %v11185 = vsel %vm8245, %v11082, -inf
    %v11186 = vmax.f32 %v11178, %v11185
    %v11187 = vsel %vm8245, %v11083, -inf
    %v11188 = vmax.f32 %v11180, %v11187
    %v11189 = vsel %vm8245, %v11084, -inf
    %v11190 = vmax.f32 %v11182, %v11189
    %v11191 = vsel %vm8245, %v11085, -inf
    %v11192 = vmax.f32 %v11184, %v11191
    %v11193 = vsel %vm8245, %v11086, -inf
    %v11194 = vmax.f32 %v11186, %v11193
    %v11195 = vsel %vm8245, %v11087, -inf
    %v11196 = vmax.f32 %v11188, %v11195
    %v11197 = vsel %vm8245, %v11088, -inf
    %v11198 = vmax.f32 %v11190, %v11197
    %v11199 = vsel %vm8245, %v11089, -inf
    %v11200 = vmax.f32 %v11192, %v11199
    %v11201 = vsel %vm8245, %v11090, -inf
    %v11202 = vmax.f32 %v11194, %v11201
    %v11203 = vsel %vm8245, %v11091, -inf
    %v11204 = vmax.f32 %v11196, %v11203
    %v11205 = vsel %vm8245, %v11092, -inf
    %v11206 = vmax.f32 %v11198, %v11205
    %v11207 = vsel %vm8245, %v11093, -inf
    %v11208 = vmax.f32 %v11200, %v11207
    %v11209 = vsel %vm8245, %v11094, -inf
    %v11210 = vmax.f32 %v11202, %v11209
    %v11211 = vsel %vm8245, %v11095, -inf
    %v11212 = vmax.f32 %v11204, %v11211
    %v11213 = vsel %vm8245, %v11096, -inf
    %v11214 = vmax.f32 %v11206, %v11213
    %v11215 = vsel %vm8245, %v11097, -inf
    %v11216 = vmax.f32 %v11208, %v11215
    %v11217 = vsel %vm8245, %v11098, -inf
    %v11218 = vmax.f32 %v11210, %v11217
    %v11219 = vsel %vm8245, %v11099, -inf
    %v11220 = vmax.f32 %v11212, %v11219
    %v11221 = vsel %vm8245, %v11100, -inf
    %v11222 = vmax.f32 %v11214, %v11221
    %v11223 = vsel %vm8245, %v11101, -inf
    %v11224 = vmax.f32 %v11216, %v11223
    %v11225 = vsel %vm8245, %v11102, -inf
    %v11226 = vmax.f32 %v11218, %v11225
    %v11227 = vsel %vm8245, %v11103, -inf
    %v11228 = vmax.f32 %v11220, %v11227
    %v11229 = vsel %vm8245, %v11104, -inf
    %v11230 = vmax.f32 %v11222, %v11229
    %v11231 = vmax.f32 %v11224, %v11226
    %v11232 = vmax.f32 %v11228, %v11230
    %v11233 = vmax.f32 %v11231, %v11232
    %v11234 = vrot.slane %v11233, 4
    %v11235 = vmax.f32 %v11233, %v11234
    %v11236 = vrot.slane %v11235, 2
    %v11237 = vmax.f32 %v11235, %v11236
    %v11238 = vrot.slane %v11237, 1
    %v11239 = vmax.f32 %v11237, %v11238
    %v11240 = vmax.f32 %v11106, %v11239
    %v11241 = vsub.f32 %v11106, %v11240
    %v11242 = vmul.f32 %v11241, 1.442695
    %v11243 = vpow.pop %v11242
    %v11245 = vlaneseq
    %v11246 = vshrl.u32 %v11245, 7
    %v11247 = vsub.s32 0, %v11246
    %v11248 = vrot.slane %v11240, %v11247
    %v11250 = vsub.f32 %v11041, %v11248
    %v11251 = vsub.f32 %v11042, %v11248
    %v11252 = vsub.f32 %v11043, %v11248
    %v11253 = vsub.f32 %v11044, %v11248
    %v11254 = vsub.f32 %v11045, %v11248
    %v11255 = vsub.f32 %v11046, %v11248
    %v11256 = vsub.f32 %v11047, %v11248
    %v11257 = vsub.f32 %v11048, %v11248
    %v11258 = vsub.f32 %v11049, %v11248
    %v11259 = vsub.f32 %v11050, %v11248
    %v11260 = vsub.f32 %v11051, %v11248
    %v11261 = vsub.f32 %v11052, %v11248
    %v11262 = vsub.f32 %v11053, %v11248
    %v11263 = vsub.f32 %v11054, %v11248
    %v11264 = vsub.f32 %v11055, %v11248
    %v11265 = vsub.f32 %v11056, %v11248
    %v11266 = vsub.f32 %v11057, %v11248
    %v11267 = vsub.f32 %v11058, %v11248
    %v11268 = vsub.f32 %v11059, %v11248
    %v11269 = vsub.f32 %v11060, %v11248
    %v11270 = vsub.f32 %v11061, %v11248
    %v11271 = vsub.f32 %v11062, %v11248
    %v11272 = vsub.f32 %v11063, %v11248
    %v11273 = vsub.f32 %v11064, %v11248
    %v11274 = vsub.f32 %v11065, %v11248
    %v11275 = vsub.f32 %v11066, %v11248
    %v11276 = vsub.f32 %v11067, %v11248
    %v11277 = vsub.f32 %v11068, %v11248
    %v11278 = vsub.f32 %v11069, %v11248
    %v11279 = vsub.f32 %v11070, %v11248
    %v11280 = vsub.f32 %v11071, %v11248
    %v11281 = vsub.f32 %v11072, %v11248
    %v11282 = vsub.f32 %v11073, %v11248
    %v11283 = vsub.f32 %v11074, %v11248
    %v11284 = vsub.f32 %v11075, %v11248
    %v11285 = vsub.f32 %v11076, %v11248
    %v11286 = vsub.f32 %v11077, %v11248
    %v11287 = vsub.f32 %v11078, %v11248
    %v11288 = vsub.f32 %v11079, %v11248
    %v11289 = vsub.f32 %v11080, %v11248
    %v11290 = vsub.f32 %v11081, %v11248
    %v11291 = vsub.f32 %v11082, %v11248
    %v11292 = vsub.f32 %v11083, %v11248
    %v11293 = vsub.f32 %v11084, %v11248
    %v11294 = vsub.f32 %v11085, %v11248
    %v11295 = vsub.f32 %v11086, %v11248
    %v11296 = vsub.f32 %v11087, %v11248
    %v11297 = vsub.f32 %v11088, %v11248
    %v11298 = vsub.f32 %v11089, %v11248
    %v11299 = vsub.f32 %v11090, %v11248
    %v11300 = vsub.f32 %v11091, %v11248
    %v11301 = vsub.f32 %v11092, %v11248
    %v11302 = vsub.f32 %v11093, %v11248
    %v11303 = vsub.f32 %v11094, %v11248
    %v11304 = vsub.f32 %v11095, %v11248
    %v11305 = vsub.f32 %v11096, %v11248
    %v11306 = vsub.f32 %v11097, %v11248
    %v11307 = vsub.f32 %v11098, %v11248
    %v11308 = vsub.f32 %v11099, %v11248
    %v11309 = vsub.f32 %v11100, %v11248
    %v11310 = vsub.f32 %v11101, %v11248
    %v11311 = vsub.f32 %v11102, %v11248
    %v11312 = vsub.f32 %v11103, %v11248
    %v11313 = vsub.f32 %v11104, %v11248
    %v11314 = vmul.f32 %v11250, 1.442695
    %v11315 = vpow.pop %v11314
    %v11316 = vmul.f32 %v11251, 1.442695
    %v11317 = vpow.pop %v11316
    %v11318 = vmul.f32 %v11252, 1.442695
    %v11319 = vpow.pop %v11318
    %v11320 = vmul.f32 %v11253, 1.442695
    %v11321 = vpow.pop %v11320
    %v11322 = vmul.f32 %v11254, 1.442695
    %v11323 = vpow.pop %v11322
    %v11324 = vmul.f32 %v11255, 1.442695
    %v11325 = vpow.pop %v11324
    %v11326 = vmul.f32 %v11256, 1.442695
    %v11327 = vpow.pop %v11326
    %v11328 = vmul.f32 %v11257, 1.442695
    %v11329 = vpow.pop %v11328
    %v11330 = vmul.f32 %v11258, 1.442695
    %v11331 = vpow.pop %v11330
    %v11332 = vmul.f32 %v11259, 1.442695
    %v11333 = vpow.pop %v11332
    %v11334 = vmul.f32 %v11260, 1.442695
    %v11335 = vpow.pop %v11334
    %v11336 = vmul.f32 %v11261, 1.442695
    %v11337 = vpow.pop %v11336
    %v11338 = vmul.f32 %v11262, 1.442695
    %v11339 = vpow.pop %v11338
    %v11340 = vmul.f32 %v11263, 1.442695
    %v11341 = vpow.pop %v11340
    %v11342 = vmul.f32 %v11264, 1.442695
    %v11343 = vpow.pop %v11342
    %v11344 = vmul.f32 %v11265, 1.442695
    %v11345 = vpow.pop %v11344
    %v11346 = vmul.f32 %v11266, 1.442695
    %v11347 = vpow.pop %v11346
    %v11348 = vmul.f32 %v11267, 1.442695
    %v11349 = vpow.pop %v11348
    %v11350 = vmul.f32 %v11268, 1.442695
    %v11351 = vpow.pop %v11350
    %v11352 = vmul.f32 %v11269, 1.442695
    %v11353 = vpow.pop %v11352
    %v11354 = vmul.f32 %v11270, 1.442695
    %v11355 = vpow.pop %v11354
    %v11356 = vmul.f32 %v11271, 1.442695
    %v11357 = vpow.pop %v11356
    %v11358 = vmul.f32 %v11272, 1.442695
    %v11359 = vpow.pop %v11358
    %v11360 = vmul.f32 %v11273, 1.442695
    %v11361 = vpow.pop %v11360
    %v11362 = vmul.f32 %v11274, 1.442695
    %v11363 = vpow.pop %v11362
    %v11364 = vmul.f32 %v11275, 1.442695
    %v11365 = vpow.pop %v11364
    %v11366 = vmul.f32 %v11276, 1.442695
    %v11367 = vpow.pop %v11366
    %v11368 = vmul.f32 %v11277, 1.442695
    %v11369 = vpow.pop %v11368
    %v11370 = vmul.f32 %v11278, 1.442695
    %v11371 = vpow.pop %v11370
    %v11372 = vmul.f32 %v11279, 1.442695
    %v11373 = vpow.pop %v11372
    %v11374 = vmul.f32 %v11280, 1.442695
    %v11375 = vpow.pop %v11374
    %v11376 = vmul.f32 %v11281, 1.442695
    %v11377 = vpow.pop %v11376
    %v11378 = vmul.f32 %v11282, 1.442695
    %v11379 = vpow.pop %v11378
    %v11380 = vmul.f32 %v11283, 1.442695
    %v11381 = vpow.pop %v11380
    %v11382 = vmul.f32 %v11284, 1.442695
    %v11383 = vpow.pop %v11382
    %v11384 = vmul.f32 %v11285, 1.442695
    %v11385 = vpow.pop %v11384
    %v11386 = vmul.f32 %v11286, 1.442695
    %v11387 = vpow.pop %v11386
    %v11388 = vmul.f32 %v11287, 1.442695
    %v11389 = vpow.pop %v11388
    %v11390 = vmul.f32 %v11288, 1.442695
    %v11391 = vpow.pop %v11390
    %v11392 = vmul.f32 %v11289, 1.442695
    %v11393 = vpow.pop %v11392
    %v11394 = vmul.f32 %v11290, 1.442695
    %v11395 = vpow.pop %v11394
    %v11396 = vmul.f32 %v11291, 1.442695
    %v11397 = vpow.pop %v11396
    %v11398 = vmul.f32 %v11292, 1.442695
    %v11399 = vpow.pop %v11398
    %v11400 = vmul.f32 %v11293, 1.442695
    %v11401 = vpow.pop %v11400
    %v11402 = vmul.f32 %v11294, 1.442695
    %v11403 = vpow.pop %v11402
    %v11404 = vmul.f32 %v11295, 1.442695
    %v11405 = vpow.pop %v11404
    %v11406 = vmul.f32 %v11296, 1.442695
    %v11407 = vpow.pop %v11406
    %v11408 = vmul.f32 %v11297, 1.442695
    %v11409 = vpow.pop %v11408
    %v11410 = vmul.f32 %v11298, 1.442695
    %v11411 = vpow.pop %v11410
    %v11412 = vmul.f32 %v11299, 1.442695
    %v11413 = vpow.pop %v11412
    %v11414 = vmul.f32 %v11300, 1.442695
    %v11415 = vpow.pop %v11414
    %v11416 = vmul.f32 %v11301, 1.442695
    %v11417 = vpow.pop %v11416
    %v11418 = vmul.f32 %v11302, 1.442695
    %v11419 = vpow.pop %v11418
    %v11420 = vmul.f32 %v11303, 1.442695
    %v11421 = vpow.pop %v11420
    %v11422 = vmul.f32 %v11304, 1.442695
    %v11423 = vpow.pop %v11422
    %v11424 = vmul.f32 %v11305, 1.442695
    %v11425 = vpow.pop %v11424
    %v11426 = vmul.f32 %v11306, 1.442695
    %v11427 = vpow.pop %v11426
    %v11428 = vmul.f32 %v11307, 1.442695
    %v11429 = vpow.pop %v11428
    %v11430 = vmul.f32 %v11308, 1.442695
    %v11431 = vpow.pop %v11430
    %v11432 = vmul.f32 %v11309, 1.442695
    %v11433 = vpow.pop %v11432
    %v11434 = vmul.f32 %v11310, 1.442695
    %v11435 = vpow.pop %v11434
    %v11436 = vmul.f32 %v11311, 1.442695
    %v11437 = vpow.pop %v11436
    %v11438 = vmul.f32 %v11312, 1.442695
    %v11439 = vpow.pop %v11438
    %v11440 = vmul.f32 %v11313, 1.442695
    %v11441 = vpow.pop %v11440
    %s11442 = scalar_lea.vmem [#allocation4], 1
    %v11443 = vld [vmem:[%s11442] sm:$0x1]
    %v11444 = vmul.f32 %v11243, %v11443
    %v11445 = vsel %vm8245, %v11315, 0.0
    %v11446 = vsel %vm8245, %v11317, 0.0
    %v11447 = vadd.f32 %v11445, %v11446
    %v11448 = vsel %vm8245, %v11319, 0.0
    %v11449 = vadd.f32 %v11447, %v11448
    %v11450 = vsel %vm8245, %v11321, 0.0
    %v11451 = vadd.f32 %v11449, %v11450
    %v11452 = vsel %vm8245, %v11323, 0.0
    %v11453 = vadd.f32 %v11451, %v11452
    %v11454 = vsel %vm8245, %v11325, 0.0
    %v11455 = vadd.f32 %v11453, %v11454
    %v11456 = vsel %vm8245, %v11327, 0.0
    %v11457 = vadd.f32 %v11455, %v11456
    %v11458 = vsel %vm8245, %v11329, 0.0
    %v11459 = vadd.f32 %v11457, %v11458
    %v11460 = vsel %vm8245, %v11331, 0.0
    %v11461 = vadd.f32 %v11459, %v11460
    %v11462 = vsel %vm8245, %v11333, 0.0
    %v11463 = vadd.f32 %v11461, %v11462
    %v11464 = vsel %vm8245, %v11335, 0.0
    %v11465 = vadd.f32 %v11463, %v11464
    %v11466 = vsel %vm8245, %v11337, 0.0
    %v11467 = vadd.f32 %v11465, %v11466
    %v11468 = vsel %vm8245, %v11339, 0.0
    %v11469 = vadd.f32 %v11467, %v11468
    %v11470 = vsel %vm8245, %v11341, 0.0
    %v11471 = vadd.f32 %v11469, %v11470
    %v11472 = vsel %vm8245, %v11343, 0.0
    %v11473 = vadd.f32 %v11471, %v11472
    %v11474 = vsel %vm8245, %v11345, 0.0
    %v11475 = vadd.f32 %v11473, %v11474
    %v11476 = vsel %vm8245, %v11347, 0.0
    %v11477 = vadd.f32 %v11475, %v11476
    %v11478 = vsel %vm8245, %v11349, 0.0
    %v11479 = vadd.f32 %v11477, %v11478
    %v11480 = vsel %vm8245, %v11351, 0.0
    %v11481 = vadd.f32 %v11479, %v11480
    %v11482 = vsel %vm8245, %v11353, 0.0
    %v11483 = vadd.f32 %v11481, %v11482
    %v11484 = vsel %vm8245, %v11355, 0.0
    %v11485 = vadd.f32 %v11483, %v11484
    %v11486 = vsel %vm8245, %v11357, 0.0
    %v11487 = vadd.f32 %v11485, %v11486
    %v11488 = vsel %vm8245, %v11359, 0.0
    %v11489 = vadd.f32 %v11487, %v11488
    %v11490 = vsel %vm8245, %v11361, 0.0
    %v11491 = vadd.f32 %v11489, %v11490
    %v11492 = vsel %vm8245, %v11363, 0.0
    %v11493 = vadd.f32 %v11491, %v11492
    %v11494 = vsel %vm8245, %v11365, 0.0
    %v11495 = vadd.f32 %v11493, %v11494
    %v11496 = vsel %vm8245, %v11367, 0.0
    %v11497 = vadd.f32 %v11495, %v11496
    %v11498 = vsel %vm8245, %v11369, 0.0
    %v11499 = vadd.f32 %v11497, %v11498
    %v11500 = vsel %vm8245, %v11371, 0.0
    %v11501 = vadd.f32 %v11499, %v11500
    %v11502 = vsel %vm8245, %v11373, 0.0
    %v11503 = vadd.f32 %v11501, %v11502
    %v11504 = vsel %vm8245, %v11375, 0.0
    %v11505 = vadd.f32 %v11503, %v11504
    %v11506 = vsel %vm8245, %v11377, 0.0
    %v11507 = vadd.f32 %v11505, %v11506
    %v11508 = vsel %vm8245, %v11379, 0.0
    %v11509 = vadd.f32 %v11507, %v11508
    %v11510 = vsel %vm8245, %v11381, 0.0
    %v11511 = vadd.f32 %v11509, %v11510
    %v11512 = vsel %vm8245, %v11383, 0.0
    %v11513 = vadd.f32 %v11511, %v11512
    %v11514 = vsel %vm8245, %v11385, 0.0
    %v11515 = vadd.f32 %v11513, %v11514
    %v11516 = vsel %vm8245, %v11387, 0.0
    %v11517 = vadd.f32 %v11515, %v11516
    %v11518 = vsel %vm8245, %v11389, 0.0
    %v11519 = vadd.f32 %v11517, %v11518
    %v11520 = vsel %vm8245, %v11391, 0.0
    %v11521 = vadd.f32 %v11519, %v11520
    %v11522 = vsel %vm8245, %v11393, 0.0
    %v11523 = vadd.f32 %v11521, %v11522
    %v11524 = vsel %vm8245, %v11395, 0.0
    %v11525 = vadd.f32 %v11523, %v11524
    %v11526 = vsel %vm8245, %v11397, 0.0
    %v11527 = vadd.f32 %v11525, %v11526
    %v11528 = vsel %vm8245, %v11399, 0.0
    %v11529 = vadd.f32 %v11527, %v11528
    %v11530 = vsel %vm8245, %v11401, 0.0
    %v11531 = vadd.f32 %v11529, %v11530
    %v11532 = vsel %vm8245, %v11403, 0.0
    %v11533 = vadd.f32 %v11531, %v11532
    %v11534 = vsel %vm8245, %v11405, 0.0
    %v11535 = vadd.f32 %v11533, %v11534
    %v11536 = vsel %vm8245, %v11407, 0.0
    %v11537 = vadd.f32 %v11535, %v11536
    %v11538 = vsel %vm8245, %v11409, 0.0
    %v11539 = vadd.f32 %v11537, %v11538
    %v11540 = vsel %vm8245, %v11411, 0.0
    %v11541 = vadd.f32 %v11539, %v11540
    %v11542 = vsel %vm8245, %v11413, 0.0
    %v11543 = vadd.f32 %v11541, %v11542
    %v11544 = vsel %vm8245, %v11415, 0.0
    %v11545 = vadd.f32 %v11543, %v11544
    %v11546 = vsel %vm8245, %v11417, 0.0
    %v11547 = vadd.f32 %v11545, %v11546
    %v11548 = vsel %vm8245, %v11419, 0.0
    %v11549 = vadd.f32 %v11547, %v11548
    %v11550 = vsel %vm8245, %v11421, 0.0
    %v11551 = vadd.f32 %v11549, %v11550
    %v11552 = vsel %vm8245, %v11423, 0.0
    %v11553 = vadd.f32 %v11551, %v11552
    %v11554 = vsel %vm8245, %v11425, 0.0
    %v11555 = vadd.f32 %v11553, %v11554
    %v11556 = vsel %vm8245, %v11427, 0.0
    %v11557 = vadd.f32 %v11555, %v11556
    %v11558 = vsel %vm8245, %v11429, 0.0
    %v11559 = vadd.f32 %v11557, %v11558
    %v11560 = vsel %vm8245, %v11431, 0.0
    %v11561 = vadd.f32 %v11559, %v11560
    %v11562 = vsel %vm8245, %v11433, 0.0
    %v11563 = vadd.f32 %v11561, %v11562
    %v11564 = vsel %vm8245, %v11435, 0.0
    %v11565 = vadd.f32 %v11563, %v11564
    %v11566 = vsel %vm8245, %v11437, 0.0
    %v11567 = vadd.f32 %v11565, %v11566
    %v11568 = vsel %vm8245, %v11439, 0.0
    %v11569 = vadd.f32 %v11567, %v11568
    %v11570 = vsel %vm8245, %v11441, 0.0
    %v11571 = vadd.f32 %v11569, %v11570
    %v11572 = vrot.slane %v11571, 4
    %v11573 = vadd.f32 %v11571, %v11572
    %v11574 = vrot.slane %v11573, 2
    %v11575 = vadd.f32 %v11573, %v11574
    %v11576 = vrot.slane %v11575, 1
    %v11577 = vadd.f32 %v11575, %v11576
    %v11578 = vadd.f32 %v11444, %v11577
    %11579 = vst.msk [vmem:[%s11442] sm:$0x1] %vm8717, %v11578
    %s11580 = scalar_lea.vmem [#allocation2], 2
    %v11581 = vld [vmem:[%s11580] sm:$0x3]
    %11583 = vset.pattern.permute.xlu0 0
    %11584 = vperm.xlu0 %11583, %v11243
    %v11585 = vpop.permute.xlu0 %11584
    %v11587 = vlaneseq
    %v11588 = vshrl.u32 %v11587, 7
    %v11589 = vsub.s32 0, %v11588
    %v11590 = vrot.slane %v11585, %v11589
    %v11591 = vmul.f32 %v11590, %v11581
    %11593 = vset.pattern.permute.xlu0 0
    %11594 = vperm.xlu0 %11593, %v11315
    %v11595 = vpop.permute.xlu0 %11594
    %11598 = vset.pattern.permute.xlu0 0
    %11599 = vperm.xlu0 %11598, %v11317
    %v11600 = vpop.permute.xlu0 %11599
    %11603 = vset.pattern.permute.xlu0 0
    %11604 = vperm.xlu0 %11603, %v11319
    %v11605 = vpop.permute.xlu0 %11604
    %11608 = vset.pattern.permute.xlu0 0
    %11609 = vperm.xlu0 %11608, %v11321
    %v11610 = vpop.permute.xlu0 %11609
    %11613 = vset.pattern.permute.xlu0 0
    %11614 = vperm.xlu0 %11613, %v11323
    %v11615 = vpop.permute.xlu0 %11614
    %11618 = vset.pattern.permute.xlu0 0
    %11619 = vperm.xlu0 %11618, %v11325
    %v11620 = vpop.permute.xlu0 %11619
    %11623 = vset.pattern.permute.xlu0 0
    %11624 = vperm.xlu0 %11623, %v11327
    %v11625 = vpop.permute.xlu0 %11624
    %11628 = vset.pattern.permute.xlu0 0
    %11629 = vperm.xlu0 %11628, %v11329
    %v11630 = vpop.permute.xlu0 %11629
    %11633 = vset.pattern.permute.xlu0 0
    %11634 = vperm.xlu0 %11633, %v11331
    %v11635 = vpop.permute.xlu0 %11634
    %11638 = vset.pattern.permute.xlu0 0
    %11639 = vperm.xlu0 %11638, %v11333
    %v11640 = vpop.permute.xlu0 %11639
    %11643 = vset.pattern.permute.xlu0 0
    %11644 = vperm.xlu0 %11643, %v11335
    %v11645 = vpop.permute.xlu0 %11644
    %11648 = vset.pattern.permute.xlu0 0
    %11649 = vperm.xlu0 %11648, %v11337
    %v11650 = vpop.permute.xlu0 %11649
    %11653 = vset.pattern.permute.xlu0 0
    %11654 = vperm.xlu0 %11653, %v11339
    %v11655 = vpop.permute.xlu0 %11654
    %11658 = vset.pattern.permute.xlu0 0
    %11659 = vperm.xlu0 %11658, %v11341
    %v11660 = vpop.permute.xlu0 %11659
    %11663 = vset.pattern.permute.xlu0 0
    %11664 = vperm.xlu0 %11663, %v11343
    %v11665 = vpop.permute.xlu0 %11664
    %11668 = vset.pattern.permute.xlu0 0
    %11669 = vperm.xlu0 %11668, %v11345
    %v11670 = vpop.permute.xlu0 %11669
    %11673 = vset.pattern.permute.xlu0 0
    %11674 = vperm.xlu0 %11673, %v11347
    %v11675 = vpop.permute.xlu0 %11674
    %11678 = vset.pattern.permute.xlu0 0
    %11679 = vperm.xlu0 %11678, %v11349
    %v11680 = vpop.permute.xlu0 %11679
    %11683 = vset.pattern.permute.xlu0 0
    %11684 = vperm.xlu0 %11683, %v11351
    %v11685 = vpop.permute.xlu0 %11684
    %11688 = vset.pattern.permute.xlu0 0
    %11689 = vperm.xlu0 %11688, %v11353
    %v11690 = vpop.permute.xlu0 %11689
    %11693 = vset.pattern.permute.xlu0 0
    %11694 = vperm.xlu0 %11693, %v11355
    %v11695 = vpop.permute.xlu0 %11694
    %11698 = vset.pattern.permute.xlu0 0
    %11699 = vperm.xlu0 %11698, %v11357
    %v11700 = vpop.permute.xlu0 %11699
    %11703 = vset.pattern.permute.xlu0 0
    %11704 = vperm.xlu0 %11703, %v11359
    %v11705 = vpop.permute.xlu0 %11704
    %11708 = vset.pattern.permute.xlu0 0
    %11709 = vperm.xlu0 %11708, %v11361
    %v11710 = vpop.permute.xlu0 %11709
    %11713 = vset.pattern.permute.xlu0 0
    %11714 = vperm.xlu0 %11713, %v11363
    %v11715 = vpop.permute.xlu0 %11714
    %11718 = vset.pattern.permute.xlu0 0
    %11719 = vperm.xlu0 %11718, %v11365
    %v11720 = vpop.permute.xlu0 %11719
    %11723 = vset.pattern.permute.xlu0 0
    %11724 = vperm.xlu0 %11723, %v11367
    %v11725 = vpop.permute.xlu0 %11724
    %11728 = vset.pattern.permute.xlu0 0
    %11729 = vperm.xlu0 %11728, %v11369
    %v11730 = vpop.permute.xlu0 %11729
    %11733 = vset.pattern.permute.xlu0 0
    %11734 = vperm.xlu0 %11733, %v11371
    %v11735 = vpop.permute.xlu0 %11734
    %11738 = vset.pattern.permute.xlu0 0
    %11739 = vperm.xlu0 %11738, %v11373
    %v11740 = vpop.permute.xlu0 %11739
    %11743 = vset.pattern.permute.xlu0 0
    %11744 = vperm.xlu0 %11743, %v11375
    %v11745 = vpop.permute.xlu0 %11744
    %11748 = vset.pattern.permute.xlu0 0
    %11749 = vperm.xlu0 %11748, %v11377
    %v11750 = vpop.permute.xlu0 %11749
    %11753 = vset.pattern.permute.xlu0 0
    %11754 = vperm.xlu0 %11753, %v11379
    %v11755 = vpop.permute.xlu0 %11754
    %11758 = vset.pattern.permute.xlu0 0
    %11759 = vperm.xlu0 %11758, %v11381
    %v11760 = vpop.permute.xlu0 %11759
    %11763 = vset.pattern.permute.xlu0 0
    %11764 = vperm.xlu0 %11763, %v11383
    %v11765 = vpop.permute.xlu0 %11764
    %11768 = vset.pattern.permute.xlu0 0
    %11769 = vperm.xlu0 %11768, %v11385
    %v11770 = vpop.permute.xlu0 %11769
    %11773 = vset.pattern.permute.xlu0 0
    %11774 = vperm.xlu0 %11773, %v11387
    %v11775 = vpop.permute.xlu0 %11774
    %11778 = vset.pattern.permute.xlu0 0
    %11779 = vperm.xlu0 %11778, %v11389
    %v11780 = vpop.permute.xlu0 %11779
    %11783 = vset.pattern.permute.xlu0 0
    %11784 = vperm.xlu0 %11783, %v11391
    %v11785 = vpop.permute.xlu0 %11784
    %11788 = vset.pattern.permute.xlu0 0
    %11789 = vperm.xlu0 %11788, %v11393
    %v11790 = vpop.permute.xlu0 %11789
    %11793 = vset.pattern.permute.xlu0 0
    %11794 = vperm.xlu0 %11793, %v11395
    %v11795 = vpop.permute.xlu0 %11794
    %11798 = vset.pattern.permute.xlu0 0
    %11799 = vperm.xlu0 %11798, %v11397
    %v11800 = vpop.permute.xlu0 %11799
    %11803 = vset.pattern.permute.xlu0 0
    %11804 = vperm.xlu0 %11803, %v11399
    %v11805 = vpop.permute.xlu0 %11804
    %11808 = vset.pattern.permute.xlu0 0
    %11809 = vperm.xlu0 %11808, %v11401
    %v11810 = vpop.permute.xlu0 %11809
    %11813 = vset.pattern.permute.xlu0 0
    %11814 = vperm.xlu0 %11813, %v11403
    %v11815 = vpop.permute.xlu0 %11814
    %11818 = vset.pattern.permute.xlu0 0
    %11819 = vperm.xlu0 %11818, %v11405
    %v11820 = vpop.permute.xlu0 %11819
    %11823 = vset.pattern.permute.xlu0 0
    %11824 = vperm.xlu0 %11823, %v11407
    %v11825 = vpop.permute.xlu0 %11824
    %11828 = vset.pattern.permute.xlu0 0
    %11829 = vperm.xlu0 %11828, %v11409
    %v11830 = vpop.permute.xlu0 %11829
    %11833 = vset.pattern.permute.xlu0 0
    %11834 = vperm.xlu0 %11833, %v11411
    %v11835 = vpop.permute.xlu0 %11834
    %11838 = vset.pattern.permute.xlu0 0
    %11839 = vperm.xlu0 %11838, %v11413
    %v11840 = vpop.permute.xlu0 %11839
    %11843 = vset.pattern.permute.xlu0 0
    %11844 = vperm.xlu0 %11843, %v11415
    %v11845 = vpop.permute.xlu0 %11844
    %11848 = vset.pattern.permute.xlu0 0
    %11849 = vperm.xlu0 %11848, %v11417
    %v11850 = vpop.permute.xlu0 %11849
    %11853 = vset.pattern.permute.xlu0 0
    %11854 = vperm.xlu0 %11853, %v11419
    %v11855 = vpop.permute.xlu0 %11854
    %11858 = vset.pattern.permute.xlu0 0
    %11859 = vperm.xlu0 %11858, %v11421
    %v11860 = vpop.permute.xlu0 %11859
    %11863 = vset.pattern.permute.xlu0 0
    %11864 = vperm.xlu0 %11863, %v11423
    %v11865 = vpop.permute.xlu0 %11864
    %11868 = vset.pattern.permute.xlu0 0
    %11869 = vperm.xlu0 %11868, %v11425
    %v11870 = vpop.permute.xlu0 %11869
    %11873 = vset.pattern.permute.xlu0 0
    %11874 = vperm.xlu0 %11873, %v11427
    %v11875 = vpop.permute.xlu0 %11874
    %11878 = vset.pattern.permute.xlu0 0
    %11879 = vperm.xlu0 %11878, %v11429
    %v11880 = vpop.permute.xlu0 %11879
    %11883 = vset.pattern.permute.xlu0 0
    %11884 = vperm.xlu0 %11883, %v11431
    %v11885 = vpop.permute.xlu0 %11884
    %11888 = vset.pattern.permute.xlu0 0
    %11889 = vperm.xlu0 %11888, %v11433
    %v11890 = vpop.permute.xlu0 %11889
    %11893 = vset.pattern.permute.xlu0 0
    %11894 = vperm.xlu0 %11893, %v11435
    %v11895 = vpop.permute.xlu0 %11894
    %11898 = vset.pattern.permute.xlu0 0
    %11899 = vperm.xlu0 %11898, %v11437
    %v11900 = vpop.permute.xlu0 %11899
    %11903 = vset.pattern.permute.xlu0 0
    %11904 = vperm.xlu0 %11903, %v11439
    %v11905 = vpop.permute.xlu0 %11904
    %11908 = vset.pattern.permute.xlu0 0
    %11909 = vperm.xlu0 %11908, %v11441
    %v11910 = vpop.permute.xlu0 %11909
    %v11912 = vmul.f32 %v11595, %v6037
    %v11913 = vmul.f32 %v11595, %v6038
    %v11914 = vmul.f32 %v11600, %v6041
    %v11915 = vmul.f32 %v11600, %v6042
    %v11916 = vmul.f32 %v11605, %v6045
    %v11917 = vmul.f32 %v11605, %v6046
    %v11918 = vmul.f32 %v11610, %v6049
    %v11919 = vmul.f32 %v11610, %v6050
    %v11920 = vmul.f32 %v11615, %v6053
    %v11921 = vmul.f32 %v11615, %v6054
    %v11922 = vmul.f32 %v11620, %v6057
    %v11923 = vmul.f32 %v11620, %v6058
    %v11924 = vmul.f32 %v11625, %v6061
    %v11925 = vmul.f32 %v11625, %v6062
    %v11926 = vmul.f32 %v11630, %v6065
    %v11927 = vmul.f32 %v11630, %v6066
    %v11928 = vmul.f32 %v11635, %v6069
    %v11929 = vmul.f32 %v11635, %v6070
    %v11930 = vmul.f32 %v11640, %v6073
    %v11931 = vmul.f32 %v11640, %v6074
    %v11932 = vmul.f32 %v11645, %v6077
    %v11933 = vmul.f32 %v11645, %v6078
    %v11934 = vmul.f32 %v11650, %v6081
    %v11935 = vmul.f32 %v11650, %v6082
    %v11936 = vmul.f32 %v11655, %v6085
    %v11937 = vmul.f32 %v11655, %v6086
    %v11938 = vmul.f32 %v11660, %v6089
    %v11939 = vmul.f32 %v11660, %v6090
    %v11940 = vmul.f32 %v11665, %v6093
    %v11941 = vmul.f32 %v11665, %v6094
    %v11942 = vmul.f32 %v11670, %v6097
    %v11943 = vmul.f32 %v11670, %v6098
    %v11944 = vmul.f32 %v11675, %v6101
    %v11945 = vmul.f32 %v11675, %v6102
    %v11946 = vmul.f32 %v11680, %v6105
    %v11947 = vmul.f32 %v11680, %v6106
    %v11948 = vmul.f32 %v11685, %v6109
    %v11949 = vmul.f32 %v11685, %v6110
    %v11950 = vmul.f32 %v11690, %v6113
    %v11951 = vmul.f32 %v11690, %v6114
    %v11952 = vmul.f32 %v11695, %v6117
    %v11953 = vmul.f32 %v11695, %v6118
    %v11954 = vmul.f32 %v11700, %v6121
    %v11955 = vmul.f32 %v11700, %v6122
    %v11956 = vmul.f32 %v11705, %v6125
    %v11957 = vmul.f32 %v11705, %v6126
    %v11958 = vmul.f32 %v11710, %v6129
    %v11959 = vmul.f32 %v11710, %v6130
    %v11960 = vmul.f32 %v11715, %v6133
    %v11961 = vmul.f32 %v11715, %v6134
    %v11962 = vmul.f32 %v11720, %v6137
    %v11963 = vmul.f32 %v11720, %v6138
    %v11964 = vmul.f32 %v11725, %v6141
    %v11965 = vmul.f32 %v11725, %v6142
    %v11966 = vmul.f32 %v11730, %v6145
    %v11967 = vmul.f32 %v11730, %v6146
    %v11968 = vmul.f32 %v11735, %v6149
    %v11969 = vmul.f32 %v11735, %v6150
    %v11970 = vmul.f32 %v11740, %v6153
    %v11971 = vmul.f32 %v11740, %v6154
    %v11972 = vmul.f32 %v11745, %v6157
    %v11973 = vmul.f32 %v11745, %v6158
    %v11974 = vmul.f32 %v11750, %v6161
    %v11975 = vmul.f32 %v11750, %v6162
    %v11976 = vmul.f32 %v11755, %v6165
    %v11977 = vmul.f32 %v11755, %v6166
    %v11978 = vmul.f32 %v11760, %v6169
    %v11979 = vmul.f32 %v11760, %v6170
    %v11980 = vmul.f32 %v11765, %v6173
    %v11981 = vmul.f32 %v11765, %v6174
    %v11982 = vmul.f32 %v11770, %v6177
    %v11983 = vmul.f32 %v11770, %v6178
    %v11984 = vmul.f32 %v11775, %v6181
    %v11985 = vmul.f32 %v11775, %v6182
    %v11986 = vmul.f32 %v11780, %v6185
    %v11987 = vmul.f32 %v11780, %v6186
    %v11988 = vmul.f32 %v11785, %v6189
    %v11989 = vmul.f32 %v11785, %v6190
    %v11990 = vmul.f32 %v11790, %v6193
    %v11991 = vmul.f32 %v11790, %v6194
    %v11992 = vmul.f32 %v11795, %v6197
    %v11993 = vmul.f32 %v11795, %v6198
    %v11994 = vmul.f32 %v11800, %v6201
    %v11995 = vmul.f32 %v11800, %v6202
    %v11996 = vmul.f32 %v11805, %v6205
    %v11997 = vmul.f32 %v11805, %v6206
    %v11998 = vmul.f32 %v11810, %v6209
    %v11999 = vmul.f32 %v11810, %v6210
    %v12000 = vmul.f32 %v11815, %v6213
    %v12001 = vmul.f32 %v11815, %v6214
    %v12002 = vmul.f32 %v11820, %v6217
    %v12003 = vmul.f32 %v11820, %v6218
    %v12004 = vmul.f32 %v11825, %v6221
    %v12005 = vmul.f32 %v11825, %v6222
    %v12006 = vmul.f32 %v11830, %v6225
    %v12007 = vmul.f32 %v11830, %v6226
    %v12008 = vmul.f32 %v11835, %v6229
    %v12009 = vmul.f32 %v11835, %v6230
    %v12010 = vmul.f32 %v11840, %v6233
    %v12011 = vmul.f32 %v11840, %v6234
    %v12012 = vmul.f32 %v11845, %v6237
    %v12013 = vmul.f32 %v11845, %v6238
    %v12014 = vmul.f32 %v11850, %v6241
    %v12015 = vmul.f32 %v11850, %v6242
    %v12016 = vmul.f32 %v11855, %v6245
    %v12017 = vmul.f32 %v11855, %v6246
    %v12018 = vmul.f32 %v11860, %v6249
    %v12019 = vmul.f32 %v11860, %v6250
    %v12020 = vmul.f32 %v11865, %v6253
    %v12021 = vmul.f32 %v11865, %v6254
    %v12022 = vmul.f32 %v11870, %v6257
    %v12023 = vmul.f32 %v11870, %v6258
    %v12024 = vmul.f32 %v11875, %v6261
    %v12025 = vmul.f32 %v11875, %v6262
    %v12026 = vmul.f32 %v11880, %v6265
    %v12027 = vmul.f32 %v11880, %v6266
    %v12028 = vmul.f32 %v11885, %v6269
    %v12029 = vmul.f32 %v11885, %v6270
    %v12030 = vmul.f32 %v11890, %v6273
    %v12031 = vmul.f32 %v11890, %v6274
    %v12032 = vmul.f32 %v11895, %v6277
    %v12033 = vmul.f32 %v11895, %v6278
    %v12034 = vmul.f32 %v11900, %v6281
    %v12035 = vmul.f32 %v11900, %v6282
    %v12036 = vmul.f32 %v11905, %v6285
    %v12037 = vmul.f32 %v11905, %v6286
    %v12038 = vmul.f32 %v11910, %v6289
    %v12039 = vmul.f32 %v11910, %v6290
    %v12040 = vadd.f32 %v11912, %v11914
    %v12041 = vadd.f32 %v12040, %v11916
    %v12042 = vadd.f32 %v12041, %v11918
    %v12043 = vadd.f32 %v12042, %v11920
    %v12044 = vadd.f32 %v12043, %v11922
    %v12045 = vadd.f32 %v12044, %v11924
    %v12046 = vadd.f32 %v12045, %v11926
    %v12047 = vadd.f32 %v12046, %v11928
    %v12048 = vadd.f32 %v12047, %v11930
    %v12049 = vadd.f32 %v12048, %v11932
    %v12050 = vadd.f32 %v12049, %v11934
    %v12051 = vadd.f32 %v12050, %v11936
    %v12052 = vadd.f32 %v12051, %v11938
    %v12053 = vadd.f32 %v12052, %v11940
    %v12054 = vadd.f32 %v12053, %v11942
    %v12055 = vadd.f32 %v12054, %v11944
    %v12056 = vadd.f32 %v12055, %v11946
    %v12057 = vadd.f32 %v12056, %v11948
    %v12058 = vadd.f32 %v12057, %v11950
    %v12059 = vadd.f32 %v12058, %v11952
    %v12060 = vadd.f32 %v12059, %v11954
    %v12061 = vadd.f32 %v12060, %v11956
    %v12062 = vadd.f32 %v12061, %v11958
    %v12063 = vadd.f32 %v12062, %v11960
    %v12064 = vadd.f32 %v12063, %v11962
    %v12065 = vadd.f32 %v12064, %v11964
    %v12066 = vadd.f32 %v12065, %v11966
    %v12067 = vadd.f32 %v12066, %v11968
    %v12068 = vadd.f32 %v12067, %v11970
    %v12069 = vadd.f32 %v12068, %v11972
    %v12070 = vadd.f32 %v12069, %v11974
    %v12071 = vadd.f32 %v12070, %v11976
    %v12072 = vadd.f32 %v12071, %v11978
    %v12073 = vadd.f32 %v12072, %v11980
    %v12074 = vadd.f32 %v12073, %v11982
    %v12075 = vadd.f32 %v12074, %v11984
    %v12076 = vadd.f32 %v12075, %v11986
    %v12077 = vadd.f32 %v12076, %v11988
    %v12078 = vadd.f32 %v12077, %v11990
    %v12079 = vadd.f32 %v12078, %v11992
    %v12080 = vadd.f32 %v12079, %v11994
    %v12081 = vadd.f32 %v12080, %v11996
    %v12082 = vadd.f32 %v12081, %v11998
    %v12083 = vadd.f32 %v12082, %v12000
    %v12084 = vadd.f32 %v12083, %v12002
    %v12085 = vadd.f32 %v12084, %v12004
    %v12086 = vadd.f32 %v12085, %v12006
    %v12087 = vadd.f32 %v12086, %v12008
    %v12088 = vadd.f32 %v12087, %v12010
    %v12089 = vadd.f32 %v12088, %v12012
    %v12090 = vadd.f32 %v12089, %v12014
    %v12091 = vadd.f32 %v12090, %v12016
    %v12092 = vadd.f32 %v12091, %v12018
    %v12093 = vadd.f32 %v12092, %v12020
    %v12094 = vadd.f32 %v12093, %v12022
    %v12095 = vadd.f32 %v12094, %v12024
    %v12096 = vadd.f32 %v12095, %v12026
    %v12097 = vadd.f32 %v12096, %v12028
    %v12098 = vadd.f32 %v12097, %v12030
    %v12099 = vadd.f32 %v12098, %v12032
    %v12100 = vadd.f32 %v12099, %v12034
    %v12101 = vadd.f32 %v12100, %v12036
    %v12102 = vadd.f32 %v12101, %v12038
    %v12103 = vrot.slane %v12102, 4
    %v12104 = vadd.f32 %v12102, %v12103
    %v12105 = vrot.slane %v12104, 2
    %v12106 = vadd.f32 %v12104, %v12105
    %v12107 = vrot.slane %v12106, 1
    %v12108 = vadd.f32 %v12106, %v12107
    %v12109 = vadd.f32 %v11913, %v11915
    %v12110 = vadd.f32 %v12109, %v11917
    %v12111 = vadd.f32 %v12110, %v11919
    %v12112 = vadd.f32 %v12111, %v11921
    %v12113 = vadd.f32 %v12112, %v11923
    %v12114 = vadd.f32 %v12113, %v11925
    %v12115 = vadd.f32 %v12114, %v11927
    %v12116 = vadd.f32 %v12115, %v11929
    %v12117 = vadd.f32 %v12116, %v11931
    %v12118 = vadd.f32 %v12117, %v11933
    %v12119 = vadd.f32 %v12118, %v11935
    %v12120 = vadd.f32 %v12119, %v11937
    %v12121 = vadd.f32 %v12120, %v11939
    %v12122 = vadd.f32 %v12121, %v11941
    %v12123 = vadd.f32 %v12122, %v11943
    %v12124 = vadd.f32 %v12123, %v11945
    %v12125 = vadd.f32 %v12124, %v11947
    %v12126 = vadd.f32 %v12125, %v11949
    %v12127 = vadd.f32 %v12126, %v11951
    %v12128 = vadd.f32 %v12127, %v11953
    %v12129 = vadd.f32 %v12128, %v11955
    %v12130 = vadd.f32 %v12129, %v11957
    %v12131 = vadd.f32 %v12130, %v11959
    %v12132 = vadd.f32 %v12131, %v11961
    %v12133 = vadd.f32 %v12132, %v11963
    %v12134 = vadd.f32 %v12133, %v11965
    %v12135 = vadd.f32 %v12134, %v11967
    %v12136 = vadd.f32 %v12135, %v11969
    %v12137 = vadd.f32 %v12136, %v11971
    %v12138 = vadd.f32 %v12137, %v11973
    %v12139 = vadd.f32 %v12138, %v11975
    %v12140 = vadd.f32 %v12139, %v11977
    %v12141 = vadd.f32 %v12140, %v11979
    %v12142 = vadd.f32 %v12141, %v11981
    %v12143 = vadd.f32 %v12142, %v11983
    %v12144 = vadd.f32 %v12143, %v11985
    %v12145 = vadd.f32 %v12144, %v11987
    %v12146 = vadd.f32 %v12145, %v11989
    %v12147 = vadd.f32 %v12146, %v11991
    %v12148 = vadd.f32 %v12147, %v11993
    %v12149 = vadd.f32 %v12148, %v11995
    %v12150 = vadd.f32 %v12149, %v11997
    %v12151 = vadd.f32 %v12150, %v11999
    %v12152 = vadd.f32 %v12151, %v12001
    %v12153 = vadd.f32 %v12152, %v12003
    %v12154 = vadd.f32 %v12153, %v12005
    %v12155 = vadd.f32 %v12154, %v12007
    %v12156 = vadd.f32 %v12155, %v12009
    %v12157 = vadd.f32 %v12156, %v12011
    %v12158 = vadd.f32 %v12157, %v12013
    %v12159 = vadd.f32 %v12158, %v12015
    %v12160 = vadd.f32 %v12159, %v12017
    %v12161 = vadd.f32 %v12160, %v12019
    %v12162 = vadd.f32 %v12161, %v12021
    %v12163 = vadd.f32 %v12162, %v12023
    %v12164 = vadd.f32 %v12163, %v12025
    %v12165 = vadd.f32 %v12164, %v12027
    %v12166 = vadd.f32 %v12165, %v12029
    %v12167 = vadd.f32 %v12166, %v12031
    %v12168 = vadd.f32 %v12167, %v12033
    %v12169 = vadd.f32 %v12168, %v12035
    %v12170 = vadd.f32 %v12169, %v12037
    %v12171 = vadd.f32 %v12170, %v12039
    %v12172 = vrot.slane %v12171, 4
    %v12173 = vadd.f32 %v12171, %v12172
    %v12174 = vrot.slane %v12173, 2
    %v12175 = vadd.f32 %v12173, %v12174
    %v12176 = vrot.slane %v12175, 1
    %v12177 = vadd.f32 %v12175, %v12176
    %v12180 = vcombine.low %v12108, %v12177
    %v12182 = vunpack.c.l.s4 1966171168
    %v12183 = vunpack.c.0.s8 %v12182
    %v12184 = vlaneseq
    %v12185 = vshrl.u32 %v12184, 7
    %v12186 = vsub.s32 %v12183, %v12185
    %v12187 = vrot.slane %v12180, %v12186
    %v12189 = vunpack.c.l.s4 1966171168
    %v12190 = vunpack.c.0.s8 %v12189
    %v12191 = vlaneseq
    %v12192 = vshrl.u32 %v12191, 7
    %v12193 = vsub.s32 %v12190, %v12192
    %v12194 = vrot.slane %v12187, %v12193
    %v12196 = vadd.f32 %v11591, %v12194
    %12197 = vst.msk [vmem:[%s11580] sm:$0x3] %vm9338, %v12196
    %12198 = vst.msk [vmem:[%s11105] sm:$0x1] %vm8717, %v11240
    %12263 = vrot.lane.b32.xlu0 %v11041, 1
    %v12264 = vpop.permute.xlu0 %12263
    %12265 = vrot.lane.b32.xlu0 %v11042, 1
    %v12266 = vpop.permute.xlu0 %12265
    %12267 = vrot.lane.b32.xlu0 %v11043, 1
    %v12268 = vpop.permute.xlu0 %12267
    %12269 = vrot.lane.b32.xlu0 %v11044, 1
    %v12270 = vpop.permute.xlu0 %12269
    %12271 = vrot.lane.b32.xlu0 %v11045, 1
    %v12272 = vpop.permute.xlu0 %12271
    %12273 = vrot.lane.b32.xlu0 %v11046, 1
    %v12274 = vpop.permute.xlu0 %12273
    %12275 = vrot.lane.b32.xlu0 %v11047, 1
    %v12276 = vpop.permute.xlu0 %12275
    %12277 = vrot.lane.b32.xlu0 %v11048, 1
    %v12278 = vpop.permute.xlu0 %12277
    %12279 = vrot.lane.b32.xlu0 %v11049, 1
    %v12280 = vpop.permute.xlu0 %12279
    %12281 = vrot.lane.b32.xlu0 %v11050, 1
    %v12282 = vpop.permute.xlu0 %12281
    %12283 = vrot.lane.b32.xlu0 %v11051, 1
    %v12284 = vpop.permute.xlu0 %12283
    %12285 = vrot.lane.b32.xlu0 %v11052, 1
    %v12286 = vpop.permute.xlu0 %12285
    %12287 = vrot.lane.b32.xlu0 %v11053, 1
    %v12288 = vpop.permute.xlu0 %12287
    %12289 = vrot.lane.b32.xlu0 %v11054, 1
    %v12290 = vpop.permute.xlu0 %12289
    %12291 = vrot.lane.b32.xlu0 %v11055, 1
    %v12292 = vpop.permute.xlu0 %12291
    %12293 = vrot.lane.b32.xlu0 %v11056, 1
    %v12294 = vpop.permute.xlu0 %12293
    %12295 = vrot.lane.b32.xlu0 %v11057, 1
    %v12296 = vpop.permute.xlu0 %12295
    %12297 = vrot.lane.b32.xlu0 %v11058, 1
    %v12298 = vpop.permute.xlu0 %12297
    %12299 = vrot.lane.b32.xlu0 %v11059, 1
    %v12300 = vpop.permute.xlu0 %12299
    %12301 = vrot.lane.b32.xlu0 %v11060, 1
    %v12302 = vpop.permute.xlu0 %12301
    %12303 = vrot.lane.b32.xlu0 %v11061, 1
    %v12304 = vpop.permute.xlu0 %12303
    %12305 = vrot.lane.b32.xlu0 %v11062, 1
    %v12306 = vpop.permute.xlu0 %12305
    %12307 = vrot.lane.b32.xlu0 %v11063, 1
    %v12308 = vpop.permute.xlu0 %12307
    %12309 = vrot.lane.b32.xlu0 %v11064, 1
    %v12310 = vpop.permute.xlu0 %12309
    %12311 = vrot.lane.b32.xlu0 %v11065, 1
    %v12312 = vpop.permute.xlu0 %12311
    %12313 = vrot.lane.b32.xlu0 %v11066, 1
    %v12314 = vpop.permute.xlu0 %12313
    %12315 = vrot.lane.b32.xlu0 %v11067, 1
    %v12316 = vpop.permute.xlu0 %12315
    %12317 = vrot.lane.b32.xlu0 %v11068, 1
    %v12318 = vpop.permute.xlu0 %12317
    %12319 = vrot.lane.b32.xlu0 %v11069, 1
    %v12320 = vpop.permute.xlu0 %12319
    %12321 = vrot.lane.b32.xlu0 %v11070, 1
    %v12322 = vpop.permute.xlu0 %12321
    %12323 = vrot.lane.b32.xlu0 %v11071, 1
    %v12324 = vpop.permute.xlu0 %12323
    %12325 = vrot.lane.b32.xlu0 %v11072, 1
    %v12326 = vpop.permute.xlu0 %12325
    %12327 = vrot.lane.b32.xlu0 %v11073, 1
    %v12328 = vpop.permute.xlu0 %12327
    %12329 = vrot.lane.b32.xlu0 %v11074, 1
    %v12330 = vpop.permute.xlu0 %12329
    %12331 = vrot.lane.b32.xlu0 %v11075, 1
    %v12332 = vpop.permute.xlu0 %12331
    %12333 = vrot.lane.b32.xlu0 %v11076, 1
    %v12334 = vpop.permute.xlu0 %12333
    %12335 = vrot.lane.b32.xlu0 %v11077, 1
    %v12336 = vpop.permute.xlu0 %12335
    %12337 = vrot.lane.b32.xlu0 %v11078, 1
    %v12338 = vpop.permute.xlu0 %12337
    %12339 = vrot.lane.b32.xlu0 %v11079, 1
    %v12340 = vpop.permute.xlu0 %12339
    %12341 = vrot.lane.b32.xlu0 %v11080, 1
    %v12342 = vpop.permute.xlu0 %12341
    %12343 = vrot.lane.b32.xlu0 %v11081, 1
    %v12344 = vpop.permute.xlu0 %12343
    %12345 = vrot.lane.b32.xlu0 %v11082, 1
    %v12346 = vpop.permute.xlu0 %12345
    %12347 = vrot.lane.b32.xlu0 %v11083, 1
    %v12348 = vpop.permute.xlu0 %12347
    %12349 = vrot.lane.b32.xlu0 %v11084, 1
    %v12350 = vpop.permute.xlu0 %12349
    %12351 = vrot.lane.b32.xlu0 %v11085, 1
    %v12352 = vpop.permute.xlu0 %12351
    %12353 = vrot.lane.b32.xlu0 %v11086, 1
    %v12354 = vpop.permute.xlu0 %12353
    %12355 = vrot.lane.b32.xlu0 %v11087, 1
    %v12356 = vpop.permute.xlu0 %12355
    %12357 = vrot.lane.b32.xlu0 %v11088, 1
    %v12358 = vpop.permute.xlu0 %12357
    %12359 = vrot.lane.b32.xlu0 %v11089, 1
    %v12360 = vpop.permute.xlu0 %12359
    %12361 = vrot.lane.b32.xlu0 %v11090, 1
    %v12362 = vpop.permute.xlu0 %12361
    %12363 = vrot.lane.b32.xlu0 %v11091, 1
    %v12364 = vpop.permute.xlu0 %12363
    %12365 = vrot.lane.b32.xlu0 %v11092, 1
    %v12366 = vpop.permute.xlu0 %12365
    %12367 = vrot.lane.b32.xlu0 %v11093, 1
    %v12368 = vpop.permute.xlu0 %12367
    %12369 = vrot.lane.b32.xlu0 %v11094, 1
    %v12370 = vpop.permute.xlu0 %12369
    %12371 = vrot.lane.b32.xlu0 %v11095, 1
    %v12372 = vpop.permute.xlu0 %12371
    %12373 = vrot.lane.b32.xlu0 %v11096, 1
    %v12374 = vpop.permute.xlu0 %12373
    %12375 = vrot.lane.b32.xlu0 %v11097, 1
    %v12376 = vpop.permute.xlu0 %12375
    %12377 = vrot.lane.b32.xlu0 %v11098, 1
    %v12378 = vpop.permute.xlu0 %12377
    %12379 = vrot.lane.b32.xlu0 %v11099, 1
    %v12380 = vpop.permute.xlu0 %12379
    %12381 = vrot.lane.b32.xlu0 %v11100, 1
    %v12382 = vpop.permute.xlu0 %12381
    %12383 = vrot.lane.b32.xlu0 %v11101, 1
    %v12384 = vpop.permute.xlu0 %12383
    %12385 = vrot.lane.b32.xlu0 %v11102, 1
    %v12386 = vpop.permute.xlu0 %12385
    %12387 = vrot.lane.b32.xlu0 %v11103, 1
    %v12388 = vpop.permute.xlu0 %12387
    %12389 = vrot.lane.b32.xlu0 %v11104, 1
    %v12390 = vpop.permute.xlu0 %12389
    %v12455 = vsel %vm8245, %v8180, %v12264
    %v12456 = vsel %vm8245, %v8181, %v12266
    %v12457 = vsel %vm8245, %v8182, %v12268
    %v12458 = vsel %vm8245, %v8183, %v12270
    %v12459 = vsel %vm8245, %v8184, %v12272
    %v12460 = vsel %vm8245, %v8185, %v12274
    %v12461 = vsel %vm8245, %v8186, %v12276
    %v12462 = vsel %vm8245, %v8187, %v12278
    %v12463 = vsel %vm8245, %v8188, %v12280
    %v12464 = vsel %vm8245, %v8189, %v12282
    %v12465 = vsel %vm8245, %v8190, %v12284
    %v12466 = vsel %vm8245, %v8191, %v12286
    %v12467 = vsel %vm8245, %v8192, %v12288
    %v12468 = vsel %vm8245, %v8193, %v12290
    %v12469 = vsel %vm8245, %v8194, %v12292
    %v12470 = vsel %vm8245, %v8195, %v12294
    %v12471 = vsel %vm8245, %v8196, %v12296
    %v12472 = vsel %vm8245, %v8197, %v12298
    %v12473 = vsel %vm8245, %v8198, %v12300
    %v12474 = vsel %vm8245, %v8199, %v12302
    %v12475 = vsel %vm8245, %v8200, %v12304
    %v12476 = vsel %vm8245, %v8201, %v12306
    %v12477 = vsel %vm8245, %v8202, %v12308
    %v12478 = vsel %vm8245, %v8203, %v12310
    %v12479 = vsel %vm8245, %v8204, %v12312
    %v12480 = vsel %vm8245, %v8205, %v12314
    %v12481 = vsel %vm8245, %v8206, %v12316
    %v12482 = vsel %vm8245, %v8207, %v12318
    %v12483 = vsel %vm8245, %v8208, %v12320
    %v12484 = vsel %vm8245, %v8209, %v12322
    %v12485 = vsel %vm8245, %v8210, %v12324
    %v12486 = vsel %vm8245, %v8211, %v12326
    %v12487 = vsel %vm8245, %v8212, %v12328
    %v12488 = vsel %vm8245, %v8213, %v12330
    %v12489 = vsel %vm8245, %v8214, %v12332
    %v12490 = vsel %vm8245, %v8215, %v12334
    %v12491 = vsel %vm8245, %v8216, %v12336
    %v12492 = vsel %vm8245, %v8217, %v12338
    %v12493 = vsel %vm8245, %v8218, %v12340
    %v12494 = vsel %vm8245, %v8219, %v12342
    %v12495 = vsel %vm8245, %v8220, %v12344
    %v12496 = vsel %vm8245, %v8221, %v12346
    %v12497 = vsel %vm8245, %v8222, %v12348
    %v12498 = vsel %vm8245, %v8223, %v12350
    %v12499 = vsel %vm8245, %v8224, %v12352
    %v12500 = vsel %vm8245, %v8225, %v12354
    %v12501 = vsel %vm8245, %v8226, %v12356
    %v12502 = vsel %vm8245, %v8227, %v12358
    %v12503 = vsel %vm8245, %v8228, %v12360
    %v12504 = vsel %vm8245, %v8229, %v12362
    %v12505 = vsel %vm8245, %v8230, %v12364
    %v12506 = vsel %vm8245, %v8231, %v12366
    %v12507 = vsel %vm8245, %v8232, %v12368
    %v12508 = vsel %vm8245, %v8233, %v12370
    %v12509 = vsel %vm8245, %v8234, %v12372
    %v12510 = vsel %vm8245, %v8235, %v12374
    %v12511 = vsel %vm8245, %v8236, %v12376
    %v12512 = vsel %vm8245, %v8237, %v12378
    %v12513 = vsel %vm8245, %v8238, %v12380
    %v12514 = vsel %vm8245, %v8239, %v12382
    %v12515 = vsel %vm8245, %v8240, %v12384
    %v12516 = vsel %vm8245, %v8241, %v12386
    %v12517 = vsel %vm8245, %v8242, %v12388
    %v12518 = vsel %vm8245, %v8243, %v12390
    %vm12519 = vcmask 15360
    %12520 = vst.msk [vmem:[%s11] sm:$0xff] %vm12519, %v12455
    %12521 = vst.msk [vmem:[%s11 + $0x8] sm:$0xff] %vm12519, %v12456
    %12522 = vst.msk [vmem:[%s11 + $0x10] sm:$0xff] %vm12519, %v12457
    %12523 = vst.msk [vmem:[%s11 + $0x18] sm:$0xff] %vm12519, %v12458
    %12524 = vst.msk [vmem:[%s11 + $0x20] sm:$0xff] %vm12519, %v12459
    %12525 = vst.msk [vmem:[%s11 + $0x28] sm:$0xff] %vm12519, %v12460
    %12526 = vst.msk [vmem:[%s11 + $0x30] sm:$0xff] %vm12519, %v12461
    %12527 = vst.msk [vmem:[%s11 + $0x38] sm:$0xff] %vm12519, %v12462
    %12528 = vst.msk [vmem:[%s11 + $0x40] sm:$0xff] %vm12519, %v12463
    %12529 = vst.msk [vmem:[%s11 + $0x48] sm:$0xff] %vm12519, %v12464
    %12530 = vst.msk [vmem:[%s11 + $0x50] sm:$0xff] %vm12519, %v12465
    %12531 = vst.msk [vmem:[%s11 + $0x58] sm:$0xff] %vm12519, %v12466
    %12532 = vst.msk [vmem:[%s11 + $0x60] sm:$0xff] %vm12519, %v12467
    %12533 = vst.msk [vmem:[%s11 + $0x68] sm:$0xff] %vm12519, %v12468
    %12534 = vst.msk [vmem:[%s11 + $0x70] sm:$0xff] %vm12519, %v12469
    %12535 = vst.msk [vmem:[%s11 + $0x78] sm:$0xff] %vm12519, %v12470
    %12536 = vst.msk [vmem:[%s11 + $0x80] sm:$0xff] %vm12519, %v12471
    %12537 = vst.msk [vmem:[%s11 + $0x88] sm:$0xff] %vm12519, %v12472
    %12538 = vst.msk [vmem:[%s11 + $0x90] sm:$0xff] %vm12519, %v12473
    %12539 = vst.msk [vmem:[%s11 + $0x98] sm:$0xff] %vm12519, %v12474
    %12540 = vst.msk [vmem:[%s11 + $0xa0] sm:$0xff] %vm12519, %v12475
    %12541 = vst.msk [vmem:[%s11 + $0xa8] sm:$0xff] %vm12519, %v12476
    %12542 = vst.msk [vmem:[%s11 + $0xb0] sm:$0xff] %vm12519, %v12477
    %12543 = vst.msk [vmem:[%s11 + $0xb8] sm:$0xff] %vm12519, %v12478
    %12544 = vst.msk [vmem:[%s11 + $0xc0] sm:$0xff] %vm12519, %v12479
    %12545 = vst.msk [vmem:[%s11 + $0xc8] sm:$0xff] %vm12519, %v12480
    %12546 = vst.msk [vmem:[%s11 + $0xd0] sm:$0xff] %vm12519, %v12481
    %12547 = vst.msk [vmem:[%s11 + $0xd8] sm:$0xff] %vm12519, %v12482
    %12548 = vst.msk [vmem:[%s11 + $0xe0] sm:$0xff] %vm12519, %v12483
    %12549 = vst.msk [vmem:[%s11 + $0xe8] sm:$0xff] %vm12519, %v12484
    %12550 = vst.msk [vmem:[%s11 + $0xf0] sm:$0xff] %vm12519, %v12485
    %12551 = vst.msk [vmem:[%s11 + $0xf8] sm:$0xff] %vm12519, %v12486
    %12552 = vst.msk [vmem:[%s11 + $0x100] sm:$0xff] %vm12519, %v12487
    %12553 = vst.msk [vmem:[%s11 + $0x108] sm:$0xff] %vm12519, %v12488
    %12554 = vst.msk [vmem:[%s11 + $0x110] sm:$0xff] %vm12519, %v12489
    %12555 = vst.msk [vmem:[%s11 + $0x118] sm:$0xff] %vm12519, %v12490
    %12556 = vst.msk [vmem:[%s11 + $0x120] sm:$0xff] %vm12519, %v12491
    %12557 = vst.msk [vmem:[%s11 + $0x128] sm:$0xff] %vm12519, %v12492
    %12558 = vst.msk [vmem:[%s11 + $0x130] sm:$0xff] %vm12519, %v12493
    %12559 = vst.msk [vmem:[%s11 + $0x138] sm:$0xff] %vm12519, %v12494
    %12560 = vst.msk [vmem:[%s11 + $0x140] sm:$0xff] %vm12519, %v12495
    %12561 = vst.msk [vmem:[%s11 + $0x148] sm:$0xff] %vm12519, %v12496
    %12562 = vst.msk [vmem:[%s11 + $0x150] sm:$0xff] %vm12519, %v12497
    %12563 = vst.msk [vmem:[%s11 + $0x158] sm:$0xff] %vm12519, %v12498
    %12564 = vst.msk [vmem:[%s11 + $0x160] sm:$0xff] %vm12519, %v12499
    %12565 = vst.msk [vmem:[%s11 + $0x168] sm:$0xff] %vm12519, %v12500
    %12566 = vst.msk [vmem:[%s11 + $0x170] sm:$0xff] %vm12519, %v12501
    %12567 = vst.msk [vmem:[%s11 + $0x178] sm:$0xff] %vm12519, %v12502
    %12568 = vst.msk [vmem:[%s11 + $0x180] sm:$0xff] %vm12519, %v12503
    %12569 = vst.msk [vmem:[%s11 + $0x188] sm:$0xff] %vm12519, %v12504
    %12570 = vst.msk [vmem:[%s11 + $0x190] sm:$0xff] %vm12519, %v12505
    %12571 = vst.msk [vmem:[%s11 + $0x198] sm:$0xff] %vm12519, %v12506
    %12572 = vst.msk [vmem:[%s11 + $0x1a0] sm:$0xff] %vm12519, %v12507
    %12573 = vst.msk [vmem:[%s11 + $0x1a8] sm:$0xff] %vm12519, %v12508
    %12574 = vst.msk [vmem:[%s11 + $0x1b0] sm:$0xff] %vm12519, %v12509
    %12575 = vst.msk [vmem:[%s11 + $0x1b8] sm:$0xff] %vm12519, %v12510
    %12576 = vst.msk [vmem:[%s11 + $0x1c0] sm:$0xff] %vm12519, %v12511
    %12577 = vst.msk [vmem:[%s11 + $0x1c8] sm:$0xff] %vm12519, %v12512
    %12578 = vst.msk [vmem:[%s11 + $0x1d0] sm:$0xff] %vm12519, %v12513
    %12579 = vst.msk [vmem:[%s11 + $0x1d8] sm:$0xff] %vm12519, %v12514
    %12580 = vst.msk [vmem:[%s11 + $0x1e0] sm:$0xff] %vm12519, %v12515
    %12581 = vst.msk [vmem:[%s11 + $0x1e8] sm:$0xff] %vm12519, %v12516
    %12582 = vst.msk [vmem:[%s11 + $0x1f0] sm:$0xff] %vm12519, %v12517
    %12583 = vst.msk [vmem:[%s11 + $0x1f8] sm:$0xff] %vm12519, %v12518
    // Predicated region
    $region66: #{tpu_custom_call.1} parent=1 // pred_check
      %p12584 = pneg %p102
    $region67: #{tpu_custom_call.1} parent=1 // pred_check_branch
      %12586 = sbr.rel (%p12584) target = $region69
    $region68: #{tpu_custom_call.1} parent=1 // pred_region
      %v12587 = vld [vmem:[#allocation2] sm:$0x3]
      %v12588 = vld [vmem:[#allocation4] sm:$0x1]
      %12590 = vset.pattern.permute.xlu0 0
      %12591 = vperm.xlu0 %12590, %v12588
      %v12592 = vpop.permute.xlu0 %12591
      %v12594 = vlaneseq
      %v12595 = vshrl.u32 %v12594, 7
      %v12596 = vsub.s32 0, %v12595
      %v12597 = vrot.slane %v12592, %v12596
      %v12598 = vrcp.pop %v12597
      %v12599 = vmul.f32 %v12587, %v12598
      %12600 = vst.msk [vmem:[#allocation14] sm:$0x3] %vm9338, %v12599
      %v12601 = vld [vmem:[%s11580] sm:$0x3]
      %v12602 = vld [vmem:[%s11442] sm:$0x1]
      %12604 = vset.pattern.permute.xlu0 0
      %12605 = vperm.xlu0 %12604, %v12602
      %v12606 = vpop.permute.xlu0 %12605
      %v12608 = vlaneseq
      %v12609 = vshrl.u32 %v12608, 7
      %v12610 = vsub.s32 0, %v12609
      %v12611 = vrot.slane %v12606, %v12610
      %v12612 = vrcp.pop %v12611
      %v12613 = vmul.f32 %v12601, %v12612
      %12614 = vst.msk [vmem:[#allocation14 + $0x2] sm:$0x3] %vm9338, %v12613
      %v12616 = vlaneseq
      %v12617 = vshrl.u32 %v12616, 7
      %v12618 = vsub.s32 0, %v12617
      %v12619 = vrot.slane %v12599, %v12618
      %v12620 = vlaneseq
      %v12621 = vshrl.u32 %v12620, 7
      %v12622 = vsub.s32 1, %v12621
      %v12623 = vrot.slane %v12599, %v12622
      %v12627 = vlaneseq
      %v12628 = vshrl.u32 %v12627, 7
      %v12629 = vsub.s32 0, %v12628
      %v12630 = vrot.slane %v12613, %v12629
      %v12631 = vlaneseq
      %v12632 = vshrl.u32 %v12631, 7
      %v12633 = vsub.s32 1, %v12632
      %v12634 = vrot.slane %v12613, %v12633
      %v12637 = vld [vmem:[%s9] sm:$0xf]
      %v12639 = vlaneseq
      %v12640 = vshrl.u32 %v12639, 7
      %v12641 = vsub.s32 0, %v12640
      %v12642 = vrot.slane %v12637, %v12641
      %v12643 = vlaneseq
      %v12644 = vshrl.u32 %v12643, 7
      %v12645 = vsub.s32 1, %v12644
      %v12646 = vrot.slane %v12637, %v12645
      %v12647 = vlaneseq
      %v12648 = vshrl.u32 %v12647, 7
      %v12649 = vsub.s32 2, %v12648
      %v12650 = vrot.slane %v12637, %v12649
      %v12651 = vlaneseq
      %v12652 = vshrl.u32 %v12651, 7
      %v12653 = vsub.s32 3, %v12652
      %v12654 = vrot.slane %v12637, %v12653
      %v12659 = vmul.f32 %v12619, %v12642
      %v12660 = vmul.f32 %v12623, %v12646
      %v12661 = vmul.f32 %v12630, %v12650
      %v12662 = vmul.f32 %v12634, %v12654
      %vm12663 = vcmask 1040384
      %v12664 = vsel %vm12663, %v12659, 0.0
      %v12665 = vsel %vm12663, %v12660, 0.0
      %v12666 = vadd.f32 %v12664, %v12665
      %v12667 = vsel %vm12663, %v12661, 0.0
      %v12668 = vadd.f32 %v12666, %v12667
      %v12669 = vsel %vm12663, %v12662, 0.0
      %v12670 = vadd.f32 %v12668, %v12669
      %12671 = vadd.xlane.f32.xlu0 %v12670
      %v12672 = vpop.xlane.xlu0 %12671
      %v12673 = vld [vmem:[#allocation5] sm:$0x1]
      %v12674 = vadd.f32 %v12672, %v12673
      %12675 = vst.msk [vmem:[#allocation15] sm:$0x1] %vm8717, %v12674
      %v12676 = vmul.f32 %v12674, 1.442695
      %v12677 = vpow.pop %v12676
      %12678 = vst.msk [vmem:[#allocation17] sm:$0x1] %vm8717, %v12677
    $region69: #{tpu_custom_call.1} parent=1 // pred_fallthru
      _
    // Predicated region
    $region70: #{tpu_custom_call.1} parent=1 // pred_check
      _
    $region71: #{tpu_custom_call.1} parent=1 // pred_check_branch
      %12680 = sbr.rel (0) target = $region73
    $region72: #{tpu_custom_call.1} parent=1 // pred_region
      _
    $region73: #{tpu_custom_call.1} parent=1 // pred_fallthru
      _
    // Predicated region
    $region74: #{tpu_custom_call.1} parent=1 // pred_check
      _
    $region75: #{tpu_custom_call.1} parent=1 // pred_check_branch
      %12682 = sbr.rel (0) target = $region77
    $region76: #{tpu_custom_call.1} parent=1 // pred_region
      %s12684 = ssub.s32 64, 64
      %12685 = vsyncadd [#allocation8], %s12684
      %s12687 = sshll.u32 [#allocation14], 4
      %s12688 = int_to_ptr.vmem [resolvable:$true] %s12687
      %12690 = dma.vmem_to_hbm [thread:$0]  %s12688, 64, %s12, [#allocation8]
    $region77: #{tpu_custom_call.1} parent=1 // pred_fallthru
      _
    // Predicated region
    $region78: #{tpu_custom_call.1} parent=1 // pred_check
      _
    $region79: #{tpu_custom_call.1} parent=1 // pred_check_branch
      %12692 = sbr.rel (0) target = $region81
    $region80: #{tpu_custom_call.1} parent=1 // pred_region
      %s12694 = ssub.s32 16, 16
      %12695 = vsyncadd [#allocation16], %s12694
      %s12697 = sshll.u32 [#allocation15], 4
      %s12698 = int_to_ptr.vmem [resolvable:$true] %s12697
      %12700 = dma.vmem_to_hbm [thread:$0]  %s12698, 16, %s13, [#allocation16]
    $region81: #{tpu_custom_call.1} parent=1 // pred_fallthru
      _
    // Predicated region
    $region82: #{tpu_custom_call.1} parent=1 // pred_check
      _
    $region83: #{tpu_custom_call.1} parent=1 // pred_check_branch
      %12702 = sbr.rel (0) target = $region85
    $region84: #{tpu_custom_call.1} parent=1 // pred_region
      %s12704 = ssub.s32 16, 16
      %12705 = vsyncadd [#allocation16], %s12704
      %s12707 = sshll.u32 [#allocation17], 4
      %s12708 = int_to_ptr.vmem [resolvable:$true] %s12707
      %12710 = dma.vmem_to_hbm [thread:$0]  %s12708, 16, %s14, [#allocation16]
    $region85: #{tpu_custom_call.1} parent=1 // pred_fallthru
      _
    // Predicated region
    $region86: #{tpu_custom_call.1} parent=1 // pred_check
      _
    $region87: #{tpu_custom_call.1} parent=1 // pred_check_branch
      %12712 = sbr.rel (0) target = $region89
    $region88: #{tpu_custom_call.1} parent=1 // pred_region
      _
    $region89: #{tpu_custom_call.1} parent=1 // pred_fallthru
      _
    // Predicated region
    $region90: #{tpu_custom_call.1} parent=1 // pred_check
      _
    $region91: #{tpu_custom_call.1} parent=1 // pred_check_branch
      %12714 = sbr.rel (0) target = $region93
    $region92: #{tpu_custom_call.1} parent=1 // pred_region
      %12715 = dma.done [#allocation8], 64
    $region93: #{tpu_custom_call.1} parent=1 // pred_fallthru
      _
    // Predicated region
    $region94: #{tpu_custom_call.1} parent=1 // pred_check
      _
    $region95: #{tpu_custom_call.1} parent=1 // pred_check_branch
      %12717 = sbr.rel (0) target = $region97
    $region96: #{tpu_custom_call.1} parent=1 // pred_region
      %12718 = dma.done [#allocation16], 16
    $region97: #{tpu_custom_call.1} parent=1 // pred_fallthru
      _
    // Predicated region
    $region98: #{tpu_custom_call.1} parent=1 // pred_check
      _
    $region99: #{tpu_custom_call.1} parent=1 // pred_check_branch
      %12720 = sbr.rel (0) target = $region101
    $region100: #{tpu_custom_call.1} parent=1 // pred_region
      %12721 = dma.done [#allocation16], 16
    $region101: #{tpu_custom_call.1} parent=1 // pred_fallthru
      _
    %12722 = vsyncpa [#allocation7], 1
    %12723 = vsyncpa [#allocation10], 1
    %12724 = vsyncpa [#allocation13], 1
    %12725 = vsyncpa [#allocation8], 1
    %12726 = vsyncpa [#allocation16], 1

</llo_original>
